<compile_context>
chip_gen: v5e
topology: v5e:2x2
jax: 0.10.0
libtpu: 0.0.40
codegen_flags: <defaults>
</compile_context>

<pallas_src>
import functools

import jax
import jax.numpy as jnp
import numpy as np
from jax.experimental import pallas as pl
from jax.experimental.pallas import tpu as pltpu

EPS = 1e-5


# ---------------------------------------------------------------------------
# Fused Block kernel: conv1+BN+ReLU -> conv2+BN+ReLU -> (optional) 2x2 maxpool
# ---------------------------------------------------------------------------
def _fused_block_kernel(xcol_ref, w1_ref, s1_ref, b1_ref, w2_ref, s2_ref, b2_ref,
                        *out_and_scratch, H, W, Wp, pool):
    # xcol_ref: (1, H*W, 9*Cin)  pre-built im2col patch of the block input
    # w1_ref:   (9*Cin, C1)      conv1 weight, dense K
    # w2_ref:   (9, C1, C2)      conv2 weight, one (C1, C2) slab per tap
    # s*/b*:    (1, C)           fused BatchNorm (eval) scale / bias
    # o_ref:    (1, H, W, C2)    block output
    # p_ref:    (1, H//2, W//2, C2)  pooled output (only when pool=True)
    # pad_ref:  VMEM scratch holding the zero-padded, flattened conv2 input
    if pool:
        o_ref, p_ref, pad_ref = out_and_scratch
    else:
        o_ref, pad_ref = out_and_scratch

    # ---- conv1 + BN + ReLU: one dense MXU matmul (K = 9*Cin) ----
    y1 = jnp.dot(xcol_ref[0], w1_ref[...], preferred_element_type=jnp.float32)
    y1 = jnp.maximum(y1 * s1_ref[...] + b1_ref[...], 0.0)          # (H*W, C1)

    # ---- build zero-padded flattened conv2 input in VMEM ----
    # Each padded row has Wp = W + 8 + pad_right columns; the data starts at
    # column 8 so every interior store is 8-sublane aligned.  Rows 0 and H+1
    # (and all padding columns) stay zero.
    pad_ref[...] = jnp.zeros_like(pad_ref)
    for h in range(H):
        pad_ref[pl.ds((h + 1) * Wp + 8, W), :] = y1[h * W:(h + 1) * W, :]

    # ---- conv2 + BN + ReLU: 9 shifted contiguous windows, f32 accumulation ----
    M = H * Wp                       # over-computed rows; border cols dropped below
    C2 = w2_ref.shape[-1]
    acc = jnp.zeros((M, C2), jnp.float32)
    for dy in range(3):
        for dx in range(3):
            tap = pad_ref[pl.ds(dy * Wp + dx + 7, M), :]
            acc = acc + jnp.dot(tap, w2_ref[dy * 3 + dx],
                                preferred_element_type=jnp.float32)
    y2 = jnp.maximum(acc * s2_ref[...] + b2_ref[...], 0.0)          # (M, C2)

    # ---- write only the valid rows (no wrapper-side border-drop slice) ----
    rows = [y2[h * Wp:h * Wp + W, :] for h in range(H)]
    for h in range(H):
        o_ref[0, h] = rows[h]

    # ---- fused 2x2 max-pool ----
    if pool:
        H2, W2 = H // 2, W // 2
        # 0/1 selection matrices picking even / odd columns (exact selection).
        kk = jax.lax.broadcasted_iota(jnp.int32, (W2, W), 0)
        jj = jax.lax.broadcasted_iota(jnp.int32, (W2, W), 1)
        sel_even = (jj == 2 * kk).astype(jnp.float32)
        sel_odd = (jj == 2 * kk + 1).astype(jnp.float32)
        for h2 in range(H2):
            rmax = jnp.maximum(rows[2 * h2], rows[2 * h2 + 1])       # (W, C2)
            p_ref[0, h2] = jnp.maximum(
                jnp.dot(sel_even, rmax, preferred_element_type=jnp.float32),
                jnp.dot(sel_odd, rmax, preferred_element_type=jnp.float32))


def fused_block(x, params, pool):
    """x: (N, H, W, Cin) f32 NHWC.  Returns block output (and pooled output)."""
    N, H, W, Cin = x.shape
    C1 = params["w1"].shape[-1]
    C2 = params["w2"].shape[-1]

    # im2col patch for conv1 (wrapper-side, tiny): dense K = 9*Cin contraction.
    xp = jnp.pad(x, ((0, 0), (1, 1), (1, 1), (0, 0)))
    xcol = jnp.concatenate(
        [xp[:, dy:dy + H, dx:dx + W, :] for dy in range(3) for dx in range(3)],
        axis=-1).reshape(N, H * W, 9 * Cin)

    w1f = params["w1"].reshape(9 * Cin, C1).astype(jnp.float32)
    w2f = params["w2"].reshape(9, C1, C2).astype(jnp.float32)
    s1 = params["s1"].reshape(1, C1).astype(jnp.float32)
    b1 = params["b1"].reshape(1, C1).astype(jnp.float32)
    s2 = params["s2"].reshape(1, C2).astype(jnp.float32)
    b2 = params["b2"].reshape(1, C2).astype(jnp.float32)

    pad_right = (-W) % 8
    if pad_right == 0:
        pad_right = 8                 # need >= 1 zero column on the right
    Wp = W + 8 + pad_right            # padded row width (multiple of 8)
    pad_rows = (H + 2) * Wp + 16      # covers the max shifted-window read

    kernel = functools.partial(_fused_block_kernel, H=H, W=W, Wp=Wp, pool=pool)

    in_specs = [
        pl.BlockSpec((1, H * W, 9 * Cin), lambda n: (n, 0, 0)),
        pl.BlockSpec((9 * Cin, C1), lambda n: (0, 0)),
        pl.BlockSpec((1, C1), lambda n: (0, 0)),
        pl.BlockSpec((1, C1), lambda n: (0, 0)),
        pl.BlockSpec((9, C1, C2), lambda n: (0, 0, 0)),
        pl.BlockSpec((1, C2), lambda n: (0, 0)),
        pl.BlockSpec((1, C2), lambda n: (0, 0)),
    ]
    if pool:
        H2, W2 = H // 2, W // 2
        out_shape = (jax.ShapeDtypeStruct((N, H, W, C2), jnp.float32),
                     jax.ShapeDtypeStruct((N, H2, W2, C2), jnp.float32))
        out_specs = (pl.BlockSpec((1, H, W, C2), lambda n: (n, 0, 0, 0)),
                     pl.BlockSpec((1, H2, W2, C2), lambda n: (n, 0, 0, 0)))
    else:
        out_shape = jax.ShapeDtypeStruct((N, H, W, C2), jnp.float32)
        out_specs = pl.BlockSpec((1, H, W, C2), lambda n: (n, 0, 0, 0))

    return pl.pallas_call(
        kernel,
        grid=(N,),
        in_specs=in_specs,
        out_specs=out_specs,
        out_shape=out_shape,
        scratch_shapes=[pltpu.VMEM((pad_rows, C1), jnp.float32)],
        compiler_params=pltpu.CompilerParams(dimension_semantics=("parallel",)),
    )(xcol, w1f, s1, b1, w2f, s2, b2)


# ---------------------------------------------------------------------------
# Module: Block / Encoder
# ---------------------------------------------------------------------------
def init_block_params(key, c_in, c_out):
    ks = jax.random.split(key, 10)

    def bn_affine(k_gamma, k_beta, k_mean, k_var, c):
        gamma = 1.0 + 0.1 * jax.random.normal(k_gamma, (c,), jnp.float32)
        beta = 0.1 * jax.random.normal(k_beta, (c,), jnp.float32)
        mean = 0.1 * jax.random.normal(k_mean, (c,), jnp.float32)
        var = jax.random.uniform(k_var, (c,), jnp.float32, minval=0.5, maxval=1.5)
        scale = gamma / jnp.sqrt(var + EPS)
        bias = beta - mean * scale
        return scale, bias

    w1 = 0.1 * jax.random.normal(ks[0], (3, 3, c_in, c_out), jnp.float32)
    s1, b1 = bn_affine(ks[1], ks[2], ks[3], ks[4], c_out)
    w2 = 0.1 * jax.random.normal(ks[5], (3, 3, c_out, c_out), jnp.float32)
    s2, b2 = bn_affine(ks[6], ks[7], ks[8], ks[9], c_out)
    return dict(w1=w1, s1=s1, b1=b1, w2=w2, s2=s2, b2=b2)


def encoder_forward(x_nchw, params):
    x = jnp.transpose(x_nchw, (0, 2, 3, 1))              # NCHW -> NHWC
    feats = []
    for p in params["enc_blocks"]:
        o, x = fused_block(x, p, pool=True)               # block + fused 2x2 pool
        feats.append(jnp.transpose(o, (0, 3, 1, 2)))       # features in NCHW
    x = fused_block(x, params["last_block"], pool=False)
    return jnp.transpose(x, (0, 3, 1, 2)), feats


# ---------------------------------------------------------------------------
# Plain-JAX reference (correctness check only)
# ---------------------------------------------------------------------------
def _ref_conv_bn_relu(x, w, scale, bias):
    y = jax.lax.conv_general_dilated(
        x, w, window_strides=(1, 1), padding=((1, 1), (1, 1)),
        dimension_numbers=("NHWC", "HWIO", "NHWC"))
    return jnp.maximum(y * scale + bias, 0.0)


def _ref_block(x, p):
    x = _ref_conv_bn_relu(x, p["w1"], p["s1"], p["b1"])
    x = _ref_conv_bn_relu(x, p["w2"], p["s2"], p["b2"])
    return x


def _ref_pool(x):
    N, H, W, C = x.shape
    return jnp.max(x.reshape(N, H // 2, 2, W // 2, 2, C), axis=(2, 4))


def _ref_encoder(x_nchw, params):
    x = jnp.transpose(x_nchw, (0, 2, 3, 1))
    feats = []
    for p in params["enc_blocks"]:
        x = _ref_block(x, p)
        feats.append(jnp.transpose(x, (0, 3, 1, 2)))
        x = _ref_pool(x)
    x = _ref_block(x, params["last_block"])
    return jnp.transpose(x, (0, 3, 1, 2)), feats


if __name__ == "__main__":
    # Small config consistent with Encoder(chs=...): 2 enc blocks + last block.
    chs = (4, 8, 16, 32)
    key = jax.random.PRNGKey(0)
    k_x, *k_blocks = jax.random.split(key, len(chs))
    params = {
        "enc_blocks": [init_block_params(k_blocks[i], chs[i], chs[i + 1])
                       for i in range(len(chs) - 2)],
        "last_block": init_block_params(k_blocks[-1], chs[-2], chs[-1]),
    }

    # Input in PyTorch NCHW layout: (batch=2, channels=4, 16, 16)
    x = jax.random.normal(k_x, (2, chs[0], 16, 16), jnp.float32)

    out, feats = jax.block_until_ready(jax.jit(encoder_forward)(x, params))

    # Verify against a plain-JAX reference.  Both paths use default (bf16-pass)
    # MXU precision, so tolerances are loosened accordingly.
    ref_out, ref_feats = _ref_encoder(x, params)
    np.testing.assert_allclose(np.asarray(out), np.asarray(ref_out),
                               rtol=5e-2, atol=5e-2)
    for a, b in zip(feats, ref_feats):
        np.testing.assert_allclose(np.asarray(a), np.asarray(b),
                                   rtol=5e-2, atol=5e-2)

    assert out.shape == (2, chs[-1], 4, 4)
    assert [tuple(f.shape) for f in feats] == [(2, chs[1], 16, 16),
                                               (2, chs[2], 8, 8)]
    print("KERNEL_OK")
</pallas_src>

<mosaic_0001>
module attributes {stable_mosaic.version = 11 : i64} {
  func.func @_fused_block_kernel(%arg0: i32, %arg1: memref<1x256x36xf32, #tpu.memory_space<vmem>>, %arg2: memref<36x8xf32, #tpu.memory_space<vmem>>, %arg3: memref<1x8xf32, #tpu.memory_space<vmem>>, %arg4: memref<1x8xf32, #tpu.memory_space<vmem>>, %arg5: memref<9x8x8xf32, #tpu.memory_space<vmem>>, %arg6: memref<1x8xf32, #tpu.memory_space<vmem>>, %arg7: memref<1x8xf32, #tpu.memory_space<vmem>>, %arg8: memref<1x16x16x8xf32, #tpu.memory_space<vmem>>, %arg9: memref<1x8x8x8xf32, #tpu.memory_space<vmem>>, %arg10: memref<592x8xf32, #tpu.memory_space<vmem>>) attributes {dimension_semantics = [#tpu.dimension_semantics<parallel>], iteration_bounds = array<i64: 2>, scalar_prefetch = 0 : i64, scratch_operands = 1 : i64, tpu.core_type = #tpu.core_type<tc>, window_params = [{transform_indices = @transform_0, window_bounds = array<i64: 1, 256, 36>}, {pipeline_mode = #tpu.pipeline_mode<synchronous>, transform_indices = @transform_1, window_bounds = array<i64: 36, 8>}, {pipeline_mode = #tpu.pipeline_mode<synchronous>, transform_indices = @transform_2, window_bounds = array<i64: 1, 8>}, {pipeline_mode = #tpu.pipeline_mode<synchronous>, transform_indices = @transform_3, window_bounds = array<i64: 1, 8>}, {pipeline_mode = #tpu.pipeline_mode<synchronous>, transform_indices = @transform_4, window_bounds = array<i64: 9, 8, 8>}, {pipeline_mode = #tpu.pipeline_mode<synchronous>, transform_indices = @transform_5, window_bounds = array<i64: 1, 8>}, {pipeline_mode = #tpu.pipeline_mode<synchronous>, transform_indices = @transform_6, window_bounds = array<i64: 1, 8>}, {transform_indices = @transform_7, window_bounds = array<i64: 1, 16, 16, 8>}, {transform_indices = @transform_8, window_bounds = array<i64: 1, 8, 8, 8>}]} {
    %c0 = arith.constant 0 : index
    %c0_0 = arith.constant 0 : index
    %c0_1 = arith.constant 0 : index
    %0 = vector.load %arg1[%c0, %c0_0, %c0_1] : memref<1x256x36xf32, #tpu.memory_space<vmem>>, vector<1x256x36xf32>
    %1 = vector.shape_cast %0 : vector<1x256x36xf32> to vector<256x36xf32>
    %c0_2 = arith.constant 0 : index
    %c0_3 = arith.constant 0 : index
    %2 = vector.load %arg2[%c0_2, %c0_3] : memref<36x8xf32, #tpu.memory_space<vmem>>, vector<36x8xf32>
    %cst = arith.constant dense<0.000000e+00> : vector<256x8xf32>
    %3 = tpu.matmul %1, %2, %cst {dimension_numbers = #tpu.dot_dimension_numbers<[1], [0], [0], [1], [0, 0, 1, 1], [], []>} : vector<256x36xf32>, vector<36x8xf32>, vector<256x8xf32> -> vector<256x8xf32>
    %c0_4 = arith.constant 0 : index
    %c0_5 = arith.constant 0 : index
    %4 = vector.load %arg3[%c0_4, %c0_5] : memref<1x8xf32, #tpu.memory_space<vmem>>, vector<1x8xf32>
    %5 = vector.broadcast %4 : vector<1x8xf32> to vector<256x8xf32>
    %6 = arith.mulf %3, %5 : vector<256x8xf32>
    %c0_6 = arith.constant 0 : index
    %c0_7 = arith.constant 0 : index
    %7 = vector.load %arg4[%c0_6, %c0_7] : memref<1x8xf32, #tpu.memory_space<vmem>>, vector<1x8xf32>
    %8 = vector.broadcast %7 : vector<1x8xf32> to vector<256x8xf32>
    %9 = arith.addf %6, %8 : vector<256x8xf32>
    %cst_8 = arith.constant 0.000000e+00 : f32
    %10 = vector.broadcast %cst_8 : f32 to vector<256x8xf32>
    %11 = arith.maximumf %9, %10 : vector<256x8xf32>
    %cst_9 = arith.constant 0.000000e+00 : f32
    %12 = vector.broadcast %cst_9 : f32 to vector<592x8xf32>
    %c0_10 = arith.constant 0 : index
    %c0_11 = arith.constant 0 : index
    %13 = vector.load %arg10[%c0_10, %c0_11] : memref<592x8xf32, #tpu.memory_space<vmem>>, vector<592x8xf32>
    tpu.vector_store %arg10[%c0_10, %c0_11], %12 {strides = array<i32>} : memref<592x8xf32, #tpu.memory_space<vmem>>, vector<592x8xf32>,
    %14 = vector.extract_strided_slice %11 {offsets = [0, 0], sizes = [16, 8], strides = [1, 1]} : vector<256x8xf32> to vector<16x8xf32>
    %c40 = arith.constant 40 : index
    %c0_12 = arith.constant 0 : index
    %15 = vector.load %arg10[%c40, %c0_12] : memref<592x8xf32, #tpu.memory_space<vmem>>, vector<16x8xf32>
    tpu.vector_store %arg10[%c40, %c0_12], %14 {strides = array<i32>} : memref<592x8xf32, #tpu.memory_space<vmem>>, vector<16x8xf32>,
    %16 = vector.extract_strided_slice %11 {offsets = [16, 0], sizes = [16, 8], strides = [1, 1]} : vector<256x8xf32> to vector<16x8xf32>
    %c72 = arith.constant 72 : index
    %c0_13 = arith.constant 0 : index
    %17 = vector.load %arg10[%c72, %c0_13] : memref<592x8xf32, #tpu.memory_space<vmem>>, vector<16x8xf32>
    tpu.vector_store %arg10[%c72, %c0_13], %16 {strides = array<i32>} : memref<592x8xf32, #tpu.memory_space<vmem>>, vector<16x8xf32>,
    %18 = vector.extract_strided_slice %11 {offsets = [32, 0], sizes = [16, 8], strides = [1, 1]} : vector<256x8xf32> to vector<16x8xf32>
    %c104 = arith.constant 104 : index
    %c0_14 = arith.constant 0 : index
    %19 = vector.load %arg10[%c104, %c0_14] : memref<592x8xf32, #tpu.memory_space<vmem>>, vector<16x8xf32>
    tpu.vector_store %arg10[%c104, %c0_14], %18 {strides = array<i32>} : memref<592x8xf32, #tpu.memory_space<vmem>>, vector<16x8xf32>,
    %20 = vector.extract_strided_slice %11 {offsets = [48, 0], sizes = [16, 8], strides = [1, 1]} : vector<256x8xf32> to vector<16x8xf32>
    %c136 = arith.constant 136 : index
    %c0_15 = arith.constant 0 : index
    %21 = vector.load %arg10[%c136, %c0_15] : memref<592x8xf32, #tpu.memory_space<vmem>>, vector<16x8xf32>
    tpu.vector_store %arg10[%c136, %c0_15], %20 {strides = array<i32>} : memref<592x8xf32, #tpu.memory_space<vmem>>, vector<16x8xf32>,
    %22 = vector.extract_strided_slice %11 {offsets = [64, 0], sizes = [16, 8], strides = [1, 1]} : vector<256x8xf32> to vector<16x8xf32>
    %c168 = arith.constant 168 : index
    %c0_16 = arith.constant 0 : index
    %23 = vector.load %arg10[%c168, %c0_16] : memref<592x8xf32, #tpu.memory_space<vmem>>, vector<16x8xf32>
    tpu.vector_store %arg10[%c168, %c0_16], %22 {strides = array<i32>} : memref<592x8xf32, #tpu.memory_space<vmem>>, vector<16x8xf32>,
    %24 = vector.extract_strided_slice %11 {offsets = [80, 0], sizes = [16, 8], strides = [1, 1]} : vector<256x8xf32> to vector<16x8xf32>
    %c200 = arith.constant 200 : index
    %c0_17 = arith.constant 0 : index
    %25 = vector.load %arg10[%c200, %c0_17] : memref<592x8xf32, #tpu.memory_space<vmem>>, vector<16x8xf32>
    tpu.vector_store %arg10[%c200, %c0_17], %24 {strides = array<i32>} : memref<592x8xf32, #tpu.memory_space<vmem>>, vector<16x8xf32>,
    %26 = vector.extract_strided_slice %11 {offsets = [96, 0], sizes = [16, 8], strides = [1, 1]} : vector<256x8xf32> to vector<16x8xf32>
    %c232 = arith.constant 232 : index
    %c0_18 = arith.constant 0 : index
    %27 = vector.load %arg10[%c232, %c0_18] : memref<592x8xf32, #tpu.memory_space<vmem>>, vector<16x8xf32>
    tpu.vector_store %arg10[%c232, %c0_18], %26 {strides = array<i32>} : memref<592x8xf32, #tpu.memory_space<vmem>>, vector<16x8xf32>,
    %28 = vector.extract_strided_slice %11 {offsets = [112, 0], sizes = [16, 8], strides = [1, 1]} : vector<256x8xf32> to vector<16x8xf32>
    %c264 = arith.constant 264 : index
    %c0_19 = arith.constant 0 : index
    %29 = vector.load %arg10[%c264, %c0_19] : memref<592x8xf32, #tpu.memory_space<vmem>>, vector<16x8xf32>
    tpu.vector_store %arg10[%c264, %c0_19], %28 {strides = array<i32>} : memref<592x8xf32, #tpu.memory_space<vmem>>, vector<16x8xf32>,
    %30 = vector.extract_strided_slice %11 {offsets = [128, 0], sizes = [16, 8], strides = [1, 1]} : vector<256x8xf32> to vector<16x8xf32>
    %c296 = arith.constant 296 : index
    %c0_20 = arith.constant 0 : index
    %31 = vector.load %arg10[%c296, %c0_20] : memref<592x8xf32, #tpu.memory_space<vmem>>, vector<16x8xf32>
    tpu.vector_store %arg10[%c296, %c0_20], %30 {strides = array<i32>} : memref<592x8xf32, #tpu.memory_space<vmem>>, vector<16x8xf32>,
    %32 = vector.extract_strided_slice %11 {offsets = [144, 0], sizes = [16, 8], strides = [1, 1]} : vector<256x8xf32> to vector<16x8xf32>
    %c328 = arith.constant 328 : index
    %c0_21 = arith.constant 0 : index
    %33 = vector.load %arg10[%c328, %c0_21] : memref<592x8xf32, #tpu.memory_space<vmem>>, vector<16x8xf32>
    tpu.vector_store %arg10[%c328, %c0_21], %32 {strides = array<i32>} : memref<592x8xf32, #tpu.memory_space<vmem>>, vector<16x8xf32>,
    %34 = vector.extract_strided_slice %11 {offsets = [160, 0], sizes = [16, 8], strides = [1, 1]} : vector<256x8xf32> to vector<16x8xf32>
    %c360 = arith.constant 360 : index
    %c0_22 = arith.constant 0 : index
    %35 = vector.load %arg10[%c360, %c0_22] : memref<592x8xf32, #tpu.memory_space<vmem>>, vector<16x8xf32>
    tpu.vector_store %arg10[%c360, %c0_22], %34 {strides = array<i32>} : memref<592x8xf32, #tpu.memory_space<vmem>>, vector<16x8xf32>,
    %36 = vector.extract_strided_slice %11 {offsets = [176, 0], sizes = [16, 8], strides = [1, 1]} : vector<256x8xf32> to vector<16x8xf32>
    %c392 = arith.constant 392 : index
    %c0_23 = arith.constant 0 : index
    %37 = vector.load %arg10[%c392, %c0_23] : memref<592x8xf32, #tpu.memory_space<vmem>>, vector<16x8xf32>
    tpu.vector_store %arg10[%c392, %c0_23], %36 {strides = array<i32>} : memref<592x8xf32, #tpu.memory_space<vmem>>, vector<16x8xf32>,
    %38 = vector.extract_strided_slice %11 {offsets = [192, 0], sizes = [16, 8], strides = [1, 1]} : vector<256x8xf32> to vector<16x8xf32>
    %c424 = arith.constant 424 : index
    %c0_24 = arith.constant 0 : index
    %39 = vector.load %arg10[%c424, %c0_24] : memref<592x8xf32, #tpu.memory_space<vmem>>, vector<16x8xf32>
    tpu.vector_store %arg10[%c424, %c0_24], %38 {strides = array<i32>} : memref<592x8xf32, #tpu.memory_space<vmem>>, vector<16x8xf32>,
    %40 = vector.extract_strided_slice %11 {offsets = [208, 0], sizes = [16, 8], strides = [1, 1]} : vector<256x8xf32> to vector<16x8xf32>
    %c456 = arith.constant 456 : index
    %c0_25 = arith.constant 0 : index
    %41 = vector.load %arg10[%c456, %c0_25] : memref<592x8xf32, #tpu.memory_space<vmem>>, vector<16x8xf32>
    tpu.vector_store %arg10[%c456, %c0_25], %40 {strides = array<i32>} : memref<592x8xf32, #tpu.memory_space<vmem>>, vector<16x8xf32>,
    %42 = vector.extract_strided_slice %11 {offsets = [224, 0], sizes = [16, 8], strides = [1, 1]} : vector<256x8xf32> to vector<16x8xf32>
    %c488 = arith.constant 488 : index
    %c0_26 = arith.constant 0 : index
    %43 = vector.load %arg10[%c488, %c0_26] : memref<592x8xf32, #tpu.memory_space<vmem>>, vector<16x8xf32>
    tpu.vector_store %arg10[%c488, %c0_26], %42 {strides = array<i32>} : memref<592x8xf32, #tpu.memory_space<vmem>>, vector<16x8xf32>,
    %44 = vector.extract_strided_slice %11 {offsets = [240, 0], sizes = [16, 8], strides = [1, 1]} : vector<256x8xf32> to vector<16x8xf32>
    %c520 = arith.constant 520 : index
    %c0_27 = arith.constant 0 : index
    %45 = vector.load %arg10[%c520, %c0_27] : memref<592x8xf32, #tpu.memory_space<vmem>>, vector<16x8xf32>
    tpu.vector_store %arg10[%c520, %c0_27], %44 {strides = array<i32>} : memref<592x8xf32, #tpu.memory_space<vmem>>, vector<16x8xf32>,
    %cst_28 = arith.constant 0.000000e+00 : f32
    %46 = vector.broadcast %cst_28 : f32 to vector<512x8xf32>
    %c7 = arith.constant 7 : index
    %c0_29 = arith.constant 0 : index
    %47 = vector.load %arg10[%c7, %c0_29] : memref<592x8xf32, #tpu.memory_space<vmem>>, vector<512x8xf32>
    %c0_30 = arith.constant 0 : index
    %c0_31 = arith.constant 0 : index
    %c0_32 = arith.constant 0 : index
    %48 = vector.load %arg5[%c0_30, %c0_31, %c0_32] : memref<9x8x8xf32, #tpu.memory_space<vmem>>, vector<1x8x8xf32>
    %49 = vector.shape_cast %48 : vector<1x8x8xf32> to vector<8x8xf32>
    %cst_33 = arith.constant dense<0.000000e+00> : vector<512x8xf32>
    %50 = tpu.matmul %47, %49, %cst_33 {dimension_numbers = #tpu.dot_dimension_numbers<[1], [0], [0], [1], [0, 0, 1, 1], [], []>} : vector<512x8xf32>, vector<8x8xf32>, vector<512x8xf32> -> vector<512x8xf32>
    %51 = arith.addf %46, %50 : vector<512x8xf32>
    %c8 = arith.constant 8 : index
    %c0_34 = arith.constant 0 : index
    %52 = vector.load %arg10[%c8, %c0_34] : memref<592x8xf32, #tpu.memory_space<vmem>>, vector<512x8xf32>
    %c1 = arith.constant 1 : index
    %c0_35 = arith.constant 0 : index
    %c0_36 = arith.constant 0 : index
    %53 = vector.load %arg5[%c1, %c0_35, %c0_36] : memref<9x8x8xf32, #tpu.memory_space<vmem>>, vector<1x8x8xf32>
    %54 = vector.shape_cast %53 : vector<1x8x8xf32> to vector<8x8xf32>
    %cst_37 = arith.constant dense<0.000000e+00> : vector<512x8xf32>
    %55 = tpu.matmul %52, %54, %cst_37 {dimension_numbers = #tpu.dot_dimension_numbers<[1], [0], [0], [1], [0, 0, 1, 1], [], []>} : vector<512x8xf32>, vector<8x8xf32>, vector<512x8xf32> -> vector<512x8xf32>
    %56 = arith.addf %51, %55 : vector<512x8xf32>
    %c9 = arith.constant 9 : index
    %c0_38 = arith.constant 0 : index
    %57 = vector.load %arg10[%c9, %c0_38] : memref<592x8xf32, #tpu.memory_space<vmem>>, vector<512x8xf32>
    %c2 = arith.constant 2 : index
    %c0_39 = arith.constant 0 : index
    %c0_40 = arith.constant 0 : index
    %58 = vector.load %arg5[%c2, %c0_39, %c0_40] : memref<9x8x8xf32, #tpu.memory_space<vmem>>, vector<1x8x8xf32>
    %59 = vector.shape_cast %58 : vector<1x8x8xf32> to vector<8x8xf32>
    %cst_41 = arith.constant dense<0.000000e+00> : vector<512x8xf32>
    %60 = tpu.matmul %57, %59, %cst_41 {dimension_numbers = #tpu.dot_dimension_numbers<[1], [0], [0], [1], [0, 0, 1, 1], [], []>} : vector<512x8xf32>, vector<8x8xf32>, vector<512x8xf32> -> vector<512x8xf32>
    %61 = arith.addf %56, %60 : vector<512x8xf32>
    %c39 = arith.constant 39 : index
    %c0_42 = arith.constant 0 : index
    %62 = vector.load %arg10[%c39, %c0_42] : memref<592x8xf32, #tpu.memory_space<vmem>>, vector<512x8xf32>
    %c3 = arith.constant 3 : index
    %c0_43 = arith.constant 0 : index
    %c0_44 = arith.constant 0 : index
    %63 = vector.load %arg5[%c3, %c0_43, %c0_44] : memref<9x8x8xf32, #tpu.memory_space<vmem>>, vector<1x8x8xf32>
    %64 = vector.shape_cast %63 : vector<1x8x8xf32> to vector<8x8xf32>
    %cst_45 = arith.constant dense<0.000000e+00> : vector<512x8xf32>
    %65 = tpu.matmul %62, %64, %cst_45 {dimension_numbers = #tpu.dot_dimension_numbers<[1], [0], [0], [1], [0, 0, 1, 1], [], []>} : vector<512x8xf32>, vector<8x8xf32>, vector<512x8xf32> -> vector<512x8xf32>
    %66 = arith.addf %61, %65 : vector<512x8xf32>
    %c40_46 = arith.constant 40 : index
    %c0_47 = arith.constant 0 : index
    %67 = vector.load %arg10[%c40_46, %c0_47] : memref<592x8xf32, #tpu.memory_space<vmem>>, vector<512x8xf32>
    %c4 = arith.constant 4 : index
    %c0_48 = arith.constant 0 : index
    %c0_49 = arith.constant 0 : index
    %68 = vector.load %arg5[%c4, %c0_48, %c0_49] : memref<9x8x8xf32, #tpu.memory_space<vmem>>, vector<1x8x8xf32>
    %69 = vector.shape_cast %68 : vector<1x8x8xf32> to vector<8x8xf32>
    %cst_50 = arith.constant dense<0.000000e+00> : vector<512x8xf32>
    %70 = tpu.matmul %67, %69, %cst_50 {dimension_numbers = #tpu.dot_dimension_numbers<[1], [0], [0], [1], [0, 0, 1, 1], [], []>} : vector<512x8xf32>, vector<8x8xf32>, vector<512x8xf32> -> vector<512x8xf32>
    %71 = arith.addf %66, %70 : vector<512x8xf32>
    %c41 = arith.constant 41 : index
    %c0_51 = arith.constant 0 : index
    %72 = vector.load %arg10[%c41, %c0_51] : memref<592x8xf32, #tpu.memory_space<vmem>>, vector<512x8xf32>
    %c5 = arith.constant 5 : index
    %c0_52 = arith.constant 0 : index
    %c0_53 = arith.constant 0 : index
    %73 = vector.load %arg5[%c5, %c0_52, %c0_53] : memref<9x8x8xf32, #tpu.memory_space<vmem>>, vector<1x8x8xf32>
    %74 = vector.shape_cast %73 : vector<1x8x8xf32> to vector<8x8xf32>
    %cst_54 = arith.constant dense<0.000000e+00> : vector<512x8xf32>
    %75 = tpu.matmul %72, %74, %cst_54 {dimension_numbers = #tpu.dot_dimension_numbers<[1], [0], [0], [1], [0, 0, 1, 1], [], []>} : vector<512x8xf32>, vector<8x8xf32>, vector<512x8xf32> -> vector<512x8xf32>
    %76 = arith.addf %71, %75 : vector<512x8xf32>
    %c71 = arith.constant 71 : index
    %c0_55 = arith.constant 0 : index
    %77 = vector.load %arg10[%c71, %c0_55] : memref<592x8xf32, #tpu.memory_space<vmem>>, vector<512x8xf32>
    %c6 = arith.constant 6 : index
    %c0_56 = arith.constant 0 : index
    %c0_57 = arith.constant 0 : index
    %78 = vector.load %arg5[%c6, %c0_56, %c0_57] : memref<9x8x8xf32, #tpu.memory_space<vmem>>, vector<1x8x8xf32>
    %79 = vector.shape_cast %78 : vector<1x8x8xf32> to vector<8x8xf32>
    %cst_58 = arith.constant dense<0.000000e+00> : vector<512x8xf32>
    %80 = tpu.matmul %77, %79, %cst_58 {dimension_numbers = #tpu.dot_dimension_numbers<[1], [0], [0], [1], [0, 0, 1, 1], [], []>} : vector<512x8xf32>, vector<8x8xf32>, vector<512x8xf32> -> vector<512x8xf32>
    %81 = arith.addf %76, %80 : vector<512x8xf32>
    %c72_59 = arith.constant 72 : index
    %c0_60 = arith.constant 0 : index
    %82 = vector.load %arg10[%c72_59, %c0_60] : memref<592x8xf32, #tpu.memory_space<vmem>>, vector<512x8xf32>
    %c7_61 = arith.constant 7 : index
    %c0_62 = arith.constant 0 : index
    %c0_63 = arith.constant 0 : index
    %83 = vector.load %arg5[%c7_61, %c0_62, %c0_63] : memref<9x8x8xf32, #tpu.memory_space<vmem>>, vector<1x8x8xf32>
    %84 = vector.shape_cast %83 : vector<1x8x8xf32> to vector<8x8xf32>
    %cst_64 = arith.constant dense<0.000000e+00> : vector<512x8xf32>
    %85 = tpu.matmul %82, %84, %cst_64 {dimension_numbers = #tpu.dot_dimension_numbers<[1], [0], [0], [1], [0, 0, 1, 1], [], []>} : vector<512x8xf32>, vector<8x8xf32>, vector<512x8xf32> -> vector<512x8xf32>
    %86 = arith.addf %81, %85 : vector<512x8xf32>
    %c73 = arith.constant 73 : index
    %c0_65 = arith.constant 0 : index
    %87 = vector.load %arg10[%c73, %c0_65] : memref<592x8xf32, #tpu.memory_space<vmem>>, vector<512x8xf32>
    %c8_66 = arith.constant 8 : index
    %c0_67 = arith.constant 0 : index
    %c0_68 = arith.constant 0 : index
    %88 = vector.load %arg5[%c8_66, %c0_67, %c0_68] : memref<9x8x8xf32, #tpu.memory_space<vmem>>, vector<1x8x8xf32>
    %89 = vector.shape_cast %88 : vector<1x8x8xf32> to vector<8x8xf32>
    %cst_69 = arith.constant dense<0.000000e+00> : vector<512x8xf32>
    %90 = tpu.matmul %87, %89, %cst_69 {dimension_numbers = #tpu.dot_dimension_numbers<[1], [0], [0], [1], [0, 0, 1, 1], [], []>} : vector<512x8xf32>, vector<8x8xf32>, vector<512x8xf32> -> vector<512x8xf32>
    %91 = arith.addf %86, %90 : vector<512x8xf32>
    %c0_70 = arith.constant 0 : index
    %c0_71 = arith.constant 0 : index
    %92 = vector.load %arg6[%c0_70, %c0_71] : memref<1x8xf32, #tpu.memory_space<vmem>>, vector<1x8xf32>
    %93 = vector.broadcast %92 : vector<1x8xf32> to vector<512x8xf32>
    %94 = arith.mulf %91, %93 : vector<512x8xf32>
    %c0_72 = arith.constant 0 : index
    %c0_73 = arith.constant 0 : index
    %95 = vector.load %arg7[%c0_72, %c0_73] : memref<1x8xf32, #tpu.memory_space<vmem>>, vector<1x8xf32>
    %96 = vector.broadcast %95 : vector<1x8xf32> to vector<512x8xf32>
    %97 = arith.addf %94, %96 : vector<512x8xf32>
    %cst_74 = arith.constant 0.000000e+00 : f32
    %98 = vector.broadcast %cst_74 : f32 to vector<512x8xf32>
    %99 = arith.maximumf %97, %98 : vector<512x8xf32>
    %100 = vector.extract_strided_slice %99 {offsets = [0, 0], sizes = [16, 8], strides = [1, 1]} : vector<512x8xf32> to vector<16x8xf32>
    %101 = vector.extract_strided_slice %99 {offsets = [32, 0], sizes = [16, 8], strides = [1, 1]} : vector<512x8xf32> to vector<16x8xf32>
    %102 = vector.extract_strided_slice %99 {offsets = [64, 0], sizes = [16, 8], strides = [1, 1]} : vector<512x8xf32> to vector<16x8xf32>
    %103 = vector.extract_strided_slice %99 {offsets = [96, 0], sizes = [16, 8], strides = [1, 1]} : vector<512x8xf32> to vector<16x8xf32>
    %104 = vector.extract_strided_slice %99 {offsets = [128, 0], sizes = [16, 8], strides = [1, 1]} : vector<512x8xf32> to vector<16x8xf32>
    %105 = vector.extract_strided_slice %99 {offsets = [160, 0], sizes = [16, 8], strides = [1, 1]} : vector<512x8xf32> to vector<16x8xf32>
    %106 = vector.extract_strided_slice %99 {offsets = [192, 0], sizes = [16, 8], strides = [1, 1]} : vector<512x8xf32> to vector<16x8xf32>
    %107 = vector.extract_strided_slice %99 {offsets = [224, 0], sizes = [16, 8], strides = [1, 1]} : vector<512x8xf32> to vector<16x8xf32>
    %108 = vector.extract_strided_slice %99 {offsets = [256, 0], sizes = [16, 8], strides = [1, 1]} : vector<512x8xf32> to vector<16x8xf32>
    %109 = vector.extract_strided_slice %99 {offsets = [288, 0], sizes = [16, 8], strides = [1, 1]} : vector<512x8xf32> to vector<16x8xf32>
    %110 = vector.extract_strided_slice %99 {offsets = [320, 0], sizes = [16, 8], strides = [1, 1]} : vector<512x8xf32> to vector<16x8xf32>
    %111 = vector.extract_strided_slice %99 {offsets = [352, 0], sizes = [16, 8], strides = [1, 1]} : vector<512x8xf32> to vector<16x8xf32>
    %112 = vector.extract_strided_slice %99 {offsets = [384, 0], sizes = [16, 8], strides = [1, 1]} : vector<512x8xf32> to vector<16x8xf32>
    %113 = vector.extract_strided_slice %99 {offsets = [416, 0], sizes = [16, 8], strides = [1, 1]} : vector<512x8xf32> to vector<16x8xf32>
    %114 = vector.extract_strided_slice %99 {offsets = [448, 0], sizes = [16, 8], strides = [1, 1]} : vector<512x8xf32> to vector<16x8xf32>
    %115 = vector.extract_strided_slice %99 {offsets = [480, 0], sizes = [16, 8], strides = [1, 1]} : vector<512x8xf32> to vector<16x8xf32>
    %c0_75 = arith.constant 0 : index
    %c0_76 = arith.constant 0 : index
    %c0_77 = arith.constant 0 : index
    %c0_78 = arith.constant 0 : index
    %116 = vector.load %arg8[%c0_75, %c0_76, %c0_77, %c0_78] : memref<1x16x16x8xf32, #tpu.memory_space<vmem>>, vector<1x1x16x8xf32>
    %117 = vector.shape_cast %116 : vector<1x1x16x8xf32> to vector<16x8xf32>
    %118 = vector.shape_cast %100 : vector<16x8xf32> to vector<1x1x16x8xf32>
    tpu.vector_store %arg8[%c0_75, %c0_76, %c0_77, %c0_78], %118 {strides = array<i32>} : memref<1x16x16x8xf32, #tpu.memory_space<vmem>>, vector<1x1x16x8xf32>,
    %c0_79 = arith.constant 0 : index
    %c1_80 = arith.constant 1 : index
    %c0_81 = arith.constant 0 : index
    %c0_82 = arith.constant 0 : index
    %119 = vector.load %arg8[%c0_79, %c1_80, %c0_81, %c0_82] : memref<1x16x16x8xf32, #tpu.memory_space<vmem>>, vector<1x1x16x8xf32>
    %120 = vector.shape_cast %119 : vector<1x1x16x8xf32> to vector<16x8xf32>
    %121 = vector.shape_cast %101 : vector<16x8xf32> to vector<1x1x16x8xf32>
    tpu.vector_store %arg8[%c0_79, %c1_80, %c0_81, %c0_82], %121 {strides = array<i32>} : memref<1x16x16x8xf32, #tpu.memory_space<vmem>>, vector<1x1x16x8xf32>,
    %c0_83 = arith.constant 0 : index
    %c2_84 = arith.constant 2 : index
    %c0_85 = arith.constant 0 : index
    %c0_86 = arith.constant 0 : index
    %122 = vector.load %arg8[%c0_83, %c2_84, %c0_85, %c0_86] : memref<1x16x16x8xf32, #tpu.memory_space<vmem>>, vector<1x1x16x8xf32>
    %123 = vector.shape_cast %122 : vector<1x1x16x8xf32> to vector<16x8xf32>
    %124 = vector.shape_cast %102 : vector<16x8xf32> to vector<1x1x16x8xf32>
    tpu.vector_store %arg8[%c0_83, %c2_84, %c0_85, %c0_86], %124 {strides = array<i32>} : memref<1x16x16x8xf32, #tpu.memory_space<vmem>>, vector<1x1x16x8xf32>,
    %c0_87 = arith.constant 0 : index
    %c3_88 = arith.constant 3 : index
    %c0_89 = arith.constant 0 : index
    %c0_90 = arith.constant 0 : index
    %125 = vector.load %arg8[%c0_87, %c3_88, %c0_89, %c0_90] : memref<1x16x16x8xf32, #tpu.memory_space<vmem>>, vector<1x1x16x8xf32>
    %126 = vector.shape_cast %125 : vector<1x1x16x8xf32> to vector<16x8xf32>
    %127 = vector.shape_cast %103 : vector<16x8xf32> to vector<1x1x16x8xf32>
    tpu.vector_store %arg8[%c0_87, %c3_88, %c0_89, %c0_90], %127 {strides = array<i32>} : memref<1x16x16x8xf32, #tpu.memory_space<vmem>>, vector<1x1x16x8xf32>,
    %c0_91 = arith.constant 0 : index
    %c4_92 = arith.constant 4 : index
    %c0_93 = arith.constant 0 : index
    %c0_94 = arith.constant 0 : index
    %128 = vector.load %arg8[%c0_91, %c4_92, %c0_93, %c0_94] : memref<1x16x16x8xf32, #tpu.memory_space<vmem>>, vector<1x1x16x8xf32>
    %129 = vector.shape_cast %128 : vector<1x1x16x8xf32> to vector<16x8xf32>
    %130 = vector.shape_cast %104 : vector<16x8xf32> to vector<1x1x16x8xf32>
    tpu.vector_store %arg8[%c0_91, %c4_92, %c0_93, %c0_94], %130 {strides = array<i32>} : memref<1x16x16x8xf32, #tpu.memory_space<vmem>>, vector<1x1x16x8xf32>,
    %c0_95 = arith.constant 0 : index
    %c5_96 = arith.constant 5 : index
    %c0_97 = arith.constant 0 : index
    %c0_98 = arith.constant 0 : index
    %131 = vector.load %arg8[%c0_95, %c5_96, %c0_97, %c0_98] : memref<1x16x16x8xf32, #tpu.memory_space<vmem>>, vector<1x1x16x8xf32>
    %132 = vector.shape_cast %131 : vector<1x1x16x8xf32> to vector<16x8xf32>
    %133 = vector.shape_cast %105 : vector<16x8xf32> to vector<1x1x16x8xf32>
    tpu.vector_store %arg8[%c0_95, %c5_96, %c0_97, %c0_98], %133 {strides = array<i32>} : memref<1x16x16x8xf32, #tpu.memory_space<vmem>>, vector<1x1x16x8xf32>,
    %c0_99 = arith.constant 0 : index
    %c6_100 = arith.constant 6 : index
    %c0_101 = arith.constant 0 : index
    %c0_102 = arith.constant 0 : index
    %134 = vector.load %arg8[%c0_99, %c6_100, %c0_101, %c0_102] : memref<1x16x16x8xf32, #tpu.memory_space<vmem>>, vector<1x1x16x8xf32>
    %135 = vector.shape_cast %134 : vector<1x1x16x8xf32> to vector<16x8xf32>
    %136 = vector.shape_cast %106 : vector<16x8xf32> to vector<1x1x16x8xf32>
    tpu.vector_store %arg8[%c0_99, %c6_100, %c0_101, %c0_102], %136 {strides = array<i32>} : memref<1x16x16x8xf32, #tpu.memory_space<vmem>>, vector<1x1x16x8xf32>,
    %c0_103 = arith.constant 0 : index
    %c7_104 = arith.constant 7 : index
    %c0_105 = arith.constant 0 : index
    %c0_106 = arith.constant 0 : index
    %137 = vector.load %arg8[%c0_103, %c7_104, %c0_105, %c0_106] : memref<1x16x16x8xf32, #tpu.memory_space<vmem>>, vector<1x1x16x8xf32>
    %138 = vector.shape_cast %137 : vector<1x1x16x8xf32> to vector<16x8xf32>
    %139 = vector.shape_cast %107 : vector<16x8xf32> to vector<1x1x16x8xf32>
    tpu.vector_store %arg8[%c0_103, %c7_104, %c0_105, %c0_106], %139 {strides = array<i32>} : memref<1x16x16x8xf32, #tpu.memory_space<vmem>>, vector<1x1x16x8xf32>,
    %c0_107 = arith.constant 0 : index
    %c8_108 = arith.constant 8 : index
    %c0_109 = arith.constant 0 : index
    %c0_110 = arith.constant 0 : index
    %140 = vector.load %arg8[%c0_107, %c8_108, %c0_109, %c0_110] : memref<1x16x16x8xf32, #tpu.memory_space<vmem>>, vector<1x1x16x8xf32>
    %141 = vector.shape_cast %140 : vector<1x1x16x8xf32> to vector<16x8xf32>
    %142 = vector.shape_cast %108 : vector<16x8xf32> to vector<1x1x16x8xf32>
    tpu.vector_store %arg8[%c0_107, %c8_108, %c0_109, %c0_110], %142 {strides = array<i32>} : memref<1x16x16x8xf32, #tpu.memory_space<vmem>>, vector<1x1x16x8xf32>,
    %c0_111 = arith.constant 0 : index
    %c9_112 = arith.constant 9 : index
    %c0_113 = arith.constant 0 : index
    %c0_114 = arith.constant 0 : index
    %143 = vector.load %arg8[%c0_111, %c9_112, %c0_113, %c0_114] : memref<1x16x16x8xf32, #tpu.memory_space<vmem>>, vector<1x1x16x8xf32>
    %144 = vector.shape_cast %143 : vector<1x1x16x8xf32> to vector<16x8xf32>
    %145 = vector.shape_cast %109 : vector<16x8xf32> to vector<1x1x16x8xf32>
    tpu.vector_store %arg8[%c0_111, %c9_112, %c0_113, %c0_114], %145 {strides = array<i32>} : memref<1x16x16x8xf32, #tpu.memory_space<vmem>>, vector<1x1x16x8xf32>,
    %c0_115 = arith.constant 0 : index
    %c10 = arith.constant 10 : index
    %c0_116 = arith.constant 0 : index
    %c0_117 = arith.constant 0 : index
    %146 = vector.load %arg8[%c0_115, %c10, %c0_116, %c0_117] : memref<1x16x16x8xf32, #tpu.memory_space<vmem>>, vector<1x1x16x8xf32>
    %147 = vector.shape_cast %146 : vector<1x1x16x8xf32> to vector<16x8xf32>
    %148 = vector.shape_cast %110 : vector<16x8xf32> to vector<1x1x16x8xf32>
    tpu.vector_store %arg8[%c0_115, %c10, %c0_116, %c0_117], %148 {strides = array<i32>} : memref<1x16x16x8xf32, #tpu.memory_space<vmem>>, vector<1x1x16x8xf32>,
    %c0_118 = arith.constant 0 : index
    %c11 = arith.constant 11 : index
    %c0_119 = arith.constant 0 : index
    %c0_120 = arith.constant 0 : index
    %149 = vector.load %arg8[%c0_118, %c11, %c0_119, %c0_120] : memref<1x16x16x8xf32, #tpu.memory_space<vmem>>, vector<1x1x16x8xf32>
    %150 = vector.shape_cast %149 : vector<1x1x16x8xf32> to vector<16x8xf32>
    %151 = vector.shape_cast %111 : vector<16x8xf32> to vector<1x1x16x8xf32>
    tpu.vector_store %arg8[%c0_118, %c11, %c0_119, %c0_120], %151 {strides = array<i32>} : memref<1x16x16x8xf32, #tpu.memory_space<vmem>>, vector<1x1x16x8xf32>,
    %c0_121 = arith.constant 0 : index
    %c12 = arith.constant 12 : index
    %c0_122 = arith.constant 0 : index
    %c0_123 = arith.constant 0 : index
    %152 = vector.load %arg8[%c0_121, %c12, %c0_122, %c0_123] : memref<1x16x16x8xf32, #tpu.memory_space<vmem>>, vector<1x1x16x8xf32>
    %153 = vector.shape_cast %152 : vector<1x1x16x8xf32> to vector<16x8xf32>
    %154 = vector.shape_cast %112 : vector<16x8xf32> to vector<1x1x16x8xf32>
    tpu.vector_store %arg8[%c0_121, %c12, %c0_122, %c0_123], %154 {strides = array<i32>} : memref<1x16x16x8xf32, #tpu.memory_space<vmem>>, vector<1x1x16x8xf32>,
    %c0_124 = arith.constant 0 : index
    %c13 = arith.constant 13 : index
    %c0_125 = arith.constant 0 : index
    %c0_126 = arith.constant 0 : index
    %155 = vector.load %arg8[%c0_124, %c13, %c0_125, %c0_126] : memref<1x16x16x8xf32, #tpu.memory_space<vmem>>, vector<1x1x16x8xf32>
    %156 = vector.shape_cast %155 : vector<1x1x16x8xf32> to vector<16x8xf32>
    %157 = vector.shape_cast %113 : vector<16x8xf32> to vector<1x1x16x8xf32>
    tpu.vector_store %arg8[%c0_124, %c13, %c0_125, %c0_126], %157 {strides = array<i32>} : memref<1x16x16x8xf32, #tpu.memory_space<vmem>>, vector<1x1x16x8xf32>,
    %c0_127 = arith.constant 0 : index
    %c14 = arith.constant 14 : index
    %c0_128 = arith.constant 0 : index
    %c0_129 = arith.constant 0 : index
    %158 = vector.load %arg8[%c0_127, %c14, %c0_128, %c0_129] : memref<1x16x16x8xf32, #tpu.memory_space<vmem>>, vector<1x1x16x8xf32>
    %159 = vector.shape_cast %158 : vector<1x1x16x8xf32> to vector<16x8xf32>
    %160 = vector.shape_cast %114 : vector<16x8xf32> to vector<1x1x16x8xf32>
    tpu.vector_store %arg8[%c0_127, %c14, %c0_128, %c0_129], %160 {strides = array<i32>} : memref<1x16x16x8xf32, #tpu.memory_space<vmem>>, vector<1x1x16x8xf32>,
    %c0_130 = arith.constant 0 : index
    %c15 = arith.constant 15 : index
    %c0_131 = arith.constant 0 : index
    %c0_132 = arith.constant 0 : index
    %161 = vector.load %arg8[%c0_130, %c15, %c0_131, %c0_132] : memref<1x16x16x8xf32, #tpu.memory_space<vmem>>, vector<1x1x16x8xf32>
    %162 = vector.shape_cast %161 : vector<1x1x16x8xf32> to vector<16x8xf32>
    %163 = vector.shape_cast %115 : vector<16x8xf32> to vector<1x1x16x8xf32>
    tpu.vector_store %arg8[%c0_130, %c15, %c0_131, %c0_132], %163 {strides = array<i32>} : memref<1x16x16x8xf32, #tpu.memory_space<vmem>>, vector<1x1x16x8xf32>,
    %164 = tpu.iota {dimensions = array<i32: 0>} : vector<8x16xi32>
    %165 = tpu.iota {dimensions = array<i32: 1>} : vector<8x16xi32>
    %c2_i32 = arith.constant 2 : i32
    %166 = vector.broadcast %c2_i32 : i32 to vector<8x16xi32>
    %167 = arith.muli %166, %164 : vector<8x16xi32>
    %168 = arith.cmpi eq, %165, %167 : vector<8x16xi32>
    %169 = arith.extui %168 : vector<8x16xi1> to vector<8x16xi32>
    %170 = arith.sitofp %169 : vector<8x16xi32> to vector<8x16xf32>
    %c2_i32_133 = arith.constant 2 : i32
    %171 = vector.broadcast %c2_i32_133 : i32 to vector<8x16xi32>
    %172 = arith.muli %171, %164 : vector<8x16xi32>
    %c1_i32 = arith.constant 1 : i32
    %173 = vector.broadcast %c1_i32 : i32 to vector<8x16xi32>
    %174 = arith.addi %172, %173 : vector<8x16xi32>
    %175 = arith.cmpi eq, %165, %174 : vector<8x16xi32>
    %176 = arith.extui %175 : vector<8x16xi1> to vector<8x16xi32>
    %177 = arith.sitofp %176 : vector<8x16xi32> to vector<8x16xf32>
    %178 = arith.maximumf %100, %101 : vector<16x8xf32>
    %cst_134 = arith.constant dense<0.000000e+00> : vector<8x8xf32>
    %179 = tpu.matmul %170, %178, %cst_134 {dimension_numbers = #tpu.dot_dimension_numbers<[1], [0], [0], [1], [0, 0, 1, 1], [], []>} : vector<8x16xf32>, vector<16x8xf32>, vector<8x8xf32> -> vector<8x8xf32>
    %cst_135 = arith.constant dense<0.000000e+00> : vector<8x8xf32>
    %180 = tpu.matmul %177, %178, %cst_135 {dimension_numbers = #tpu.dot_dimension_numbers<[1], [0], [0], [1], [0, 0, 1, 1], [], []>} : vector<8x16xf32>, vector<16x8xf32>, vector<8x8xf32> -> vector<8x8xf32>
    %181 = arith.maximumf %179, %180 : vector<8x8xf32>
    %c0_136 = arith.constant 0 : index
    %c0_137 = arith.constant 0 : index
    %c0_138 = arith.constant 0 : index
    %c0_139 = arith.constant 0 : index
    %182 = vector.load %arg9[%c0_136, %c0_137, %c0_138, %c0_139] : memref<1x8x8x8xf32, #tpu.memory_space<vmem>>, vector<1x1x8x8xf32>
    %183 = vector.shape_cast %182 : vector<1x1x8x8xf32> to vector<8x8xf32>
    %184 = vector.shape_cast %181 : vector<8x8xf32> to vector<1x1x8x8xf32>
    tpu.vector_store %arg9[%c0_136, %c0_137, %c0_138, %c0_139], %184 {strides = array<i32>} : memref<1x8x8x8xf32, #tpu.memory_space<vmem>>, vector<1x1x8x8xf32>,
    %185 = arith.maximumf %102, %103 : vector<16x8xf32>
    %cst_140 = arith.constant dense<0.000000e+00> : vector<8x8xf32>
    %186 = tpu.matmul %170, %185, %cst_140 {dimension_numbers = #tpu.dot_dimension_numbers<[1], [0], [0], [1], [0, 0, 1, 1], [], []>} : vector<8x16xf32>, vector<16x8xf32>, vector<8x8xf32> -> vector<8x8xf32>
    %cst_141 = arith.constant dense<0.000000e+00> : vector<8x8xf32>
    %187 = tpu.matmul %177, %185, %cst_141 {dimension_numbers = #tpu.dot_dimension_numbers<[1], [0], [0], [1], [0, 0, 1, 1], [], []>} : vector<8x16xf32>, vector<16x8xf32>, vector<8x8xf32> -> vector<8x8xf32>
    %188 = arith.maximumf %186, %187 : vector<8x8xf32>
    %c0_142 = arith.constant 0 : index
    %c1_143 = arith.constant 1 : index
    %c0_144 = arith.constant 0 : index
    %c0_145 = arith.constant 0 : index
    %189 = vector.load %arg9[%c0_142, %c1_143, %c0_144, %c0_145] : memref<1x8x8x8xf32, #tpu.memory_space<vmem>>, vector<1x1x8x8xf32>
    %190 = vector.shape_cast %189 : vector<1x1x8x8xf32> to vector<8x8xf32>
    %191 = vector.shape_cast %188 : vector<8x8xf32> to vector<1x1x8x8xf32>
    tpu.vector_store %arg9[%c0_142, %c1_143, %c0_144, %c0_145], %191 {strides = array<i32>} : memref<1x8x8x8xf32, #tpu.memory_space<vmem>>, vector<1x1x8x8xf32>,
    %192 = arith.maximumf %104, %105 : vector<16x8xf32>
    %cst_146 = arith.constant dense<0.000000e+00> : vector<8x8xf32>
    %193 = tpu.matmul %170, %192, %cst_146 {dimension_numbers = #tpu.dot_dimension_numbers<[1], [0], [0], [1], [0, 0, 1, 1], [], []>} : vector<8x16xf32>, vector<16x8xf32>, vector<8x8xf32> -> vector<8x8xf32>
    %cst_147 = arith.constant dense<0.000000e+00> : vector<8x8xf32>
    %194 = tpu.matmul %177, %192, %cst_147 {dimension_numbers = #tpu.dot_dimension_numbers<[1], [0], [0], [1], [0, 0, 1, 1], [], []>} : vector<8x16xf32>, vector<16x8xf32>, vector<8x8xf32> -> vector<8x8xf32>
    %195 = arith.maximumf %193, %194 : vector<8x8xf32>
    %c0_148 = arith.constant 0 : index
    %c2_149 = arith.constant 2 : index
    %c0_150 = arith.constant 0 : index
    %c0_151 = arith.constant 0 : index
    %196 = vector.load %arg9[%c0_148, %c2_149, %c0_150, %c0_151] : memref<1x8x8x8xf32, #tpu.memory_space<vmem>>, vector<1x1x8x8xf32>
    %197 = vector.shape_cast %196 : vector<1x1x8x8xf32> to vector<8x8xf32>
    %198 = vector.shape_cast %195 : vector<8x8xf32> to vector<1x1x8x8xf32>
    tpu.vector_store %arg9[%c0_148, %c2_149, %c0_150, %c0_151], %198 {strides = array<i32>} : memref<1x8x8x8xf32, #tpu.memory_space<vmem>>, vector<1x1x8x8xf32>,
    %199 = arith.maximumf %106, %107 : vector<16x8xf32>
    %cst_152 = arith.constant dense<0.000000e+00> : vector<8x8xf32>
    %200 = tpu.matmul %170, %199, %cst_152 {dimension_numbers = #tpu.dot_dimension_numbers<[1], [0], [0], [1], [0, 0, 1, 1], [], []>} : vector<8x16xf32>, vector<16x8xf32>, vector<8x8xf32> -> vector<8x8xf32>
    %cst_153 = arith.constant dense<0.000000e+00> : vector<8x8xf32>
    %201 = tpu.matmul %177, %199, %cst_153 {dimension_numbers = #tpu.dot_dimension_numbers<[1], [0], [0], [1], [0, 0, 1, 1], [], []>} : vector<8x16xf32>, vector<16x8xf32>, vector<8x8xf32> -> vector<8x8xf32>
    %202 = arith.maximumf %200, %201 : vector<8x8xf32>
    %c0_154 = arith.constant 0 : index
    %c3_155 = arith.constant 3 : index
    %c0_156 = arith.constant 0 : index
    %c0_157 = arith.constant 0 : index
    %203 = vector.load %arg9[%c0_154, %c3_155, %c0_156, %c0_157] : memref<1x8x8x8xf32, #tpu.memory_space<vmem>>, vector<1x1x8x8xf32>
    %204 = vector.shape_cast %203 : vector<1x1x8x8xf32> to vector<8x8xf32>
    %205 = vector.shape_cast %202 : vector<8x8xf32> to vector<1x1x8x8xf32>
    tpu.vector_store %arg9[%c0_154, %c3_155, %c0_156, %c0_157], %205 {strides = array<i32>} : memref<1x8x8x8xf32, #tpu.memory_space<vmem>>, vector<1x1x8x8xf32>,
    %206 = arith.maximumf %108, %109 : vector<16x8xf32>
    %cst_158 = arith.constant dense<0.000000e+00> : vector<8x8xf32>
    %207 = tpu.matmul %170, %206, %cst_158 {dimension_numbers = #tpu.dot_dimension_numbers<[1], [0], [0], [1], [0, 0, 1, 1], [], []>} : vector<8x16xf32>, vector<16x8xf32>, vector<8x8xf32> -> vector<8x8xf32>
    %cst_159 = arith.constant dense<0.000000e+00> : vector<8x8xf32>
    %208 = tpu.matmul %177, %206, %cst_159 {dimension_numbers = #tpu.dot_dimension_numbers<[1], [0], [0], [1], [0, 0, 1, 1], [], []>} : vector<8x16xf32>, vector<16x8xf32>, vector<8x8xf32> -> vector<8x8xf32>
    %209 = arith.maximumf %207, %208 : vector<8x8xf32>
    %c0_160 = arith.constant 0 : index
    %c4_161 = arith.constant 4 : index
    %c0_162 = arith.constant 0 : index
    %c0_163 = arith.constant 0 : index
    %210 = vector.load %arg9[%c0_160, %c4_161, %c0_162, %c0_163] : memref<1x8x8x8xf32, #tpu.memory_space<vmem>>, vector<1x1x8x8xf32>
    %211 = vector.shape_cast %210 : vector<1x1x8x8xf32> to vector<8x8xf32>
    %212 = vector.shape_cast %209 : vector<8x8xf32> to vector<1x1x8x8xf32>
    tpu.vector_store %arg9[%c0_160, %c4_161, %c0_162, %c0_163], %212 {strides = array<i32>} : memref<1x8x8x8xf32, #tpu.memory_space<vmem>>, vector<1x1x8x8xf32>,
    %213 = arith.maximumf %110, %111 : vector<16x8xf32>
    %cst_164 = arith.constant dense<0.000000e+00> : vector<8x8xf32>
    %214 = tpu.matmul %170, %213, %cst_164 {dimension_numbers = #tpu.dot_dimension_numbers<[1], [0], [0], [1], [0, 0, 1, 1], [], []>} : vector<8x16xf32>, vector<16x8xf32>, vector<8x8xf32> -> vector<8x8xf32>
    %cst_165 = arith.constant dense<0.000000e+00> : vector<8x8xf32>
    %215 = tpu.matmul %177, %213, %cst_165 {dimension_numbers = #tpu.dot_dimension_numbers<[1], [0], [0], [1], [0, 0, 1, 1], [], []>} : vector<8x16xf32>, vector<16x8xf32>, vector<8x8xf32> -> vector<8x8xf32>
    %216 = arith.maximumf %214, %215 : vector<8x8xf32>
    %c0_166 = arith.constant 0 : index
    %c5_167 = arith.constant 5 : index
    %c0_168 = arith.constant 0 : index
    %c0_169 = arith.constant 0 : index
    %217 = vector.load %arg9[%c0_166, %c5_167, %c0_168, %c0_169] : memref<1x8x8x8xf32, #tpu.memory_space<vmem>>, vector<1x1x8x8xf32>
    %218 = vector.shape_cast %217 : vector<1x1x8x8xf32> to vector<8x8xf32>
    %219 = vector.shape_cast %216 : vector<8x8xf32> to vector<1x1x8x8xf32>
    tpu.vector_store %arg9[%c0_166, %c5_167, %c0_168, %c0_169], %219 {strides = array<i32>} : memref<1x8x8x8xf32, #tpu.memory_space<vmem>>, vector<1x1x8x8xf32>,
    %220 = arith.maximumf %112, %113 : vector<16x8xf32>
    %cst_170 = arith.constant dense<0.000000e+00> : vector<8x8xf32>
    %221 = tpu.matmul %170, %220, %cst_170 {dimension_numbers = #tpu.dot_dimension_numbers<[1], [0], [0], [1], [0, 0, 1, 1], [], []>} : vector<8x16xf32>, vector<16x8xf32>, vector<8x8xf32> -> vector<8x8xf32>
    %cst_171 = arith.constant dense<0.000000e+00> : vector<8x8xf32>
    %222 = tpu.matmul %177, %220, %cst_171 {dimension_numbers = #tpu.dot_dimension_numbers<[1], [0], [0], [1], [0, 0, 1, 1], [], []>} : vector<8x16xf32>, vector<16x8xf32>, vector<8x8xf32> -> vector<8x8xf32>
    %223 = arith.maximumf %221, %222 : vector<8x8xf32>
    %c0_172 = arith.constant 0 : index
    %c6_173 = arith.constant 6 : index
    %c0_174 = arith.constant 0 : index
    %c0_175 = arith.constant 0 : index
    %224 = vector.load %arg9[%c0_172, %c6_173, %c0_174, %c0_175] : memref<1x8x8x8xf32, #tpu.memory_space<vmem>>, vector<1x1x8x8xf32>
    %225 = vector.shape_cast %224 : vector<1x1x8x8xf32> to vector<8x8xf32>
    %226 = vector.shape_cast %223 : vector<8x8xf32> to vector<1x1x8x8xf32>
    tpu.vector_store %arg9[%c0_172, %c6_173, %c0_174, %c0_175], %226 {strides = array<i32>} : memref<1x8x8x8xf32, #tpu.memory_space<vmem>>, vector<1x1x8x8xf32>,
    %227 = arith.maximumf %114, %115 : vector<16x8xf32>
    %cst_176 = arith.constant dense<0.000000e+00> : vector<8x8xf32>
    %228 = tpu.matmul %170, %227, %cst_176 {dimension_numbers = #tpu.dot_dimension_numbers<[1], [0], [0], [1], [0, 0, 1, 1], [], []>} : vector<8x16xf32>, vector<16x8xf32>, vector<8x8xf32> -> vector<8x8xf32>
    %cst_177 = arith.constant dense<0.000000e+00> : vector<8x8xf32>
    %229 = tpu.matmul %177, %227, %cst_177 {dimension_numbers = #tpu.dot_dimension_numbers<[1], [0], [0], [1], [0, 0, 1, 1], [], []>} : vector<8x16xf32>, vector<16x8xf32>, vector<8x8xf32> -> vector<8x8xf32>
    %230 = arith.maximumf %228, %229 : vector<8x8xf32>
    %c0_178 = arith.constant 0 : index
    %c7_179 = arith.constant 7 : index
    %c0_180 = arith.constant 0 : index
    %c0_181 = arith.constant 0 : index
    %231 = vector.load %arg9[%c0_178, %c7_179, %c0_180, %c0_181] : memref<1x8x8x8xf32, #tpu.memory_space<vmem>>, vector<1x1x8x8xf32>
    %232 = vector.shape_cast %231 : vector<1x1x8x8xf32> to vector<8x8xf32>
    %233 = vector.shape_cast %230 : vector<8x8xf32> to vector<1x1x8x8xf32>
    tpu.vector_store %arg9[%c0_178, %c7_179, %c0_180, %c0_181], %233 {strides = array<i32>} : memref<1x8x8x8xf32, #tpu.memory_space<vmem>>, vector<1x1x8x8xf32>,
    return
  }
  func.func @transform_0(%arg0: i32) -> (i32, i32, i32) {
    %c0_i32 = arith.constant 0 : i32
    %c0_i32_0 = arith.constant 0 : i32
    %c0_i32_1 = arith.constant 0 : i32
    return %arg0, %c0_i32, %c0_i32_0 : i32, i32, i32
  }
  func.func @transform_1(%arg0: i32) -> (i32, i32) {
    %c0_i32 = arith.constant 0 : i32
    %c0_i32_0 = arith.constant 0 : i32
    %c0_i32_1 = arith.constant 0 : i32
    return %c0_i32, %c0_i32_0 : i32, i32
  }
  func.func @transform_2(%arg0: i32) -> (i32, i32) {
    %c0_i32 = arith.constant 0 : i32
    %c0_i32_0 = arith.constant 0 : i32
    %c0_i32_1 = arith.constant 0 : i32
    return %c0_i32, %c0_i32_0 : i32, i32
  }
  func.func @transform_3(%arg0: i32) -> (i32, i32) {
    %c0_i32 = arith.constant 0 : i32
    %c0_i32_0 = arith.constant 0 : i32
    %c0_i32_1 = arith.constant 0 : i32
    return %c0_i32, %c0_i32_0 : i32, i32
  }
  func.func @transform_4(%arg0: i32) -> (i32, i32, i32) {
    %c0_i32 = arith.constant 0 : i32
    %c0_i32_0 = arith.constant 0 : i32
    %c0_i32_1 = arith.constant 0 : i32
    %c0_i32_2 = arith.constant 0 : i32
    return %c0_i32, %c0_i32_0, %c0_i32_1 : i32, i32, i32
  }
  func.func @transform_5(%arg0: i32) -> (i32, i32) {
    %c0_i32 = arith.constant 0 : i32
    %c0_i32_0 = arith.constant 0 : i32
    %c0_i32_1 = arith.constant 0 : i32
    return %c0_i32, %c0_i32_0 : i32, i32
  }
  func.func @transform_6(%arg0: i32) -> (i32, i32) {
    %c0_i32 = arith.constant 0 : i32
    %c0_i32_0 = arith.constant 0 : i32
    %c0_i32_1 = arith.constant 0 : i32
    return %c0_i32, %c0_i32_0 : i32, i32
  }
  func.func @transform_7(%arg0: i32) -> (i32, i32, i32, i32) {
    %c0_i32 = arith.constant 0 : i32
    %c0_i32_0 = arith.constant 0 : i32
    %c0_i32_1 = arith.constant 0 : i32
    %c0_i32_2 = arith.constant 0 : i32
    return %arg0, %c0_i32, %c0_i32_0, %c0_i32_1 : i32, i32, i32, i32
  }
  func.func @transform_8(%arg0: i32) -> (i32, i32, i32, i32) {
    %c0_i32 = arith.constant 0 : i32
    %c0_i32_0 = arith.constant 0 : i32
    %c0_i32_1 = arith.constant 0 : i32
    %c0_i32_2 = arith.constant 0 : i32
    return %arg0, %c0_i32, %c0_i32_0, %c0_i32_1 : i32, i32, i32, i32
  }
}

module attributes {stable_mosaic.version = 11 : i64} {
  func.func @_fused_block_kernel(%arg0: i32, %arg1: memref<1x64x72xf32, #tpu.memory_space<vmem>>, %arg2: memref<72x16xf32, #tpu.memory_space<vmem>>, %arg3: memref<1x16xf32, #tpu.memory_space<vmem>>, %arg4: memref<1x16xf32, #tpu.memory_space<vmem>>, %arg5: memref<9x16x16xf32, #tpu.memory_space<vmem>>, %arg6: memref<1x16xf32, #tpu.memory_space<vmem>>, %arg7: memref<1x16xf32, #tpu.memory_space<vmem>>, %arg8: memref<1x8x8x16xf32, #tpu.memory_space<vmem>>, %arg9: memref<1x4x4x16xf32, #tpu.memory_space<vmem>>, %arg10: memref<256x16xf32, #tpu.memory_space<vmem>>) attributes {dimension_semantics = [#tpu.dimension_semantics<parallel>], iteration_bounds = array<i64: 2>, scalar_prefetch = 0 : i64, scratch_operands = 1 : i64, tpu.core_type = #tpu.core_type<tc>, window_params = [{transform_indices = @transform_0, window_bounds = array<i64: 1, 64, 72>}, {pipeline_mode = #tpu.pipeline_mode<synchronous>, transform_indices = @transform_1, window_bounds = array<i64: 72, 16>}, {pipeline_mode = #tpu.pipeline_mode<synchronous>, transform_indices = @transform_2, window_bounds = array<i64: 1, 16>}, {pipeline_mode = #tpu.pipeline_mode<synchronous>, transform_indices = @transform_3, window_bounds = array<i64: 1, 16>}, {pipeline_mode = #tpu.pipeline_mode<synchronous>, transform_indices = @transform_4, window_bounds = array<i64: 9, 16, 16>}, {pipeline_mode = #tpu.pipeline_mode<synchronous>, transform_indices = @transform_5, window_bounds = array<i64: 1, 16>}, {pipeline_mode = #tpu.pipeline_mode<synchronous>, transform_indices = @transform_6, window_bounds = array<i64: 1, 16>}, {transform_indices = @transform_7, window_bounds = array<i64: 1, 8, 8, 16>}, {transform_indices = @transform_8, window_bounds = array<i64: 1, 4, 4, 16>}]} {
    %c0 = arith.constant 0 : index
    %c0_0 = arith.constant 0 : index
    %c0_1 = arith.constant 0 : index
    %0 = vector.load %arg1[%c0, %c0_0, %c0_1] : memref<1x64x72xf32, #tpu.memory_space<vmem>>, vector<1x64x72xf32>
    %1 = vector.shape_cast %0 : vector<1x64x72xf32> to vector<64x72xf32>
    %c0_2 = arith.constant 0 : index
    %c0_3 = arith.constant 0 : index
    %2 = vector.load %arg2[%c0_2, %c0_3] : memref<72x16xf32, #tpu.memory_space<vmem>>, vector<72x16xf32>
    %cst = arith.constant dense<0.000000e+00> : vector<64x16xf32>
    %3 = tpu.matmul %1, %2, %cst {dimension_numbers = #tpu.dot_dimension_numbers<[1], [0], [0], [1], [0, 0, 1, 1], [], []>} : vector<64x72xf32>, vector<72x16xf32>, vector<64x16xf32> -> vector<64x16xf32>
    %c0_4 = arith.constant 0 : index
    %c0_5 = arith.constant 0 : index
    %4 = vector.load %arg3[%c0_4, %c0_5] : memref<1x16xf32, #tpu.memory_space<vmem>>, vector<1x16xf32>
    %5 = vector.broadcast %4 : vector<1x16xf32> to vector<64x16xf32>
    %6 = arith.mulf %3, %5 : vector<64x16xf32>
    %c0_6 = arith.constant 0 : index
    %c0_7 = arith.constant 0 : index
    %7 = vector.load %arg4[%c0_6, %c0_7] : memref<1x16xf32, #tpu.memory_space<vmem>>, vector<1x16xf32>
    %8 = vector.broadcast %7 : vector<1x16xf32> to vector<64x16xf32>
    %9 = arith.addf %6, %8 : vector<64x16xf32>
    %cst_8 = arith.constant 0.000000e+00 : f32
    %10 = vector.broadcast %cst_8 : f32 to vector<64x16xf32>
    %11 = arith.maximumf %9, %10 : vector<64x16xf32>
    %cst_9 = arith.constant 0.000000e+00 : f32
    %12 = vector.broadcast %cst_9 : f32 to vector<256x16xf32>
    %c0_10 = arith.constant 0 : index
    %c0_11 = arith.constant 0 : index
    %13 = vector.load %arg10[%c0_10, %c0_11] : memref<256x16xf32, #tpu.memory_space<vmem>>, vector<256x16xf32>
    tpu.vector_store %arg10[%c0_10, %c0_11], %12 {strides = array<i32>} : memref<256x16xf32, #tpu.memory_space<vmem>>, vector<256x16xf32>,
    %14 = vector.extract_strided_slice %11 {offsets = [0, 0], sizes = [8, 16], strides = [1, 1]} : vector<64x16xf32> to vector<8x16xf32>
    %c32 = arith.constant 32 : index
    %c0_12 = arith.constant 0 : index
    %15 = vector.load %arg10[%c32, %c0_12] : memref<256x16xf32, #tpu.memory_space<vmem>>, vector<8x16xf32>
    tpu.vector_store %arg10[%c32, %c0_12], %14 {strides = array<i32>} : memref<256x16xf32, #tpu.memory_space<vmem>>, vector<8x16xf32>,
    %16 = vector.extract_strided_slice %11 {offsets = [8, 0], sizes = [8, 16], strides = [1, 1]} : vector<64x16xf32> to vector<8x16xf32>
    %c56 = arith.constant 56 : index
    %c0_13 = arith.constant 0 : index
    %17 = vector.load %arg10[%c56, %c0_13] : memref<256x16xf32, #tpu.memory_space<vmem>>, vector<8x16xf32>
    tpu.vector_store %arg10[%c56, %c0_13], %16 {strides = array<i32>} : memref<256x16xf32, #tpu.memory_space<vmem>>, vector<8x16xf32>,
    %18 = vector.extract_strided_slice %11 {offsets = [16, 0], sizes = [8, 16], strides = [1, 1]} : vector<64x16xf32> to vector<8x16xf32>
    %c80 = arith.constant 80 : index
    %c0_14 = arith.constant 0 : index
    %19 = vector.load %arg10[%c80, %c0_14] : memref<256x16xf32, #tpu.memory_space<vmem>>, vector<8x16xf32>
    tpu.vector_store %arg10[%c80, %c0_14], %18 {strides = array<i32>} : memref<256x16xf32, #tpu.memory_space<vmem>>, vector<8x16xf32>,
    %20 = vector.extract_strided_slice %11 {offsets = [24, 0], sizes = [8, 16], strides = [1, 1]} : vector<64x16xf32> to vector<8x16xf32>
    %c104 = arith.constant 104 : index
    %c0_15 = arith.constant 0 : index
    %21 = vector.load %arg10[%c104, %c0_15] : memref<256x16xf32, #tpu.memory_space<vmem>>, vector<8x16xf32>
    tpu.vector_store %arg10[%c104, %c0_15], %20 {strides = array<i32>} : memref<256x16xf32, #tpu.memory_space<vmem>>, vector<8x16xf32>,
    %22 = vector.extract_strided_slice %11 {offsets = [32, 0], sizes = [8, 16], strides = [1, 1]} : vector<64x16xf32> to vector<8x16xf32>
    %c128 = arith.constant 128 : index
    %c0_16 = arith.constant 0 : index
    %23 = vector.load %arg10[%c128, %c0_16] : memref<256x16xf32, #tpu.memory_space<vmem>>, vector<8x16xf32>
    tpu.vector_store %arg10[%c128, %c0_16], %22 {strides = array<i32>} : memref<256x16xf32, #tpu.memory_space<vmem>>, vector<8x16xf32>,
    %24 = vector.extract_strided_slice %11 {offsets = [40, 0], sizes = [8, 16], strides = [1, 1]} : vector<64x16xf32> to vector<8x16xf32>
    %c152 = arith.constant 152 : index
    %c0_17 = arith.constant 0 : index
    %25 = vector.load %arg10[%c152, %c0_17] : memref<256x16xf32, #tpu.memory_space<vmem>>, vector<8x16xf32>
    tpu.vector_store %arg10[%c152, %c0_17], %24 {strides = array<i32>} : memref<256x16xf32, #tpu.memory_space<vmem>>, vector<8x16xf32>,
    %26 = vector.extract_strided_slice %11 {offsets = [48, 0], sizes = [8, 16], strides = [1, 1]} : vector<64x16xf32> to vector<8x16xf32>
    %c176 = arith.constant 176 : index
    %c0_18 = arith.constant 0 : index
    %27 = vector.load %arg10[%c176, %c0_18] : memref<256x16xf32, #tpu.memory_space<vmem>>, vector<8x16xf32>
    tpu.vector_store %arg10[%c176, %c0_18], %26 {strides = array<i32>} : memref<256x16xf32, #tpu.memory_space<vmem>>, vector<8x16xf32>,
    %28 = vector.extract_strided_slice %11 {offsets = [56, 0], sizes = [8, 16], strides = [1, 1]} : vector<64x16xf32> to vector<8x16xf32>
    %c200 = arith.constant 200 : index
    %c0_19 = arith.constant 0 : index
    %29 = vector.load %arg10[%c200, %c0_19] : memref<256x16xf32, #tpu.memory_space<vmem>>, vector<8x16xf32>
    tpu.vector_store %arg10[%c200, %c0_19], %28 {strides = array<i32>} : memref<256x16xf32, #tpu.memory_space<vmem>>, vector<8x16xf32>,
    %cst_20 = arith.constant 0.000000e+00 : f32
    %30 = vector.broadcast %cst_20 : f32 to vector<192x16xf32>
    %c7 = arith.constant 7 : index
    %c0_21 = arith.constant 0 : index
    %31 = vector.load %arg10[%c7, %c0_21] : memref<256x16xf32, #tpu.memory_space<vmem>>, vector<192x16xf32>
    %c0_22 = arith.constant 0 : index
    %c0_23 = arith.constant 0 : index
    %c0_24 = arith.constant 0 : index
    %32 = vector.load %arg5[%c0_22, %c0_23, %c0_24] : memref<9x16x16xf32, #tpu.memory_space<vmem>>, vector<1x16x16xf32>
    %33 = vector.shape_cast %32 : vector<1x16x16xf32> to vector<16x16xf32>
    %cst_25 = arith.constant dense<0.000000e+00> : vector<192x16xf32>
    %34 = tpu.matmul %31, %33, %cst_25 {dimension_numbers = #tpu.dot_dimension_numbers<[1], [0], [0], [1], [0, 0, 1, 1], [], []>} : vector<192x16xf32>, vector<16x16xf32>, vector<192x16xf32> -> vector<192x16xf32>
    %35 = arith.addf %30, %34 : vector<192x16xf32>
    %c8 = arith.constant 8 : index
    %c0_26 = arith.constant 0 : index
    %36 = vector.load %arg10[%c8, %c0_26] : memref<256x16xf32, #tpu.memory_space<vmem>>, vector<192x16xf32>
    %c1 = arith.constant 1 : index
    %c0_27 = arith.constant 0 : index
    %c0_28 = arith.constant 0 : index
    %37 = vector.load %arg5[%c1, %c0_27, %c0_28] : memref<9x16x16xf32, #tpu.memory_space<vmem>>, vector<1x16x16xf32>
    %38 = vector.shape_cast %37 : vector<1x16x16xf32> to vector<16x16xf32>
    %cst_29 = arith.constant dense<0.000000e+00> : vector<192x16xf32>
    %39 = tpu.matmul %36, %38, %cst_29 {dimension_numbers = #tpu.dot_dimension_numbers<[1], [0], [0], [1], [0, 0, 1, 1], [], []>} : vector<192x16xf32>, vector<16x16xf32>, vector<192x16xf32> -> vector<192x16xf32>
    %40 = arith.addf %35, %39 : vector<192x16xf32>
    %c9 = arith.constant 9 : index
    %c0_30 = arith.constant 0 : index
    %41 = vector.load %arg10[%c9, %c0_30] : memref<256x16xf32, #tpu.memory_space<vmem>>, vector<192x16xf32>
    %c2 = arith.constant 2 : index
    %c0_31 = arith.constant 0 : index
    %c0_32 = arith.constant 0 : index
    %42 = vector.load %arg5[%c2, %c0_31, %c0_32] : memref<9x16x16xf32, #tpu.memory_space<vmem>>, vector<1x16x16xf32>
    %43 = vector.shape_cast %42 : vector<1x16x16xf32> to vector<16x16xf32>
    %cst_33 = arith.constant dense<0.000000e+00> : vector<192x16xf32>
    %44 = tpu.matmul %41, %43, %cst_33 {dimension_numbers = #tpu.dot_dimension_numbers<[1], [0], [0], [1], [0, 0, 1, 1], [], []>} : vector<192x16xf32>, vector<16x16xf32>, vector<192x16xf32> -> vector<192x16xf32>
    %45 = arith.addf %40, %44 : vector<192x16xf32>
    %c31 = arith.constant 31 : index
    %c0_34 = arith.constant 0 : index
    %46 = vector.load %arg10[%c31, %c0_34] : memref<256x16xf32, #tpu.memory_space<vmem>>, vector<192x16xf32>
    %c3 = arith.constant 3 : index
    %c0_35 = arith.constant 0 : index
    %c0_36 = arith.constant 0 : index
    %47 = vector.load %arg5[%c3, %c0_35, %c0_36] : memref<9x16x16xf32, #tpu.memory_space<vmem>>, vector<1x16x16xf32>
    %48 = vector.shape_cast %47 : vector<1x16x16xf32> to vector<16x16xf32>
    %cst_37 = arith.constant dense<0.000000e+00> : vector<192x16xf32>
    %49 = tpu.matmul %46, %48, %cst_37 {dimension_numbers = #tpu.dot_dimension_numbers<[1], [0], [0], [1], [0, 0, 1, 1], [], []>} : vector<192x16xf32>, vector<16x16xf32>, vector<192x16xf32> -> vector<192x16xf32>
    %50 = arith.addf %45, %49 : vector<192x16xf32>
    %c32_38 = arith.constant 32 : index
    %c0_39 = arith.constant 0 : index
    %51 = vector.load %arg10[%c32_38, %c0_39] : memref<256x16xf32, #tpu.memory_space<vmem>>, vector<192x16xf32>
    %c4 = arith.constant 4 : index
    %c0_40 = arith.constant 0 : index
    %c0_41 = arith.constant 0 : index
    %52 = vector.load %arg5[%c4, %c0_40, %c0_41] : memref<9x16x16xf32, #tpu.memory_space<vmem>>, vector<1x16x16xf32>
    %53 = vector.shape_cast %52 : vector<1x16x16xf32> to vector<16x16xf32>
    %cst_42 = arith.constant dense<0.000000e+00> : vector<192x16xf32>
    %54 = tpu.matmul %51, %53, %cst_42 {dimension_numbers = #tpu.dot_dimension_numbers<[1], [0], [0], [1], [0, 0, 1, 1], [], []>} : vector<192x16xf32>, vector<16x16xf32>, vector<192x16xf32> -> vector<192x16xf32>
    %55 = arith.addf %50, %54 : vector<192x16xf32>
    %c33 = arith.constant 33 : index
    %c0_43 = arith.constant 0 : index
    %56 = vector.load %arg10[%c33, %c0_43] : memref<256x16xf32, #tpu.memory_space<vmem>>, vector<192x16xf32>
    %c5 = arith.constant 5 : index
    %c0_44 = arith.constant 0 : index
    %c0_45 = arith.constant 0 : index
    %57 = vector.load %arg5[%c5, %c0_44, %c0_45] : memref<9x16x16xf32, #tpu.memory_space<vmem>>, vector<1x16x16xf32>
    %58 = vector.shape_cast %57 : vector<1x16x16xf32> to vector<16x16xf32>
    %cst_46 = arith.constant dense<0.000000e+00> : vector<192x16xf32>
    %59 = tpu.matmul %56, %58, %cst_46 {dimension_numbers = #tpu.dot_dimension_numbers<[1], [0], [0], [1], [0, 0, 1, 1], [], []>} : vector<192x16xf32>, vector<16x16xf32>, vector<192x16xf32> -> vector<192x16xf32>
    %60 = arith.addf %55, %59 : vector<192x16xf32>
    %c55 = arith.constant 55 : index
    %c0_47 = arith.constant 0 : index
    %61 = vector.load %arg10[%c55, %c0_47] : memref<256x16xf32, #tpu.memory_space<vmem>>, vector<192x16xf32>
    %c6 = arith.constant 6 : index
    %c0_48 = arith.constant 0 : index
    %c0_49 = arith.constant 0 : index
    %62 = vector.load %arg5[%c6, %c0_48, %c0_49] : memref<9x16x16xf32, #tpu.memory_space<vmem>>, vector<1x16x16xf32>
    %63 = vector.shape_cast %62 : vector<1x16x16xf32> to vector<16x16xf32>
    %cst_50 = arith.constant dense<0.000000e+00> : vector<192x16xf32>
    %64 = tpu.matmul %61, %63, %cst_50 {dimension_numbers = #tpu.dot_dimension_numbers<[1], [0], [0], [1], [0, 0, 1, 1], [], []>} : vector<192x16xf32>, vector<16x16xf32>, vector<192x16xf32> -> vector<192x16xf32>
    %65 = arith.addf %60, %64 : vector<192x16xf32>
    %c56_51 = arith.constant 56 : index
    %c0_52 = arith.constant 0 : index
    %66 = vector.load %arg10[%c56_51, %c0_52] : memref<256x16xf32, #tpu.memory_space<vmem>>, vector<192x16xf32>
    %c7_53 = arith.constant 7 : index
    %c0_54 = arith.constant 0 : index
    %c0_55 = arith.constant 0 : index
    %67 = vector.load %arg5[%c7_53, %c0_54, %c0_55] : memref<9x16x16xf32, #tpu.memory_space<vmem>>, vector<1x16x16xf32>
    %68 = vector.shape_cast %67 : vector<1x16x16xf32> to vector<16x16xf32>
    %cst_56 = arith.constant dense<0.000000e+00> : vector<192x16xf32>
    %69 = tpu.matmul %66, %68, %cst_56 {dimension_numbers = #tpu.dot_dimension_numbers<[1], [0], [0], [1], [0, 0, 1, 1], [], []>} : vector<192x16xf32>, vector<16x16xf32>, vector<192x16xf32> -> vector<192x16xf32>
    %70 = arith.addf %65, %69 : vector<192x16xf32>
    %c57 = arith.constant 57 : index
    %c0_57 = arith.constant 0 : index
    %71 = vector.load %arg10[%c57, %c0_57] : memref<256x16xf32, #tpu.memory_space<vmem>>, vector<192x16xf32>
    %c8_58 = arith.constant 8 : index
    %c0_59 = arith.constant 0 : index
    %c0_60 = arith.constant 0 : index
    %72 = vector.load %arg5[%c8_58, %c0_59, %c0_60] : memref<9x16x16xf32, #tpu.memory_space<vmem>>, vector<1x16x16xf32>
    %73 = vector.shape_cast %72 : vector<1x16x16xf32> to vector<16x16xf32>
    %cst_61 = arith.constant dense<0.000000e+00> : vector<192x16xf32>
    %74 = tpu.matmul %71, %73, %cst_61 {dimension_numbers = #tpu.dot_dimension_numbers<[1], [0], [0], [1], [0, 0, 1, 1], [], []>} : vector<192x16xf32>, vector<16x16xf32>, vector<192x16xf32> -> vector<192x16xf32>
    %75 = arith.addf %70, %74 : vector<192x16xf32>
    %c0_62 = arith.constant 0 : index
    %c0_63 = arith.constant 0 : index
    %76 = vector.load %arg6[%c0_62, %c0_63] : memref<1x16xf32, #tpu.memory_space<vmem>>, vector<1x16xf32>
    %77 = vector.broadcast %76 : vector<1x16xf32> to vector<192x16xf32>
    %78 = arith.mulf %75, %77 : vector<192x16xf32>
    %c0_64 = arith.constant 0 : index
    %c0_65 = arith.constant 0 : index
    %79 = vector.load %arg7[%c0_64, %c0_65] : memref<1x16xf32, #tpu.memory_space<vmem>>, vector<1x16xf32>
    %80 = vector.broadcast %79 : vector<1x16xf32> to vector<192x16xf32>
    %81 = arith.addf %78, %80 : vector<192x16xf32>
    %cst_66 = arith.constant 0.000000e+00 : f32
    %82 = vector.broadcast %cst_66 : f32 to vector<192x16xf32>
    %83 = arith.maximumf %81, %82 : vector<192x16xf32>
    %84 = vector.extract_strided_slice %83 {offsets = [0, 0], sizes = [8, 16], strides = [1, 1]} : vector<192x16xf32> to vector<8x16xf32>
    %85 = vector.extract_strided_slice %83 {offsets = [24, 0], sizes = [8, 16], strides = [1, 1]} : vector<192x16xf32> to vector<8x16xf32>
    %86 = vector.extract_strided_slice %83 {offsets = [48, 0], sizes = [8, 16], strides = [1, 1]} : vector<192x16xf32> to vector<8x16xf32>
    %87 = vector.extract_strided_slice %83 {offsets = [72, 0], sizes = [8, 16], strides = [1, 1]} : vector<192x16xf32> to vector<8x16xf32>
    %88 = vector.extract_strided_slice %83 {offsets = [96, 0], sizes = [8, 16], strides = [1, 1]} : vector<192x16xf32> to vector<8x16xf32>
    %89 = vector.extract_strided_slice %83 {offsets = [120, 0], sizes = [8, 16], strides = [1, 1]} : vector<192x16xf32> to vector<8x16xf32>
    %90 = vector.extract_strided_slice %83 {offsets = [144, 0], sizes = [8, 16], strides = [1, 1]} : vector<192x16xf32> to vector<8x16xf32>
    %91 = vector.extract_strided_slice %83 {offsets = [168, 0], sizes = [8, 16], strides = [1, 1]} : vector<192x16xf32> to vector<8x16xf32>
    %c0_67 = arith.constant 0 : index
    %c0_68 = arith.constant 0 : index
    %c0_69 = arith.constant 0 : index
    %c0_70 = arith.constant 0 : index
    %92 = vector.load %arg8[%c0_67, %c0_68, %c0_69, %c0_70] : memref<1x8x8x16xf32, #tpu.memory_space<vmem>>, vector<1x1x8x16xf32>
    %93 = vector.shape_cast %92 : vector<1x1x8x16xf32> to vector<8x16xf32>
    %94 = vector.shape_cast %84 : vector<8x16xf32> to vector<1x1x8x16xf32>
    tpu.vector_store %arg8[%c0_67, %c0_68, %c0_69, %c0_70], %94 {strides = array<i32>} : memref<1x8x8x16xf32, #tpu.memory_space<vmem>>, vector<1x1x8x16xf32>,
    %c0_71 = arith.constant 0 : index
    %c1_72 = arith.constant 1 : index
    %c0_73 = arith.constant 0 : index
    %c0_74 = arith.constant 0 : index
    %95 = vector.load %arg8[%c0_71, %c1_72, %c0_73, %c0_74] : memref<1x8x8x16xf32, #tpu.memory_space<vmem>>, vector<1x1x8x16xf32>
    %96 = vector.shape_cast %95 : vector<1x1x8x16xf32> to vector<8x16xf32>
    %97 = vector.shape_cast %85 : vector<8x16xf32> to vector<1x1x8x16xf32>
    tpu.vector_store %arg8[%c0_71, %c1_72, %c0_73, %c0_74], %97 {strides = array<i32>} : memref<1x8x8x16xf32, #tpu.memory_space<vmem>>, vector<1x1x8x16xf32>,
    %c0_75 = arith.constant 0 : index
    %c2_76 = arith.constant 2 : index
    %c0_77 = arith.constant 0 : index
    %c0_78 = arith.constant 0 : index
    %98 = vector.load %arg8[%c0_75, %c2_76, %c0_77, %c0_78] : memref<1x8x8x16xf32, #tpu.memory_space<vmem>>, vector<1x1x8x16xf32>
    %99 = vector.shape_cast %98 : vector<1x1x8x16xf32> to vector<8x16xf32>
    %100 = vector.shape_cast %86 : vector<8x16xf32> to vector<1x1x8x16xf32>
    tpu.vector_store %arg8[%c0_75, %c2_76, %c0_77, %c0_78], %100 {strides = array<i32>} : memref<1x8x8x16xf32, #tpu.memory_space<vmem>>, vector<1x1x8x16xf32>,
    %c0_79 = arith.constant 0 : index
    %c3_80 = arith.constant 3 : index
    %c0_81 = arith.constant 0 : index
    %c0_82 = arith.constant 0 : index
    %101 = vector.load %arg8[%c0_79, %c3_80, %c0_81, %c0_82] : memref<1x8x8x16xf32, #tpu.memory_space<vmem>>, vector<1x1x8x16xf32>
    %102 = vector.shape_cast %101 : vector<1x1x8x16xf32> to vector<8x16xf32>
    %103 = vector.shape_cast %87 : vector<8x16xf32> to vector<1x1x8x16xf32>
    tpu.vector_store %arg8[%c0_79, %c3_80, %c0_81, %c0_82], %103 {strides = array<i32>} : memref<1x8x8x16xf32, #tpu.memory_space<vmem>>, vector<1x1x8x16xf32>,
    %c0_83 = arith.constant 0 : index
    %c4_84 = arith.constant 4 : index
    %c0_85 = arith.constant 0 : index
    %c0_86 = arith.constant 0 : index
    %104 = vector.load %arg8[%c0_83, %c4_84, %c0_85, %c0_86] : memref<1x8x8x16xf32, #tpu.memory_space<vmem>>, vector<1x1x8x16xf32>
    %105 = vector.shape_cast %104 : vector<1x1x8x16xf32> to vector<8x16xf32>
    %106 = vector.shape_cast %88 : vector<8x16xf32> to vector<1x1x8x16xf32>
    tpu.vector_store %arg8[%c0_83, %c4_84, %c0_85, %c0_86], %106 {strides = array<i32>} : memref<1x8x8x16xf32, #tpu.memory_space<vmem>>, vector<1x1x8x16xf32>,
    %c0_87 = arith.constant 0 : index
    %c5_88 = arith.constant 5 : index
    %c0_89 = arith.constant 0 : index
    %c0_90 = arith.constant 0 : index
    %107 = vector.load %arg8[%c0_87, %c5_88, %c0_89, %c0_90] : memref<1x8x8x16xf32, #tpu.memory_space<vmem>>, vector<1x1x8x16xf32>
    %108 = vector.shape_cast %107 : vector<1x1x8x16xf32> to vector<8x16xf32>
    %109 = vector.shape_cast %89 : vector<8x16xf32> to vector<1x1x8x16xf32>
    tpu.vector_store %arg8[%c0_87, %c5_88, %c0_89, %c0_90], %109 {strides = array<i32>} : memref<1x8x8x16xf32, #tpu.memory_space<vmem>>, vector<1x1x8x16xf32>,
    %c0_91 = arith.constant 0 : index
    %c6_92 = arith.constant 6 : index
    %c0_93 = arith.constant 0 : index
    %c0_94 = arith.constant 0 : index
    %110 = vector.load %arg8[%c0_91, %c6_92, %c0_93, %c0_94] : memref<1x8x8x16xf32, #tpu.memory_space<vmem>>, vector<1x1x8x16xf32>
    %111 = vector.shape_cast %110 : vector<1x1x8x16xf32> to vector<8x16xf32>
    %112 = vector.shape_cast %90 : vector<8x16xf32> to vector<1x1x8x16xf32>
    tpu.vector_store %arg8[%c0_91, %c6_92, %c0_93, %c0_94], %112 {strides = array<i32>} : memref<1x8x8x16xf32, #tpu.memory_space<vmem>>, vector<1x1x8x16xf32>,
    %c0_95 = arith.constant 0 : index
    %c7_96 = arith.constant 7 : index
    %c0_97 = arith.constant 0 : index
    %c0_98 = arith.constant 0 : index
    %113 = vector.load %arg8[%c0_95, %c7_96, %c0_97, %c0_98] : memref<1x8x8x16xf32, #tpu.memory_space<vmem>>, vector<1x1x8x16xf32>
    %114 = vector.shape_cast %113 : vector<1x1x8x16xf32> to vector<8x16xf32>
    %115 = vector.shape_cast %91 : vector<8x16xf32> to vector<1x1x8x16xf32>
    tpu.vector_store %arg8[%c0_95, %c7_96, %c0_97, %c0_98], %115 {strides = array<i32>} : memref<1x8x8x16xf32, #tpu.memory_space<vmem>>, vector<1x1x8x16xf32>,
    %116 = tpu.iota {dimensions = array<i32: 0>} : vector<4x8xi32>
    %117 = tpu.iota {dimensions = array<i32: 1>} : vector<4x8xi32>
    %c2_i32 = arith.constant 2 : i32
    %118 = vector.broadcast %c2_i32 : i32 to vector<4x8xi32>
    %119 = arith.muli %118, %116 : vector<4x8xi32>
    %120 = arith.cmpi eq, %117, %119 : vector<4x8xi32>
    %121 = arith.extui %120 : vector<4x8xi1> to vector<4x8xi32>
    %122 = arith.sitofp %121 : vector<4x8xi32> to vector<4x8xf32>
    %c2_i32_99 = arith.constant 2 : i32
    %123 = vector.broadcast %c2_i32_99 : i32 to vector<4x8xi32>
    %124 = arith.muli %123, %116 : vector<4x8xi32>
    %c1_i32 = arith.constant 1 : i32
    %125 = vector.broadcast %c1_i32 : i32 to vector<4x8xi32>
    %126 = arith.addi %124, %125 : vector<4x8xi32>
    %127 = arith.cmpi eq, %117, %126 : vector<4x8xi32>
    %128 = arith.extui %127 : vector<4x8xi1> to vector<4x8xi32>
    %129 = arith.sitofp %128 : vector<4x8xi32> to vector<4x8xf32>
    %130 = arith.maximumf %84, %85 : vector<8x16xf32>
    %cst_100 = arith.constant dense<0.000000e+00> : vector<4x16xf32>
    %131 = tpu.matmul %122, %130, %cst_100 {dimension_numbers = #tpu.dot_dimension_numbers<[1], [0], [0], [1], [0, 0, 1, 1], [], []>} : vector<4x8xf32>, vector<8x16xf32>, vector<4x16xf32> -> vector<4x16xf32>
    %cst_101 = arith.constant dense<0.000000e+00> : vector<4x16xf32>
    %132 = tpu.matmul %129, %130, %cst_101 {dimension_numbers = #tpu.dot_dimension_numbers<[1], [0], [0], [1], [0, 0, 1, 1], [], []>} : vector<4x8xf32>, vector<8x16xf32>, vector<4x16xf32> -> vector<4x16xf32>
    %133 = arith.maximumf %131, %132 : vector<4x16xf32>
    %c0_102 = arith.constant 0 : index
    %c0_103 = arith.constant 0 : index
    %c0_104 = arith.constant 0 : index
    %c0_105 = arith.constant 0 : index
    %134 = vector.load %arg9[%c0_102, %c0_103, %c0_104, %c0_105] : memref<1x4x4x16xf32, #tpu.memory_space<vmem>>, vector<1x1x4x16xf32>
    %135 = vector.shape_cast %134 : vector<1x1x4x16xf32> to vector<4x16xf32>
    %136 = vector.shape_cast %133 : vector<4x16xf32> to vector<1x1x4x16xf32>
    tpu.vector_store %arg9[%c0_102, %c0_103, %c0_104, %c0_105], %136 {strides = array<i32>} : memref<1x4x4x16xf32, #tpu.memory_space<vmem>>, vector<1x1x4x16xf32>,
    %137 = arith.maximumf %86, %87 : vector<8x16xf32>
    %cst_106 = arith.constant dense<0.000000e+00> : vector<4x16xf32>
    %138 = tpu.matmul %122, %137, %cst_106 {dimension_numbers = #tpu.dot_dimension_numbers<[1], [0], [0], [1], [0, 0, 1, 1], [], []>} : vector<4x8xf32>, vector<8x16xf32>, vector<4x16xf32> -> vector<4x16xf32>
    %cst_107 = arith.constant dense<0.000000e+00> : vector<4x16xf32>
    %139 = tpu.matmul %129, %137, %cst_107 {dimension_numbers = #tpu.dot_dimension_numbers<[1], [0], [0], [1], [0, 0, 1, 1], [], []>} : vector<4x8xf32>, vector<8x16xf32>, vector<4x16xf32> -> vector<4x16xf32>
    %140 = arith.maximumf %138, %139 : vector<4x16xf32>
    %c0_108 = arith.constant 0 : index
    %c1_109 = arith.constant 1 : index
    %c0_110 = arith.constant 0 : index
    %c0_111 = arith.constant 0 : index
    %141 = vector.load %arg9[%c0_108, %c1_109, %c0_110, %c0_111] : memref<1x4x4x16xf32, #tpu.memory_space<vmem>>, vector<1x1x4x16xf32>
    %142 = vector.shape_cast %141 : vector<1x1x4x16xf32> to vector<4x16xf32>
    %143 = vector.shape_cast %140 : vector<4x16xf32> to vector<1x1x4x16xf32>
    tpu.vector_store %arg9[%c0_108, %c1_109, %c0_110, %c0_111], %143 {strides = array<i32>} : memref<1x4x4x16xf32, #tpu.memory_space<vmem>>, vector<1x1x4x16xf32>,
    %144 = arith.maximumf %88, %89 : vector<8x16xf32>
    %cst_112 = arith.constant dense<0.000000e+00> : vector<4x16xf32>
    %145 = tpu.matmul %122, %144, %cst_112 {dimension_numbers = #tpu.dot_dimension_numbers<[1], [0], [0], [1], [0, 0, 1, 1], [], []>} : vector<4x8xf32>, vector<8x16xf32>, vector<4x16xf32> -> vector<4x16xf32>
    %cst_113 = arith.constant dense<0.000000e+00> : vector<4x16xf32>
    %146 = tpu.matmul %129, %144, %cst_113 {dimension_numbers = #tpu.dot_dimension_numbers<[1], [0], [0], [1], [0, 0, 1, 1], [], []>} : vector<4x8xf32>, vector<8x16xf32>, vector<4x16xf32> -> vector<4x16xf32>
    %147 = arith.maximumf %145, %146 : vector<4x16xf32>
    %c0_114 = arith.constant 0 : index
    %c2_115 = arith.constant 2 : index
    %c0_116 = arith.constant 0 : index
    %c0_117 = arith.constant 0 : index
    %148 = vector.load %arg9[%c0_114, %c2_115, %c0_116, %c0_117] : memref<1x4x4x16xf32, #tpu.memory_space<vmem>>, vector<1x1x4x16xf32>
    %149 = vector.shape_cast %148 : vector<1x1x4x16xf32> to vector<4x16xf32>
    %150 = vector.shape_cast %147 : vector<4x16xf32> to vector<1x1x4x16xf32>
    tpu.vector_store %arg9[%c0_114, %c2_115, %c0_116, %c0_117], %150 {strides = array<i32>} : memref<1x4x4x16xf32, #tpu.memory_space<vmem>>, vector<1x1x4x16xf32>,
    %151 = arith.maximumf %90, %91 : vector<8x16xf32>
    %cst_118 = arith.constant dense<0.000000e+00> : vector<4x16xf32>
    %152 = tpu.matmul %122, %151, %cst_118 {dimension_numbers = #tpu.dot_dimension_numbers<[1], [0], [0], [1], [0, 0, 1, 1], [], []>} : vector<4x8xf32>, vector<8x16xf32>, vector<4x16xf32> -> vector<4x16xf32>
    %cst_119 = arith.constant dense<0.000000e+00> : vector<4x16xf32>
    %153 = tpu.matmul %129, %151, %cst_119 {dimension_numbers = #tpu.dot_dimension_numbers<[1], [0], [0], [1], [0, 0, 1, 1], [], []>} : vector<4x8xf32>, vector<8x16xf32>, vector<4x16xf32> -> vector<4x16xf32>
    %154 = arith.maximumf %152, %153 : vector<4x16xf32>
    %c0_120 = arith.constant 0 : index
    %c3_121 = arith.constant 3 : index
    %c0_122 = arith.constant 0 : index
    %c0_123 = arith.constant 0 : index
    %155 = vector.load %arg9[%c0_120, %c3_121, %c0_122, %c0_123] : memref<1x4x4x16xf32, #tpu.memory_space<vmem>>, vector<1x1x4x16xf32>
    %156 = vector.shape_cast %155 : vector<1x1x4x16xf32> to vector<4x16xf32>
    %157 = vector.shape_cast %154 : vector<4x16xf32> to vector<1x1x4x16xf32>
    tpu.vector_store %arg9[%c0_120, %c3_121, %c0_122, %c0_123], %157 {strides = array<i32>} : memref<1x4x4x16xf32, #tpu.memory_space<vmem>>, vector<1x1x4x16xf32>,
    return
  }
  func.func @transform_0(%arg0: i32) -> (i32, i32, i32) {
    %c0_i32 = arith.constant 0 : i32
    %c0_i32_0 = arith.constant 0 : i32
    %c0_i32_1 = arith.constant 0 : i32
    return %arg0, %c0_i32, %c0_i32_0 : i32, i32, i32
  }
  func.func @transform_1(%arg0: i32) -> (i32, i32) {
    %c0_i32 = arith.constant 0 : i32
    %c0_i32_0 = arith.constant 0 : i32
    %c0_i32_1 = arith.constant 0 : i32
    return %c0_i32, %c0_i32_0 : i32, i32
  }
  func.func @transform_2(%arg0: i32) -> (i32, i32) {
    %c0_i32 = arith.constant 0 : i32
    %c0_i32_0 = arith.constant 0 : i32
    %c0_i32_1 = arith.constant 0 : i32
    return %c0_i32, %c0_i32_0 : i32, i32
  }
  func.func @transform_3(%arg0: i32) -> (i32, i32) {
    %c0_i32 = arith.constant 0 : i32
    %c0_i32_0 = arith.constant 0 : i32
    %c0_i32_1 = arith.constant 0 : i32
    return %c0_i32, %c0_i32_0 : i32, i32
  }
  func.func @transform_4(%arg0: i32) -> (i32, i32, i32) {
    %c0_i32 = arith.constant 0 : i32
    %c0_i32_0 = arith.constant 0 : i32
    %c0_i32_1 = arith.constant 0 : i32
    %c0_i32_2 = arith.constant 0 : i32
    return %c0_i32, %c0_i32_0, %c0_i32_1 : i32, i32, i32
  }
  func.func @transform_5(%arg0: i32) -> (i32, i32) {
    %c0_i32 = arith.constant 0 : i32
    %c0_i32_0 = arith.constant 0 : i32
    %c0_i32_1 = arith.constant 0 : i32
    return %c0_i32, %c0_i32_0 : i32, i32
  }
  func.func @transform_6(%arg0: i32) -> (i32, i32) {
    %c0_i32 = arith.constant 0 : i32
    %c0_i32_0 = arith.constant 0 : i32
    %c0_i32_1 = arith.constant 0 : i32
    return %c0_i32, %c0_i32_0 : i32, i32
  }
  func.func @transform_7(%arg0: i32) -> (i32, i32, i32, i32) {
    %c0_i32 = arith.constant 0 : i32
    %c0_i32_0 = arith.constant 0 : i32
    %c0_i32_1 = arith.constant 0 : i32
    %c0_i32_2 = arith.constant 0 : i32
    return %arg0, %c0_i32, %c0_i32_0, %c0_i32_1 : i32, i32, i32, i32
  }
  func.func @transform_8(%arg0: i32) -> (i32, i32, i32, i32) {
    %c0_i32 = arith.constant 0 : i32
    %c0_i32_0 = arith.constant 0 : i32
    %c0_i32_1 = arith.constant 0 : i32
    %c0_i32_2 = arith.constant 0 : i32
    return %arg0, %c0_i32, %c0_i32_0, %c0_i32_1 : i32, i32, i32, i32
  }
}

module attributes {stable_mosaic.version = 11 : i64} {
  func.func @_fused_block_kernel(%arg0: i32, %arg1: memref<1x16x144xf32, #tpu.memory_space<vmem>>, %arg2: memref<144x32xf32, #tpu.memory_space<vmem>>, %arg3: memref<1x32xf32, #tpu.memory_space<vmem>>, %arg4: memref<1x32xf32, #tpu.memory_space<vmem>>, %arg5: memref<9x32x32xf32, #tpu.memory_space<vmem>>, %arg6: memref<1x32xf32, #tpu.memory_space<vmem>>, %arg7: memref<1x32xf32, #tpu.memory_space<vmem>>, %arg8: memref<1x4x4x32xf32, #tpu.memory_space<vmem>>, %arg9: memref<112x32xf32, #tpu.memory_space<vmem>>) attributes {dimension_semantics = [#tpu.dimension_semantics<parallel>], iteration_bounds = array<i64: 2>, scalar_prefetch = 0 : i64, scratch_operands = 1 : i64, tpu.core_type = #tpu.core_type<tc>, window_params = [{transform_indices = @transform_0, window_bounds = array<i64: 1, 16, 144>}, {pipeline_mode = #tpu.pipeline_mode<synchronous>, transform_indices = @transform_1, window_bounds = array<i64: 144, 32>}, {pipeline_mode = #tpu.pipeline_mode<synchronous>, transform_indices = @transform_2, window_bounds = array<i64: 1, 32>}, {pipeline_mode = #tpu.pipeline_mode<synchronous>, transform_indices = @transform_3, window_bounds = array<i64: 1, 32>}, {pipeline_mode = #tpu.pipeline_mode<synchronous>, transform_indices = @transform_4, window_bounds = array<i64: 9, 32, 32>}, {pipeline_mode = #tpu.pipeline_mode<synchronous>, transform_indices = @transform_5, window_bounds = array<i64: 1, 32>}, {pipeline_mode = #tpu.pipeline_mode<synchronous>, transform_indices = @transform_6, window_bounds = array<i64: 1, 32>}, {transform_indices = @transform_7, window_bounds = array<i64: 1, 4, 4, 32>}]} {
    %c0 = arith.constant 0 : index
    %c0_0 = arith.constant 0 : index
    %c0_1 = arith.constant 0 : index
    %0 = vector.load %arg1[%c0, %c0_0, %c0_1] : memref<1x16x144xf32, #tpu.memory_space<vmem>>, vector<1x16x144xf32>
    %1 = vector.shape_cast %0 : vector<1x16x144xf32> to vector<16x144xf32>
    %c0_2 = arith.constant 0 : index
    %c0_3 = arith.constant 0 : index
    %2 = vector.load %arg2[%c0_2, %c0_3] : memref<144x32xf32, #tpu.memory_space<vmem>>, vector<144x32xf32>
    %cst = arith.constant dense<0.000000e+00> : vector<16x32xf32>
    %3 = tpu.matmul %1, %2, %cst {dimension_numbers = #tpu.dot_dimension_numbers<[1], [0], [0], [1], [0, 0, 1, 1], [], []>} : vector<16x144xf32>, vector<144x32xf32>, vector<16x32xf32> -> vector<16x32xf32>
    %c0_4 = arith.constant 0 : index
    %c0_5 = arith.constant 0 : index
    %4 = vector.load %arg3[%c0_4, %c0_5] : memref<1x32xf32, #tpu.memory_space<vmem>>, vector<1x32xf32>
    %5 = vector.broadcast %4 : vector<1x32xf32> to vector<16x32xf32>
    %6 = arith.mulf %3, %5 : vector<16x32xf32>
    %c0_6 = arith.constant 0 : index
    %c0_7 = arith.constant 0 : index
    %7 = vector.load %arg4[%c0_6, %c0_7] : memref<1x32xf32, #tpu.memory_space<vmem>>, vector<1x32xf32>
    %8 = vector.broadcast %7 : vector<1x32xf32> to vector<16x32xf32>
    %9 = arith.addf %6, %8 : vector<16x32xf32>
    %cst_8 = arith.constant 0.000000e+00 : f32
    %10 = vector.broadcast %cst_8 : f32 to vector<16x32xf32>
    %11 = arith.maximumf %9, %10 : vector<16x32xf32>
    %cst_9 = arith.constant 0.000000e+00 : f32
    %12 = vector.broadcast %cst_9 : f32 to vector<112x32xf32>
    %c0_10 = arith.constant 0 : index
    %c0_11 = arith.constant 0 : index
    %13 = vector.load %arg9[%c0_10, %c0_11] : memref<112x32xf32, #tpu.memory_space<vmem>>, vector<112x32xf32>
    tpu.vector_store %arg9[%c0_10, %c0_11], %12 {strides = array<i32>} : memref<112x32xf32, #tpu.memory_space<vmem>>, vector<112x32xf32>,
    %14 = vector.extract_strided_slice %11 {offsets = [0, 0], sizes = [4, 32], strides = [1, 1]} : vector<16x32xf32> to vector<4x32xf32>
    %c24 = arith.constant 24 : index
    %c0_12 = arith.constant 0 : index
    %15 = vector.load %arg9[%c24, %c0_12] : memref<112x32xf32, #tpu.memory_space<vmem>>, vector<4x32xf32>
    tpu.vector_store %arg9[%c24, %c0_12], %14 {strides = array<i32>} : memref<112x32xf32, #tpu.memory_space<vmem>>, vector<4x32xf32>,
    %16 = vector.extract_strided_slice %11 {offsets = [4, 0], sizes = [4, 32], strides = [1, 1]} : vector<16x32xf32> to vector<4x32xf32>
    %c40 = arith.constant 40 : index
    %c0_13 = arith.constant 0 : index
    %17 = vector.load %arg9[%c40, %c0_13] : memref<112x32xf32, #tpu.memory_space<vmem>>, vector<4x32xf32>
    tpu.vector_store %arg9[%c40, %c0_13], %16 {strides = array<i32>} : memref<112x32xf32, #tpu.memory_space<vmem>>, vector<4x32xf32>,
    %18 = vector.extract_strided_slice %11 {offsets = [8, 0], sizes = [4, 32], strides = [1, 1]} : vector<16x32xf32> to vector<4x32xf32>
    %c56 = arith.constant 56 : index
    %c0_14 = arith.constant 0 : index
    %19 = vector.load %arg9[%c56, %c0_14] : memref<112x32xf32, #tpu.memory_space<vmem>>, vector<4x32xf32>
    tpu.vector_store %arg9[%c56, %c0_14], %18 {strides = array<i32>} : memref<112x32xf32, #tpu.memory_space<vmem>>, vector<4x32xf32>,
    %20 = vector.extract_strided_slice %11 {offsets = [12, 0], sizes = [4, 32], strides = [1, 1]} : vector<16x32xf32> to vector<4x32xf32>
    %c72 = arith.constant 72 : index
    %c0_15 = arith.constant 0 : index
    %21 = vector.load %arg9[%c72, %c0_15] : memref<112x32xf32, #tpu.memory_space<vmem>>, vector<4x32xf32>
    tpu.vector_store %arg9[%c72, %c0_15], %20 {strides = array<i32>} : memref<112x32xf32, #tpu.memory_space<vmem>>, vector<4x32xf32>,
    %cst_16 = arith.constant 0.000000e+00 : f32
    %22 = vector.broadcast %cst_16 : f32 to vector<64x32xf32>
    %c7 = arith.constant 7 : index
    %c0_17 = arith.constant 0 : index
    %23 = vector.load %arg9[%c7, %c0_17] : memref<112x32xf32, #tpu.memory_space<vmem>>, vector<64x32xf32>
    %c0_18 = arith.constant 0 : index
    %c0_19 = arith.constant 0 : index
    %c0_20 = arith.constant 0 : index
    %24 = vector.load %arg5[%c0_18, %c0_19, %c0_20] : memref<9x32x32xf32, #tpu.memory_space<vmem>>, vector<1x32x32xf32>
    %25 = vector.shape_cast %24 : vector<1x32x32xf32> to vector<32x32xf32>
    %cst_21 = arith.constant dense<0.000000e+00> : vector<64x32xf32>
    %26 = tpu.matmul %23, %25, %cst_21 {dimension_numbers = #tpu.dot_dimension_numbers<[1], [0], [0], [1], [0, 0, 1, 1], [], []>} : vector<64x32xf32>, vector<32x32xf32>, vector<64x32xf32> -> vector<64x32xf32>
    %27 = arith.addf %22, %26 : vector<64x32xf32>
    %c8 = arith.constant 8 : index
    %c0_22 = arith.constant 0 : index
    %28 = vector.load %arg9[%c8, %c0_22] : memref<112x32xf32, #tpu.memory_space<vmem>>, vector<64x32xf32>
    %c1 = arith.constant 1 : index
    %c0_23 = arith.constant 0 : index
    %c0_24 = arith.constant 0 : index
    %29 = vector.load %arg5[%c1, %c0_23, %c0_24] : memref<9x32x32xf32, #tpu.memory_space<vmem>>, vector<1x32x32xf32>
    %30 = vector.shape_cast %29 : vector<1x32x32xf32> to vector<32x32xf32>
    %cst_25 = arith.constant dense<0.000000e+00> : vector<64x32xf32>
    %31 = tpu.matmul %28, %30, %cst_25 {dimension_numbers = #tpu.dot_dimension_numbers<[1], [0], [0], [1], [0, 0, 1, 1], [], []>} : vector<64x32xf32>, vector<32x32xf32>, vector<64x32xf32> -> vector<64x32xf32>
    %32 = arith.addf %27, %31 : vector<64x32xf32>
    %c9 = arith.constant 9 : index
    %c0_26 = arith.constant 0 : index
    %33 = vector.load %arg9[%c9, %c0_26] : memref<112x32xf32, #tpu.memory_space<vmem>>, vector<64x32xf32>
    %c2 = arith.constant 2 : index
    %c0_27 = arith.constant 0 : index
    %c0_28 = arith.constant 0 : index
    %34 = vector.load %arg5[%c2, %c0_27, %c0_28] : memref<9x32x32xf32, #tpu.memory_space<vmem>>, vector<1x32x32xf32>
    %35 = vector.shape_cast %34 : vector<1x32x32xf32> to vector<32x32xf32>
    %cst_29 = arith.constant dense<0.000000e+00> : vector<64x32xf32>
    %36 = tpu.matmul %33, %35, %cst_29 {dimension_numbers = #tpu.dot_dimension_numbers<[1], [0], [0], [1], [0, 0, 1, 1], [], []>} : vector<64x32xf32>, vector<32x32xf32>, vector<64x32xf32> -> vector<64x32xf32>
    %37 = arith.addf %32, %36 : vector<64x32xf32>
    %c23 = arith.constant 23 : index
    %c0_30 = arith.constant 0 : index
    %38 = vector.load %arg9[%c23, %c0_30] : memref<112x32xf32, #tpu.memory_space<vmem>>, vector<64x32xf32>
    %c3 = arith.constant 3 : index
    %c0_31 = arith.constant 0 : index
    %c0_32 = arith.constant 0 : index
    %39 = vector.load %arg5[%c3, %c0_31, %c0_32] : memref<9x32x32xf32, #tpu.memory_space<vmem>>, vector<1x32x32xf32>
    %40 = vector.shape_cast %39 : vector<1x32x32xf32> to vector<32x32xf32>
    %cst_33 = arith.constant dense<0.000000e+00> : vector<64x32xf32>
    %41 = tpu.matmul %38, %40, %cst_33 {dimension_numbers = #tpu.dot_dimension_numbers<[1], [0], [0], [1], [0, 0, 1, 1], [], []>} : vector<64x32xf32>, vector<32x32xf32>, vector<64x32xf32> -> vector<64x32xf32>
    %42 = arith.addf %37, %41 : vector<64x32xf32>
    %c24_34 = arith.constant 24 : index
    %c0_35 = arith.constant 0 : index
    %43 = vector.load %arg9[%c24_34, %c0_35] : memref<112x32xf32, #tpu.memory_space<vmem>>, vector<64x32xf32>
    %c4 = arith.constant 4 : index
    %c0_36 = arith.constant 0 : index
    %c0_37 = arith.constant 0 : index
    %44 = vector.load %arg5[%c4, %c0_36, %c0_37] : memref<9x32x32xf32, #tpu.memory_space<vmem>>, vector<1x32x32xf32>
    %45 = vector.shape_cast %44 : vector<1x32x32xf32> to vector<32x32xf32>
    %cst_38 = arith.constant dense<0.000000e+00> : vector<64x32xf32>
    %46 = tpu.matmul %43, %45, %cst_38 {dimension_numbers = #tpu.dot_dimension_numbers<[1], [0], [0], [1], [0, 0, 1, 1], [], []>} : vector<64x32xf32>, vector<32x32xf32>, vector<64x32xf32> -> vector<64x32xf32>
    %47 = arith.addf %42, %46 : vector<64x32xf32>
    %c25 = arith.constant 25 : index
    %c0_39 = arith.constant 0 : index
    %48 = vector.load %arg9[%c25, %c0_39] : memref<112x32xf32, #tpu.memory_space<vmem>>, vector<64x32xf32>
    %c5 = arith.constant 5 : index
    %c0_40 = arith.constant 0 : index
    %c0_41 = arith.constant 0 : index
    %49 = vector.load %arg5[%c5, %c0_40, %c0_41] : memref<9x32x32xf32, #tpu.memory_space<vmem>>, vector<1x32x32xf32>
    %50 = vector.shape_cast %49 : vector<1x32x32xf32> to vector<32x32xf32>
    %cst_42 = arith.constant dense<0.000000e+00> : vector<64x32xf32>
    %51 = tpu.matmul %48, %50, %cst_42 {dimension_numbers = #tpu.dot_dimension_numbers<[1], [0], [0], [1], [0, 0, 1, 1], [], []>} : vector<64x32xf32>, vector<32x32xf32>, vector<64x32xf32> -> vector<64x32xf32>
    %52 = arith.addf %47, %51 : vector<64x32xf32>
    %c39 = arith.constant 39 : index
    %c0_43 = arith.constant 0 : index
    %53 = vector.load %arg9[%c39, %c0_43] : memref<112x32xf32, #tpu.memory_space<vmem>>, vector<64x32xf32>
    %c6 = arith.constant 6 : index
    %c0_44 = arith.constant 0 : index
    %c0_45 = arith.constant 0 : index
    %54 = vector.load %arg5[%c6, %c0_44, %c0_45] : memref<9x32x32xf32, #tpu.memory_space<vmem>>, vector<1x32x32xf32>
    %55 = vector.shape_cast %54 : vector<1x32x32xf32> to vector<32x32xf32>
    %cst_46 = arith.constant dense<0.000000e+00> : vector<64x32xf32>
    %56 = tpu.matmul %53, %55, %cst_46 {dimension_numbers = #tpu.dot_dimension_numbers<[1], [0], [0], [1], [0, 0, 1, 1], [], []>} : vector<64x32xf32>, vector<32x32xf32>, vector<64x32xf32> -> vector<64x32xf32>
    %57 = arith.addf %52, %56 : vector<64x32xf32>
    %c40_47 = arith.constant 40 : index
    %c0_48 = arith.constant 0 : index
    %58 = vector.load %arg9[%c40_47, %c0_48] : memref<112x32xf32, #tpu.memory_space<vmem>>, vector<64x32xf32>
    %c7_49 = arith.constant 7 : index
    %c0_50 = arith.constant 0 : index
    %c0_51 = arith.constant 0 : index
    %59 = vector.load %arg5[%c7_49, %c0_50, %c0_51] : memref<9x32x32xf32, #tpu.memory_space<vmem>>, vector<1x32x32xf32>
    %60 = vector.shape_cast %59 : vector<1x32x32xf32> to vector<32x32xf32>
    %cst_52 = arith.constant dense<0.000000e+00> : vector<64x32xf32>
    %61 = tpu.matmul %58, %60, %cst_52 {dimension_numbers = #tpu.dot_dimension_numbers<[1], [0], [0], [1], [0, 0, 1, 1], [], []>} : vector<64x32xf32>, vector<32x32xf32>, vector<64x32xf32> -> vector<64x32xf32>
    %62 = arith.addf %57, %61 : vector<64x32xf32>
    %c41 = arith.constant 41 : index
    %c0_53 = arith.constant 0 : index
    %63 = vector.load %arg9[%c41, %c0_53] : memref<112x32xf32, #tpu.memory_space<vmem>>, vector<64x32xf32>
    %c8_54 = arith.constant 8 : index
    %c0_55 = arith.constant 0 : index
    %c0_56 = arith.constant 0 : index
    %64 = vector.load %arg5[%c8_54, %c0_55, %c0_56] : memref<9x32x32xf32, #tpu.memory_space<vmem>>, vector<1x32x32xf32>
    %65 = vector.shape_cast %64 : vector<1x32x32xf32> to vector<32x32xf32>
    %cst_57 = arith.constant dense<0.000000e+00> : vector<64x32xf32>
    %66 = tpu.matmul %63, %65, %cst_57 {dimension_numbers = #tpu.dot_dimension_numbers<[1], [0], [0], [1], [0, 0, 1, 1], [], []>} : vector<64x32xf32>, vector<32x32xf32>, vector<64x32xf32> -> vector<64x32xf32>
    %67 = arith.addf %62, %66 : vector<64x32xf32>
    %c0_58 = arith.constant 0 : index
    %c0_59 = arith.constant 0 : index
    %68 = vector.load %arg6[%c0_58, %c0_59] : memref<1x32xf32, #tpu.memory_space<vmem>>, vector<1x32xf32>
    %69 = vector.broadcast %68 : vector<1x32xf32> to vector<64x32xf32>
    %70 = arith.mulf %67, %69 : vector<64x32xf32>
    %c0_60 = arith.constant 0 : index
    %c0_61 = arith.constant 0 : index
    %71 = vector.load %arg7[%c0_60, %c0_61] : memref<1x32xf32, #tpu.memory_space<vmem>>, vector<1x32xf32>
    %72 = vector.broadcast %71 : vector<1x32xf32> to vector<64x32xf32>
    %73 = arith.addf %70, %72 : vector<64x32xf32>
    %cst_62 = arith.constant 0.000000e+00 : f32
    %74 = vector.broadcast %cst_62 : f32 to vector<64x32xf32>
    %75 = arith.maximumf %73, %74 : vector<64x32xf32>
    %76 = vector.extract_strided_slice %75 {offsets = [0, 0], sizes = [4, 32], strides = [1, 1]} : vector<64x32xf32> to vector<4x32xf32>
    %77 = vector.extract_strided_slice %75 {offsets = [16, 0], sizes = [4, 32], strides = [1, 1]} : vector<64x32xf32> to vector<4x32xf32>
    %78 = vector.extract_strided_slice %75 {offsets = [32, 0], sizes = [4, 32], strides = [1, 1]} : vector<64x32xf32> to vector<4x32xf32>
    %79 = vector.extract_strided_slice %75 {offsets = [48, 0], sizes = [4, 32], strides = [1, 1]} : vector<64x32xf32> to vector<4x32xf32>
    %c0_63 = arith.constant 0 : index
    %c0_64 = arith.constant 0 : index
    %c0_65 = arith.constant 0 : index
    %c0_66 = arith.constant 0 : index
    %80 = vector.load %arg8[%c0_63, %c0_64, %c0_65, %c0_66] : memref<1x4x4x32xf32, #tpu.memory_space<vmem>>, vector<1x1x4x32xf32>
    %81 = vector.shape_cast %80 : vector<1x1x4x32xf32> to vector<4x32xf32>
    %82 = vector.shape_cast %76 : vector<4x32xf32> to vector<1x1x4x32xf32>
    tpu.vector_store %arg8[%c0_63, %c0_64, %c0_65, %c0_66], %82 {strides = array<i32>} : memref<1x4x4x32xf32, #tpu.memory_space<vmem>>, vector<1x1x4x32xf32>,
    %c0_67 = arith.constant 0 : index
    %c1_68 = arith.constant 1 : index
    %c0_69 = arith.constant 0 : index
    %c0_70 = arith.constant 0 : index
    %83 = vector.load %arg8[%c0_67, %c1_68, %c0_69, %c0_70] : memref<1x4x4x32xf32, #tpu.memory_space<vmem>>, vector<1x1x4x32xf32>
    %84 = vector.shape_cast %83 : vector<1x1x4x32xf32> to vector<4x32xf32>
    %85 = vector.shape_cast %77 : vector<4x32xf32> to vector<1x1x4x32xf32>
    tpu.vector_store %arg8[%c0_67, %c1_68, %c0_69, %c0_70], %85 {strides = array<i32>} : memref<1x4x4x32xf32, #tpu.memory_space<vmem>>, vector<1x1x4x32xf32>,
    %c0_71 = arith.constant 0 : index
    %c2_72 = arith.constant 2 : index
    %c0_73 = arith.constant 0 : index
    %c0_74 = arith.constant 0 : index
    %86 = vector.load %arg8[%c0_71, %c2_72, %c0_73, %c0_74] : memref<1x4x4x32xf32, #tpu.memory_space<vmem>>, vector<1x1x4x32xf32>
    %87 = vector.shape_cast %86 : vector<1x1x4x32xf32> to vector<4x32xf32>
    %88 = vector.shape_cast %78 : vector<4x32xf32> to vector<1x1x4x32xf32>
    tpu.vector_store %arg8[%c0_71, %c2_72, %c0_73, %c0_74], %88 {strides = array<i32>} : memref<1x4x4x32xf32, #tpu.memory_space<vmem>>, vector<1x1x4x32xf32>,
    %c0_75 = arith.constant 0 : index
    %c3_76 = arith.constant 3 : index
    %c0_77 = arith.constant 0 : index
    %c0_78 = arith.constant 0 : index
    %89 = vector.load %arg8[%c0_75, %c3_76, %c0_77, %c0_78] : memref<1x4x4x32xf32, #tpu.memory_space<vmem>>, vector<1x1x4x32xf32>
    %90 = vector.shape_cast %89 : vector<1x1x4x32xf32> to vector<4x32xf32>
    %91 = vector.shape_cast %79 : vector<4x32xf32> to vector<1x1x4x32xf32>
    tpu.vector_store %arg8[%c0_75, %c3_76, %c0_77, %c0_78], %91 {strides = array<i32>} : memref<1x4x4x32xf32, #tpu.memory_space<vmem>>, vector<1x1x4x32xf32>,
    return
  }
  func.func @transform_0(%arg0: i32) -> (i32, i32, i32) {
    %c0_i32 = arith.constant 0 : i32
    %c0_i32_0 = arith.constant 0 : i32
    %c0_i32_1 = arith.constant 0 : i32
    return %arg0, %c0_i32, %c0_i32_0 : i32, i32, i32
  }
  func.func @transform_1(%arg0: i32) -> (i32, i32) {
    %c0_i32 = arith.constant 0 : i32
    %c0_i32_0 = arith.constant 0 : i32
    %c0_i32_1 = arith.constant 0 : i32
    return %c0_i32, %c0_i32_0 : i32, i32
  }
  func.func @transform_2(%arg0: i32) -> (i32, i32) {
    %c0_i32 = arith.constant 0 : i32
    %c0_i32_0 = arith.constant 0 : i32
    %c0_i32_1 = arith.constant 0 : i32
    return %c0_i32, %c0_i32_0 : i32, i32
  }
  func.func @transform_3(%arg0: i32) -> (i32, i32) {
    %c0_i32 = arith.constant 0 : i32
    %c0_i32_0 = arith.constant 0 : i32
    %c0_i32_1 = arith.constant 0 : i32
    return %c0_i32, %c0_i32_0 : i32, i32
  }
  func.func @transform_4(%arg0: i32) -> (i32, i32, i32) {
    %c0_i32 = arith.constant 0 : i32
    %c0_i32_0 = arith.constant 0 : i32
    %c0_i32_1 = arith.constant 0 : i32
    %c0_i32_2 = arith.constant 0 : i32
    return %c0_i32, %c0_i32_0, %c0_i32_1 : i32, i32, i32
  }
  func.func @transform_5(%arg0: i32) -> (i32, i32) {
    %c0_i32 = arith.constant 0 : i32
    %c0_i32_0 = arith.constant 0 : i32
    %c0_i32_1 = arith.constant 0 : i32
    return %c0_i32, %c0_i32_0 : i32, i32
  }
  func.func @transform_6(%arg0: i32) -> (i32, i32) {
    %c0_i32 = arith.constant 0 : i32
    %c0_i32_0 = arith.constant 0 : i32
    %c0_i32_1 = arith.constant 0 : i32
    return %c0_i32, %c0_i32_0 : i32, i32
  }
  func.func @transform_7(%arg0: i32) -> (i32, i32, i32, i32) {
    %c0_i32 = arith.constant 0 : i32
    %c0_i32_0 = arith.constant 0 : i32
    %c0_i32_1 = arith.constant 0 : i32
    %c0_i32_2 = arith.constant 0 : i32
    return %arg0, %c0_i32, %c0_i32_0, %c0_i32_1 : i32, i32, i32, i32
  }
}

</mosaic_0001>

<llo_original>
// kernel: encoder_forward.4
$region0: #{encoder_forward.4}
  #allocation0 [shape = 'u32[]', space=smem, size = 0x4, offset = 0x4, fixed_abs, tag = 'smem constant byte address 0x4 - core index']
  #allocation1 [shape = 'u32[72,128]{1,0:T(1,128)}', space=vmem, size = 0x9000, scoped, tag = 'internal scratch']
  #allocation2 [shape = 'f32[256,16]{1,0:T(8,128)}', space=vmem, size = 0x20000, scoped, tag = 'scratch operand']
  %s0 = inlined_call_operand.vmem [shape: f32[2,64,72], index: 0, kind: input, shape index: {}]
  %s1 = inlined_call_operand.vmem [shape: f32[72,16], index: 1, kind: input, shape index: {}]
  %s2 = inlined_call_operand.vmem [shape: f32[1,16], index: 2, kind: input, shape index: {}]
  %s3 = inlined_call_operand.vmem [shape: f32[1,16], index: 3, kind: input, shape index: {}]
  %s4 = inlined_call_operand.vmem [shape: f32[9,16,16], index: 4, kind: input, shape index: {}]
  %s5 = inlined_call_operand.vmem [shape: f32[1,16], index: 5, kind: input, shape index: {}]
  %s6 = inlined_call_operand.vmem [shape: f32[1,16], index: 6, kind: input, shape index: {}]
  %s7 = inlined_call_operand.hbm [shape: f32[2,8,8,16], index: 7, kind: output, shape index: {0}]
  %s8 = inlined_call_operand.vmem [shape: f32[2,4,4,16], index: 8, kind: output, shape index: {1}]
  %9 = xla_tuple %s7, %s8
  %s10 = sld [smem:[#allocation0]]
  $region69: #{encoder_forward.4} parent=0
    _
  %s12 = ssub.s32 1, %s10
  %s13 = scalar_select 0, %s12, %s10
  $region1: #{encoder_forward.4} parent=0
    #allocation3 [shape = 'u8[65536]{0}', space=vmem, size = 0x10000, scoped, tag = 'output window, operand 0']
    #allocation4 [shape = 's32[2]{0}', space=sflag, size = 0x8, scoped, tag = 'scoped memory for encoder_forward.4']
    %14 = vsyncpa [#allocation4], 0
    %s15 = scalar_lea.sflag [#allocation4], 1
    %16 = vsyncpa %s15, 0
    loop: start=0, step=1, limit=4
    $region2: #{encoder_forward.4} parent=1 // loop_pre_header
      _
    $region3: #{encoder_forward.4} parent=1 // loop_header
      %s18 = sphi 0, %s22
      %p19 = scmp.ge.s32.totalorder %s18, 4
      %s28 = sphi 0, %s30
      %s31 = sphi 0, %s28
      %s32 = sphi 0, %s31
      %s48 = sphi 0, %s32
      %s52 = sphi 0, %s52
      %s54 = sphi 0, %s52
      %s55 = sphi 0, %s54
      %s69 = sphi 0, %s55
      %s73 = sphi 0, %s73
      %s75 = sphi 0, %s73
      %s76 = sphi 0, %s75
      %s90 = sphi 0, %s76
      %s94 = sphi 0, %s94
      %s96 = sphi 0, %s94
      %s97 = sphi 0, %s96
      %s111 = sphi 0, %s97
      %s115 = sphi 0, %s115
      %s117 = sphi 0, %s115
      %s118 = sphi 0, %s117
      %s132 = sphi 0, %s118
      %s136 = sphi 0, %s136
      %s138 = sphi 0, %s136
      %s139 = sphi 0, %s138
      %s153 = sphi 0, %s139
      %s157 = sphi 0, %s157
      %s159 = sphi 0, %s157
      %s160 = sphi 0, %s159
      %s174 = sphi 0, %s160
      %s180 = sphi 0, %s182
      %s183 = sphi 0, %s180
      %s184 = sphi 0, %s183
      %s200 = sphi 0, %s184
      %s206 = sphi 0, %s208
      %s209 = sphi 0, %s206
      %s210 = sphi 0, %s209
      %s226 = sphi 0, %s210
    $region4: #{encoder_forward.4} parent=1 // loop_header_branch
      %21 = sbr.rel (%p19) target = $region8
    $region5: #{encoder_forward.4} parent=1 // loop_body
      %s23 = ssub.s32 %s18, 1
      %s24 = ssub.s32 %s18, 2
      %s25 = sadd.s32 %s18, 1
      %s26 = ssub.s32 %s18, %s25
      %p27 = scmp.eq.s32.totalorder %s26, 0
      %s29 = sadd.s32 %s28, 1
      %s30 = scalar_select %p27, %s28, %s29
      %p33 = pneg %p27
      %p34 = scmp.eq.s32.totalorder %s18, 1
      %p35 = por %p33, %p34
      %p36 = scmp.ne.s32.totalorder %s28, %s31
      %p37 = scmp.eq.s32.totalorder %s18, 0
      %p38 = por %p36, %p37
      %p39 = scmp.ne.s32.totalorder %s28, %s31
      %p40 = scmp.eq.s32.totalorder %s23, 1
      %p41 = por %p39, %p40
      %p42 = scmp.ne.s32.totalorder %s31, %s32
      %p43 = scmp.eq.s32.totalorder %s23, 0
      %p44 = por %p42, %p43
      %p45 = scmp.ne.s32.totalorder %s31, %s32
      %p46 = scmp.eq.s32.totalorder %s24, 1
      %p47 = por %p45, %p46
      %p49 = scmp.ne.s32.totalorder %s32, %s48
      %p50 = scmp.eq.s32.totalorder %s24, 0
      %p51 = por %p49, %p50
      %s53 = sadd.s32 %s52, 1
      %p56 = scmp.eq.s32.totalorder %s18, 1
      %p57 = scmp.ne.s32.totalorder %s52, %s54
      %p58 = scmp.eq.s32.totalorder %s18, 0
      %p59 = por %p57, %p58
      %p60 = scmp.ne.s32.totalorder %s52, %s54
      %p61 = scmp.eq.s32.totalorder %s23, 1
      %p62 = por %p60, %p61
      %p63 = scmp.ne.s32.totalorder %s54, %s55
      %p64 = scmp.eq.s32.totalorder %s23, 0
      %p65 = por %p63, %p64
      %p66 = scmp.ne.s32.totalorder %s54, %s55
      %p67 = scmp.eq.s32.totalorder %s24, 1
      %p68 = por %p66, %p67
      %p70 = scmp.ne.s32.totalorder %s55, %s69
      %p71 = scmp.eq.s32.totalorder %s24, 0
      %p72 = por %p70, %p71
      %s74 = sadd.s32 %s73, 1
      %p77 = scmp.eq.s32.totalorder %s18, 1
      %p78 = scmp.ne.s32.totalorder %s73, %s75
      %p79 = scmp.eq.s32.totalorder %s18, 0
      %p80 = por %p78, %p79
      %p81 = scmp.ne.s32.totalorder %s73, %s75
      %p82 = scmp.eq.s32.totalorder %s23, 1
      %p83 = por %p81, %p82
      %p84 = scmp.ne.s32.totalorder %s75, %s76
      %p85 = scmp.eq.s32.totalorder %s23, 0
      %p86 = por %p84, %p85
      %p87 = scmp.ne.s32.totalorder %s75, %s76
      %p88 = scmp.eq.s32.totalorder %s24, 1
      %p89 = por %p87, %p88
      %p91 = scmp.ne.s32.totalorder %s76, %s90
      %p92 = scmp.eq.s32.totalorder %s24, 0
      %p93 = por %p91, %p92
      %s95 = sadd.s32 %s94, 1
      %p98 = scmp.eq.s32.totalorder %s18, 1
      %p99 = scmp.ne.s32.totalorder %s94, %s96
      %p100 = scmp.eq.s32.totalorder %s18, 0
      %p101 = por %p99, %p100
      %p102 = scmp.ne.s32.totalorder %s94, %s96
      %p103 = scmp.eq.s32.totalorder %s23, 1
      %p104 = por %p102, %p103
      %p105 = scmp.ne.s32.totalorder %s96, %s97
      %p106 = scmp.eq.s32.totalorder %s23, 0
      %p107 = por %p105, %p106
      %p108 = scmp.ne.s32.totalorder %s96, %s97
      %p109 = scmp.eq.s32.totalorder %s24, 1
      %p110 = por %p108, %p109
      %p112 = scmp.ne.s32.totalorder %s97, %s111
      %p113 = scmp.eq.s32.totalorder %s24, 0
      %p114 = por %p112, %p113
      %s116 = sadd.s32 %s115, 1
      %p119 = scmp.eq.s32.totalorder %s18, 1
      %p120 = scmp.ne.s32.totalorder %s115, %s117
      %p121 = scmp.eq.s32.totalorder %s18, 0
      %p122 = por %p120, %p121
      %p123 = scmp.ne.s32.totalorder %s115, %s117
      %p124 = scmp.eq.s32.totalorder %s23, 1
      %p125 = por %p123, %p124
      %p126 = scmp.ne.s32.totalorder %s117, %s118
      %p127 = scmp.eq.s32.totalorder %s23, 0
      %p128 = por %p126, %p127
      %p129 = scmp.ne.s32.totalorder %s117, %s118
      %p130 = scmp.eq.s32.totalorder %s24, 1
      %p131 = por %p129, %p130
      %p133 = scmp.ne.s32.totalorder %s118, %s132
      %p134 = scmp.eq.s32.totalorder %s24, 0
      %p135 = por %p133, %p134
      %s137 = sadd.s32 %s136, 1
      %p140 = scmp.eq.s32.totalorder %s18, 1
      %p141 = scmp.ne.s32.totalorder %s136, %s138
      %p142 = scmp.eq.s32.totalorder %s18, 0
      %p143 = por %p141, %p142
      %p144 = scmp.ne.s32.totalorder %s136, %s138
      %p145 = scmp.eq.s32.totalorder %s23, 1
      %p146 = por %p144, %p145
      %p147 = scmp.ne.s32.totalorder %s138, %s139
      %p148 = scmp.eq.s32.totalorder %s23, 0
      %p149 = por %p147, %p148
      %p150 = scmp.ne.s32.totalorder %s138, %s139
      %p151 = scmp.eq.s32.totalorder %s24, 1
      %p152 = por %p150, %p151
      %p154 = scmp.ne.s32.totalorder %s139, %s153
      %p155 = scmp.eq.s32.totalorder %s24, 0
      %p156 = por %p154, %p155
      %s158 = sadd.s32 %s157, 1
      %p161 = scmp.eq.s32.totalorder %s18, 1
      %p162 = scmp.ne.s32.totalorder %s157, %s159
      %p163 = scmp.eq.s32.totalorder %s18, 0
      %p164 = por %p162, %p163
      %p165 = scmp.ne.s32.totalorder %s157, %s159
      %p166 = scmp.eq.s32.totalorder %s23, 1
      %p167 = por %p165, %p166
      %p168 = scmp.ne.s32.totalorder %s159, %s160
      %p169 = scmp.eq.s32.totalorder %s23, 0
      %p170 = por %p168, %p169
      %p171 = scmp.ne.s32.totalorder %s159, %s160
      %p172 = scmp.eq.s32.totalorder %s24, 1
      %p173 = por %p171, %p172
      %p175 = scmp.ne.s32.totalorder %s160, %s174
      %p176 = scmp.eq.s32.totalorder %s24, 0
      %p177 = por %p175, %p176
      %s178 = ssub.s32 %s18, %s25
      %p179 = scmp.eq.s32.totalorder %s178, 0
      %s181 = sadd.s32 %s180, 1
      %s182 = scalar_select %p179, %s180, %s181
      %p185 = pneg %p179
      %p186 = scmp.eq.s32.totalorder %s18, 1
      %p187 = por %p185, %p186
      %p188 = scmp.ne.s32.totalorder %s180, %s183
      %p189 = scmp.eq.s32.totalorder %s18, 0
      %p190 = por %p188, %p189
      %p191 = scmp.ne.s32.totalorder %s180, %s183
      %p192 = scmp.eq.s32.totalorder %s23, 1
      %p193 = por %p191, %p192
      %p194 = scmp.ne.s32.totalorder %s183, %s184
      %p195 = scmp.eq.s32.totalorder %s23, 0
      %p196 = por %p194, %p195
      %p197 = scmp.ne.s32.totalorder %s183, %s184
      %p198 = scmp.eq.s32.totalorder %s24, 1
      %p199 = por %p197, %p198
      %p201 = scmp.ne.s32.totalorder %s184, %s200
      %p202 = scmp.eq.s32.totalorder %s24, 0
      %p203 = por %p201, %p202
      %s204 = ssub.s32 %s18, %s25
      %p205 = scmp.eq.s32.totalorder %s204, 0
      %s207 = sadd.s32 %s206, 1
      %s208 = scalar_select %p205, %s206, %s207
      %p211 = pneg %p205
      %p212 = scmp.eq.s32.totalorder %s18, 1
      %p213 = por %p211, %p212
      %p214 = scmp.ne.s32.totalorder %s206, %s209
      %p215 = scmp.eq.s32.totalorder %s18, 0
      %p216 = por %p214, %p215
      %p217 = scmp.ne.s32.totalorder %s206, %s209
      %p218 = scmp.eq.s32.totalorder %s23, 1
      %p219 = por %p217, %p218
      %p220 = scmp.ne.s32.totalorder %s209, %s210
      %p221 = scmp.eq.s32.totalorder %s23, 0
      %p222 = por %p220, %p221
      %p223 = scmp.ne.s32.totalorder %s209, %s210
      %p224 = scmp.eq.s32.totalorder %s24, 1
      %p225 = por %p223, %p224
      %p227 = scmp.ne.s32.totalorder %s210, %s226
      %p228 = scmp.eq.s32.totalorder %s24, 0
      %p229 = por %p227, %p228
      %p230 = scmp.le.s32.totalorder 1, %s18
      %p231 = scmp.lt.s32.totalorder %s18, 3
      %p232 = pnand %p230, %p231
      %p233 = pneg %p232
      // Predicated region
      $region9: #{encoder_forward.4} parent=5 // pred_check
        _
      $region10: #{encoder_forward.4} parent=5 // pred_check_branch
        %235 = sbr.rel (%p232) target = $region12
      $region11: #{encoder_forward.4} parent=5 // pred_region
        %s236 = ssub.s32 %s18, 1
        // Predicated region
        $region13: #{encoder_forward.4} parent=11 // pred_check
          %p237 = pneg %p65
        $region14: #{encoder_forward.4} parent=11 // pred_check_branch
          %239 = sbr.rel (%p237) target = $region16
        $region15: #{encoder_forward.4} parent=11 // pred_region
          _
        $region16: #{encoder_forward.4} parent=11 // pred_fallthru
          _
        // Predicated region
        $region17: #{encoder_forward.4} parent=11 // pred_check
          %p240 = pneg %p86
        $region18: #{encoder_forward.4} parent=11 // pred_check_branch
          %242 = sbr.rel (%p240) target = $region20
        $region19: #{encoder_forward.4} parent=11 // pred_region
          _
        $region20: #{encoder_forward.4} parent=11 // pred_fallthru
          _
        // Predicated region
        $region21: #{encoder_forward.4} parent=11 // pred_check
          %p243 = pneg %p107
        $region22: #{encoder_forward.4} parent=11 // pred_check_branch
          %245 = sbr.rel (%p243) target = $region24
        $region23: #{encoder_forward.4} parent=11 // pred_region
          _
        $region24: #{encoder_forward.4} parent=11 // pred_fallthru
          _
        // Predicated region
        $region25: #{encoder_forward.4} parent=11 // pred_check
          %p246 = pneg %p128
        $region26: #{encoder_forward.4} parent=11 // pred_check_branch
          %248 = sbr.rel (%p246) target = $region28
        $region27: #{encoder_forward.4} parent=11 // pred_region
          _
        $region28: #{encoder_forward.4} parent=11 // pred_fallthru
          _
        // Predicated region
        $region29: #{encoder_forward.4} parent=11 // pred_check
          %p249 = pneg %p149
        $region30: #{encoder_forward.4} parent=11 // pred_check_branch
          %251 = sbr.rel (%p249) target = $region32
        $region31: #{encoder_forward.4} parent=11 // pred_region
          _
        $region32: #{encoder_forward.4} parent=11 // pred_fallthru
          _
        // Predicated region
        $region33: #{encoder_forward.4} parent=11 // pred_check
          %p252 = pneg %p170
        $region34: #{encoder_forward.4} parent=11 // pred_check_branch
          %254 = sbr.rel (%p252) target = $region36
        $region35: #{encoder_forward.4} parent=11 // pred_region
          _
        $region36: #{encoder_forward.4} parent=11 // pred_fallthru
          _
      $region12: #{encoder_forward.4} parent=5 // pred_fallthru
        _
      %p255 = scmp.lt.s32.totalorder %s18, 2
      // Predicated region
      $region37: #{encoder_forward.4} parent=5 // pred_check
        %p256 = pneg %p255
      $region38: #{encoder_forward.4} parent=5 // pred_check_branch
        %258 = sbr.rel (%p256) target = $region40
      $region39: #{encoder_forward.4} parent=5 // pred_region
        // Predicated region
        $region41: #{encoder_forward.4} parent=39 // pred_check
          %p259 = pneg %p38
        $region42: #{encoder_forward.4} parent=39 // pred_check_branch
          %261 = sbr.rel (%p259) target = $region44
        $region43: #{encoder_forward.4} parent=39 // pred_region
          %p262 = scmp.lt.s32.totalorder %s18, 1
          %s263 = scalar_select %p262, %s18, 1
          %s264 = smul.addr %s263, 8
          %s265 = smul.addr %s264, 8
          %s266 = scalar_lea.vmem %s0, %s265
        $region44: #{encoder_forward.4} parent=39 // pred_fallthru
          _
      $region40: #{encoder_forward.4} parent=5 // pred_fallthru
        _
      %p267 = scmp.le.s32.totalorder 1, %s18
      %p268 = scmp.lt.s32.totalorder %s18, 3
      %p269 = pnand %p267, %p268
      %p270 = pneg %p269
      // Predicated region
      $region45: #{encoder_forward.4} parent=5 // pred_check
        _
      $region46: #{encoder_forward.4} parent=5 // pred_check_branch
        %272 = sbr.rel (%p269) target = $region48
      $region47: #{encoder_forward.4} parent=5 // pred_region
        %s273 = ssub.s32 %s18, 1
        %p274 = scmp.lt.s32.totalorder %s23, 1
        %s275 = scalar_select %p274, %s23, 1
        %s276 = smul.addr %s275, 8
        %s277 = smul.addr %s276, 8
        %s278 = scalar_lea.vmem %s0, %s277
        %p279 = pneg %p44
        %p280 = pneg %p41
        %p281 = pneg %p65
        %p282 = pneg %p62
        %p283 = pneg %p86
        %p284 = pneg %p83
        %p285 = pneg %p107
        %p286 = pneg %p104
        %p287 = pneg %p128
        %p288 = pneg %p125
        %p289 = pneg %p149
        %p290 = pneg %p146
        %p291 = pneg %p170
        %p292 = pneg %p167
        %p293 = pneg %p196
        %p294 = pneg %p193
        %s295 = sand.u32 %s183, 1
        %s296 = scalar_lea.sflag [#allocation4], %s295
        %s297 = sand.u32 %s183, 1
        %s298 = smul.addr %s297, 64
        %s299 = scalar_lea.vmem [#allocation3], %s298
        %p300 = pneg %p222
        %p301 = pneg %p219
        %p302 = scmp.lt.s32.totalorder %s23, 1
        %s303 = scalar_select %p302, %s23, 1
        %s304 = smul.addr %s303, 4
        %s305 = smul.addr %s304, 4
        %s306 = scalar_lea.vmem %s8, %s305
        %p307 = scmp.lt.s32.totalorder %s23, 1
        %s308 = scalar_select %p307, %s23, 1
        %s309 = smul.addr %s308, 8
        %s310 = smul.addr %s309, 8
        %s311 = scalar_lea.vmem %s0, %s310
        %p312 = scmp.lt.s32.totalorder %s23, 1
        %s313 = scalar_select %p312, %s23, 1
        %s314 = smul.addr %s313, 4
        %s315 = smul.addr %s314, 4
        %s316 = scalar_lea.vmem %s8, %s315
        %v317 = vld [vmem:[%s311] sm:$0xff]
        %v318 = vld [vmem:[%s311 + $0x8] sm:$0xff]
        %v319 = vld [vmem:[%s311 + $0x10] sm:$0xff]
        %v320 = vld [vmem:[%s311 + $0x18] sm:$0xff]
        %v321 = vld [vmem:[%s311 + $0x20] sm:$0xff]
        %v322 = vld [vmem:[%s311 + $0x28] sm:$0xff]
        %v323 = vld [vmem:[%s311 + $0x30] sm:$0xff]
        %v324 = vld [vmem:[%s311 + $0x38] sm:$0xff]
        %v325 = vld [vmem:[%s1] sm:$0xff]
        %v326 = vld [vmem:[%s1 + $0x8] sm:$0xff]
        %v327 = vld [vmem:[%s1 + $0x10] sm:$0xff]
        %v328 = vld [vmem:[%s1 + $0x18] sm:$0xff]
        %v329 = vld [vmem:[%s1 + $0x20] sm:$0xff]
        %v330 = vld [vmem:[%s1 + $0x28] sm:$0xff]
        %v331 = vld [vmem:[%s1 + $0x30] sm:$0xff]
        %v332 = vld [vmem:[%s1 + $0x38] sm:$0xff]
        %v333 = vld [vmem:[%s1 + $0x40] sm:$0xff]
        %vm334 = vcmask 588800
        %v336 = vsel %vm334, %v317, 0
        %v339 = vsel %vm334, %v318, 0
        %v342 = vsel %vm334, %v319, 0
        %v345 = vsel %vm334, %v320, 0
        %v348 = vsel %vm334, %v321, 0
        %v351 = vsel %vm334, %v322, 0
        %v354 = vsel %vm334, %v323, 0
        %v357 = vsel %vm334, %v324, 0
        %359 = vmatpush.msra.mxu0 0.0
        %360 = vmatpush.msra.mxu0 0.0
        %361 = vmatpush.msra.mxu0 0.0
        %362 = vmatpush.msra.mxu0 0.0
        %363 = vmatpush.msra.mxu0 0.0
        %364 = vmatpush.msra.mxu0 0.0
        %365 = vmatpush.msra.mxu0 0.0
        %366 = vmatpush.msra.mxu0 %v333
        %367 = vmatpush.msra.mxu0 %v332
        %368 = vmatpush.msra.mxu0 %v331
        %369 = vmatpush.msra.mxu0 %v330
        %370 = vmatpush.msra.mxu0 %v329
        %371 = vmatpush.msra.mxu0 %v328
        %372 = vmatpush.msra.mxu0 %v327
        %373 = vmatpush.msra.mxu0 %v326
        %374 = vmatpush.msra.mxu0 %v325
        %375 = vmatmul.f32.gmra.mxu0 %v336
        %v376 = vpop.f32.mrf.mxu0
        %v377 = vadd.f32 0.0, %v376
        %378 = vmatmul.f32.gmra.mxu0 %v339
        %v379 = vpop.f32.mrf.mxu0
        %v380 = vadd.f32 0.0, %v379
        %381 = vmatmul.f32.gmra.mxu0 %v342
        %v382 = vpop.f32.mrf.mxu0
        %v383 = vadd.f32 0.0, %v382
        %384 = vmatmul.f32.gmra.mxu0 %v345
        %v385 = vpop.f32.mrf.mxu0
        %v386 = vadd.f32 0.0, %v385
        %387 = vmatmul.f32.gmra.mxu0 %v348
        %v388 = vpop.f32.mrf.mxu0
        %v389 = vadd.f32 0.0, %v388
        %390 = vmatmul.f32.gmra.mxu0 %v351
        %v391 = vpop.f32.mrf.mxu0
        %v392 = vadd.f32 0.0, %v391
        %393 = vmatmul.f32.gmra.mxu0 %v354
        %v394 = vpop.f32.mrf.mxu0
        %v395 = vadd.f32 0.0, %v394
        %396 = vmatmul.f32.gmra.mxu0 %v357
        %v397 = vpop.f32.mrf.mxu0
        %v398 = vadd.f32 0.0, %v397
        %399 = vdwg.mxu0
        %v400 = vld [vmem:[%s2] sm:$0x1]
        %v402 = vperm.slane %v400, 0
        %v404 = vmul.f32 %v377, %v402
        %v405 = vmul.f32 %v380, %v402
        %v406 = vmul.f32 %v383, %v402
        %v407 = vmul.f32 %v386, %v402
        %v408 = vmul.f32 %v389, %v402
        %v409 = vmul.f32 %v392, %v402
        %v410 = vmul.f32 %v395, %v402
        %v411 = vmul.f32 %v398, %v402
        %v412 = vld [vmem:[%s3] sm:$0x1]
        %v414 = vperm.slane %v412, 0
        %v416 = vadd.f32 %v404, %v414
        %v417 = vadd.f32 %v405, %v414
        %v418 = vadd.f32 %v406, %v414
        %v419 = vadd.f32 %v407, %v414
        %v420 = vadd.f32 %v408, %v414
        %v421 = vadd.f32 %v409, %v414
        %v422 = vadd.f32 %v410, %v414
        %v423 = vadd.f32 %v411, %v414
        %v424 = vmax.f32 %v416, 0.0
        %v425 = vmax.f32 %v417, 0.0
        %v426 = vmax.f32 %v418, 0.0
        %v427 = vmax.f32 %v419, 0.0
        %v428 = vmax.f32 %v420, 0.0
        %v429 = vmax.f32 %v421, 0.0
        %v430 = vmax.f32 %v422, 0.0
        %v431 = vmax.f32 %v423, 0.0
        %vm432 = vcmask 130048
        %433 = vst.msk [vmem:[#allocation2] sm:$0xff] %vm432, 0.0
        %434 = vst.msk [vmem:[#allocation2 + $0x8] sm:$0xff] %vm432, 0.0
        %435 = vst.msk [vmem:[#allocation2 + $0x10] sm:$0xff] %vm432, 0.0
        %436 = vst.msk [vmem:[#allocation2 + $0x18] sm:$0xff] %vm432, 0.0
        %437 = vst.msk [vmem:[#allocation2 + $0x20] sm:$0xff] %vm432, 0.0
        %438 = vst.msk [vmem:[#allocation2 + $0x28] sm:$0xff] %vm432, 0.0
        %439 = vst.msk [vmem:[#allocation2 + $0x30] sm:$0xff] %vm432, 0.0
        %440 = vst.msk [vmem:[#allocation2 + $0x38] sm:$0xff] %vm432, 0.0
        %441 = vst.msk [vmem:[#allocation2 + $0x40] sm:$0xff] %vm432, 0.0
        %442 = vst.msk [vmem:[#allocation2 + $0x48] sm:$0xff] %vm432, 0.0
        %443 = vst.msk [vmem:[#allocation2 + $0x50] sm:$0xff] %vm432, 0.0
        %444 = vst.msk [vmem:[#allocation2 + $0x58] sm:$0xff] %vm432, 0.0
        %445 = vst.msk [vmem:[#allocation2 + $0x60] sm:$0xff] %vm432, 0.0
        %446 = vst.msk [vmem:[#allocation2 + $0x68] sm:$0xff] %vm432, 0.0
        %447 = vst.msk [vmem:[#allocation2 + $0x70] sm:$0xff] %vm432, 0.0
        %448 = vst.msk [vmem:[#allocation2 + $0x78] sm:$0xff] %vm432, 0.0
        %449 = vst.msk [vmem:[#allocation2 + $0x80] sm:$0xff] %vm432, 0.0
        %450 = vst.msk [vmem:[#allocation2 + $0x88] sm:$0xff] %vm432, 0.0
        %451 = vst.msk [vmem:[#allocation2 + $0x90] sm:$0xff] %vm432, 0.0
        %452 = vst.msk [vmem:[#allocation2 + $0x98] sm:$0xff] %vm432, 0.0
        %453 = vst.msk [vmem:[#allocation2 + $0xa0] sm:$0xff] %vm432, 0.0
        %454 = vst.msk [vmem:[#allocation2 + $0xa8] sm:$0xff] %vm432, 0.0
        %455 = vst.msk [vmem:[#allocation2 + $0xb0] sm:$0xff] %vm432, 0.0
        %456 = vst.msk [vmem:[#allocation2 + $0xb8] sm:$0xff] %vm432, 0.0
        %457 = vst.msk [vmem:[#allocation2 + $0xc0] sm:$0xff] %vm432, 0.0
        %458 = vst.msk [vmem:[#allocation2 + $0xc8] sm:$0xff] %vm432, 0.0
        %459 = vst.msk [vmem:[#allocation2 + $0xd0] sm:$0xff] %vm432, 0.0
        %460 = vst.msk [vmem:[#allocation2 + $0xd8] sm:$0xff] %vm432, 0.0
        %461 = vst.msk [vmem:[#allocation2 + $0xe0] sm:$0xff] %vm432, 0.0
        %462 = vst.msk [vmem:[#allocation2 + $0xe8] sm:$0xff] %vm432, 0.0
        %463 = vst.msk [vmem:[#allocation2 + $0xf0] sm:$0xff] %vm432, 0.0
        %464 = vst.msk [vmem:[#allocation2 + $0xf8] sm:$0xff] %vm432, 0.0
        %465 = vst.msk [vmem:[#allocation2 + $0x20] sm:$0xff] %vm432, %v424
        %466 = vst.msk [vmem:[#allocation2 + $0x38] sm:$0xff] %vm432, %v425
        %467 = vst.msk [vmem:[#allocation2 + $0x50] sm:$0xff] %vm432, %v426
        %468 = vst.msk [vmem:[#allocation2 + $0x68] sm:$0xff] %vm432, %v427
        %469 = vst.msk [vmem:[#allocation2 + $0x80] sm:$0xff] %vm432, %v428
        %470 = vst.msk [vmem:[#allocation2 + $0x98] sm:$0xff] %vm432, %v429
        %471 = vst.msk [vmem:[#allocation2 + $0xb0] sm:$0xff] %vm432, %v430
        %472 = vst.msk [vmem:[#allocation2 + $0xc8] sm:$0xff] %vm432, %v431
        %v473 = vld [vmem:[#allocation2 + $0x7] sm:$0xff]
        %v474 = vld [vmem:[#allocation2 + $0xf] sm:$0xff]
        %v475 = vld [vmem:[#allocation2 + $0x17] sm:$0xff]
        %v476 = vld [vmem:[#allocation2 + $0x1f] sm:$0xff]
        %v477 = vld [vmem:[#allocation2 + $0x27] sm:$0xff]
        %v478 = vld [vmem:[#allocation2 + $0x2f] sm:$0xff]
        %v479 = vld [vmem:[#allocation2 + $0x37] sm:$0xff]
        %v480 = vld [vmem:[#allocation2 + $0x3f] sm:$0xff]
        %v481 = vld [vmem:[#allocation2 + $0x47] sm:$0xff]
        %v482 = vld [vmem:[#allocation2 + $0x4f] sm:$0xff]
        %v483 = vld [vmem:[#allocation2 + $0x57] sm:$0xff]
        %v484 = vld [vmem:[#allocation2 + $0x5f] sm:$0xff]
        %v485 = vld [vmem:[#allocation2 + $0x67] sm:$0xff]
        %v486 = vld [vmem:[#allocation2 + $0x6f] sm:$0xff]
        %v487 = vld [vmem:[#allocation2 + $0x77] sm:$0xff]
        %v488 = vld [vmem:[#allocation2 + $0x7f] sm:$0xff]
        %v489 = vld [vmem:[#allocation2 + $0x87] sm:$0xff]
        %v490 = vld [vmem:[#allocation2 + $0x8f] sm:$0xff]
        %v491 = vld [vmem:[#allocation2 + $0x97] sm:$0xff]
        %v492 = vld [vmem:[#allocation2 + $0x9f] sm:$0xff]
        %v493 = vld [vmem:[#allocation2 + $0xa7] sm:$0xff]
        %v494 = vld [vmem:[#allocation2 + $0xaf] sm:$0xff]
        %v495 = vld [vmem:[#allocation2 + $0xb7] sm:$0xff]
        %v496 = vld [vmem:[#allocation2 + $0xbf] sm:$0xff]
        %v497 = vld [vmem:[%s4] sm:$0xff]
        %v498 = vld [vmem:[%s4 + $0x8] sm:$0xff]
        %v499 = vld [vmem:[#allocation2 + $0x8] sm:$0xff]
        %v500 = vld [vmem:[#allocation2 + $0x10] sm:$0xff]
        %v501 = vld [vmem:[#allocation2 + $0x18] sm:$0xff]
        %v502 = vld [vmem:[#allocation2 + $0x20] sm:$0xff]
        %v503 = vld [vmem:[#allocation2 + $0x28] sm:$0xff]
        %v504 = vld [vmem:[#allocation2 + $0x30] sm:$0xff]
        %v505 = vld [vmem:[#allocation2 + $0x38] sm:$0xff]
        %v506 = vld [vmem:[#allocation2 + $0x40] sm:$0xff]
        %v507 = vld [vmem:[#allocation2 + $0x48] sm:$0xff]
        %v508 = vld [vmem:[#allocation2 + $0x50] sm:$0xff]
        %v509 = vld [vmem:[#allocation2 + $0x58] sm:$0xff]
        %v510 = vld [vmem:[#allocation2 + $0x60] sm:$0xff]
        %v511 = vld [vmem:[#allocation2 + $0x68] sm:$0xff]
        %v512 = vld [vmem:[#allocation2 + $0x70] sm:$0xff]
        %v513 = vld [vmem:[#allocation2 + $0x78] sm:$0xff]
        %v514 = vld [vmem:[#allocation2 + $0x80] sm:$0xff]
        %v515 = vld [vmem:[#allocation2 + $0x88] sm:$0xff]
        %v516 = vld [vmem:[#allocation2 + $0x90] sm:$0xff]
        %v517 = vld [vmem:[#allocation2 + $0x98] sm:$0xff]
        %v518 = vld [vmem:[#allocation2 + $0xa0] sm:$0xff]
        %v519 = vld [vmem:[#allocation2 + $0xa8] sm:$0xff]
        %v520 = vld [vmem:[#allocation2 + $0xb0] sm:$0xff]
        %v521 = vld [vmem:[#allocation2 + $0xb8] sm:$0xff]
        %v522 = vld [vmem:[#allocation2 + $0xc0] sm:$0xff]
        %s523 = scalar_lea.vmem %s4, 16
        %v524 = vld [vmem:[%s523] sm:$0xff]
        %v525 = vld [vmem:[%s523 + $0x8] sm:$0xff]
        %v527 = vsel %vm432, %v499, 0
        %v530 = vsel %vm432, %v500, 0
        %v533 = vsel %vm432, %v501, 0
        %v536 = vsel %vm432, %v502, 0
        %v539 = vsel %vm432, %v503, 0
        %v542 = vsel %vm432, %v504, 0
        %v545 = vsel %vm432, %v505, 0
        %v548 = vsel %vm432, %v506, 0
        %v551 = vsel %vm432, %v507, 0
        %v554 = vsel %vm432, %v508, 0
        %v557 = vsel %vm432, %v509, 0
        %v560 = vsel %vm432, %v510, 0
        %v563 = vsel %vm432, %v511, 0
        %v566 = vsel %vm432, %v512, 0
        %v569 = vsel %vm432, %v513, 0
        %v572 = vsel %vm432, %v514, 0
        %v575 = vsel %vm432, %v515, 0
        %v578 = vsel %vm432, %v516, 0
        %v581 = vsel %vm432, %v517, 0
        %v584 = vsel %vm432, %v518, 0
        %v587 = vsel %vm432, %v519, 0
        %v590 = vsel %vm432, %v520, 0
        %v593 = vsel %vm432, %v521, 0
        %v596 = vsel %vm432, %v522, 0
        %598 = vmatpush.msra.mxu0 0.0
        %599 = vmatpush.msra.mxu0 0.0
        %600 = vmatpush.msra.mxu0 0.0
        %601 = vmatpush.msra.mxu0 0.0
        %602 = vmatpush.msra.mxu0 0.0
        %603 = vmatpush.msra.mxu0 0.0
        %604 = vmatpush.msra.mxu0 0.0
        %605 = vmatpush.msra.mxu0 0.0
        %606 = vmatpush.msra.mxu0 0.0
        %607 = vmatpush.msra.mxu0 0.0
        %608 = vmatpush.msra.mxu0 0.0
        %609 = vmatpush.msra.mxu0 0.0
        %610 = vmatpush.msra.mxu0 0.0
        %611 = vmatpush.msra.mxu0 0.0
        %612 = vmatpush.msra.mxu0 %v525
        %613 = vmatpush.msra.mxu0 %v524
        %614 = vmatmul.f32.gmra.mxu0 %v527
        %v615 = vpop.f32.mrf.mxu0
        %v616 = vadd.f32 0.0, %v615
        %617 = vmatmul.f32.gmra.mxu0 %v530
        %v618 = vpop.f32.mrf.mxu0
        %619 = vmatmul.f32.gmra.mxu0 %v533
        %v620 = vpop.f32.mrf.mxu0
        %621 = vmatmul.f32.gmra.mxu0 %v536
        %v622 = vpop.f32.mrf.mxu0
        %v623 = vadd.f32 0.0, %v622
        %624 = vmatmul.f32.gmra.mxu0 %v539
        %v625 = vpop.f32.mrf.mxu0
        %626 = vmatmul.f32.gmra.mxu0 %v542
        %v627 = vpop.f32.mrf.mxu0
        %628 = vmatmul.f32.gmra.mxu0 %v545
        %v629 = vpop.f32.mrf.mxu0
        %v630 = vadd.f32 0.0, %v629
        %631 = vmatmul.f32.gmra.mxu0 %v548
        %v632 = vpop.f32.mrf.mxu0
        %633 = vmatmul.f32.gmra.mxu0 %v551
        %v634 = vpop.f32.mrf.mxu0
        %635 = vmatmul.f32.gmra.mxu0 %v554
        %v636 = vpop.f32.mrf.mxu0
        %v637 = vadd.f32 0.0, %v636
        %638 = vmatmul.f32.gmra.mxu0 %v557
        %v639 = vpop.f32.mrf.mxu0
        %640 = vmatmul.f32.gmra.mxu0 %v560
        %v641 = vpop.f32.mrf.mxu0
        %642 = vmatmul.f32.gmra.mxu0 %v563
        %v643 = vpop.f32.mrf.mxu0
        %v644 = vadd.f32 0.0, %v643
        %645 = vmatmul.f32.gmra.mxu0 %v566
        %v646 = vpop.f32.mrf.mxu0
        %647 = vmatmul.f32.gmra.mxu0 %v569
        %v648 = vpop.f32.mrf.mxu0
        %649 = vmatmul.f32.gmra.mxu0 %v572
        %v650 = vpop.f32.mrf.mxu0
        %v651 = vadd.f32 0.0, %v650
        %652 = vmatmul.f32.gmra.mxu0 %v575
        %v653 = vpop.f32.mrf.mxu0
        %654 = vmatmul.f32.gmra.mxu0 %v578
        %v655 = vpop.f32.mrf.mxu0
        %656 = vmatmul.f32.gmra.mxu0 %v581
        %v657 = vpop.f32.mrf.mxu0
        %v658 = vadd.f32 0.0, %v657
        %659 = vmatmul.f32.gmra.mxu0 %v584
        %v660 = vpop.f32.mrf.mxu0
        %661 = vmatmul.f32.gmra.mxu0 %v587
        %v662 = vpop.f32.mrf.mxu0
        %663 = vmatmul.f32.gmra.mxu0 %v590
        %v664 = vpop.f32.mrf.mxu0
        %v665 = vadd.f32 0.0, %v664
        %666 = vmatmul.f32.gmra.mxu0 %v593
        %v667 = vpop.f32.mrf.mxu0
        %668 = vmatmul.f32.gmra.mxu0 %v596
        %v669 = vpop.f32.mrf.mxu0
        %670 = vdwg.mxu0
        %v672 = vsel %vm432, %v473, 0
        %v675 = vsel %vm432, %v474, 0
        %v678 = vsel %vm432, %v475, 0
        %v681 = vsel %vm432, %v476, 0
        %v684 = vsel %vm432, %v477, 0
        %v687 = vsel %vm432, %v478, 0
        %v690 = vsel %vm432, %v479, 0
        %v693 = vsel %vm432, %v480, 0
        %v696 = vsel %vm432, %v481, 0
        %v699 = vsel %vm432, %v482, 0
        %v702 = vsel %vm432, %v483, 0
        %v705 = vsel %vm432, %v484, 0
        %v708 = vsel %vm432, %v485, 0
        %v711 = vsel %vm432, %v486, 0
        %v714 = vsel %vm432, %v487, 0
        %v717 = vsel %vm432, %v488, 0
        %v720 = vsel %vm432, %v489, 0
        %v723 = vsel %vm432, %v490, 0
        %v726 = vsel %vm432, %v491, 0
        %v729 = vsel %vm432, %v492, 0
        %v732 = vsel %vm432, %v493, 0
        %v735 = vsel %vm432, %v494, 0
        %v738 = vsel %vm432, %v495, 0
        %v741 = vsel %vm432, %v496, 0
        %743 = vmatpush.msra.mxu0 0.0
        %744 = vmatpush.msra.mxu0 0.0
        %745 = vmatpush.msra.mxu0 0.0
        %746 = vmatpush.msra.mxu0 0.0
        %747 = vmatpush.msra.mxu0 0.0
        %748 = vmatpush.msra.mxu0 0.0
        %749 = vmatpush.msra.mxu0 0.0
        %750 = vmatpush.msra.mxu0 0.0
        %751 = vmatpush.msra.mxu0 0.0
        %752 = vmatpush.msra.mxu0 0.0
        %753 = vmatpush.msra.mxu0 0.0
        %754 = vmatpush.msra.mxu0 0.0
        %755 = vmatpush.msra.mxu0 0.0
        %756 = vmatpush.msra.mxu0 0.0
        %757 = vmatpush.msra.mxu0 %v498
        %758 = vmatpush.msra.mxu0 %v497
        %759 = vmatmul.f32.gmra.mxu0 %v672
        %v760 = vpop.f32.mrf.mxu0
        %v761 = vadd.f32 %v616, %v760
        %762 = vmatmul.f32.gmra.mxu0 %v675
        %v763 = vpop.f32.mrf.mxu0
        %764 = vmatmul.f32.gmra.mxu0 %v678
        %v765 = vpop.f32.mrf.mxu0
        %766 = vmatmul.f32.gmra.mxu0 %v681
        %v767 = vpop.f32.mrf.mxu0
        %v768 = vadd.f32 %v623, %v767
        %769 = vmatmul.f32.gmra.mxu0 %v684
        %v770 = vpop.f32.mrf.mxu0
        %771 = vmatmul.f32.gmra.mxu0 %v687
        %v772 = vpop.f32.mrf.mxu0
        %773 = vmatmul.f32.gmra.mxu0 %v690
        %v774 = vpop.f32.mrf.mxu0
        %v775 = vadd.f32 %v630, %v774
        %776 = vmatmul.f32.gmra.mxu0 %v693
        %v777 = vpop.f32.mrf.mxu0
        %778 = vmatmul.f32.gmra.mxu0 %v696
        %v779 = vpop.f32.mrf.mxu0
        %780 = vmatmul.f32.gmra.mxu0 %v699
        %v781 = vpop.f32.mrf.mxu0
        %v782 = vadd.f32 %v637, %v781
        %783 = vmatmul.f32.gmra.mxu0 %v702
        %v784 = vpop.f32.mrf.mxu0
        %785 = vmatmul.f32.gmra.mxu0 %v705
        %v786 = vpop.f32.mrf.mxu0
        %787 = vmatmul.f32.gmra.mxu0 %v708
        %v788 = vpop.f32.mrf.mxu0
        %v789 = vadd.f32 %v644, %v788
        %790 = vmatmul.f32.gmra.mxu0 %v711
        %v791 = vpop.f32.mrf.mxu0
        %792 = vmatmul.f32.gmra.mxu0 %v714
        %v793 = vpop.f32.mrf.mxu0
        %794 = vmatmul.f32.gmra.mxu0 %v717
        %v795 = vpop.f32.mrf.mxu0
        %v796 = vadd.f32 %v651, %v795
        %797 = vmatmul.f32.gmra.mxu0 %v720
        %v798 = vpop.f32.mrf.mxu0
        %799 = vmatmul.f32.gmra.mxu0 %v723
        %v800 = vpop.f32.mrf.mxu0
        %801 = vmatmul.f32.gmra.mxu0 %v726
        %v802 = vpop.f32.mrf.mxu0
        %v803 = vadd.f32 %v658, %v802
        %804 = vmatmul.f32.gmra.mxu0 %v729
        %v805 = vpop.f32.mrf.mxu0
        %806 = vmatmul.f32.gmra.mxu0 %v732
        %v807 = vpop.f32.mrf.mxu0
        %808 = vmatmul.f32.gmra.mxu0 %v735
        %v809 = vpop.f32.mrf.mxu0
        %v810 = vadd.f32 %v665, %v809
        %811 = vmatmul.f32.gmra.mxu0 %v738
        %v812 = vpop.f32.mrf.mxu0
        %813 = vmatmul.f32.gmra.mxu0 %v741
        %v814 = vpop.f32.mrf.mxu0
        %815 = vdwg.mxu0
        %v816 = vld [vmem:[#allocation2 + $0x9] sm:$0xff]
        %v817 = vld [vmem:[#allocation2 + $0x11] sm:$0xff]
        %v818 = vld [vmem:[#allocation2 + $0x19] sm:$0xff]
        %v819 = vld [vmem:[#allocation2 + $0x21] sm:$0xff]
        %v820 = vld [vmem:[#allocation2 + $0x29] sm:$0xff]
        %v821 = vld [vmem:[#allocation2 + $0x31] sm:$0xff]
        %v822 = vld [vmem:[#allocation2 + $0x39] sm:$0xff]
        %v823 = vld [vmem:[#allocation2 + $0x41] sm:$0xff]
        %v824 = vld [vmem:[#allocation2 + $0x49] sm:$0xff]
        %v825 = vld [vmem:[#allocation2 + $0x51] sm:$0xff]
        %v826 = vld [vmem:[#allocation2 + $0x59] sm:$0xff]
        %v827 = vld [vmem:[#allocation2 + $0x61] sm:$0xff]
        %v828 = vld [vmem:[#allocation2 + $0x69] sm:$0xff]
        %v829 = vld [vmem:[#allocation2 + $0x71] sm:$0xff]
        %v830 = vld [vmem:[#allocation2 + $0x79] sm:$0xff]
        %v831 = vld [vmem:[#allocation2 + $0x81] sm:$0xff]
        %v832 = vld [vmem:[#allocation2 + $0x89] sm:$0xff]
        %v833 = vld [vmem:[#allocation2 + $0x91] sm:$0xff]
        %v834 = vld [vmem:[#allocation2 + $0x99] sm:$0xff]
        %v835 = vld [vmem:[#allocation2 + $0xa1] sm:$0xff]
        %v836 = vld [vmem:[#allocation2 + $0xa9] sm:$0xff]
        %v837 = vld [vmem:[#allocation2 + $0xb1] sm:$0xff]
        %v838 = vld [vmem:[#allocation2 + $0xb9] sm:$0xff]
        %v839 = vld [vmem:[#allocation2 + $0xc1] sm:$0xff]
        %s840 = scalar_lea.vmem %s4, 32
        %v841 = vld [vmem:[%s840] sm:$0xff]
        %v842 = vld [vmem:[%s840 + $0x8] sm:$0xff]
        %v844 = vsel %vm432, %v816, 0
        %v847 = vsel %vm432, %v817, 0
        %v850 = vsel %vm432, %v818, 0
        %v853 = vsel %vm432, %v819, 0
        %v856 = vsel %vm432, %v820, 0
        %v859 = vsel %vm432, %v821, 0
        %v862 = vsel %vm432, %v822, 0
        %v865 = vsel %vm432, %v823, 0
        %v868 = vsel %vm432, %v824, 0
        %v871 = vsel %vm432, %v825, 0
        %v874 = vsel %vm432, %v826, 0
        %v877 = vsel %vm432, %v827, 0
        %v880 = vsel %vm432, %v828, 0
        %v883 = vsel %vm432, %v829, 0
        %v886 = vsel %vm432, %v830, 0
        %v889 = vsel %vm432, %v831, 0
        %v892 = vsel %vm432, %v832, 0
        %v895 = vsel %vm432, %v833, 0
        %v898 = vsel %vm432, %v834, 0
        %v901 = vsel %vm432, %v835, 0
        %v904 = vsel %vm432, %v836, 0
        %v907 = vsel %vm432, %v837, 0
        %v910 = vsel %vm432, %v838, 0
        %v913 = vsel %vm432, %v839, 0
        %915 = vmatpush.msra.mxu0 0.0
        %916 = vmatpush.msra.mxu0 0.0
        %917 = vmatpush.msra.mxu0 0.0
        %918 = vmatpush.msra.mxu0 0.0
        %919 = vmatpush.msra.mxu0 0.0
        %920 = vmatpush.msra.mxu0 0.0
        %921 = vmatpush.msra.mxu0 0.0
        %922 = vmatpush.msra.mxu0 0.0
        %923 = vmatpush.msra.mxu0 0.0
        %924 = vmatpush.msra.mxu0 0.0
        %925 = vmatpush.msra.mxu0 0.0
        %926 = vmatpush.msra.mxu0 0.0
        %927 = vmatpush.msra.mxu0 0.0
        %928 = vmatpush.msra.mxu0 0.0
        %929 = vmatpush.msra.mxu0 %v842
        %930 = vmatpush.msra.mxu0 %v841
        %931 = vmatmul.f32.gmra.mxu0 %v844
        %v932 = vpop.f32.mrf.mxu0
        %v933 = vadd.f32 0.0, %v932
        %934 = vmatmul.f32.gmra.mxu0 %v847
        %v935 = vpop.f32.mrf.mxu0
        %936 = vmatmul.f32.gmra.mxu0 %v850
        %v937 = vpop.f32.mrf.mxu0
        %938 = vmatmul.f32.gmra.mxu0 %v853
        %v939 = vpop.f32.mrf.mxu0
        %v940 = vadd.f32 0.0, %v939
        %941 = vmatmul.f32.gmra.mxu0 %v856
        %v942 = vpop.f32.mrf.mxu0
        %943 = vmatmul.f32.gmra.mxu0 %v859
        %v944 = vpop.f32.mrf.mxu0
        %945 = vmatmul.f32.gmra.mxu0 %v862
        %v946 = vpop.f32.mrf.mxu0
        %v947 = vadd.f32 0.0, %v946
        %948 = vmatmul.f32.gmra.mxu0 %v865
        %v949 = vpop.f32.mrf.mxu0
        %950 = vmatmul.f32.gmra.mxu0 %v868
        %v951 = vpop.f32.mrf.mxu0
        %952 = vmatmul.f32.gmra.mxu0 %v871
        %v953 = vpop.f32.mrf.mxu0
        %v954 = vadd.f32 0.0, %v953
        %955 = vmatmul.f32.gmra.mxu0 %v874
        %v956 = vpop.f32.mrf.mxu0
        %957 = vmatmul.f32.gmra.mxu0 %v877
        %v958 = vpop.f32.mrf.mxu0
        %959 = vmatmul.f32.gmra.mxu0 %v880
        %v960 = vpop.f32.mrf.mxu0
        %v961 = vadd.f32 0.0, %v960
        %962 = vmatmul.f32.gmra.mxu0 %v883
        %v963 = vpop.f32.mrf.mxu0
        %964 = vmatmul.f32.gmra.mxu0 %v886
        %v965 = vpop.f32.mrf.mxu0
        %966 = vmatmul.f32.gmra.mxu0 %v889
        %v967 = vpop.f32.mrf.mxu0
        %v968 = vadd.f32 0.0, %v967
        %969 = vmatmul.f32.gmra.mxu0 %v892
        %v970 = vpop.f32.mrf.mxu0
        %971 = vmatmul.f32.gmra.mxu0 %v895
        %v972 = vpop.f32.mrf.mxu0
        %973 = vmatmul.f32.gmra.mxu0 %v898
        %v974 = vpop.f32.mrf.mxu0
        %v975 = vadd.f32 0.0, %v974
        %976 = vmatmul.f32.gmra.mxu0 %v901
        %v977 = vpop.f32.mrf.mxu0
        %978 = vmatmul.f32.gmra.mxu0 %v904
        %v979 = vpop.f32.mrf.mxu0
        %980 = vmatmul.f32.gmra.mxu0 %v907
        %v981 = vpop.f32.mrf.mxu0
        %v982 = vadd.f32 0.0, %v981
        %983 = vmatmul.f32.gmra.mxu0 %v910
        %v984 = vpop.f32.mrf.mxu0
        %985 = vmatmul.f32.gmra.mxu0 %v913
        %v986 = vpop.f32.mrf.mxu0
        %987 = vdwg.mxu0
        %v988 = vadd.f32 %v761, %v933
        %v989 = vadd.f32 %v768, %v940
        %v990 = vadd.f32 %v775, %v947
        %v991 = vadd.f32 %v782, %v954
        %v992 = vadd.f32 %v789, %v961
        %v993 = vadd.f32 %v796, %v968
        %v994 = vadd.f32 %v803, %v975
        %v995 = vadd.f32 %v810, %v982
        %v996 = vld [vmem:[#allocation2 + $0x1f] sm:$0xff]
        %v997 = vld [vmem:[#allocation2 + $0x27] sm:$0xff]
        %v998 = vld [vmem:[#allocation2 + $0x2f] sm:$0xff]
        %v999 = vld [vmem:[#allocation2 + $0x37] sm:$0xff]
        %v1000 = vld [vmem:[#allocation2 + $0x3f] sm:$0xff]
        %v1001 = vld [vmem:[#allocation2 + $0x47] sm:$0xff]
        %v1002 = vld [vmem:[#allocation2 + $0x4f] sm:$0xff]
        %v1003 = vld [vmem:[#allocation2 + $0x57] sm:$0xff]
        %v1004 = vld [vmem:[#allocation2 + $0x5f] sm:$0xff]
        %v1005 = vld [vmem:[#allocation2 + $0x67] sm:$0xff]
        %v1006 = vld [vmem:[#allocation2 + $0x6f] sm:$0xff]
        %v1007 = vld [vmem:[#allocation2 + $0x77] sm:$0xff]
        %v1008 = vld [vmem:[#allocation2 + $0x7f] sm:$0xff]
        %v1009 = vld [vmem:[#allocation2 + $0x87] sm:$0xff]
        %v1010 = vld [vmem:[#allocation2 + $0x8f] sm:$0xff]
        %v1011 = vld [vmem:[#allocation2 + $0x97] sm:$0xff]
        %v1012 = vld [vmem:[#allocation2 + $0x9f] sm:$0xff]
        %v1013 = vld [vmem:[#allocation2 + $0xa7] sm:$0xff]
        %v1014 = vld [vmem:[#allocation2 + $0xaf] sm:$0xff]
        %v1015 = vld [vmem:[#allocation2 + $0xb7] sm:$0xff]
        %v1016 = vld [vmem:[#allocation2 + $0xbf] sm:$0xff]
        %v1017 = vld [vmem:[#allocation2 + $0xc7] sm:$0xff]
        %v1018 = vld [vmem:[#allocation2 + $0xcf] sm:$0xff]
        %v1019 = vld [vmem:[#allocation2 + $0xd7] sm:$0xff]
        %s1020 = scalar_lea.vmem %s4, 48
        %v1021 = vld [vmem:[%s1020] sm:$0xff]
        %v1022 = vld [vmem:[%s1020 + $0x8] sm:$0xff]
        %v1024 = vsel %vm432, %v996, 0
        %v1027 = vsel %vm432, %v997, 0
        %v1030 = vsel %vm432, %v998, 0
        %v1033 = vsel %vm432, %v999, 0
        %v1036 = vsel %vm432, %v1000, 0
        %v1039 = vsel %vm432, %v1001, 0
        %v1042 = vsel %vm432, %v1002, 0
        %v1045 = vsel %vm432, %v1003, 0
        %v1048 = vsel %vm432, %v1004, 0
        %v1051 = vsel %vm432, %v1005, 0
        %v1054 = vsel %vm432, %v1006, 0
        %v1057 = vsel %vm432, %v1007, 0
        %v1060 = vsel %vm432, %v1008, 0
        %v1063 = vsel %vm432, %v1009, 0
        %v1066 = vsel %vm432, %v1010, 0
        %v1069 = vsel %vm432, %v1011, 0
        %v1072 = vsel %vm432, %v1012, 0
        %v1075 = vsel %vm432, %v1013, 0
        %v1078 = vsel %vm432, %v1014, 0
        %v1081 = vsel %vm432, %v1015, 0
        %v1084 = vsel %vm432, %v1016, 0
        %v1087 = vsel %vm432, %v1017, 0
        %v1090 = vsel %vm432, %v1018, 0
        %v1093 = vsel %vm432, %v1019, 0
        %1095 = vmatpush.msra.mxu0 0.0
        %1096 = vmatpush.msra.mxu0 0.0
        %1097 = vmatpush.msra.mxu0 0.0
        %1098 = vmatpush.msra.mxu0 0.0
        %1099 = vmatpush.msra.mxu0 0.0
        %1100 = vmatpush.msra.mxu0 0.0
        %1101 = vmatpush.msra.mxu0 0.0
        %1102 = vmatpush.msra.mxu0 0.0
        %1103 = vmatpush.msra.mxu0 0.0
        %1104 = vmatpush.msra.mxu0 0.0
        %1105 = vmatpush.msra.mxu0 0.0
        %1106 = vmatpush.msra.mxu0 0.0
        %1107 = vmatpush.msra.mxu0 0.0
        %1108 = vmatpush.msra.mxu0 0.0
        %1109 = vmatpush.msra.mxu0 %v1022
        %1110 = vmatpush.msra.mxu0 %v1021
        %1111 = vmatmul.f32.gmra.mxu0 %v1024
        %v1112 = vpop.f32.mrf.mxu0
        %v1113 = vadd.f32 0.0, %v1112
        %1114 = vmatmul.f32.gmra.mxu0 %v1027
        %v1115 = vpop.f32.mrf.mxu0
        %1116 = vmatmul.f32.gmra.mxu0 %v1030
        %v1117 = vpop.f32.mrf.mxu0
        %1118 = vmatmul.f32.gmra.mxu0 %v1033
        %v1119 = vpop.f32.mrf.mxu0
        %v1120 = vadd.f32 0.0, %v1119
        %1121 = vmatmul.f32.gmra.mxu0 %v1036
        %v1122 = vpop.f32.mrf.mxu0
        %1123 = vmatmul.f32.gmra.mxu0 %v1039
        %v1124 = vpop.f32.mrf.mxu0
        %1125 = vmatmul.f32.gmra.mxu0 %v1042
        %v1126 = vpop.f32.mrf.mxu0
        %v1127 = vadd.f32 0.0, %v1126
        %1128 = vmatmul.f32.gmra.mxu0 %v1045
        %v1129 = vpop.f32.mrf.mxu0
        %1130 = vmatmul.f32.gmra.mxu0 %v1048
        %v1131 = vpop.f32.mrf.mxu0
        %1132 = vmatmul.f32.gmra.mxu0 %v1051
        %v1133 = vpop.f32.mrf.mxu0
        %v1134 = vadd.f32 0.0, %v1133
        %1135 = vmatmul.f32.gmra.mxu0 %v1054
        %v1136 = vpop.f32.mrf.mxu0
        %1137 = vmatmul.f32.gmra.mxu0 %v1057
        %v1138 = vpop.f32.mrf.mxu0
        %1139 = vmatmul.f32.gmra.mxu0 %v1060
        %v1140 = vpop.f32.mrf.mxu0
        %v1141 = vadd.f32 0.0, %v1140
        %1142 = vmatmul.f32.gmra.mxu0 %v1063
        %v1143 = vpop.f32.mrf.mxu0
        %1144 = vmatmul.f32.gmra.mxu0 %v1066
        %v1145 = vpop.f32.mrf.mxu0
        %1146 = vmatmul.f32.gmra.mxu0 %v1069
        %v1147 = vpop.f32.mrf.mxu0
        %v1148 = vadd.f32 0.0, %v1147
        %1149 = vmatmul.f32.gmra.mxu0 %v1072
        %v1150 = vpop.f32.mrf.mxu0
        %1151 = vmatmul.f32.gmra.mxu0 %v1075
        %v1152 = vpop.f32.mrf.mxu0
        %1153 = vmatmul.f32.gmra.mxu0 %v1078
        %v1154 = vpop.f32.mrf.mxu0
        %v1155 = vadd.f32 0.0, %v1154
        %1156 = vmatmul.f32.gmra.mxu0 %v1081
        %v1157 = vpop.f32.mrf.mxu0
        %1158 = vmatmul.f32.gmra.mxu0 %v1084
        %v1159 = vpop.f32.mrf.mxu0
        %1160 = vmatmul.f32.gmra.mxu0 %v1087
        %v1161 = vpop.f32.mrf.mxu0
        %v1162 = vadd.f32 0.0, %v1161
        %1163 = vmatmul.f32.gmra.mxu0 %v1090
        %v1164 = vpop.f32.mrf.mxu0
        %1165 = vmatmul.f32.gmra.mxu0 %v1093
        %v1166 = vpop.f32.mrf.mxu0
        %1167 = vdwg.mxu0
        %v1168 = vadd.f32 %v988, %v1113
        %v1169 = vadd.f32 %v989, %v1120
        %v1170 = vadd.f32 %v990, %v1127
        %v1171 = vadd.f32 %v991, %v1134
        %v1172 = vadd.f32 %v992, %v1141
        %v1173 = vadd.f32 %v993, %v1148
        %v1174 = vadd.f32 %v994, %v1155
        %v1175 = vadd.f32 %v995, %v1162
        %v1176 = vld [vmem:[#allocation2 + $0x20] sm:$0xff]
        %v1177 = vld [vmem:[#allocation2 + $0x28] sm:$0xff]
        %v1178 = vld [vmem:[#allocation2 + $0x30] sm:$0xff]
        %v1179 = vld [vmem:[#allocation2 + $0x38] sm:$0xff]
        %v1180 = vld [vmem:[#allocation2 + $0x40] sm:$0xff]
        %v1181 = vld [vmem:[#allocation2 + $0x48] sm:$0xff]
        %v1182 = vld [vmem:[#allocation2 + $0x50] sm:$0xff]
        %v1183 = vld [vmem:[#allocation2 + $0x58] sm:$0xff]
        %v1184 = vld [vmem:[#allocation2 + $0x60] sm:$0xff]
        %v1185 = vld [vmem:[#allocation2 + $0x68] sm:$0xff]
        %v1186 = vld [vmem:[#allocation2 + $0x70] sm:$0xff]
        %v1187 = vld [vmem:[#allocation2 + $0x78] sm:$0xff]
        %v1188 = vld [vmem:[#allocation2 + $0x80] sm:$0xff]
        %v1189 = vld [vmem:[#allocation2 + $0x88] sm:$0xff]
        %v1190 = vld [vmem:[#allocation2 + $0x90] sm:$0xff]
        %v1191 = vld [vmem:[#allocation2 + $0x98] sm:$0xff]
        %v1192 = vld [vmem:[#allocation2 + $0xa0] sm:$0xff]
        %v1193 = vld [vmem:[#allocation2 + $0xa8] sm:$0xff]
        %v1194 = vld [vmem:[#allocation2 + $0xb0] sm:$0xff]
        %v1195 = vld [vmem:[#allocation2 + $0xb8] sm:$0xff]
        %v1196 = vld [vmem:[#allocation2 + $0xc0] sm:$0xff]
        %v1197 = vld [vmem:[#allocation2 + $0xc8] sm:$0xff]
        %v1198 = vld [vmem:[#allocation2 + $0xd0] sm:$0xff]
        %v1199 = vld [vmem:[#allocation2 + $0xd8] sm:$0xff]
        %s1200 = scalar_lea.vmem %s4, 64
        %v1201 = vld [vmem:[%s1200] sm:$0xff]
        %v1202 = vld [vmem:[%s1200 + $0x8] sm:$0xff]
        %v1204 = vsel %vm432, %v1176, 0
        %v1207 = vsel %vm432, %v1177, 0
        %v1210 = vsel %vm432, %v1178, 0
        %v1213 = vsel %vm432, %v1179, 0
        %v1216 = vsel %vm432, %v1180, 0
        %v1219 = vsel %vm432, %v1181, 0
        %v1222 = vsel %vm432, %v1182, 0
        %v1225 = vsel %vm432, %v1183, 0
        %v1228 = vsel %vm432, %v1184, 0
        %v1231 = vsel %vm432, %v1185, 0
        %v1234 = vsel %vm432, %v1186, 0
        %v1237 = vsel %vm432, %v1187, 0
        %v1240 = vsel %vm432, %v1188, 0
        %v1243 = vsel %vm432, %v1189, 0
        %v1246 = vsel %vm432, %v1190, 0
        %v1249 = vsel %vm432, %v1191, 0
        %v1252 = vsel %vm432, %v1192, 0
        %v1255 = vsel %vm432, %v1193, 0
        %v1258 = vsel %vm432, %v1194, 0
        %v1261 = vsel %vm432, %v1195, 0
        %v1264 = vsel %vm432, %v1196, 0
        %v1267 = vsel %vm432, %v1197, 0
        %v1270 = vsel %vm432, %v1198, 0
        %v1273 = vsel %vm432, %v1199, 0
        %1275 = vmatpush.msra.mxu0 0.0
        %1276 = vmatpush.msra.mxu0 0.0
        %1277 = vmatpush.msra.mxu0 0.0
        %1278 = vmatpush.msra.mxu0 0.0
        %1279 = vmatpush.msra.mxu0 0.0
        %1280 = vmatpush.msra.mxu0 0.0
        %1281 = vmatpush.msra.mxu0 0.0
        %1282 = vmatpush.msra.mxu0 0.0
        %1283 = vmatpush.msra.mxu0 0.0
        %1284 = vmatpush.msra.mxu0 0.0
        %1285 = vmatpush.msra.mxu0 0.0
        %1286 = vmatpush.msra.mxu0 0.0
        %1287 = vmatpush.msra.mxu0 0.0
        %1288 = vmatpush.msra.mxu0 0.0
        %1289 = vmatpush.msra.mxu0 %v1202
        %1290 = vmatpush.msra.mxu0 %v1201
        %1291 = vmatmul.f32.gmra.mxu0 %v1204
        %v1292 = vpop.f32.mrf.mxu0
        %v1293 = vadd.f32 0.0, %v1292
        %1294 = vmatmul.f32.gmra.mxu0 %v1207
        %v1295 = vpop.f32.mrf.mxu0
        %1296 = vmatmul.f32.gmra.mxu0 %v1210
        %v1297 = vpop.f32.mrf.mxu0
        %1298 = vmatmul.f32.gmra.mxu0 %v1213
        %v1299 = vpop.f32.mrf.mxu0
        %v1300 = vadd.f32 0.0, %v1299
        %1301 = vmatmul.f32.gmra.mxu0 %v1216
        %v1302 = vpop.f32.mrf.mxu0
        %1303 = vmatmul.f32.gmra.mxu0 %v1219
        %v1304 = vpop.f32.mrf.mxu0
        %1305 = vmatmul.f32.gmra.mxu0 %v1222
        %v1306 = vpop.f32.mrf.mxu0
        %v1307 = vadd.f32 0.0, %v1306
        %1308 = vmatmul.f32.gmra.mxu0 %v1225
        %v1309 = vpop.f32.mrf.mxu0
        %1310 = vmatmul.f32.gmra.mxu0 %v1228
        %v1311 = vpop.f32.mrf.mxu0
        %1312 = vmatmul.f32.gmra.mxu0 %v1231
        %v1313 = vpop.f32.mrf.mxu0
        %v1314 = vadd.f32 0.0, %v1313
        %1315 = vmatmul.f32.gmra.mxu0 %v1234
        %v1316 = vpop.f32.mrf.mxu0
        %1317 = vmatmul.f32.gmra.mxu0 %v1237
        %v1318 = vpop.f32.mrf.mxu0
        %1319 = vmatmul.f32.gmra.mxu0 %v1240
        %v1320 = vpop.f32.mrf.mxu0
        %v1321 = vadd.f32 0.0, %v1320
        %1322 = vmatmul.f32.gmra.mxu0 %v1243
        %v1323 = vpop.f32.mrf.mxu0
        %1324 = vmatmul.f32.gmra.mxu0 %v1246
        %v1325 = vpop.f32.mrf.mxu0
        %1326 = vmatmul.f32.gmra.mxu0 %v1249
        %v1327 = vpop.f32.mrf.mxu0
        %v1328 = vadd.f32 0.0, %v1327
        %1329 = vmatmul.f32.gmra.mxu0 %v1252
        %v1330 = vpop.f32.mrf.mxu0
        %1331 = vmatmul.f32.gmra.mxu0 %v1255
        %v1332 = vpop.f32.mrf.mxu0
        %1333 = vmatmul.f32.gmra.mxu0 %v1258
        %v1334 = vpop.f32.mrf.mxu0
        %v1335 = vadd.f32 0.0, %v1334
        %1336 = vmatmul.f32.gmra.mxu0 %v1261
        %v1337 = vpop.f32.mrf.mxu0
        %1338 = vmatmul.f32.gmra.mxu0 %v1264
        %v1339 = vpop.f32.mrf.mxu0
        %1340 = vmatmul.f32.gmra.mxu0 %v1267
        %v1341 = vpop.f32.mrf.mxu0
        %v1342 = vadd.f32 0.0, %v1341
        %1343 = vmatmul.f32.gmra.mxu0 %v1270
        %v1344 = vpop.f32.mrf.mxu0
        %1345 = vmatmul.f32.gmra.mxu0 %v1273
        %v1346 = vpop.f32.mrf.mxu0
        %1347 = vdwg.mxu0
        %v1348 = vadd.f32 %v1168, %v1293
        %v1349 = vadd.f32 %v1169, %v1300
        %v1350 = vadd.f32 %v1170, %v1307
        %v1351 = vadd.f32 %v1171, %v1314
        %v1352 = vadd.f32 %v1172, %v1321
        %v1353 = vadd.f32 %v1173, %v1328
        %v1354 = vadd.f32 %v1174, %v1335
        %v1355 = vadd.f32 %v1175, %v1342
        %v1356 = vld [vmem:[#allocation2 + $0x21] sm:$0xff]
        %v1357 = vld [vmem:[#allocation2 + $0x29] sm:$0xff]
        %v1358 = vld [vmem:[#allocation2 + $0x31] sm:$0xff]
        %v1359 = vld [vmem:[#allocation2 + $0x39] sm:$0xff]
        %v1360 = vld [vmem:[#allocation2 + $0x41] sm:$0xff]
        %v1361 = vld [vmem:[#allocation2 + $0x49] sm:$0xff]
        %v1362 = vld [vmem:[#allocation2 + $0x51] sm:$0xff]
        %v1363 = vld [vmem:[#allocation2 + $0x59] sm:$0xff]
        %v1364 = vld [vmem:[#allocation2 + $0x61] sm:$0xff]
        %v1365 = vld [vmem:[#allocation2 + $0x69] sm:$0xff]
        %v1366 = vld [vmem:[#allocation2 + $0x71] sm:$0xff]
        %v1367 = vld [vmem:[#allocation2 + $0x79] sm:$0xff]
        %v1368 = vld [vmem:[#allocation2 + $0x81] sm:$0xff]
        %v1369 = vld [vmem:[#allocation2 + $0x89] sm:$0xff]
        %v1370 = vld [vmem:[#allocation2 + $0x91] sm:$0xff]
        %v1371 = vld [vmem:[#allocation2 + $0x99] sm:$0xff]
        %v1372 = vld [vmem:[#allocation2 + $0xa1] sm:$0xff]
        %v1373 = vld [vmem:[#allocation2 + $0xa9] sm:$0xff]
        %v1374 = vld [vmem:[#allocation2 + $0xb1] sm:$0xff]
        %v1375 = vld [vmem:[#allocation2 + $0xb9] sm:$0xff]
        %v1376 = vld [vmem:[#allocation2 + $0xc1] sm:$0xff]
        %v1377 = vld [vmem:[#allocation2 + $0xc9] sm:$0xff]
        %v1378 = vld [vmem:[#allocation2 + $0xd1] sm:$0xff]
        %v1379 = vld [vmem:[#allocation2 + $0xd9] sm:$0xff]
        %s1380 = scalar_lea.vmem %s4, 80
        %v1381 = vld [vmem:[%s1380] sm:$0xff]
        %v1382 = vld [vmem:[%s1380 + $0x8] sm:$0xff]
        %v1384 = vsel %vm432, %v1356, 0
        %v1387 = vsel %vm432, %v1357, 0
        %v1390 = vsel %vm432, %v1358, 0
        %v1393 = vsel %vm432, %v1359, 0
        %v1396 = vsel %vm432, %v1360, 0
        %v1399 = vsel %vm432, %v1361, 0
        %v1402 = vsel %vm432, %v1362, 0
        %v1405 = vsel %vm432, %v1363, 0
        %v1408 = vsel %vm432, %v1364, 0
        %v1411 = vsel %vm432, %v1365, 0
        %v1414 = vsel %vm432, %v1366, 0
        %v1417 = vsel %vm432, %v1367, 0
        %v1420 = vsel %vm432, %v1368, 0
        %v1423 = vsel %vm432, %v1369, 0
        %v1426 = vsel %vm432, %v1370, 0
        %v1429 = vsel %vm432, %v1371, 0
        %v1432 = vsel %vm432, %v1372, 0
        %v1435 = vsel %vm432, %v1373, 0
        %v1438 = vsel %vm432, %v1374, 0
        %v1441 = vsel %vm432, %v1375, 0
        %v1444 = vsel %vm432, %v1376, 0
        %v1447 = vsel %vm432, %v1377, 0
        %v1450 = vsel %vm432, %v1378, 0
        %v1453 = vsel %vm432, %v1379, 0
        %1455 = vmatpush.msra.mxu0 0.0
        %1456 = vmatpush.msra.mxu0 0.0
        %1457 = vmatpush.msra.mxu0 0.0
        %1458 = vmatpush.msra.mxu0 0.0
        %1459 = vmatpush.msra.mxu0 0.0
        %1460 = vmatpush.msra.mxu0 0.0
        %1461 = vmatpush.msra.mxu0 0.0
        %1462 = vmatpush.msra.mxu0 0.0
        %1463 = vmatpush.msra.mxu0 0.0
        %1464 = vmatpush.msra.mxu0 0.0
        %1465 = vmatpush.msra.mxu0 0.0
        %1466 = vmatpush.msra.mxu0 0.0
        %1467 = vmatpush.msra.mxu0 0.0
        %1468 = vmatpush.msra.mxu0 0.0
        %1469 = vmatpush.msra.mxu0 %v1382
        %1470 = vmatpush.msra.mxu0 %v1381
        %1471 = vmatmul.f32.gmra.mxu0 %v1384
        %v1472 = vpop.f32.mrf.mxu0
        %v1473 = vadd.f32 0.0, %v1472
        %1474 = vmatmul.f32.gmra.mxu0 %v1387
        %v1475 = vpop.f32.mrf.mxu0
        %1476 = vmatmul.f32.gmra.mxu0 %v1390
        %v1477 = vpop.f32.mrf.mxu0
        %1478 = vmatmul.f32.gmra.mxu0 %v1393
        %v1479 = vpop.f32.mrf.mxu0
        %v1480 = vadd.f32 0.0, %v1479
        %1481 = vmatmul.f32.gmra.mxu0 %v1396
        %v1482 = vpop.f32.mrf.mxu0
        %1483 = vmatmul.f32.gmra.mxu0 %v1399
        %v1484 = vpop.f32.mrf.mxu0
        %1485 = vmatmul.f32.gmra.mxu0 %v1402
        %v1486 = vpop.f32.mrf.mxu0
        %v1487 = vadd.f32 0.0, %v1486
        %1488 = vmatmul.f32.gmra.mxu0 %v1405
        %v1489 = vpop.f32.mrf.mxu0
        %1490 = vmatmul.f32.gmra.mxu0 %v1408
        %v1491 = vpop.f32.mrf.mxu0
        %1492 = vmatmul.f32.gmra.mxu0 %v1411
        %v1493 = vpop.f32.mrf.mxu0
        %v1494 = vadd.f32 0.0, %v1493
        %1495 = vmatmul.f32.gmra.mxu0 %v1414
        %v1496 = vpop.f32.mrf.mxu0
        %1497 = vmatmul.f32.gmra.mxu0 %v1417
        %v1498 = vpop.f32.mrf.mxu0
        %1499 = vmatmul.f32.gmra.mxu0 %v1420
        %v1500 = vpop.f32.mrf.mxu0
        %v1501 = vadd.f32 0.0, %v1500
        %1502 = vmatmul.f32.gmra.mxu0 %v1423
        %v1503 = vpop.f32.mrf.mxu0
        %1504 = vmatmul.f32.gmra.mxu0 %v1426
        %v1505 = vpop.f32.mrf.mxu0
        %1506 = vmatmul.f32.gmra.mxu0 %v1429
        %v1507 = vpop.f32.mrf.mxu0
        %v1508 = vadd.f32 0.0, %v1507
        %1509 = vmatmul.f32.gmra.mxu0 %v1432
        %v1510 = vpop.f32.mrf.mxu0
        %1511 = vmatmul.f32.gmra.mxu0 %v1435
        %v1512 = vpop.f32.mrf.mxu0
        %1513 = vmatmul.f32.gmra.mxu0 %v1438
        %v1514 = vpop.f32.mrf.mxu0
        %v1515 = vadd.f32 0.0, %v1514
        %1516 = vmatmul.f32.gmra.mxu0 %v1441
        %v1517 = vpop.f32.mrf.mxu0
        %1518 = vmatmul.f32.gmra.mxu0 %v1444
        %v1519 = vpop.f32.mrf.mxu0
        %1520 = vmatmul.f32.gmra.mxu0 %v1447
        %v1521 = vpop.f32.mrf.mxu0
        %v1522 = vadd.f32 0.0, %v1521
        %1523 = vmatmul.f32.gmra.mxu0 %v1450
        %v1524 = vpop.f32.mrf.mxu0
        %1525 = vmatmul.f32.gmra.mxu0 %v1453
        %v1526 = vpop.f32.mrf.mxu0
        %1527 = vdwg.mxu0
        %v1528 = vadd.f32 %v1348, %v1473
        %v1529 = vadd.f32 %v1349, %v1480
        %v1530 = vadd.f32 %v1350, %v1487
        %v1531 = vadd.f32 %v1351, %v1494
        %v1532 = vadd.f32 %v1352, %v1501
        %v1533 = vadd.f32 %v1353, %v1508
        %v1534 = vadd.f32 %v1354, %v1515
        %v1535 = vadd.f32 %v1355, %v1522
        %v1536 = vld [vmem:[#allocation2 + $0x37] sm:$0xff]
        %v1537 = vld [vmem:[#allocation2 + $0x3f] sm:$0xff]
        %v1538 = vld [vmem:[#allocation2 + $0x47] sm:$0xff]
        %v1539 = vld [vmem:[#allocation2 + $0x4f] sm:$0xff]
        %v1540 = vld [vmem:[#allocation2 + $0x57] sm:$0xff]
        %v1541 = vld [vmem:[#allocation2 + $0x5f] sm:$0xff]
        %v1542 = vld [vmem:[#allocation2 + $0x67] sm:$0xff]
        %v1543 = vld [vmem:[#allocation2 + $0x6f] sm:$0xff]
        %v1544 = vld [vmem:[#allocation2 + $0x77] sm:$0xff]
        %v1545 = vld [vmem:[#allocation2 + $0x7f] sm:$0xff]
        %v1546 = vld [vmem:[#allocation2 + $0x87] sm:$0xff]
        %v1547 = vld [vmem:[#allocation2 + $0x8f] sm:$0xff]
        %v1548 = vld [vmem:[#allocation2 + $0x97] sm:$0xff]
        %v1549 = vld [vmem:[#allocation2 + $0x9f] sm:$0xff]
        %v1550 = vld [vmem:[#allocation2 + $0xa7] sm:$0xff]
        %v1551 = vld [vmem:[#allocation2 + $0xaf] sm:$0xff]
        %v1552 = vld [vmem:[#allocation2 + $0xb7] sm:$0xff]
        %v1553 = vld [vmem:[#allocation2 + $0xbf] sm:$0xff]
        %v1554 = vld [vmem:[#allocation2 + $0xc7] sm:$0xff]
        %v1555 = vld [vmem:[#allocation2 + $0xcf] sm:$0xff]
        %v1556 = vld [vmem:[#allocation2 + $0xd7] sm:$0xff]
        %v1557 = vld [vmem:[#allocation2 + $0xdf] sm:$0xff]
        %v1558 = vld [vmem:[#allocation2 + $0xe7] sm:$0xff]
        %v1559 = vld [vmem:[#allocation2 + $0xef] sm:$0xff]
        %s1560 = scalar_lea.vmem %s4, 96
        %v1561 = vld [vmem:[%s1560] sm:$0xff]
        %v1562 = vld [vmem:[%s1560 + $0x8] sm:$0xff]
        %v1564 = vsel %vm432, %v1536, 0
        %v1567 = vsel %vm432, %v1537, 0
        %v1570 = vsel %vm432, %v1538, 0
        %v1573 = vsel %vm432, %v1539, 0
        %v1576 = vsel %vm432, %v1540, 0
        %v1579 = vsel %vm432, %v1541, 0
        %v1582 = vsel %vm432, %v1542, 0
        %v1585 = vsel %vm432, %v1543, 0
        %v1588 = vsel %vm432, %v1544, 0
        %v1591 = vsel %vm432, %v1545, 0
        %v1594 = vsel %vm432, %v1546, 0
        %v1597 = vsel %vm432, %v1547, 0
        %v1600 = vsel %vm432, %v1548, 0
        %v1603 = vsel %vm432, %v1549, 0
        %v1606 = vsel %vm432, %v1550, 0
        %v1609 = vsel %vm432, %v1551, 0
        %v1612 = vsel %vm432, %v1552, 0
        %v1615 = vsel %vm432, %v1553, 0
        %v1618 = vsel %vm432, %v1554, 0
        %v1621 = vsel %vm432, %v1555, 0
        %v1624 = vsel %vm432, %v1556, 0
        %v1627 = vsel %vm432, %v1557, 0
        %v1630 = vsel %vm432, %v1558, 0
        %v1633 = vsel %vm432, %v1559, 0
        %1635 = vmatpush.msra.mxu0 0.0
        %1636 = vmatpush.msra.mxu0 0.0
        %1637 = vmatpush.msra.mxu0 0.0
        %1638 = vmatpush.msra.mxu0 0.0
        %1639 = vmatpush.msra.mxu0 0.0
        %1640 = vmatpush.msra.mxu0 0.0
        %1641 = vmatpush.msra.mxu0 0.0
        %1642 = vmatpush.msra.mxu0 0.0
        %1643 = vmatpush.msra.mxu0 0.0
        %1644 = vmatpush.msra.mxu0 0.0
        %1645 = vmatpush.msra.mxu0 0.0
        %1646 = vmatpush.msra.mxu0 0.0
        %1647 = vmatpush.msra.mxu0 0.0
        %1648 = vmatpush.msra.mxu0 0.0
        %1649 = vmatpush.msra.mxu0 %v1562
        %1650 = vmatpush.msra.mxu0 %v1561
        %1651 = vmatmul.f32.gmra.mxu0 %v1564
        %v1652 = vpop.f32.mrf.mxu0
        %v1653 = vadd.f32 0.0, %v1652
        %1654 = vmatmul.f32.gmra.mxu0 %v1567
        %v1655 = vpop.f32.mrf.mxu0
        %1656 = vmatmul.f32.gmra.mxu0 %v1570
        %v1657 = vpop.f32.mrf.mxu0
        %1658 = vmatmul.f32.gmra.mxu0 %v1573
        %v1659 = vpop.f32.mrf.mxu0
        %v1660 = vadd.f32 0.0, %v1659
        %1661 = vmatmul.f32.gmra.mxu0 %v1576
        %v1662 = vpop.f32.mrf.mxu0
        %1663 = vmatmul.f32.gmra.mxu0 %v1579
        %v1664 = vpop.f32.mrf.mxu0
        %1665 = vmatmul.f32.gmra.mxu0 %v1582
        %v1666 = vpop.f32.mrf.mxu0
        %v1667 = vadd.f32 0.0, %v1666
        %1668 = vmatmul.f32.gmra.mxu0 %v1585
        %v1669 = vpop.f32.mrf.mxu0
        %1670 = vmatmul.f32.gmra.mxu0 %v1588
        %v1671 = vpop.f32.mrf.mxu0
        %1672 = vmatmul.f32.gmra.mxu0 %v1591
        %v1673 = vpop.f32.mrf.mxu0
        %v1674 = vadd.f32 0.0, %v1673
        %1675 = vmatmul.f32.gmra.mxu0 %v1594
        %v1676 = vpop.f32.mrf.mxu0
        %1677 = vmatmul.f32.gmra.mxu0 %v1597
        %v1678 = vpop.f32.mrf.mxu0
        %1679 = vmatmul.f32.gmra.mxu0 %v1600
        %v1680 = vpop.f32.mrf.mxu0
        %v1681 = vadd.f32 0.0, %v1680
        %1682 = vmatmul.f32.gmra.mxu0 %v1603
        %v1683 = vpop.f32.mrf.mxu0
        %1684 = vmatmul.f32.gmra.mxu0 %v1606
        %v1685 = vpop.f32.mrf.mxu0
        %1686 = vmatmul.f32.gmra.mxu0 %v1609
        %v1687 = vpop.f32.mrf.mxu0
        %v1688 = vadd.f32 0.0, %v1687
        %1689 = vmatmul.f32.gmra.mxu0 %v1612
        %v1690 = vpop.f32.mrf.mxu0
        %1691 = vmatmul.f32.gmra.mxu0 %v1615
        %v1692 = vpop.f32.mrf.mxu0
        %1693 = vmatmul.f32.gmra.mxu0 %v1618
        %v1694 = vpop.f32.mrf.mxu0
        %v1695 = vadd.f32 0.0, %v1694
        %1696 = vmatmul.f32.gmra.mxu0 %v1621
        %v1697 = vpop.f32.mrf.mxu0
        %1698 = vmatmul.f32.gmra.mxu0 %v1624
        %v1699 = vpop.f32.mrf.mxu0
        %1700 = vmatmul.f32.gmra.mxu0 %v1627
        %v1701 = vpop.f32.mrf.mxu0
        %v1702 = vadd.f32 0.0, %v1701
        %1703 = vmatmul.f32.gmra.mxu0 %v1630
        %v1704 = vpop.f32.mrf.mxu0
        %1705 = vmatmul.f32.gmra.mxu0 %v1633
        %v1706 = vpop.f32.mrf.mxu0
        %1707 = vdwg.mxu0
        %v1708 = vadd.f32 %v1528, %v1653
        %v1709 = vadd.f32 %v1529, %v1660
        %v1710 = vadd.f32 %v1530, %v1667
        %v1711 = vadd.f32 %v1531, %v1674
        %v1712 = vadd.f32 %v1532, %v1681
        %v1713 = vadd.f32 %v1533, %v1688
        %v1714 = vadd.f32 %v1534, %v1695
        %v1715 = vadd.f32 %v1535, %v1702
        %v1716 = vld [vmem:[#allocation2 + $0x38] sm:$0xff]
        %v1717 = vld [vmem:[#allocation2 + $0x40] sm:$0xff]
        %v1718 = vld [vmem:[#allocation2 + $0x48] sm:$0xff]
        %v1719 = vld [vmem:[#allocation2 + $0x50] sm:$0xff]
        %v1720 = vld [vmem:[#allocation2 + $0x58] sm:$0xff]
        %v1721 = vld [vmem:[#allocation2 + $0x60] sm:$0xff]
        %v1722 = vld [vmem:[#allocation2 + $0x68] sm:$0xff]
        %v1723 = vld [vmem:[#allocation2 + $0x70] sm:$0xff]
        %v1724 = vld [vmem:[#allocation2 + $0x78] sm:$0xff]
        %v1725 = vld [vmem:[#allocation2 + $0x80] sm:$0xff]
        %v1726 = vld [vmem:[#allocation2 + $0x88] sm:$0xff]
        %v1727 = vld [vmem:[#allocation2 + $0x90] sm:$0xff]
        %v1728 = vld [vmem:[#allocation2 + $0x98] sm:$0xff]
        %v1729 = vld [vmem:[#allocation2 + $0xa0] sm:$0xff]
        %v1730 = vld [vmem:[#allocation2 + $0xa8] sm:$0xff]
        %v1731 = vld [vmem:[#allocation2 + $0xb0] sm:$0xff]
        %v1732 = vld [vmem:[#allocation2 + $0xb8] sm:$0xff]
        %v1733 = vld [vmem:[#allocation2 + $0xc0] sm:$0xff]
        %v1734 = vld [vmem:[#allocation2 + $0xc8] sm:$0xff]
        %v1735 = vld [vmem:[#allocation2 + $0xd0] sm:$0xff]
        %v1736 = vld [vmem:[#allocation2 + $0xd8] sm:$0xff]
        %v1737 = vld [vmem:[#allocation2 + $0xe0] sm:$0xff]
        %v1738 = vld [vmem:[#allocation2 + $0xe8] sm:$0xff]
        %v1739 = vld [vmem:[#allocation2 + $0xf0] sm:$0xff]
        %s1740 = scalar_lea.vmem %s4, 112
        %v1741 = vld [vmem:[%s1740] sm:$0xff]
        %v1742 = vld [vmem:[%s1740 + $0x8] sm:$0xff]
        %v1744 = vsel %vm432, %v1716, 0
        %v1747 = vsel %vm432, %v1717, 0
        %v1750 = vsel %vm432, %v1718, 0
        %v1753 = vsel %vm432, %v1719, 0
        %v1756 = vsel %vm432, %v1720, 0
        %v1759 = vsel %vm432, %v1721, 0
        %v1762 = vsel %vm432, %v1722, 0
        %v1765 = vsel %vm432, %v1723, 0
        %v1768 = vsel %vm432, %v1724, 0
        %v1771 = vsel %vm432, %v1725, 0
        %v1774 = vsel %vm432, %v1726, 0
        %v1777 = vsel %vm432, %v1727, 0
        %v1780 = vsel %vm432, %v1728, 0
        %v1783 = vsel %vm432, %v1729, 0
        %v1786 = vsel %vm432, %v1730, 0
        %v1789 = vsel %vm432, %v1731, 0
        %v1792 = vsel %vm432, %v1732, 0
        %v1795 = vsel %vm432, %v1733, 0
        %v1798 = vsel %vm432, %v1734, 0
        %v1801 = vsel %vm432, %v1735, 0
        %v1804 = vsel %vm432, %v1736, 0
        %v1807 = vsel %vm432, %v1737, 0
        %v1810 = vsel %vm432, %v1738, 0
        %v1813 = vsel %vm432, %v1739, 0
        %1815 = vmatpush.msra.mxu0 0.0
        %1816 = vmatpush.msra.mxu0 0.0
        %1817 = vmatpush.msra.mxu0 0.0
        %1818 = vmatpush.msra.mxu0 0.0
        %1819 = vmatpush.msra.mxu0 0.0
        %1820 = vmatpush.msra.mxu0 0.0
        %1821 = vmatpush.msra.mxu0 0.0
        %1822 = vmatpush.msra.mxu0 0.0
        %1823 = vmatpush.msra.mxu0 0.0
        %1824 = vmatpush.msra.mxu0 0.0
        %1825 = vmatpush.msra.mxu0 0.0
        %1826 = vmatpush.msra.mxu0 0.0
        %1827 = vmatpush.msra.mxu0 0.0
        %1828 = vmatpush.msra.mxu0 0.0
        %1829 = vmatpush.msra.mxu0 %v1742
        %1830 = vmatpush.msra.mxu0 %v1741
        %1831 = vmatmul.f32.gmra.mxu0 %v1744
        %v1832 = vpop.f32.mrf.mxu0
        %v1833 = vadd.f32 0.0, %v1832
        %1834 = vmatmul.f32.gmra.mxu0 %v1747
        %v1835 = vpop.f32.mrf.mxu0
        %1836 = vmatmul.f32.gmra.mxu0 %v1750
        %v1837 = vpop.f32.mrf.mxu0
        %1838 = vmatmul.f32.gmra.mxu0 %v1753
        %v1839 = vpop.f32.mrf.mxu0
        %v1840 = vadd.f32 0.0, %v1839
        %1841 = vmatmul.f32.gmra.mxu0 %v1756
        %v1842 = vpop.f32.mrf.mxu0
        %1843 = vmatmul.f32.gmra.mxu0 %v1759
        %v1844 = vpop.f32.mrf.mxu0
        %1845 = vmatmul.f32.gmra.mxu0 %v1762
        %v1846 = vpop.f32.mrf.mxu0
        %v1847 = vadd.f32 0.0, %v1846
        %1848 = vmatmul.f32.gmra.mxu0 %v1765
        %v1849 = vpop.f32.mrf.mxu0
        %1850 = vmatmul.f32.gmra.mxu0 %v1768
        %v1851 = vpop.f32.mrf.mxu0
        %1852 = vmatmul.f32.gmra.mxu0 %v1771
        %v1853 = vpop.f32.mrf.mxu0
        %v1854 = vadd.f32 0.0, %v1853
        %1855 = vmatmul.f32.gmra.mxu0 %v1774
        %v1856 = vpop.f32.mrf.mxu0
        %1857 = vmatmul.f32.gmra.mxu0 %v1777
        %v1858 = vpop.f32.mrf.mxu0
        %1859 = vmatmul.f32.gmra.mxu0 %v1780
        %v1860 = vpop.f32.mrf.mxu0
        %v1861 = vadd.f32 0.0, %v1860
        %1862 = vmatmul.f32.gmra.mxu0 %v1783
        %v1863 = vpop.f32.mrf.mxu0
        %1864 = vmatmul.f32.gmra.mxu0 %v1786
        %v1865 = vpop.f32.mrf.mxu0
        %1866 = vmatmul.f32.gmra.mxu0 %v1789
        %v1867 = vpop.f32.mrf.mxu0
        %v1868 = vadd.f32 0.0, %v1867
        %1869 = vmatmul.f32.gmra.mxu0 %v1792
        %v1870 = vpop.f32.mrf.mxu0
        %1871 = vmatmul.f32.gmra.mxu0 %v1795
        %v1872 = vpop.f32.mrf.mxu0
        %1873 = vmatmul.f32.gmra.mxu0 %v1798
        %v1874 = vpop.f32.mrf.mxu0
        %v1875 = vadd.f32 0.0, %v1874
        %1876 = vmatmul.f32.gmra.mxu0 %v1801
        %v1877 = vpop.f32.mrf.mxu0
        %1878 = vmatmul.f32.gmra.mxu0 %v1804
        %v1879 = vpop.f32.mrf.mxu0
        %1880 = vmatmul.f32.gmra.mxu0 %v1807
        %v1881 = vpop.f32.mrf.mxu0
        %v1882 = vadd.f32 0.0, %v1881
        %1883 = vmatmul.f32.gmra.mxu0 %v1810
        %v1884 = vpop.f32.mrf.mxu0
        %1885 = vmatmul.f32.gmra.mxu0 %v1813
        %v1886 = vpop.f32.mrf.mxu0
        %1887 = vdwg.mxu0
        %v1888 = vadd.f32 %v1708, %v1833
        %v1889 = vadd.f32 %v1709, %v1840
        %v1890 = vadd.f32 %v1710, %v1847
        %v1891 = vadd.f32 %v1711, %v1854
        %v1892 = vadd.f32 %v1712, %v1861
        %v1893 = vadd.f32 %v1713, %v1868
        %v1894 = vadd.f32 %v1714, %v1875
        %v1895 = vadd.f32 %v1715, %v1882
        %v1896 = vld [vmem:[#allocation2 + $0x39] sm:$0xff]
        %v1897 = vld [vmem:[#allocation2 + $0x41] sm:$0xff]
        %v1898 = vld [vmem:[#allocation2 + $0x49] sm:$0xff]
        %v1899 = vld [vmem:[#allocation2 + $0x51] sm:$0xff]
        %v1900 = vld [vmem:[#allocation2 + $0x59] sm:$0xff]
        %v1901 = vld [vmem:[#allocation2 + $0x61] sm:$0xff]
        %v1902 = vld [vmem:[#allocation2 + $0x69] sm:$0xff]
        %v1903 = vld [vmem:[#allocation2 + $0x71] sm:$0xff]
        %v1904 = vld [vmem:[#allocation2 + $0x79] sm:$0xff]
        %v1905 = vld [vmem:[#allocation2 + $0x81] sm:$0xff]
        %v1906 = vld [vmem:[#allocation2 + $0x89] sm:$0xff]
        %v1907 = vld [vmem:[#allocation2 + $0x91] sm:$0xff]
        %v1908 = vld [vmem:[#allocation2 + $0x99] sm:$0xff]
        %v1909 = vld [vmem:[#allocation2 + $0xa1] sm:$0xff]
        %v1910 = vld [vmem:[#allocation2 + $0xa9] sm:$0xff]
        %v1911 = vld [vmem:[#allocation2 + $0xb1] sm:$0xff]
        %v1912 = vld [vmem:[#allocation2 + $0xb9] sm:$0xff]
        %v1913 = vld [vmem:[#allocation2 + $0xc1] sm:$0xff]
        %v1914 = vld [vmem:[#allocation2 + $0xc9] sm:$0xff]
        %v1915 = vld [vmem:[#allocation2 + $0xd1] sm:$0xff]
        %v1916 = vld [vmem:[#allocation2 + $0xd9] sm:$0xff]
        %v1917 = vld [vmem:[#allocation2 + $0xe1] sm:$0xff]
        %v1918 = vld [vmem:[#allocation2 + $0xe9] sm:$0xff]
        %v1919 = vld [vmem:[#allocation2 + $0xf1] sm:$0xff]
        %s1920 = scalar_lea.vmem %s4, 128
        %v1921 = vld [vmem:[%s1920] sm:$0xff]
        %v1922 = vld [vmem:[%s1920 + $0x8] sm:$0xff]
        %v1924 = vsel %vm432, %v1896, 0
        %v1927 = vsel %vm432, %v1897, 0
        %v1930 = vsel %vm432, %v1898, 0
        %v1933 = vsel %vm432, %v1899, 0
        %v1936 = vsel %vm432, %v1900, 0
        %v1939 = vsel %vm432, %v1901, 0
        %v1942 = vsel %vm432, %v1902, 0
        %v1945 = vsel %vm432, %v1903, 0
        %v1948 = vsel %vm432, %v1904, 0
        %v1951 = vsel %vm432, %v1905, 0
        %v1954 = vsel %vm432, %v1906, 0
        %v1957 = vsel %vm432, %v1907, 0
        %v1960 = vsel %vm432, %v1908, 0
        %v1963 = vsel %vm432, %v1909, 0
        %v1966 = vsel %vm432, %v1910, 0
        %v1969 = vsel %vm432, %v1911, 0
        %v1972 = vsel %vm432, %v1912, 0
        %v1975 = vsel %vm432, %v1913, 0
        %v1978 = vsel %vm432, %v1914, 0
        %v1981 = vsel %vm432, %v1915, 0
        %v1984 = vsel %vm432, %v1916, 0
        %v1987 = vsel %vm432, %v1917, 0
        %v1990 = vsel %vm432, %v1918, 0
        %v1993 = vsel %vm432, %v1919, 0
        %1995 = vmatpush.msra.mxu0 0.0
        %1996 = vmatpush.msra.mxu0 0.0
        %1997 = vmatpush.msra.mxu0 0.0
        %1998 = vmatpush.msra.mxu0 0.0
        %1999 = vmatpush.msra.mxu0 0.0
        %2000 = vmatpush.msra.mxu0 0.0
        %2001 = vmatpush.msra.mxu0 0.0
        %2002 = vmatpush.msra.mxu0 0.0
        %2003 = vmatpush.msra.mxu0 0.0
        %2004 = vmatpush.msra.mxu0 0.0
        %2005 = vmatpush.msra.mxu0 0.0
        %2006 = vmatpush.msra.mxu0 0.0
        %2007 = vmatpush.msra.mxu0 0.0
        %2008 = vmatpush.msra.mxu0 0.0
        %2009 = vmatpush.msra.mxu0 %v1922
        %2010 = vmatpush.msra.mxu0 %v1921
        %2011 = vmatmul.f32.gmra.mxu0 %v1924
        %v2012 = vpop.f32.mrf.mxu0
        %v2013 = vadd.f32 0.0, %v2012
        %2014 = vmatmul.f32.gmra.mxu0 %v1927
        %v2015 = vpop.f32.mrf.mxu0
        %2016 = vmatmul.f32.gmra.mxu0 %v1930
        %v2017 = vpop.f32.mrf.mxu0
        %2018 = vmatmul.f32.gmra.mxu0 %v1933
        %v2019 = vpop.f32.mrf.mxu0
        %v2020 = vadd.f32 0.0, %v2019
        %2021 = vmatmul.f32.gmra.mxu0 %v1936
        %v2022 = vpop.f32.mrf.mxu0
        %2023 = vmatmul.f32.gmra.mxu0 %v1939
        %v2024 = vpop.f32.mrf.mxu0
        %2025 = vmatmul.f32.gmra.mxu0 %v1942
        %v2026 = vpop.f32.mrf.mxu0
        %v2027 = vadd.f32 0.0, %v2026
        %2028 = vmatmul.f32.gmra.mxu0 %v1945
        %v2029 = vpop.f32.mrf.mxu0
        %2030 = vmatmul.f32.gmra.mxu0 %v1948
        %v2031 = vpop.f32.mrf.mxu0
        %2032 = vmatmul.f32.gmra.mxu0 %v1951
        %v2033 = vpop.f32.mrf.mxu0
        %v2034 = vadd.f32 0.0, %v2033
        %2035 = vmatmul.f32.gmra.mxu0 %v1954
        %v2036 = vpop.f32.mrf.mxu0
        %2037 = vmatmul.f32.gmra.mxu0 %v1957
        %v2038 = vpop.f32.mrf.mxu0
        %2039 = vmatmul.f32.gmra.mxu0 %v1960
        %v2040 = vpop.f32.mrf.mxu0
        %v2041 = vadd.f32 0.0, %v2040
        %2042 = vmatmul.f32.gmra.mxu0 %v1963
        %v2043 = vpop.f32.mrf.mxu0
        %2044 = vmatmul.f32.gmra.mxu0 %v1966
        %v2045 = vpop.f32.mrf.mxu0
        %2046 = vmatmul.f32.gmra.mxu0 %v1969
        %v2047 = vpop.f32.mrf.mxu0
        %v2048 = vadd.f32 0.0, %v2047
        %2049 = vmatmul.f32.gmra.mxu0 %v1972
        %v2050 = vpop.f32.mrf.mxu0
        %2051 = vmatmul.f32.gmra.mxu0 %v1975
        %v2052 = vpop.f32.mrf.mxu0
        %2053 = vmatmul.f32.gmra.mxu0 %v1978
        %v2054 = vpop.f32.mrf.mxu0
        %v2055 = vadd.f32 0.0, %v2054
        %2056 = vmatmul.f32.gmra.mxu0 %v1981
        %v2057 = vpop.f32.mrf.mxu0
        %2058 = vmatmul.f32.gmra.mxu0 %v1984
        %v2059 = vpop.f32.mrf.mxu0
        %2060 = vmatmul.f32.gmra.mxu0 %v1987
        %v2061 = vpop.f32.mrf.mxu0
        %v2062 = vadd.f32 0.0, %v2061
        %2063 = vmatmul.f32.gmra.mxu0 %v1990
        %v2064 = vpop.f32.mrf.mxu0
        %2065 = vmatmul.f32.gmra.mxu0 %v1993
        %v2066 = vpop.f32.mrf.mxu0
        %2067 = vdwg.mxu0
        %v2068 = vadd.f32 %v1888, %v2013
        %v2069 = vadd.f32 %v1889, %v2020
        %v2070 = vadd.f32 %v1890, %v2027
        %v2071 = vadd.f32 %v1891, %v2034
        %v2072 = vadd.f32 %v1892, %v2041
        %v2073 = vadd.f32 %v1893, %v2048
        %v2074 = vadd.f32 %v1894, %v2055
        %v2075 = vadd.f32 %v1895, %v2062
        %v2076 = vld [vmem:[%s5] sm:$0x1]
        %v2078 = vperm.slane %v2076, 0
        %v2080 = vmul.f32 %v2068, %v2078
        %v2081 = vmul.f32 %v2069, %v2078
        %v2082 = vmul.f32 %v2070, %v2078
        %v2083 = vmul.f32 %v2071, %v2078
        %v2084 = vmul.f32 %v2072, %v2078
        %v2085 = vmul.f32 %v2073, %v2078
        %v2086 = vmul.f32 %v2074, %v2078
        %v2087 = vmul.f32 %v2075, %v2078
        %v2088 = vld [vmem:[%s6] sm:$0x1]
        %v2090 = vperm.slane %v2088, 0
        %v2092 = vadd.f32 %v2080, %v2090
        %v2093 = vadd.f32 %v2081, %v2090
        %v2094 = vadd.f32 %v2082, %v2090
        %v2095 = vadd.f32 %v2083, %v2090
        %v2096 = vadd.f32 %v2084, %v2090
        %v2097 = vadd.f32 %v2085, %v2090
        %v2098 = vadd.f32 %v2086, %v2090
        %v2099 = vadd.f32 %v2087, %v2090
        %v2100 = vmax.f32 %v2092, 0.0
        %v2101 = vmax.f32 %v2093, 0.0
        %v2102 = vmax.f32 %v2094, 0.0
        %v2103 = vmax.f32 %v2095, 0.0
        %v2104 = vmax.f32 %v2096, 0.0
        %v2105 = vmax.f32 %v2097, 0.0
        %v2106 = vmax.f32 %v2098, 0.0
        %v2107 = vmax.f32 %v2099, 0.0
        %2108 = vst.msk [vmem:[%s299] sm:$0xff] %vm432, %v2100
        %s2109 = scalar_lea.vmem %s299, 8 [#allocation3]
        %2110 = vst.msk [vmem:[%s2109] sm:$0xff] %vm432, %v2101
        %s2111 = scalar_lea.vmem %s299, 16 [#allocation3]
        %2112 = vst.msk [vmem:[%s2111] sm:$0xff] %vm432, %v2102
        %s2113 = scalar_lea.vmem %s299, 24 [#allocation3]
        %2114 = vst.msk [vmem:[%s2113] sm:$0xff] %vm432, %v2103
        %s2115 = scalar_lea.vmem %s299, 32 [#allocation3]
        %2116 = vst.msk [vmem:[%s2115] sm:$0xff] %vm432, %v2104
        %s2117 = scalar_lea.vmem %s299, 40 [#allocation3]
        %2118 = vst.msk [vmem:[%s2117] sm:$0xff] %vm432, %v2105
        %s2119 = scalar_lea.vmem %s299, 48 [#allocation3]
        %2120 = vst.msk [vmem:[%s2119] sm:$0xff] %vm432, %v2106
        %s2121 = scalar_lea.vmem %s299, 56 [#allocation3]
        %2122 = vst.msk [vmem:[%s2121] sm:$0xff] %vm432, %v2107
        %v2123 = vlaneseq
        %v2124 = vshrl.u32 %v2123, 7
        %v2125 = vlaneseq
        %v2126 = vand.u32 %v2125, 127
        %v2127 = vmul.u32 %v2124, 2
        %vm2128 = vcmp.eq.s32.totalorder %v2126, %v2127
        %v2129 = vsel %vm2128, 1, 0
        %v2130 = vcvt.s32.f32 %v2129
        %v2131 = vadd.s32 %v2127, 1
        %vm2132 = vcmp.eq.s32.totalorder %v2126, %v2131
        %v2133 = vsel %vm2132, 1, 0
        %v2134 = vcvt.s32.f32 %v2133
        %v2135 = vmax.f32 %v2100, %v2101
        %vm2136 = vcmask 64512
        %v2138 = vsel %vm2136, %v2130, 0
        %2140 = vmatpush.msra.mxu0 0.0
        %2141 = vmatpush.msra.mxu0 0.0
        %2142 = vmatpush.msra.mxu0 0.0
        %2143 = vmatpush.msra.mxu0 0.0
        %2144 = vmatpush.msra.mxu0 0.0
        %2145 = vmatpush.msra.mxu0 0.0
        %2146 = vmatpush.msra.mxu0 0.0
        %2147 = vmatpush.msra.mxu0 0.0
        %2148 = vmatpush.msra.mxu0 0.0
        %2149 = vmatpush.msra.mxu0 0.0
        %2150 = vmatpush.msra.mxu0 0.0
        %2151 = vmatpush.msra.mxu0 0.0
        %2152 = vmatpush.msra.mxu0 0.0
        %2153 = vmatpush.msra.mxu0 0.0
        %2154 = vmatpush.msra.mxu0 0.0
        %2155 = vmatpush.msra.mxu0 %v2135
        %2156 = vmatmul.f32.gmra.mxu0 %v2138
        %v2157 = vpop.f32.mrf.mxu0
        %v2158 = vadd.f32 0.0, %v2157
        %2159 = vdwg.mxu0
        %v2161 = vsel %vm2136, %v2134, 0
        %2163 = vmatpush.msra.mxu0 0.0
        %2164 = vmatpush.msra.mxu0 0.0
        %2165 = vmatpush.msra.mxu0 0.0
        %2166 = vmatpush.msra.mxu0 0.0
        %2167 = vmatpush.msra.mxu0 0.0
        %2168 = vmatpush.msra.mxu0 0.0
        %2169 = vmatpush.msra.mxu0 0.0
        %2170 = vmatpush.msra.mxu0 0.0
        %2171 = vmatpush.msra.mxu0 0.0
        %2172 = vmatpush.msra.mxu0 0.0
        %2173 = vmatpush.msra.mxu0 0.0
        %2174 = vmatpush.msra.mxu0 0.0
        %2175 = vmatpush.msra.mxu0 0.0
        %2176 = vmatpush.msra.mxu0 0.0
        %2177 = vmatpush.msra.mxu0 0.0
        %2178 = vmatpush.msra.mxu0 %v2135
        %2179 = vmatmul.f32.gmra.mxu0 %v2161
        %v2180 = vpop.f32.mrf.mxu0
        %v2181 = vadd.f32 0.0, %v2180
        %2182 = vdwg.mxu0
        %v2183 = vmax.f32 %v2158, %v2181
        %vm2184 = vcmask 125952
        %2185 = vst.msk [vmem:[%s316] sm:$0xf] %vm2184, %v2183
        %v2186 = vmax.f32 %v2102, %v2103
        %2187 = vmatpush.msra.mxu0 0.0
        %2188 = vmatpush.msra.mxu0 0.0
        %2189 = vmatpush.msra.mxu0 0.0
        %2190 = vmatpush.msra.mxu0 0.0
        %2191 = vmatpush.msra.mxu0 0.0
        %2192 = vmatpush.msra.mxu0 0.0
        %2193 = vmatpush.msra.mxu0 0.0
        %2194 = vmatpush.msra.mxu0 0.0
        %2195 = vmatpush.msra.mxu0 0.0
        %2196 = vmatpush.msra.mxu0 0.0
        %2197 = vmatpush.msra.mxu0 0.0
        %2198 = vmatpush.msra.mxu0 0.0
        %2199 = vmatpush.msra.mxu0 0.0
        %2200 = vmatpush.msra.mxu0 0.0
        %2201 = vmatpush.msra.mxu0 0.0
        %2202 = vmatpush.msra.mxu0 %v2186
        %2203 = vmatmul.f32.gmra.mxu0 %v2138
        %v2204 = vpop.f32.mrf.mxu0
        %v2205 = vadd.f32 0.0, %v2204
        %2206 = vdwg.mxu0
        %2207 = vmatpush.msra.mxu0 0.0
        %2208 = vmatpush.msra.mxu0 0.0
        %2209 = vmatpush.msra.mxu0 0.0
        %2210 = vmatpush.msra.mxu0 0.0
        %2211 = vmatpush.msra.mxu0 0.0
        %2212 = vmatpush.msra.mxu0 0.0
        %2213 = vmatpush.msra.mxu0 0.0
        %2214 = vmatpush.msra.mxu0 0.0
        %2215 = vmatpush.msra.mxu0 0.0
        %2216 = vmatpush.msra.mxu0 0.0
        %2217 = vmatpush.msra.mxu0 0.0
        %2218 = vmatpush.msra.mxu0 0.0
        %2219 = vmatpush.msra.mxu0 0.0
        %2220 = vmatpush.msra.mxu0 0.0
        %2221 = vmatpush.msra.mxu0 0.0
        %2222 = vmatpush.msra.mxu0 %v2186
        %2223 = vmatmul.f32.gmra.mxu0 %v2161
        %v2224 = vpop.f32.mrf.mxu0
        %v2225 = vadd.f32 0.0, %v2224
        %2226 = vdwg.mxu0
        %v2227 = vmax.f32 %v2205, %v2225
        %s2228 = scalar_lea.vmem %s316, 4
        %2229 = vst.msk [vmem:[%s2228] sm:$0xf] %vm2184, %v2227
        %v2230 = vmax.f32 %v2104, %v2105
        %2231 = vmatpush.msra.mxu0 0.0
        %2232 = vmatpush.msra.mxu0 0.0
        %2233 = vmatpush.msra.mxu0 0.0
        %2234 = vmatpush.msra.mxu0 0.0
        %2235 = vmatpush.msra.mxu0 0.0
        %2236 = vmatpush.msra.mxu0 0.0
        %2237 = vmatpush.msra.mxu0 0.0
        %2238 = vmatpush.msra.mxu0 0.0
        %2239 = vmatpush.msra.mxu0 0.0
        %2240 = vmatpush.msra.mxu0 0.0
        %2241 = vmatpush.msra.mxu0 0.0
        %2242 = vmatpush.msra.mxu0 0.0
        %2243 = vmatpush.msra.mxu0 0.0
        %2244 = vmatpush.msra.mxu0 0.0
        %2245 = vmatpush.msra.mxu0 0.0
        %2246 = vmatpush.msra.mxu0 %v2230
        %2247 = vmatmul.f32.gmra.mxu0 %v2138
        %v2248 = vpop.f32.mrf.mxu0
        %v2249 = vadd.f32 0.0, %v2248
        %2250 = vdwg.mxu0
        %2251 = vmatpush.msra.mxu0 0.0
        %2252 = vmatpush.msra.mxu0 0.0
        %2253 = vmatpush.msra.mxu0 0.0
        %2254 = vmatpush.msra.mxu0 0.0
        %2255 = vmatpush.msra.mxu0 0.0
        %2256 = vmatpush.msra.mxu0 0.0
        %2257 = vmatpush.msra.mxu0 0.0
        %2258 = vmatpush.msra.mxu0 0.0
        %2259 = vmatpush.msra.mxu0 0.0
        %2260 = vmatpush.msra.mxu0 0.0
        %2261 = vmatpush.msra.mxu0 0.0
        %2262 = vmatpush.msra.mxu0 0.0
        %2263 = vmatpush.msra.mxu0 0.0
        %2264 = vmatpush.msra.mxu0 0.0
        %2265 = vmatpush.msra.mxu0 0.0
        %2266 = vmatpush.msra.mxu0 %v2230
        %2267 = vmatmul.f32.gmra.mxu0 %v2161
        %v2268 = vpop.f32.mrf.mxu0
        %v2269 = vadd.f32 0.0, %v2268
        %2270 = vdwg.mxu0
        %v2271 = vmax.f32 %v2249, %v2269
        %s2272 = scalar_lea.vmem %s316, 8
        %2273 = vst.msk [vmem:[%s2272] sm:$0xf] %vm2184, %v2271
        %v2274 = vmax.f32 %v2106, %v2107
        %2275 = vmatpush.msra.mxu0 0.0
        %2276 = vmatpush.msra.mxu0 0.0
        %2277 = vmatpush.msra.mxu0 0.0
        %2278 = vmatpush.msra.mxu0 0.0
        %2279 = vmatpush.msra.mxu0 0.0
        %2280 = vmatpush.msra.mxu0 0.0
        %2281 = vmatpush.msra.mxu0 0.0
        %2282 = vmatpush.msra.mxu0 0.0
        %2283 = vmatpush.msra.mxu0 0.0
        %2284 = vmatpush.msra.mxu0 0.0
        %2285 = vmatpush.msra.mxu0 0.0
        %2286 = vmatpush.msra.mxu0 0.0
        %2287 = vmatpush.msra.mxu0 0.0
        %2288 = vmatpush.msra.mxu0 0.0
        %2289 = vmatpush.msra.mxu0 0.0
        %2290 = vmatpush.msra.mxu0 %v2274
        %2291 = vmatmul.f32.gmra.mxu0 %v2138
        %v2292 = vpop.f32.mrf.mxu0
        %v2293 = vadd.f32 0.0, %v2292
        %2294 = vdwg.mxu0
        %2295 = vmatpush.msra.mxu0 0.0
        %2296 = vmatpush.msra.mxu0 0.0
        %2297 = vmatpush.msra.mxu0 0.0
        %2298 = vmatpush.msra.mxu0 0.0
        %2299 = vmatpush.msra.mxu0 0.0
        %2300 = vmatpush.msra.mxu0 0.0
        %2301 = vmatpush.msra.mxu0 0.0
        %2302 = vmatpush.msra.mxu0 0.0
        %2303 = vmatpush.msra.mxu0 0.0
        %2304 = vmatpush.msra.mxu0 0.0
        %2305 = vmatpush.msra.mxu0 0.0
        %2306 = vmatpush.msra.mxu0 0.0
        %2307 = vmatpush.msra.mxu0 0.0
        %2308 = vmatpush.msra.mxu0 0.0
        %2309 = vmatpush.msra.mxu0 0.0
        %2310 = vmatpush.msra.mxu0 %v2274
        %2311 = vmatmul.f32.gmra.mxu0 %v2161
        %v2312 = vpop.f32.mrf.mxu0
        %v2313 = vadd.f32 0.0, %v2312
        %2314 = vdwg.mxu0
        %v2315 = vmax.f32 %v2293, %v2313
        %s2316 = scalar_lea.vmem %s316, 12
        %2317 = vst.msk [vmem:[%s2316] sm:$0xf] %vm2184, %v2315
        %s2318 = sand.u32 %s183, 1
        %s2319 = scalar_lea.sflag [#allocation4], %s2318
        %s2320 = sand.u32 %s183, 1
        %s2321 = smul.addr %s2320, 64
        %s2322 = scalar_lea.vmem [#allocation3], %s2321
        %p2323 = scmp.lt.s32.totalorder %s23, 1
        %s2324 = scalar_select %p2323, %s23, 1
        %s2325 = smul.addr %s2324, 4
        %s2326 = smul.addr %s2325, 4
        %s2327 = scalar_lea.vmem %s8, %s2326
        // Predicated region
        $region49: #{encoder_forward.4} parent=47 // pred_check
          %p2328 = pneg %p193
        $region50: #{encoder_forward.4} parent=47 // pred_check_branch
          %2330 = sbr.rel (%p2328) target = $region52
        $region51: #{encoder_forward.4} parent=47 // pred_region
          %2332 = vsyncadd %s2319, 0
          %s2333 = smul.addr %s23, 8
          %s2334 = smul.addr %s2333, 8
          %s2335 = scalar_lea.hbm %s7, %s2334
          %s2336 = sshll.u32 %s2322, 4
          %s2337 = int_to_ptr.vmem [resolvable:$true] %s2336
          %s2338 = sshll.u32 %s2335, 4
          %s2339 = int_to_ptr.hbm [resolvable:$true] %s2338
          %2344 = dma.vmem_to_hbm [thread:$0]  %s2337, 1024, %s2339, %s2319, 128, 128, 8
        $region52: #{encoder_forward.4} parent=47 // pred_fallthru
          _
        // Predicated region
        $region53: #{encoder_forward.4} parent=47 // pred_check
          %p2345 = pneg %p219
        $region54: #{encoder_forward.4} parent=47 // pred_check_branch
          %2347 = sbr.rel (%p2345) target = $region56
        $region55: #{encoder_forward.4} parent=47 // pred_region
          _
        $region56: #{encoder_forward.4} parent=47 // pred_fallthru
          _
      $region48: #{encoder_forward.4} parent=5 // pred_fallthru
        _
      %p2348 = scmp.le.s32.totalorder 2, %s18
      // Predicated region
      $region57: #{encoder_forward.4} parent=5 // pred_check
        %p2349 = pneg %p2348
      $region58: #{encoder_forward.4} parent=5 // pred_check_branch
        %2351 = sbr.rel (%p2349) target = $region60
      $region59: #{encoder_forward.4} parent=5 // pred_region
        %s2352 = ssub.s32 %s18, 2
        // Predicated region
        $region61: #{encoder_forward.4} parent=59 // pred_check
          %p2353 = pneg %p199
        $region62: #{encoder_forward.4} parent=59 // pred_check_branch
          %2355 = sbr.rel (%p2353) target = $region64
        $region63: #{encoder_forward.4} parent=59 // pred_region
          %s2356 = sand.u32 %s184, 1
          %s2357 = scalar_lea.sflag [#allocation4], %s2356
          %s2358 = sand.u32 %s184, 1
          %s2359 = smul.addr %s2358, 64
          %s2360 = scalar_lea.vmem [#allocation3], %s2359
          %2362 = dma.done %s2357, 1024
        $region64: #{encoder_forward.4} parent=59 // pred_fallthru
          _
        // Predicated region
        $region65: #{encoder_forward.4} parent=59 // pred_check
          %p2363 = pneg %p225
        $region66: #{encoder_forward.4} parent=59 // pred_check_branch
          %2365 = sbr.rel (%p2363) target = $region68
        $region67: #{encoder_forward.4} parent=59 // pred_region
          %p2366 = scmp.lt.s32.totalorder %s24, 1
          %s2367 = scalar_select %p2366, %s24, 1
          %s2368 = smul.addr %s2367, 4
          %s2369 = smul.addr %s2368, 4
          %s2370 = scalar_lea.vmem %s8, %s2369
        $region68: #{encoder_forward.4} parent=59 // pred_fallthru
          _
      $region60: #{encoder_forward.4} parent=5 // pred_fallthru
        _
    $region6: #{encoder_forward.4} parent=1 // loop_footer
      %s22 = sadd.s32 1, %s18
    $region7: #{encoder_forward.4} parent=1 // loop_footer_branch
      %17 = sbr.rel target = $region3
    $region8: #{encoder_forward.4} parent=1 // loop_exit
      _
    %2371 = vsyncpa [#allocation4], 1
    %s2372 = scalar_lea.sflag [#allocation4], 1
    %2373 = vsyncpa %s2372, 1

// kernel: encoder_forward.5
$region0: #{encoder_forward.5}
  #allocation0 [shape = 'u32[]', space=smem, size = 0x4, offset = 0x4, fixed_abs, tag = 'smem constant byte address 0x4 - core index']
  #allocation1 [shape = 'u32[72,128]{1,0:T(1,128)}', space=vmem, size = 0x9000, scoped, tag = 'internal scratch']
  #allocation2 [shape = 'f32[112,32]{1,0:T(8,128)}', space=vmem, size = 0xe000, scoped, tag = 'scratch operand']
  %s0 = inlined_call_operand.vmem [shape: f32[2,16,144], index: 0, kind: input, shape index: {}]
  %s1 = inlined_call_operand.vmem [shape: f32[144,32], index: 1, kind: input, shape index: {}]
  %s2 = inlined_call_operand.vmem [shape: f32[1,32], index: 2, kind: input, shape index: {}]
  %s3 = inlined_call_operand.vmem [shape: f32[1,32], index: 3, kind: input, shape index: {}]
  %s4 = inlined_call_operand.vmem [shape: f32[9,32,32], index: 4, kind: input, shape index: {}]
  %s5 = inlined_call_operand.vmem [shape: f32[1,32], index: 5, kind: input, shape index: {}]
  %s6 = inlined_call_operand.vmem [shape: f32[1,32], index: 6, kind: input, shape index: {}]
  %s7 = inlined_call_operand.hbm [shape: f32[2,4,4,32], index: 7, kind: output, shape index: {}]
  %s8 = sld [smem:[#allocation0]]
  $region61: #{encoder_forward.5} parent=0
    _
  %s10 = ssub.s32 1, %s8
  %s11 = scalar_select 0, %s10, %s8
  $region1: #{encoder_forward.5} parent=0
    #allocation3 [shape = 'u8[16384]{0}', space=vmem, size = 0x4000, scoped, tag = 'output window, operand 0']
    #allocation4 [shape = 's32[2]{0}', space=sflag, size = 0x8, scoped, tag = 'scoped memory for encoder_forward.5']
    %12 = vsyncpa [#allocation4], 0
    %s13 = scalar_lea.sflag [#allocation4], 1
    %14 = vsyncpa %s13, 0
    loop: start=0, step=1, limit=4
    $region2: #{encoder_forward.5} parent=1 // loop_pre_header
      _
    $region3: #{encoder_forward.5} parent=1 // loop_header
      %s16 = sphi 0, %s20
      %p17 = scmp.ge.s32.totalorder %s16, 4
      %s26 = sphi 0, %s28
      %s29 = sphi 0, %s26
      %s30 = sphi 0, %s29
      %s46 = sphi 0, %s30
      %s50 = sphi 0, %s50
      %s52 = sphi 0, %s50
      %s53 = sphi 0, %s52
      %s67 = sphi 0, %s53
      %s71 = sphi 0, %s71
      %s73 = sphi 0, %s71
      %s74 = sphi 0, %s73
      %s88 = sphi 0, %s74
      %s92 = sphi 0, %s92
      %s94 = sphi 0, %s92
      %s95 = sphi 0, %s94
      %s109 = sphi 0, %s95
      %s113 = sphi 0, %s113
      %s115 = sphi 0, %s113
      %s116 = sphi 0, %s115
      %s130 = sphi 0, %s116
      %s134 = sphi 0, %s134
      %s136 = sphi 0, %s134
      %s137 = sphi 0, %s136
      %s151 = sphi 0, %s137
      %s155 = sphi 0, %s155
      %s157 = sphi 0, %s155
      %s158 = sphi 0, %s157
      %s172 = sphi 0, %s158
      %s178 = sphi 0, %s180
      %s181 = sphi 0, %s178
      %s182 = sphi 0, %s181
      %s198 = sphi 0, %s182
    $region4: #{encoder_forward.5} parent=1 // loop_header_branch
      %19 = sbr.rel (%p17) target = $region8
    $region5: #{encoder_forward.5} parent=1 // loop_body
      %s21 = ssub.s32 %s16, 1
      %s22 = ssub.s32 %s16, 2
      %s23 = sadd.s32 %s16, 1
      %s24 = ssub.s32 %s16, %s23
      %p25 = scmp.eq.s32.totalorder %s24, 0
      %s27 = sadd.s32 %s26, 1
      %s28 = scalar_select %p25, %s26, %s27
      %p31 = pneg %p25
      %p32 = scmp.eq.s32.totalorder %s16, 1
      %p33 = por %p31, %p32
      %p34 = scmp.ne.s32.totalorder %s26, %s29
      %p35 = scmp.eq.s32.totalorder %s16, 0
      %p36 = por %p34, %p35
      %p37 = scmp.ne.s32.totalorder %s26, %s29
      %p38 = scmp.eq.s32.totalorder %s21, 1
      %p39 = por %p37, %p38
      %p40 = scmp.ne.s32.totalorder %s29, %s30
      %p41 = scmp.eq.s32.totalorder %s21, 0
      %p42 = por %p40, %p41
      %p43 = scmp.ne.s32.totalorder %s29, %s30
      %p44 = scmp.eq.s32.totalorder %s22, 1
      %p45 = por %p43, %p44
      %p47 = scmp.ne.s32.totalorder %s30, %s46
      %p48 = scmp.eq.s32.totalorder %s22, 0
      %p49 = por %p47, %p48
      %s51 = sadd.s32 %s50, 1
      %p54 = scmp.eq.s32.totalorder %s16, 1
      %p55 = scmp.ne.s32.totalorder %s50, %s52
      %p56 = scmp.eq.s32.totalorder %s16, 0
      %p57 = por %p55, %p56
      %p58 = scmp.ne.s32.totalorder %s50, %s52
      %p59 = scmp.eq.s32.totalorder %s21, 1
      %p60 = por %p58, %p59
      %p61 = scmp.ne.s32.totalorder %s52, %s53
      %p62 = scmp.eq.s32.totalorder %s21, 0
      %p63 = por %p61, %p62
      %p64 = scmp.ne.s32.totalorder %s52, %s53
      %p65 = scmp.eq.s32.totalorder %s22, 1
      %p66 = por %p64, %p65
      %p68 = scmp.ne.s32.totalorder %s53, %s67
      %p69 = scmp.eq.s32.totalorder %s22, 0
      %p70 = por %p68, %p69
      %s72 = sadd.s32 %s71, 1
      %p75 = scmp.eq.s32.totalorder %s16, 1
      %p76 = scmp.ne.s32.totalorder %s71, %s73
      %p77 = scmp.eq.s32.totalorder %s16, 0
      %p78 = por %p76, %p77
      %p79 = scmp.ne.s32.totalorder %s71, %s73
      %p80 = scmp.eq.s32.totalorder %s21, 1
      %p81 = por %p79, %p80
      %p82 = scmp.ne.s32.totalorder %s73, %s74
      %p83 = scmp.eq.s32.totalorder %s21, 0
      %p84 = por %p82, %p83
      %p85 = scmp.ne.s32.totalorder %s73, %s74
      %p86 = scmp.eq.s32.totalorder %s22, 1
      %p87 = por %p85, %p86
      %p89 = scmp.ne.s32.totalorder %s74, %s88
      %p90 = scmp.eq.s32.totalorder %s22, 0
      %p91 = por %p89, %p90
      %s93 = sadd.s32 %s92, 1
      %p96 = scmp.eq.s32.totalorder %s16, 1
      %p97 = scmp.ne.s32.totalorder %s92, %s94
      %p98 = scmp.eq.s32.totalorder %s16, 0
      %p99 = por %p97, %p98
      %p100 = scmp.ne.s32.totalorder %s92, %s94
      %p101 = scmp.eq.s32.totalorder %s21, 1
      %p102 = por %p100, %p101
      %p103 = scmp.ne.s32.totalorder %s94, %s95
      %p104 = scmp.eq.s32.totalorder %s21, 0
      %p105 = por %p103, %p104
      %p106 = scmp.ne.s32.totalorder %s94, %s95
      %p107 = scmp.eq.s32.totalorder %s22, 1
      %p108 = por %p106, %p107
      %p110 = scmp.ne.s32.totalorder %s95, %s109
      %p111 = scmp.eq.s32.totalorder %s22, 0
      %p112 = por %p110, %p111
      %s114 = sadd.s32 %s113, 1
      %p117 = scmp.eq.s32.totalorder %s16, 1
      %p118 = scmp.ne.s32.totalorder %s113, %s115
      %p119 = scmp.eq.s32.totalorder %s16, 0
      %p120 = por %p118, %p119
      %p121 = scmp.ne.s32.totalorder %s113, %s115
      %p122 = scmp.eq.s32.totalorder %s21, 1
      %p123 = por %p121, %p122
      %p124 = scmp.ne.s32.totalorder %s115, %s116
      %p125 = scmp.eq.s32.totalorder %s21, 0
      %p126 = por %p124, %p125
      %p127 = scmp.ne.s32.totalorder %s115, %s116
      %p128 = scmp.eq.s32.totalorder %s22, 1
      %p129 = por %p127, %p128
      %p131 = scmp.ne.s32.totalorder %s116, %s130
      %p132 = scmp.eq.s32.totalorder %s22, 0
      %p133 = por %p131, %p132
      %s135 = sadd.s32 %s134, 1
      %p138 = scmp.eq.s32.totalorder %s16, 1
      %p139 = scmp.ne.s32.totalorder %s134, %s136
      %p140 = scmp.eq.s32.totalorder %s16, 0
      %p141 = por %p139, %p140
      %p142 = scmp.ne.s32.totalorder %s134, %s136
      %p143 = scmp.eq.s32.totalorder %s21, 1
      %p144 = por %p142, %p143
      %p145 = scmp.ne.s32.totalorder %s136, %s137
      %p146 = scmp.eq.s32.totalorder %s21, 0
      %p147 = por %p145, %p146
      %p148 = scmp.ne.s32.totalorder %s136, %s137
      %p149 = scmp.eq.s32.totalorder %s22, 1
      %p150 = por %p148, %p149
      %p152 = scmp.ne.s32.totalorder %s137, %s151
      %p153 = scmp.eq.s32.totalorder %s22, 0
      %p154 = por %p152, %p153
      %s156 = sadd.s32 %s155, 1
      %p159 = scmp.eq.s32.totalorder %s16, 1
      %p160 = scmp.ne.s32.totalorder %s155, %s157
      %p161 = scmp.eq.s32.totalorder %s16, 0
      %p162 = por %p160, %p161
      %p163 = scmp.ne.s32.totalorder %s155, %s157
      %p164 = scmp.eq.s32.totalorder %s21, 1
      %p165 = por %p163, %p164
      %p166 = scmp.ne.s32.totalorder %s157, %s158
      %p167 = scmp.eq.s32.totalorder %s21, 0
      %p168 = por %p166, %p167
      %p169 = scmp.ne.s32.totalorder %s157, %s158
      %p170 = scmp.eq.s32.totalorder %s22, 1
      %p171 = por %p169, %p170
      %p173 = scmp.ne.s32.totalorder %s158, %s172
      %p174 = scmp.eq.s32.totalorder %s22, 0
      %p175 = por %p173, %p174
      %s176 = ssub.s32 %s16, %s23
      %p177 = scmp.eq.s32.totalorder %s176, 0
      %s179 = sadd.s32 %s178, 1
      %s180 = scalar_select %p177, %s178, %s179
      %p183 = pneg %p177
      %p184 = scmp.eq.s32.totalorder %s16, 1
      %p185 = por %p183, %p184
      %p186 = scmp.ne.s32.totalorder %s178, %s181
      %p187 = scmp.eq.s32.totalorder %s16, 0
      %p188 = por %p186, %p187
      %p189 = scmp.ne.s32.totalorder %s178, %s181
      %p190 = scmp.eq.s32.totalorder %s21, 1
      %p191 = por %p189, %p190
      %p192 = scmp.ne.s32.totalorder %s181, %s182
      %p193 = scmp.eq.s32.totalorder %s21, 0
      %p194 = por %p192, %p193
      %p195 = scmp.ne.s32.totalorder %s181, %s182
      %p196 = scmp.eq.s32.totalorder %s22, 1
      %p197 = por %p195, %p196
      %p199 = scmp.ne.s32.totalorder %s182, %s198
      %p200 = scmp.eq.s32.totalorder %s22, 0
      %p201 = por %p199, %p200
      %p202 = scmp.le.s32.totalorder 1, %s16
      %p203 = scmp.lt.s32.totalorder %s16, 3
      %p204 = pnand %p202, %p203
      %p205 = pneg %p204
      // Predicated region
      $region9: #{encoder_forward.5} parent=5 // pred_check
        _
      $region10: #{encoder_forward.5} parent=5 // pred_check_branch
        %207 = sbr.rel (%p204) target = $region12
      $region11: #{encoder_forward.5} parent=5 // pred_region
        %s208 = ssub.s32 %s16, 1
        // Predicated region
        $region13: #{encoder_forward.5} parent=11 // pred_check
          %p209 = pneg %p63
        $region14: #{encoder_forward.5} parent=11 // pred_check_branch
          %211 = sbr.rel (%p209) target = $region16
        $region15: #{encoder_forward.5} parent=11 // pred_region
          _
        $region16: #{encoder_forward.5} parent=11 // pred_fallthru
          _
        // Predicated region
        $region17: #{encoder_forward.5} parent=11 // pred_check
          %p212 = pneg %p84
        $region18: #{encoder_forward.5} parent=11 // pred_check_branch
          %214 = sbr.rel (%p212) target = $region20
        $region19: #{encoder_forward.5} parent=11 // pred_region
          _
        $region20: #{encoder_forward.5} parent=11 // pred_fallthru
          _
        // Predicated region
        $region21: #{encoder_forward.5} parent=11 // pred_check
          %p215 = pneg %p105
        $region22: #{encoder_forward.5} parent=11 // pred_check_branch
          %217 = sbr.rel (%p215) target = $region24
        $region23: #{encoder_forward.5} parent=11 // pred_region
          _
        $region24: #{encoder_forward.5} parent=11 // pred_fallthru
          _
        // Predicated region
        $region25: #{encoder_forward.5} parent=11 // pred_check
          %p218 = pneg %p126
        $region26: #{encoder_forward.5} parent=11 // pred_check_branch
          %220 = sbr.rel (%p218) target = $region28
        $region27: #{encoder_forward.5} parent=11 // pred_region
          _
        $region28: #{encoder_forward.5} parent=11 // pred_fallthru
          _
        // Predicated region
        $region29: #{encoder_forward.5} parent=11 // pred_check
          %p221 = pneg %p147
        $region30: #{encoder_forward.5} parent=11 // pred_check_branch
          %223 = sbr.rel (%p221) target = $region32
        $region31: #{encoder_forward.5} parent=11 // pred_region
          _
        $region32: #{encoder_forward.5} parent=11 // pred_fallthru
          _
        // Predicated region
        $region33: #{encoder_forward.5} parent=11 // pred_check
          %p224 = pneg %p168
        $region34: #{encoder_forward.5} parent=11 // pred_check_branch
          %226 = sbr.rel (%p224) target = $region36
        $region35: #{encoder_forward.5} parent=11 // pred_region
          _
        $region36: #{encoder_forward.5} parent=11 // pred_fallthru
          _
      $region12: #{encoder_forward.5} parent=5 // pred_fallthru
        _
      %p227 = scmp.lt.s32.totalorder %s16, 2
      // Predicated region
      $region37: #{encoder_forward.5} parent=5 // pred_check
        %p228 = pneg %p227
      $region38: #{encoder_forward.5} parent=5 // pred_check_branch
        %230 = sbr.rel (%p228) target = $region40
      $region39: #{encoder_forward.5} parent=5 // pred_region
        // Predicated region
        $region41: #{encoder_forward.5} parent=39 // pred_check
          %p231 = pneg %p36
        $region42: #{encoder_forward.5} parent=39 // pred_check_branch
          %233 = sbr.rel (%p231) target = $region44
        $region43: #{encoder_forward.5} parent=39 // pred_region
          %p234 = scmp.lt.s32.totalorder %s16, 1
          %s235 = scalar_select %p234, %s16, 1
          %s236 = smul.addr %s235, 4
          %s237 = smul.addr %s236, 8
          %s238 = scalar_lea.vmem %s0, %s237
        $region44: #{encoder_forward.5} parent=39 // pred_fallthru
          _
      $region40: #{encoder_forward.5} parent=5 // pred_fallthru
        _
      %p239 = scmp.le.s32.totalorder 1, %s16
      %p240 = scmp.lt.s32.totalorder %s16, 3
      %p241 = pnand %p239, %p240
      %p242 = pneg %p241
      // Predicated region
      $region45: #{encoder_forward.5} parent=5 // pred_check
        _
      $region46: #{encoder_forward.5} parent=5 // pred_check_branch
        %244 = sbr.rel (%p241) target = $region48
      $region47: #{encoder_forward.5} parent=5 // pred_region
        %s245 = ssub.s32 %s16, 1
        %p246 = scmp.lt.s32.totalorder %s21, 1
        %s247 = scalar_select %p246, %s21, 1
        %s248 = smul.addr %s247, 4
        %s249 = smul.addr %s248, 8
        %s250 = scalar_lea.vmem %s0, %s249
        %p251 = pneg %p42
        %p252 = pneg %p39
        %p253 = pneg %p63
        %p254 = pneg %p60
        %p255 = pneg %p84
        %p256 = pneg %p81
        %p257 = pneg %p105
        %p258 = pneg %p102
        %p259 = pneg %p126
        %p260 = pneg %p123
        %p261 = pneg %p147
        %p262 = pneg %p144
        %p263 = pneg %p168
        %p264 = pneg %p165
        %p265 = pneg %p194
        %p266 = pneg %p191
        %s267 = sand.u32 %s181, 1
        %s268 = scalar_lea.sflag [#allocation4], %s267
        %s269 = sand.u32 %s181, 1
        %s270 = smul.addr %s269, 16
        %s271 = scalar_lea.vmem [#allocation3], %s270
        %p272 = scmp.lt.s32.totalorder %s21, 1
        %s273 = scalar_select %p272, %s21, 1
        %s274 = smul.addr %s273, 4
        %s275 = smul.addr %s274, 8
        %s276 = scalar_lea.vmem %s0, %s275
        %v277 = vld [vmem:[%s276] sm:$0xff]
        %v278 = vld [vmem:[%s276 + $0x8] sm:$0xff]
        %v279 = vld [vmem:[%s276 + $0x10] sm:$0xff]
        %v280 = vld [vmem:[%s276 + $0x18] sm:$0xff]
        %v281 = vld [vmem:[%s1] sm:$0xff]
        %v282 = vld [vmem:[%s1 + $0x8] sm:$0xff]
        %v283 = vld [vmem:[%s1 + $0x10] sm:$0xff]
        %v284 = vld [vmem:[%s1 + $0x18] sm:$0xff]
        %v285 = vld [vmem:[%s1 + $0x20] sm:$0xff]
        %v286 = vld [vmem:[%s1 + $0x28] sm:$0xff]
        %v287 = vld [vmem:[%s1 + $0x30] sm:$0xff]
        %v288 = vld [vmem:[%s1 + $0x38] sm:$0xff]
        %v289 = vld [vmem:[%s1 + $0x40] sm:$0xff]
        %v290 = vld [vmem:[%s1 + $0x48] sm:$0xff]
        %v291 = vld [vmem:[%s1 + $0x50] sm:$0xff]
        %v292 = vld [vmem:[%s1 + $0x58] sm:$0xff]
        %v293 = vld [vmem:[%s1 + $0x60] sm:$0xff]
        %v294 = vld [vmem:[%s1 + $0x68] sm:$0xff]
        %v295 = vld [vmem:[%s1 + $0x70] sm:$0xff]
        %v296 = vld [vmem:[%s1 + $0x78] sm:$0xff]
        %v297 = vld [vmem:[%s1 + $0x80] sm:$0xff]
        %v298 = vld [vmem:[%s1 + $0x88] sm:$0xff]
        %vm299 = vcmask 130048
        %v301 = vsel %vm299, %v278, 0
        %v304 = vsel %vm299, %v280, 0
        %306 = vmatpush.msra.mxu0 %v296
        %307 = vmatpush.msra.mxu0 %v295
        %308 = vmatpush.msra.mxu0 %v294
        %309 = vmatpush.msra.mxu0 %v293
        %310 = vmatpush.msra.mxu0 %v292
        %311 = vmatpush.msra.mxu0 %v291
        %312 = vmatpush.msra.mxu0 %v290
        %313 = vmatpush.msra.mxu0 %v289
        %314 = vmatpush.msra.mxu0 %v288
        %315 = vmatpush.msra.mxu0 %v287
        %316 = vmatpush.msra.mxu0 %v286
        %317 = vmatpush.msra.mxu0 %v285
        %318 = vmatpush.msra.mxu0 %v284
        %319 = vmatpush.msra.mxu0 %v283
        %320 = vmatpush.msra.mxu0 %v282
        %321 = vmatpush.msra.mxu0 %v281
        %322 = vmatmul.f32.gmra.mxu0 %v277
        %v323 = vpop.f32.mrf.mxu0
        %v324 = vadd.f32 0.0, %v323
        %325 = vmatmul.f32.gmra.mxu0 %v279
        %v326 = vpop.f32.mrf.mxu0
        %v327 = vadd.f32 0.0, %v326
        %328 = vdwg.mxu0
        %329 = vmatpush.msra.mxu0 0.0
        %330 = vmatpush.msra.mxu0 0.0
        %331 = vmatpush.msra.mxu0 0.0
        %332 = vmatpush.msra.mxu0 0.0
        %333 = vmatpush.msra.mxu0 0.0
        %334 = vmatpush.msra.mxu0 0.0
        %335 = vmatpush.msra.mxu0 0.0
        %336 = vmatpush.msra.mxu0 0.0
        %337 = vmatpush.msra.mxu0 0.0
        %338 = vmatpush.msra.mxu0 0.0
        %339 = vmatpush.msra.mxu0 0.0
        %340 = vmatpush.msra.mxu0 0.0
        %341 = vmatpush.msra.mxu0 0.0
        %342 = vmatpush.msra.mxu0 0.0
        %343 = vmatpush.msra.mxu0 %v298
        %344 = vmatpush.msra.mxu0 %v297
        %345 = vmatmul.f32.gmra.mxu0 %v301
        %v346 = vpop.f32.mrf.mxu0
        %v347 = vadd.f32 %v324, %v346
        %348 = vmatmul.f32.gmra.mxu0 %v304
        %v349 = vpop.f32.mrf.mxu0
        %v350 = vadd.f32 %v327, %v349
        %351 = vdwg.mxu0
        %v352 = vld [vmem:[%s2] sm:$0x1]
        %v354 = vperm.slane %v352, 0
        %v356 = vmul.f32 %v347, %v354
        %v357 = vmul.f32 %v350, %v354
        %v358 = vld [vmem:[%s3] sm:$0x1]
        %v360 = vperm.slane %v358, 0
        %v362 = vadd.f32 %v356, %v360
        %v363 = vadd.f32 %v357, %v360
        %v364 = vmax.f32 %v362, 0.0
        %v365 = vmax.f32 %v363, 0.0
        %vm366 = vcmask 261120
        %367 = vst.msk [vmem:[#allocation2] sm:$0xff] %vm366, 0.0
        %368 = vst.msk [vmem:[#allocation2 + $0x8] sm:$0xff] %vm366, 0.0
        %369 = vst.msk [vmem:[#allocation2 + $0x10] sm:$0xff] %vm366, 0.0
        %370 = vst.msk [vmem:[#allocation2 + $0x18] sm:$0xff] %vm366, 0.0
        %371 = vst.msk [vmem:[#allocation2 + $0x20] sm:$0xff] %vm366, 0.0
        %372 = vst.msk [vmem:[#allocation2 + $0x28] sm:$0xff] %vm366, 0.0
        %373 = vst.msk [vmem:[#allocation2 + $0x30] sm:$0xff] %vm366, 0.0
        %374 = vst.msk [vmem:[#allocation2 + $0x38] sm:$0xff] %vm366, 0.0
        %375 = vst.msk [vmem:[#allocation2 + $0x40] sm:$0xff] %vm366, 0.0
        %376 = vst.msk [vmem:[#allocation2 + $0x48] sm:$0xff] %vm366, 0.0
        %377 = vst.msk [vmem:[#allocation2 + $0x50] sm:$0xff] %vm366, 0.0
        %378 = vst.msk [vmem:[#allocation2 + $0x58] sm:$0xff] %vm366, 0.0
        %379 = vst.msk [vmem:[#allocation2 + $0x60] sm:$0xff] %vm366, 0.0
        %380 = vst.msk [vmem:[#allocation2 + $0x68] sm:$0xff] %vm366, 0.0
        %vm381 = vcmask 257024
        %382 = vst.msk [vmem:[#allocation2 + $0x18] sm:$0xf] %vm381, %v364
        %vm383 = vcmask 261124
        %384 = vst.msk [vmem:[#allocation2 + $0x24] sm:$0xf0] %vm383, %v364
        %385 = vst.msk [vmem:[#allocation2 + $0x38] sm:$0xf] %vm381, %v365
        %386 = vst.msk [vmem:[#allocation2 + $0x44] sm:$0xf0] %vm383, %v365
        %v387 = vld [vmem:[#allocation2 + $0x7] sm:$0xff]
        %v388 = vld [vmem:[#allocation2 + $0xf] sm:$0xff]
        %v389 = vld [vmem:[#allocation2 + $0x17] sm:$0xff]
        %v390 = vld [vmem:[#allocation2 + $0x1f] sm:$0xff]
        %v391 = vld [vmem:[#allocation2 + $0x27] sm:$0xff]
        %v392 = vld [vmem:[#allocation2 + $0x2f] sm:$0xff]
        %v393 = vld [vmem:[#allocation2 + $0x37] sm:$0xff]
        %v394 = vld [vmem:[#allocation2 + $0x3f] sm:$0xff]
        %v395 = vld [vmem:[%s4] sm:$0xff]
        %v396 = vld [vmem:[%s4 + $0x8] sm:$0xff]
        %v397 = vld [vmem:[%s4 + $0x10] sm:$0xff]
        %v398 = vld [vmem:[%s4 + $0x18] sm:$0xff]
        %v399 = vld [vmem:[#allocation2 + $0x8] sm:$0xff]
        %v400 = vld [vmem:[#allocation2 + $0x10] sm:$0xff]
        %v401 = vld [vmem:[#allocation2 + $0x18] sm:$0xff]
        %v402 = vld [vmem:[#allocation2 + $0x20] sm:$0xff]
        %v403 = vld [vmem:[#allocation2 + $0x28] sm:$0xff]
        %v404 = vld [vmem:[#allocation2 + $0x30] sm:$0xff]
        %v405 = vld [vmem:[#allocation2 + $0x38] sm:$0xff]
        %v406 = vld [vmem:[#allocation2 + $0x40] sm:$0xff]
        %s407 = scalar_lea.vmem %s4, 32
        %v408 = vld [vmem:[%s407] sm:$0xff]
        %v409 = vld [vmem:[%s407 + $0x8] sm:$0xff]
        %v410 = vld [vmem:[%s407 + $0x10] sm:$0xff]
        %v411 = vld [vmem:[%s407 + $0x18] sm:$0xff]
        %v413 = vsel %vm366, %v399, 0
        %v416 = vsel %vm366, %v400, 0
        %v419 = vsel %vm366, %v401, 0
        %v422 = vsel %vm366, %v402, 0
        %v425 = vsel %vm366, %v403, 0
        %v428 = vsel %vm366, %v404, 0
        %v431 = vsel %vm366, %v405, 0
        %v434 = vsel %vm366, %v406, 0
        %436 = vmatpush.msra.mxu0 0.0
        %437 = vmatpush.msra.mxu0 0.0
        %438 = vmatpush.msra.mxu0 0.0
        %439 = vmatpush.msra.mxu0 0.0
        %440 = vmatpush.msra.mxu0 0.0
        %441 = vmatpush.msra.mxu0 0.0
        %442 = vmatpush.msra.mxu0 0.0
        %443 = vmatpush.msra.mxu0 0.0
        %444 = vmatpush.msra.mxu0 0.0
        %445 = vmatpush.msra.mxu0 0.0
        %446 = vmatpush.msra.mxu0 0.0
        %447 = vmatpush.msra.mxu0 0.0
        %448 = vmatpush.msra.mxu0 %v411
        %449 = vmatpush.msra.mxu0 %v410
        %450 = vmatpush.msra.mxu0 %v409
        %451 = vmatpush.msra.mxu0 %v408
        %452 = vmatmul.f32.gmra.mxu0 %v413
        %v453 = vpop.f32.mrf.mxu0
        %v454 = vadd.f32 0.0, %v453
        %455 = vmatmul.f32.gmra.mxu0 %v416
        %v456 = vpop.f32.mrf.mxu0
        %457 = vmatmul.f32.gmra.mxu0 %v419
        %v458 = vpop.f32.mrf.mxu0
        %v459 = vadd.f32 0.0, %v458
        %460 = vmatmul.f32.gmra.mxu0 %v422
        %v461 = vpop.f32.mrf.mxu0
        %462 = vmatmul.f32.gmra.mxu0 %v425
        %v463 = vpop.f32.mrf.mxu0
        %v464 = vadd.f32 0.0, %v463
        %465 = vmatmul.f32.gmra.mxu0 %v428
        %v466 = vpop.f32.mrf.mxu0
        %467 = vmatmul.f32.gmra.mxu0 %v431
        %v468 = vpop.f32.mrf.mxu0
        %v469 = vadd.f32 0.0, %v468
        %470 = vmatmul.f32.gmra.mxu0 %v434
        %v471 = vpop.f32.mrf.mxu0
        %472 = vdwg.mxu0
        %v474 = vsel %vm366, %v387, 0
        %v477 = vsel %vm366, %v388, 0
        %v480 = vsel %vm366, %v389, 0
        %v483 = vsel %vm366, %v390, 0
        %v486 = vsel %vm366, %v391, 0
        %v489 = vsel %vm366, %v392, 0
        %v492 = vsel %vm366, %v393, 0
        %v495 = vsel %vm366, %v394, 0
        %497 = vmatpush.msra.mxu0 0.0
        %498 = vmatpush.msra.mxu0 0.0
        %499 = vmatpush.msra.mxu0 0.0
        %500 = vmatpush.msra.mxu0 0.0
        %501 = vmatpush.msra.mxu0 0.0
        %502 = vmatpush.msra.mxu0 0.0
        %503 = vmatpush.msra.mxu0 0.0
        %504 = vmatpush.msra.mxu0 0.0
        %505 = vmatpush.msra.mxu0 0.0
        %506 = vmatpush.msra.mxu0 0.0
        %507 = vmatpush.msra.mxu0 0.0
        %508 = vmatpush.msra.mxu0 0.0
        %509 = vmatpush.msra.mxu0 %v398
        %510 = vmatpush.msra.mxu0 %v397
        %511 = vmatpush.msra.mxu0 %v396
        %512 = vmatpush.msra.mxu0 %v395
        %513 = vmatmul.f32.gmra.mxu0 %v474
        %v514 = vpop.f32.mrf.mxu0
        %v515 = vadd.f32 %v454, %v514
        %516 = vmatmul.f32.gmra.mxu0 %v477
        %v517 = vpop.f32.mrf.mxu0
        %518 = vmatmul.f32.gmra.mxu0 %v480
        %v519 = vpop.f32.mrf.mxu0
        %v520 = vadd.f32 %v459, %v519
        %521 = vmatmul.f32.gmra.mxu0 %v483
        %v522 = vpop.f32.mrf.mxu0
        %523 = vmatmul.f32.gmra.mxu0 %v486
        %v524 = vpop.f32.mrf.mxu0
        %v525 = vadd.f32 %v464, %v524
        %526 = vmatmul.f32.gmra.mxu0 %v489
        %v527 = vpop.f32.mrf.mxu0
        %528 = vmatmul.f32.gmra.mxu0 %v492
        %v529 = vpop.f32.mrf.mxu0
        %v530 = vadd.f32 %v469, %v529
        %531 = vmatmul.f32.gmra.mxu0 %v495
        %v532 = vpop.f32.mrf.mxu0
        %533 = vdwg.mxu0
        %v534 = vld [vmem:[#allocation2 + $0x9] sm:$0xff]
        %v535 = vld [vmem:[#allocation2 + $0x11] sm:$0xff]
        %v536 = vld [vmem:[#allocation2 + $0x19] sm:$0xff]
        %v537 = vld [vmem:[#allocation2 + $0x21] sm:$0xff]
        %v538 = vld [vmem:[#allocation2 + $0x29] sm:$0xff]
        %v539 = vld [vmem:[#allocation2 + $0x31] sm:$0xff]
        %v540 = vld [vmem:[#allocation2 + $0x39] sm:$0xff]
        %v541 = vld [vmem:[#allocation2 + $0x41] sm:$0xff]
        %s542 = scalar_lea.vmem %s4, 64
        %v543 = vld [vmem:[%s542] sm:$0xff]
        %v544 = vld [vmem:[%s542 + $0x8] sm:$0xff]
        %v545 = vld [vmem:[%s542 + $0x10] sm:$0xff]
        %v546 = vld [vmem:[%s542 + $0x18] sm:$0xff]
        %v548 = vsel %vm366, %v534, 0
        %v551 = vsel %vm366, %v535, 0
        %v554 = vsel %vm366, %v536, 0
        %v557 = vsel %vm366, %v537, 0
        %v560 = vsel %vm366, %v538, 0
        %v563 = vsel %vm366, %v539, 0
        %v566 = vsel %vm366, %v540, 0
        %v569 = vsel %vm366, %v541, 0
        %571 = vmatpush.msra.mxu0 0.0
        %572 = vmatpush.msra.mxu0 0.0
        %573 = vmatpush.msra.mxu0 0.0
        %574 = vmatpush.msra.mxu0 0.0
        %575 = vmatpush.msra.mxu0 0.0
        %576 = vmatpush.msra.mxu0 0.0
        %577 = vmatpush.msra.mxu0 0.0
        %578 = vmatpush.msra.mxu0 0.0
        %579 = vmatpush.msra.mxu0 0.0
        %580 = vmatpush.msra.mxu0 0.0
        %581 = vmatpush.msra.mxu0 0.0
        %582 = vmatpush.msra.mxu0 0.0
        %583 = vmatpush.msra.mxu0 %v546
        %584 = vmatpush.msra.mxu0 %v545
        %585 = vmatpush.msra.mxu0 %v544
        %586 = vmatpush.msra.mxu0 %v543
        %587 = vmatmul.f32.gmra.mxu0 %v548
        %v588 = vpop.f32.mrf.mxu0
        %v589 = vadd.f32 0.0, %v588
        %590 = vmatmul.f32.gmra.mxu0 %v551
        %v591 = vpop.f32.mrf.mxu0
        %592 = vmatmul.f32.gmra.mxu0 %v554
        %v593 = vpop.f32.mrf.mxu0
        %v594 = vadd.f32 0.0, %v593
        %595 = vmatmul.f32.gmra.mxu0 %v557
        %v596 = vpop.f32.mrf.mxu0
        %597 = vmatmul.f32.gmra.mxu0 %v560
        %v598 = vpop.f32.mrf.mxu0
        %v599 = vadd.f32 0.0, %v598
        %600 = vmatmul.f32.gmra.mxu0 %v563
        %v601 = vpop.f32.mrf.mxu0
        %602 = vmatmul.f32.gmra.mxu0 %v566
        %v603 = vpop.f32.mrf.mxu0
        %v604 = vadd.f32 0.0, %v603
        %605 = vmatmul.f32.gmra.mxu0 %v569
        %v606 = vpop.f32.mrf.mxu0
        %607 = vdwg.mxu0
        %v608 = vadd.f32 %v515, %v589
        %v609 = vadd.f32 %v520, %v594
        %v610 = vadd.f32 %v525, %v599
        %v611 = vadd.f32 %v530, %v604
        %v612 = vld [vmem:[#allocation2 + $0x17] sm:$0xff]
        %v613 = vld [vmem:[#allocation2 + $0x1f] sm:$0xff]
        %v614 = vld [vmem:[#allocation2 + $0x27] sm:$0xff]
        %v615 = vld [vmem:[#allocation2 + $0x2f] sm:$0xff]
        %v616 = vld [vmem:[#allocation2 + $0x37] sm:$0xff]
        %v617 = vld [vmem:[#allocation2 + $0x3f] sm:$0xff]
        %v618 = vld [vmem:[#allocation2 + $0x47] sm:$0xff]
        %v619 = vld [vmem:[#allocation2 + $0x4f] sm:$0xff]
        %s620 = scalar_lea.vmem %s4, 96
        %v621 = vld [vmem:[%s620] sm:$0xff]
        %v622 = vld [vmem:[%s620 + $0x8] sm:$0xff]
        %v623 = vld [vmem:[%s620 + $0x10] sm:$0xff]
        %v624 = vld [vmem:[%s620 + $0x18] sm:$0xff]
        %v626 = vsel %vm366, %v612, 0
        %v629 = vsel %vm366, %v613, 0
        %v632 = vsel %vm366, %v614, 0
        %v635 = vsel %vm366, %v615, 0
        %v638 = vsel %vm366, %v616, 0
        %v641 = vsel %vm366, %v617, 0
        %v644 = vsel %vm366, %v618, 0
        %v647 = vsel %vm366, %v619, 0
        %649 = vmatpush.msra.mxu0 0.0
        %650 = vmatpush.msra.mxu0 0.0
        %651 = vmatpush.msra.mxu0 0.0
        %652 = vmatpush.msra.mxu0 0.0
        %653 = vmatpush.msra.mxu0 0.0
        %654 = vmatpush.msra.mxu0 0.0
        %655 = vmatpush.msra.mxu0 0.0
        %656 = vmatpush.msra.mxu0 0.0
        %657 = vmatpush.msra.mxu0 0.0
        %658 = vmatpush.msra.mxu0 0.0
        %659 = vmatpush.msra.mxu0 0.0
        %660 = vmatpush.msra.mxu0 0.0
        %661 = vmatpush.msra.mxu0 %v624
        %662 = vmatpush.msra.mxu0 %v623
        %663 = vmatpush.msra.mxu0 %v622
        %664 = vmatpush.msra.mxu0 %v621
        %665 = vmatmul.f32.gmra.mxu0 %v626
        %v666 = vpop.f32.mrf.mxu0
        %v667 = vadd.f32 0.0, %v666
        %668 = vmatmul.f32.gmra.mxu0 %v629
        %v669 = vpop.f32.mrf.mxu0
        %670 = vmatmul.f32.gmra.mxu0 %v632
        %v671 = vpop.f32.mrf.mxu0
        %v672 = vadd.f32 0.0, %v671
        %673 = vmatmul.f32.gmra.mxu0 %v635
        %v674 = vpop.f32.mrf.mxu0
        %675 = vmatmul.f32.gmra.mxu0 %v638
        %v676 = vpop.f32.mrf.mxu0
        %v677 = vadd.f32 0.0, %v676
        %678 = vmatmul.f32.gmra.mxu0 %v641
        %v679 = vpop.f32.mrf.mxu0
        %680 = vmatmul.f32.gmra.mxu0 %v644
        %v681 = vpop.f32.mrf.mxu0
        %v682 = vadd.f32 0.0, %v681
        %683 = vmatmul.f32.gmra.mxu0 %v647
        %v684 = vpop.f32.mrf.mxu0
        %685 = vdwg.mxu0
        %v686 = vadd.f32 %v608, %v667
        %v687 = vadd.f32 %v609, %v672
        %v688 = vadd.f32 %v610, %v677
        %v689 = vadd.f32 %v611, %v682
        %v690 = vld [vmem:[#allocation2 + $0x18] sm:$0xff]
        %v691 = vld [vmem:[#allocation2 + $0x20] sm:$0xff]
        %v692 = vld [vmem:[#allocation2 + $0x28] sm:$0xff]
        %v693 = vld [vmem:[#allocation2 + $0x30] sm:$0xff]
        %v694 = vld [vmem:[#allocation2 + $0x38] sm:$0xff]
        %v695 = vld [vmem:[#allocation2 + $0x40] sm:$0xff]
        %v696 = vld [vmem:[#allocation2 + $0x48] sm:$0xff]
        %v697 = vld [vmem:[#allocation2 + $0x50] sm:$0xff]
        %s698 = scalar_lea.vmem %s4, 128
        %v699 = vld [vmem:[%s698] sm:$0xff]
        %v700 = vld [vmem:[%s698 + $0x8] sm:$0xff]
        %v701 = vld [vmem:[%s698 + $0x10] sm:$0xff]
        %v702 = vld [vmem:[%s698 + $0x18] sm:$0xff]
        %v704 = vsel %vm366, %v690, 0
        %v707 = vsel %vm366, %v691, 0
        %v710 = vsel %vm366, %v692, 0
        %v713 = vsel %vm366, %v693, 0
        %v716 = vsel %vm366, %v694, 0
        %v719 = vsel %vm366, %v695, 0
        %v722 = vsel %vm366, %v696, 0
        %v725 = vsel %vm366, %v697, 0
        %727 = vmatpush.msra.mxu0 0.0
        %728 = vmatpush.msra.mxu0 0.0
        %729 = vmatpush.msra.mxu0 0.0
        %730 = vmatpush.msra.mxu0 0.0
        %731 = vmatpush.msra.mxu0 0.0
        %732 = vmatpush.msra.mxu0 0.0
        %733 = vmatpush.msra.mxu0 0.0
        %734 = vmatpush.msra.mxu0 0.0
        %735 = vmatpush.msra.mxu0 0.0
        %736 = vmatpush.msra.mxu0 0.0
        %737 = vmatpush.msra.mxu0 0.0
        %738 = vmatpush.msra.mxu0 0.0
        %739 = vmatpush.msra.mxu0 %v702
        %740 = vmatpush.msra.mxu0 %v701
        %741 = vmatpush.msra.mxu0 %v700
        %742 = vmatpush.msra.mxu0 %v699
        %743 = vmatmul.f32.gmra.mxu0 %v704
        %v744 = vpop.f32.mrf.mxu0
        %v745 = vadd.f32 0.0, %v744
        %746 = vmatmul.f32.gmra.mxu0 %v707
        %v747 = vpop.f32.mrf.mxu0
        %748 = vmatmul.f32.gmra.mxu0 %v710
        %v749 = vpop.f32.mrf.mxu0
        %v750 = vadd.f32 0.0, %v749
        %751 = vmatmul.f32.gmra.mxu0 %v713
        %v752 = vpop.f32.mrf.mxu0
        %753 = vmatmul.f32.gmra.mxu0 %v716
        %v754 = vpop.f32.mrf.mxu0
        %v755 = vadd.f32 0.0, %v754
        %756 = vmatmul.f32.gmra.mxu0 %v719
        %v757 = vpop.f32.mrf.mxu0
        %758 = vmatmul.f32.gmra.mxu0 %v722
        %v759 = vpop.f32.mrf.mxu0
        %v760 = vadd.f32 0.0, %v759
        %761 = vmatmul.f32.gmra.mxu0 %v725
        %v762 = vpop.f32.mrf.mxu0
        %763 = vdwg.mxu0
        %v764 = vadd.f32 %v686, %v745
        %v765 = vadd.f32 %v687, %v750
        %v766 = vadd.f32 %v688, %v755
        %v767 = vadd.f32 %v689, %v760
        %v768 = vld [vmem:[#allocation2 + $0x19] sm:$0xff]
        %v769 = vld [vmem:[#allocation2 + $0x21] sm:$0xff]
        %v770 = vld [vmem:[#allocation2 + $0x29] sm:$0xff]
        %v771 = vld [vmem:[#allocation2 + $0x31] sm:$0xff]
        %v772 = vld [vmem:[#allocation2 + $0x39] sm:$0xff]
        %v773 = vld [vmem:[#allocation2 + $0x41] sm:$0xff]
        %v774 = vld [vmem:[#allocation2 + $0x49] sm:$0xff]
        %v775 = vld [vmem:[#allocation2 + $0x51] sm:$0xff]
        %s776 = scalar_lea.vmem %s4, 160
        %v777 = vld [vmem:[%s776] sm:$0xff]
        %v778 = vld [vmem:[%s776 + $0x8] sm:$0xff]
        %v779 = vld [vmem:[%s776 + $0x10] sm:$0xff]
        %v780 = vld [vmem:[%s776 + $0x18] sm:$0xff]
        %v782 = vsel %vm366, %v768, 0
        %v785 = vsel %vm366, %v769, 0
        %v788 = vsel %vm366, %v770, 0
        %v791 = vsel %vm366, %v771, 0
        %v794 = vsel %vm366, %v772, 0
        %v797 = vsel %vm366, %v773, 0
        %v800 = vsel %vm366, %v774, 0
        %v803 = vsel %vm366, %v775, 0
        %805 = vmatpush.msra.mxu0 0.0
        %806 = vmatpush.msra.mxu0 0.0
        %807 = vmatpush.msra.mxu0 0.0
        %808 = vmatpush.msra.mxu0 0.0
        %809 = vmatpush.msra.mxu0 0.0
        %810 = vmatpush.msra.mxu0 0.0
        %811 = vmatpush.msra.mxu0 0.0
        %812 = vmatpush.msra.mxu0 0.0
        %813 = vmatpush.msra.mxu0 0.0
        %814 = vmatpush.msra.mxu0 0.0
        %815 = vmatpush.msra.mxu0 0.0
        %816 = vmatpush.msra.mxu0 0.0
        %817 = vmatpush.msra.mxu0 %v780
        %818 = vmatpush.msra.mxu0 %v779
        %819 = vmatpush.msra.mxu0 %v778
        %820 = vmatpush.msra.mxu0 %v777
        %821 = vmatmul.f32.gmra.mxu0 %v782
        %v822 = vpop.f32.mrf.mxu0
        %v823 = vadd.f32 0.0, %v822
        %824 = vmatmul.f32.gmra.mxu0 %v785
        %v825 = vpop.f32.mrf.mxu0
        %826 = vmatmul.f32.gmra.mxu0 %v788
        %v827 = vpop.f32.mrf.mxu0
        %v828 = vadd.f32 0.0, %v827
        %829 = vmatmul.f32.gmra.mxu0 %v791
        %v830 = vpop.f32.mrf.mxu0
        %831 = vmatmul.f32.gmra.mxu0 %v794
        %v832 = vpop.f32.mrf.mxu0
        %v833 = vadd.f32 0.0, %v832
        %834 = vmatmul.f32.gmra.mxu0 %v797
        %v835 = vpop.f32.mrf.mxu0
        %836 = vmatmul.f32.gmra.mxu0 %v800
        %v837 = vpop.f32.mrf.mxu0
        %v838 = vadd.f32 0.0, %v837
        %839 = vmatmul.f32.gmra.mxu0 %v803
        %v840 = vpop.f32.mrf.mxu0
        %841 = vdwg.mxu0
        %v842 = vadd.f32 %v764, %v823
        %v843 = vadd.f32 %v765, %v828
        %v844 = vadd.f32 %v766, %v833
        %v845 = vadd.f32 %v767, %v838
        %v846 = vld [vmem:[#allocation2 + $0x27] sm:$0xff]
        %v847 = vld [vmem:[#allocation2 + $0x2f] sm:$0xff]
        %v848 = vld [vmem:[#allocation2 + $0x37] sm:$0xff]
        %v849 = vld [vmem:[#allocation2 + $0x3f] sm:$0xff]
        %v850 = vld [vmem:[#allocation2 + $0x47] sm:$0xff]
        %v851 = vld [vmem:[#allocation2 + $0x4f] sm:$0xff]
        %v852 = vld [vmem:[#allocation2 + $0x57] sm:$0xff]
        %v853 = vld [vmem:[#allocation2 + $0x5f] sm:$0xff]
        %s854 = scalar_lea.vmem %s4, 192
        %v855 = vld [vmem:[%s854] sm:$0xff]
        %v856 = vld [vmem:[%s854 + $0x8] sm:$0xff]
        %v857 = vld [vmem:[%s854 + $0x10] sm:$0xff]
        %v858 = vld [vmem:[%s854 + $0x18] sm:$0xff]
        %v860 = vsel %vm366, %v846, 0
        %v863 = vsel %vm366, %v847, 0
        %v866 = vsel %vm366, %v848, 0
        %v869 = vsel %vm366, %v849, 0
        %v872 = vsel %vm366, %v850, 0
        %v875 = vsel %vm366, %v851, 0
        %v878 = vsel %vm366, %v852, 0
        %v881 = vsel %vm366, %v853, 0
        %883 = vmatpush.msra.mxu0 0.0
        %884 = vmatpush.msra.mxu0 0.0
        %885 = vmatpush.msra.mxu0 0.0
        %886 = vmatpush.msra.mxu0 0.0
        %887 = vmatpush.msra.mxu0 0.0
        %888 = vmatpush.msra.mxu0 0.0
        %889 = vmatpush.msra.mxu0 0.0
        %890 = vmatpush.msra.mxu0 0.0
        %891 = vmatpush.msra.mxu0 0.0
        %892 = vmatpush.msra.mxu0 0.0
        %893 = vmatpush.msra.mxu0 0.0
        %894 = vmatpush.msra.mxu0 0.0
        %895 = vmatpush.msra.mxu0 %v858
        %896 = vmatpush.msra.mxu0 %v857
        %897 = vmatpush.msra.mxu0 %v856
        %898 = vmatpush.msra.mxu0 %v855
        %899 = vmatmul.f32.gmra.mxu0 %v860
        %v900 = vpop.f32.mrf.mxu0
        %v901 = vadd.f32 0.0, %v900
        %902 = vmatmul.f32.gmra.mxu0 %v863
        %v903 = vpop.f32.mrf.mxu0
        %904 = vmatmul.f32.gmra.mxu0 %v866
        %v905 = vpop.f32.mrf.mxu0
        %v906 = vadd.f32 0.0, %v905
        %907 = vmatmul.f32.gmra.mxu0 %v869
        %v908 = vpop.f32.mrf.mxu0
        %909 = vmatmul.f32.gmra.mxu0 %v872
        %v910 = vpop.f32.mrf.mxu0
        %v911 = vadd.f32 0.0, %v910
        %912 = vmatmul.f32.gmra.mxu0 %v875
        %v913 = vpop.f32.mrf.mxu0
        %914 = vmatmul.f32.gmra.mxu0 %v878
        %v915 = vpop.f32.mrf.mxu0
        %v916 = vadd.f32 0.0, %v915
        %917 = vmatmul.f32.gmra.mxu0 %v881
        %v918 = vpop.f32.mrf.mxu0
        %919 = vdwg.mxu0
        %v920 = vadd.f32 %v842, %v901
        %v921 = vadd.f32 %v843, %v906
        %v922 = vadd.f32 %v844, %v911
        %v923 = vadd.f32 %v845, %v916
        %v924 = vld [vmem:[#allocation2 + $0x28] sm:$0xff]
        %v925 = vld [vmem:[#allocation2 + $0x30] sm:$0xff]
        %v926 = vld [vmem:[#allocation2 + $0x38] sm:$0xff]
        %v927 = vld [vmem:[#allocation2 + $0x40] sm:$0xff]
        %v928 = vld [vmem:[#allocation2 + $0x48] sm:$0xff]
        %v929 = vld [vmem:[#allocation2 + $0x50] sm:$0xff]
        %v930 = vld [vmem:[#allocation2 + $0x58] sm:$0xff]
        %v931 = vld [vmem:[#allocation2 + $0x60] sm:$0xff]
        %s932 = scalar_lea.vmem %s4, 224
        %v933 = vld [vmem:[%s932] sm:$0xff]
        %v934 = vld [vmem:[%s932 + $0x8] sm:$0xff]
        %v935 = vld [vmem:[%s932 + $0x10] sm:$0xff]
        %v936 = vld [vmem:[%s932 + $0x18] sm:$0xff]
        %v938 = vsel %vm366, %v924, 0
        %v941 = vsel %vm366, %v925, 0
        %v944 = vsel %vm366, %v926, 0
        %v947 = vsel %vm366, %v927, 0
        %v950 = vsel %vm366, %v928, 0
        %v953 = vsel %vm366, %v929, 0
        %v956 = vsel %vm366, %v930, 0
        %v959 = vsel %vm366, %v931, 0
        %961 = vmatpush.msra.mxu0 0.0
        %962 = vmatpush.msra.mxu0 0.0
        %963 = vmatpush.msra.mxu0 0.0
        %964 = vmatpush.msra.mxu0 0.0
        %965 = vmatpush.msra.mxu0 0.0
        %966 = vmatpush.msra.mxu0 0.0
        %967 = vmatpush.msra.mxu0 0.0
        %968 = vmatpush.msra.mxu0 0.0
        %969 = vmatpush.msra.mxu0 0.0
        %970 = vmatpush.msra.mxu0 0.0
        %971 = vmatpush.msra.mxu0 0.0
        %972 = vmatpush.msra.mxu0 0.0
        %973 = vmatpush.msra.mxu0 %v936
        %974 = vmatpush.msra.mxu0 %v935
        %975 = vmatpush.msra.mxu0 %v934
        %976 = vmatpush.msra.mxu0 %v933
        %977 = vmatmul.f32.gmra.mxu0 %v938
        %v978 = vpop.f32.mrf.mxu0
        %v979 = vadd.f32 0.0, %v978
        %980 = vmatmul.f32.gmra.mxu0 %v941
        %v981 = vpop.f32.mrf.mxu0
        %982 = vmatmul.f32.gmra.mxu0 %v944
        %v983 = vpop.f32.mrf.mxu0
        %v984 = vadd.f32 0.0, %v983
        %985 = vmatmul.f32.gmra.mxu0 %v947
        %v986 = vpop.f32.mrf.mxu0
        %987 = vmatmul.f32.gmra.mxu0 %v950
        %v988 = vpop.f32.mrf.mxu0
        %v989 = vadd.f32 0.0, %v988
        %990 = vmatmul.f32.gmra.mxu0 %v953
        %v991 = vpop.f32.mrf.mxu0
        %992 = vmatmul.f32.gmra.mxu0 %v956
        %v993 = vpop.f32.mrf.mxu0
        %v994 = vadd.f32 0.0, %v993
        %995 = vmatmul.f32.gmra.mxu0 %v959
        %v996 = vpop.f32.mrf.mxu0
        %997 = vdwg.mxu0
        %v998 = vadd.f32 %v920, %v979
        %v999 = vadd.f32 %v921, %v984
        %v1000 = vadd.f32 %v922, %v989
        %v1001 = vadd.f32 %v923, %v994
        %v1002 = vld [vmem:[#allocation2 + $0x29] sm:$0xff]
        %v1003 = vld [vmem:[#allocation2 + $0x31] sm:$0xff]
        %v1004 = vld [vmem:[#allocation2 + $0x39] sm:$0xff]
        %v1005 = vld [vmem:[#allocation2 + $0x41] sm:$0xff]
        %v1006 = vld [vmem:[#allocation2 + $0x49] sm:$0xff]
        %v1007 = vld [vmem:[#allocation2 + $0x51] sm:$0xff]
        %v1008 = vld [vmem:[#allocation2 + $0x59] sm:$0xff]
        %v1009 = vld [vmem:[#allocation2 + $0x61] sm:$0xff]
        %s1010 = scalar_lea.vmem %s4, 256
        %v1011 = vld [vmem:[%s1010] sm:$0xff]
        %v1012 = vld [vmem:[%s1010 + $0x8] sm:$0xff]
        %v1013 = vld [vmem:[%s1010 + $0x10] sm:$0xff]
        %v1014 = vld [vmem:[%s1010 + $0x18] sm:$0xff]
        %v1016 = vsel %vm366, %v1002, 0
        %v1019 = vsel %vm366, %v1003, 0
        %v1022 = vsel %vm366, %v1004, 0
        %v1025 = vsel %vm366, %v1005, 0
        %v1028 = vsel %vm366, %v1006, 0
        %v1031 = vsel %vm366, %v1007, 0
        %v1034 = vsel %vm366, %v1008, 0
        %v1037 = vsel %vm366, %v1009, 0
        %1039 = vmatpush.msra.mxu0 0.0
        %1040 = vmatpush.msra.mxu0 0.0
        %1041 = vmatpush.msra.mxu0 0.0
        %1042 = vmatpush.msra.mxu0 0.0
        %1043 = vmatpush.msra.mxu0 0.0
        %1044 = vmatpush.msra.mxu0 0.0
        %1045 = vmatpush.msra.mxu0 0.0
        %1046 = vmatpush.msra.mxu0 0.0
        %1047 = vmatpush.msra.mxu0 0.0
        %1048 = vmatpush.msra.mxu0 0.0
        %1049 = vmatpush.msra.mxu0 0.0
        %1050 = vmatpush.msra.mxu0 0.0
        %1051 = vmatpush.msra.mxu0 %v1014
        %1052 = vmatpush.msra.mxu0 %v1013
        %1053 = vmatpush.msra.mxu0 %v1012
        %1054 = vmatpush.msra.mxu0 %v1011
        %1055 = vmatmul.f32.gmra.mxu0 %v1016
        %v1056 = vpop.f32.mrf.mxu0
        %v1057 = vadd.f32 0.0, %v1056
        %1058 = vmatmul.f32.gmra.mxu0 %v1019
        %v1059 = vpop.f32.mrf.mxu0
        %1060 = vmatmul.f32.gmra.mxu0 %v1022
        %v1061 = vpop.f32.mrf.mxu0
        %v1062 = vadd.f32 0.0, %v1061
        %1063 = vmatmul.f32.gmra.mxu0 %v1025
        %v1064 = vpop.f32.mrf.mxu0
        %1065 = vmatmul.f32.gmra.mxu0 %v1028
        %v1066 = vpop.f32.mrf.mxu0
        %v1067 = vadd.f32 0.0, %v1066
        %1068 = vmatmul.f32.gmra.mxu0 %v1031
        %v1069 = vpop.f32.mrf.mxu0
        %1070 = vmatmul.f32.gmra.mxu0 %v1034
        %v1071 = vpop.f32.mrf.mxu0
        %v1072 = vadd.f32 0.0, %v1071
        %1073 = vmatmul.f32.gmra.mxu0 %v1037
        %v1074 = vpop.f32.mrf.mxu0
        %1075 = vdwg.mxu0
        %v1076 = vadd.f32 %v998, %v1057
        %v1077 = vadd.f32 %v999, %v1062
        %v1078 = vadd.f32 %v1000, %v1067
        %v1079 = vadd.f32 %v1001, %v1072
        %v1080 = vld [vmem:[%s5] sm:$0x1]
        %v1082 = vperm.slane %v1080, 0
        %v1084 = vmul.f32 %v1076, %v1082
        %v1085 = vmul.f32 %v1077, %v1082
        %v1086 = vmul.f32 %v1078, %v1082
        %v1087 = vmul.f32 %v1079, %v1082
        %v1088 = vld [vmem:[%s6] sm:$0x1]
        %v1090 = vperm.slane %v1088, 0
        %v1092 = vadd.f32 %v1084, %v1090
        %v1093 = vadd.f32 %v1085, %v1090
        %v1094 = vadd.f32 %v1086, %v1090
        %v1095 = vadd.f32 %v1087, %v1090
        %v1096 = vmax.f32 %v1092, 0.0
        %v1097 = vmax.f32 %v1093, 0.0
        %v1098 = vmax.f32 %v1094, 0.0
        %v1099 = vmax.f32 %v1095, 0.0
        %1100 = vst.msk [vmem:[%s271] sm:$0xf] %vm381, %v1096
        %s1101 = scalar_lea.vmem %s271, 4 [#allocation3]
        %1102 = vst.msk [vmem:[%s1101] sm:$0xf] %vm381, %v1097
        %s1103 = scalar_lea.vmem %s271, 8 [#allocation3]
        %1104 = vst.msk [vmem:[%s1103] sm:$0xf] %vm381, %v1098
        %s1105 = scalar_lea.vmem %s271, 12 [#allocation3]
        %1106 = vst.msk [vmem:[%s1105] sm:$0xf] %vm381, %v1099
        %s1107 = sand.u32 %s181, 1
        %s1108 = scalar_lea.sflag [#allocation4], %s1107
        %s1109 = sand.u32 %s181, 1
        %s1110 = smul.addr %s1109, 16
        %s1111 = scalar_lea.vmem [#allocation3], %s1110
        // Predicated region
        $region49: #{encoder_forward.5} parent=47 // pred_check
          %p1112 = pneg %p191
        $region50: #{encoder_forward.5} parent=47 // pred_check_branch
          %1114 = sbr.rel (%p1112) target = $region52
        $region51: #{encoder_forward.5} parent=47 // pred_region
          %1116 = vsyncadd %s1108, 0
          %s1117 = smul.addr %s21, 4
          %s1118 = smul.addr %s1117, 4
          %s1119 = scalar_lea.hbm %s7, %s1118
          %s1120 = sshll.u32 %s1111, 4
          %s1121 = int_to_ptr.vmem [resolvable:$true] %s1120
          %s1122 = sshll.u32 %s1119, 4
          %s1123 = int_to_ptr.hbm [resolvable:$true] %s1122
          %1128 = dma.vmem_to_hbm [thread:$0]  %s1121, 256, %s1123, %s1108, 64, 64, 4
        $region52: #{encoder_forward.5} parent=47 // pred_fallthru
          _
      $region48: #{encoder_forward.5} parent=5 // pred_fallthru
        _
      %p1129 = scmp.le.s32.totalorder 2, %s16
      // Predicated region
      $region53: #{encoder_forward.5} parent=5 // pred_check
        %p1130 = pneg %p1129
      $region54: #{encoder_forward.5} parent=5 // pred_check_branch
        %1132 = sbr.rel (%p1130) target = $region56
      $region55: #{encoder_forward.5} parent=5 // pred_region
        %s1133 = ssub.s32 %s16, 2
        // Predicated region
        $region57: #{encoder_forward.5} parent=55 // pred_check
          %p1134 = pneg %p197
        $region58: #{encoder_forward.5} parent=55 // pred_check_branch
          %1136 = sbr.rel (%p1134) target = $region60
        $region59: #{encoder_forward.5} parent=55 // pred_region
          %s1137 = sand.u32 %s182, 1
          %s1138 = scalar_lea.sflag [#allocation4], %s1137
          %s1139 = sand.u32 %s182, 1
          %s1140 = smul.addr %s1139, 16
          %s1141 = scalar_lea.vmem [#allocation3], %s1140
          %1143 = dma.done %s1138, 256
        $region60: #{encoder_forward.5} parent=55 // pred_fallthru
          _
      $region56: #{encoder_forward.5} parent=5 // pred_fallthru
        _
    $region6: #{encoder_forward.5} parent=1 // loop_footer
      %s20 = sadd.s32 1, %s16
    $region7: #{encoder_forward.5} parent=1 // loop_footer_branch
      %15 = sbr.rel target = $region3
    $region8: #{encoder_forward.5} parent=1 // loop_exit
      _
    %1144 = vsyncpa [#allocation4], 1
    %s1145 = scalar_lea.sflag [#allocation4], 1
    %1146 = vsyncpa %s1145, 1

// kernel: encoder_forward.3
$region0: #{encoder_forward.3}
  #allocation0 [shape = 'u32[]', space=smem, size = 0x4, offset = 0x4, fixed_abs, tag = 'smem constant byte address 0x4 - core index']
  #allocation1 [shape = 'u32[72,128]{1,0:T(1,128)}', space=vmem, size = 0x9000, scoped, tag = 'internal scratch']
  #allocation2 [shape = 'f32[592,8]{1,0:T(8,128)}', space=vmem, size = 0x4a000, scoped, tag = 'scratch operand']
  %s0 = inlined_call_operand.vmem [shape: f32[2,256,36], index: 0, kind: input, shape index: {}]
  %s1 = inlined_call_operand.vmem [shape: f32[36,8], index: 1, kind: input, shape index: {}]
  %s2 = inlined_call_operand.vmem [shape: f32[1,8], index: 2, kind: input, shape index: {}]
  %s3 = inlined_call_operand.vmem [shape: f32[1,8], index: 3, kind: input, shape index: {}]
  %s4 = inlined_call_operand.vmem [shape: f32[9,8,8], index: 4, kind: input, shape index: {}]
  %s5 = inlined_call_operand.vmem [shape: f32[1,8], index: 5, kind: input, shape index: {}]
  %s6 = inlined_call_operand.vmem [shape: f32[1,8], index: 6, kind: input, shape index: {}]
  %s7 = inlined_call_operand.vmem [shape: f32[2,16,16,8], index: 7, kind: output, shape index: {0}]
  %s8 = inlined_call_operand.vmem [shape: f32[2,8,8,8], index: 8, kind: output, shape index: {1}]
  %9 = xla_tuple %s7, %s8
  %s10 = sld [smem:[#allocation0]]
  $region69: #{encoder_forward.3} parent=0
    _
  %s12 = ssub.s32 1, %s10
  %s13 = scalar_select 0, %s12, %s10
  loop: start=0, step=1, limit=4
  $region2: #{encoder_forward.3} parent=0 // loop_pre_header
    _
  $region3: #{encoder_forward.3} parent=0 // loop_header
    %s15 = sphi 0, %s19
    %p16 = scmp.ge.s32.totalorder %s15, 4
    %s25 = sphi 0, %s27
    %s28 = sphi 0, %s25
    %s29 = sphi 0, %s28
    %s45 = sphi 0, %s29
    %s49 = sphi 0, %s49
    %s51 = sphi 0, %s49
    %s52 = sphi 0, %s51
    %s66 = sphi 0, %s52
    %s70 = sphi 0, %s70
    %s72 = sphi 0, %s70
    %s73 = sphi 0, %s72
    %s87 = sphi 0, %s73
    %s91 = sphi 0, %s91
    %s93 = sphi 0, %s91
    %s94 = sphi 0, %s93
    %s108 = sphi 0, %s94
    %s112 = sphi 0, %s112
    %s114 = sphi 0, %s112
    %s115 = sphi 0, %s114
    %s129 = sphi 0, %s115
    %s133 = sphi 0, %s133
    %s135 = sphi 0, %s133
    %s136 = sphi 0, %s135
    %s150 = sphi 0, %s136
    %s154 = sphi 0, %s154
    %s156 = sphi 0, %s154
    %s157 = sphi 0, %s156
    %s171 = sphi 0, %s157
    %s177 = sphi 0, %s179
    %s180 = sphi 0, %s177
    %s181 = sphi 0, %s180
    %s197 = sphi 0, %s181
    %s203 = sphi 0, %s205
    %s206 = sphi 0, %s203
    %s207 = sphi 0, %s206
    %s223 = sphi 0, %s207
  $region4: #{encoder_forward.3} parent=0 // loop_header_branch
    %18 = sbr.rel (%p16) target = $region8
  $region5: #{encoder_forward.3} parent=0 // loop_body
    %s20 = ssub.s32 %s15, 1
    %s21 = ssub.s32 %s15, 2
    %s22 = sadd.s32 %s15, 1
    %s23 = ssub.s32 %s15, %s22
    %p24 = scmp.eq.s32.totalorder %s23, 0
    %s26 = sadd.s32 %s25, 1
    %s27 = scalar_select %p24, %s25, %s26
    %p30 = pneg %p24
    %p31 = scmp.eq.s32.totalorder %s15, 1
    %p32 = por %p30, %p31
    %p33 = scmp.ne.s32.totalorder %s25, %s28
    %p34 = scmp.eq.s32.totalorder %s15, 0
    %p35 = por %p33, %p34
    %p36 = scmp.ne.s32.totalorder %s25, %s28
    %p37 = scmp.eq.s32.totalorder %s20, 1
    %p38 = por %p36, %p37
    %p39 = scmp.ne.s32.totalorder %s28, %s29
    %p40 = scmp.eq.s32.totalorder %s20, 0
    %p41 = por %p39, %p40
    %p42 = scmp.ne.s32.totalorder %s28, %s29
    %p43 = scmp.eq.s32.totalorder %s21, 1
    %p44 = por %p42, %p43
    %p46 = scmp.ne.s32.totalorder %s29, %s45
    %p47 = scmp.eq.s32.totalorder %s21, 0
    %p48 = por %p46, %p47
    %s50 = sadd.s32 %s49, 1
    %p53 = scmp.eq.s32.totalorder %s15, 1
    %p54 = scmp.ne.s32.totalorder %s49, %s51
    %p55 = scmp.eq.s32.totalorder %s15, 0
    %p56 = por %p54, %p55
    %p57 = scmp.ne.s32.totalorder %s49, %s51
    %p58 = scmp.eq.s32.totalorder %s20, 1
    %p59 = por %p57, %p58
    %p60 = scmp.ne.s32.totalorder %s51, %s52
    %p61 = scmp.eq.s32.totalorder %s20, 0
    %p62 = por %p60, %p61
    %p63 = scmp.ne.s32.totalorder %s51, %s52
    %p64 = scmp.eq.s32.totalorder %s21, 1
    %p65 = por %p63, %p64
    %p67 = scmp.ne.s32.totalorder %s52, %s66
    %p68 = scmp.eq.s32.totalorder %s21, 0
    %p69 = por %p67, %p68
    %s71 = sadd.s32 %s70, 1
    %p74 = scmp.eq.s32.totalorder %s15, 1
    %p75 = scmp.ne.s32.totalorder %s70, %s72
    %p76 = scmp.eq.s32.totalorder %s15, 0
    %p77 = por %p75, %p76
    %p78 = scmp.ne.s32.totalorder %s70, %s72
    %p79 = scmp.eq.s32.totalorder %s20, 1
    %p80 = por %p78, %p79
    %p81 = scmp.ne.s32.totalorder %s72, %s73
    %p82 = scmp.eq.s32.totalorder %s20, 0
    %p83 = por %p81, %p82
    %p84 = scmp.ne.s32.totalorder %s72, %s73
    %p85 = scmp.eq.s32.totalorder %s21, 1
    %p86 = por %p84, %p85
    %p88 = scmp.ne.s32.totalorder %s73, %s87
    %p89 = scmp.eq.s32.totalorder %s21, 0
    %p90 = por %p88, %p89
    %s92 = sadd.s32 %s91, 1
    %p95 = scmp.eq.s32.totalorder %s15, 1
    %p96 = scmp.ne.s32.totalorder %s91, %s93
    %p97 = scmp.eq.s32.totalorder %s15, 0
    %p98 = por %p96, %p97
    %p99 = scmp.ne.s32.totalorder %s91, %s93
    %p100 = scmp.eq.s32.totalorder %s20, 1
    %p101 = por %p99, %p100
    %p102 = scmp.ne.s32.totalorder %s93, %s94
    %p103 = scmp.eq.s32.totalorder %s20, 0
    %p104 = por %p102, %p103
    %p105 = scmp.ne.s32.totalorder %s93, %s94
    %p106 = scmp.eq.s32.totalorder %s21, 1
    %p107 = por %p105, %p106
    %p109 = scmp.ne.s32.totalorder %s94, %s108
    %p110 = scmp.eq.s32.totalorder %s21, 0
    %p111 = por %p109, %p110
    %s113 = sadd.s32 %s112, 1
    %p116 = scmp.eq.s32.totalorder %s15, 1
    %p117 = scmp.ne.s32.totalorder %s112, %s114
    %p118 = scmp.eq.s32.totalorder %s15, 0
    %p119 = por %p117, %p118
    %p120 = scmp.ne.s32.totalorder %s112, %s114
    %p121 = scmp.eq.s32.totalorder %s20, 1
    %p122 = por %p120, %p121
    %p123 = scmp.ne.s32.totalorder %s114, %s115
    %p124 = scmp.eq.s32.totalorder %s20, 0
    %p125 = por %p123, %p124
    %p126 = scmp.ne.s32.totalorder %s114, %s115
    %p127 = scmp.eq.s32.totalorder %s21, 1
    %p128 = por %p126, %p127
    %p130 = scmp.ne.s32.totalorder %s115, %s129
    %p131 = scmp.eq.s32.totalorder %s21, 0
    %p132 = por %p130, %p131
    %s134 = sadd.s32 %s133, 1
    %p137 = scmp.eq.s32.totalorder %s15, 1
    %p138 = scmp.ne.s32.totalorder %s133, %s135
    %p139 = scmp.eq.s32.totalorder %s15, 0
    %p140 = por %p138, %p139
    %p141 = scmp.ne.s32.totalorder %s133, %s135
    %p142 = scmp.eq.s32.totalorder %s20, 1
    %p143 = por %p141, %p142
    %p144 = scmp.ne.s32.totalorder %s135, %s136
    %p145 = scmp.eq.s32.totalorder %s20, 0
    %p146 = por %p144, %p145
    %p147 = scmp.ne.s32.totalorder %s135, %s136
    %p148 = scmp.eq.s32.totalorder %s21, 1
    %p149 = por %p147, %p148
    %p151 = scmp.ne.s32.totalorder %s136, %s150
    %p152 = scmp.eq.s32.totalorder %s21, 0
    %p153 = por %p151, %p152
    %s155 = sadd.s32 %s154, 1
    %p158 = scmp.eq.s32.totalorder %s15, 1
    %p159 = scmp.ne.s32.totalorder %s154, %s156
    %p160 = scmp.eq.s32.totalorder %s15, 0
    %p161 = por %p159, %p160
    %p162 = scmp.ne.s32.totalorder %s154, %s156
    %p163 = scmp.eq.s32.totalorder %s20, 1
    %p164 = por %p162, %p163
    %p165 = scmp.ne.s32.totalorder %s156, %s157
    %p166 = scmp.eq.s32.totalorder %s20, 0
    %p167 = por %p165, %p166
    %p168 = scmp.ne.s32.totalorder %s156, %s157
    %p169 = scmp.eq.s32.totalorder %s21, 1
    %p170 = por %p168, %p169
    %p172 = scmp.ne.s32.totalorder %s157, %s171
    %p173 = scmp.eq.s32.totalorder %s21, 0
    %p174 = por %p172, %p173
    %s175 = ssub.s32 %s15, %s22
    %p176 = scmp.eq.s32.totalorder %s175, 0
    %s178 = sadd.s32 %s177, 1
    %s179 = scalar_select %p176, %s177, %s178
    %p182 = pneg %p176
    %p183 = scmp.eq.s32.totalorder %s15, 1
    %p184 = por %p182, %p183
    %p185 = scmp.ne.s32.totalorder %s177, %s180
    %p186 = scmp.eq.s32.totalorder %s15, 0
    %p187 = por %p185, %p186
    %p188 = scmp.ne.s32.totalorder %s177, %s180
    %p189 = scmp.eq.s32.totalorder %s20, 1
    %p190 = por %p188, %p189
    %p191 = scmp.ne.s32.totalorder %s180, %s181
    %p192 = scmp.eq.s32.totalorder %s20, 0
    %p193 = por %p191, %p192
    %p194 = scmp.ne.s32.totalorder %s180, %s181
    %p195 = scmp.eq.s32.totalorder %s21, 1
    %p196 = por %p194, %p195
    %p198 = scmp.ne.s32.totalorder %s181, %s197
    %p199 = scmp.eq.s32.totalorder %s21, 0
    %p200 = por %p198, %p199
    %s201 = ssub.s32 %s15, %s22
    %p202 = scmp.eq.s32.totalorder %s201, 0
    %s204 = sadd.s32 %s203, 1
    %s205 = scalar_select %p202, %s203, %s204
    %p208 = pneg %p202
    %p209 = scmp.eq.s32.totalorder %s15, 1
    %p210 = por %p208, %p209
    %p211 = scmp.ne.s32.totalorder %s203, %s206
    %p212 = scmp.eq.s32.totalorder %s15, 0
    %p213 = por %p211, %p212
    %p214 = scmp.ne.s32.totalorder %s203, %s206
    %p215 = scmp.eq.s32.totalorder %s20, 1
    %p216 = por %p214, %p215
    %p217 = scmp.ne.s32.totalorder %s206, %s207
    %p218 = scmp.eq.s32.totalorder %s20, 0
    %p219 = por %p217, %p218
    %p220 = scmp.ne.s32.totalorder %s206, %s207
    %p221 = scmp.eq.s32.totalorder %s21, 1
    %p222 = por %p220, %p221
    %p224 = scmp.ne.s32.totalorder %s207, %s223
    %p225 = scmp.eq.s32.totalorder %s21, 0
    %p226 = por %p224, %p225
    %p227 = scmp.le.s32.totalorder 1, %s15
    %p228 = scmp.lt.s32.totalorder %s15, 3
    %p229 = pnand %p227, %p228
    %p230 = pneg %p229
    // Predicated region
    $region9: #{encoder_forward.3} parent=5 // pred_check
      _
    $region10: #{encoder_forward.3} parent=5 // pred_check_branch
      %232 = sbr.rel (%p229) target = $region12
    $region11: #{encoder_forward.3} parent=5 // pred_region
      %s233 = ssub.s32 %s15, 1
      // Predicated region
      $region13: #{encoder_forward.3} parent=11 // pred_check
        %p234 = pneg %p62
      $region14: #{encoder_forward.3} parent=11 // pred_check_branch
        %236 = sbr.rel (%p234) target = $region16
      $region15: #{encoder_forward.3} parent=11 // pred_region
        _
      $region16: #{encoder_forward.3} parent=11 // pred_fallthru
        _
      // Predicated region
      $region17: #{encoder_forward.3} parent=11 // pred_check
        %p237 = pneg %p83
      $region18: #{encoder_forward.3} parent=11 // pred_check_branch
        %239 = sbr.rel (%p237) target = $region20
      $region19: #{encoder_forward.3} parent=11 // pred_region
        _
      $region20: #{encoder_forward.3} parent=11 // pred_fallthru
        _
      // Predicated region
      $region21: #{encoder_forward.3} parent=11 // pred_check
        %p240 = pneg %p104
      $region22: #{encoder_forward.3} parent=11 // pred_check_branch
        %242 = sbr.rel (%p240) target = $region24
      $region23: #{encoder_forward.3} parent=11 // pred_region
        _
      $region24: #{encoder_forward.3} parent=11 // pred_fallthru
        _
      // Predicated region
      $region25: #{encoder_forward.3} parent=11 // pred_check
        %p243 = pneg %p125
      $region26: #{encoder_forward.3} parent=11 // pred_check_branch
        %245 = sbr.rel (%p243) target = $region28
      $region27: #{encoder_forward.3} parent=11 // pred_region
        _
      $region28: #{encoder_forward.3} parent=11 // pred_fallthru
        _
      // Predicated region
      $region29: #{encoder_forward.3} parent=11 // pred_check
        %p246 = pneg %p146
      $region30: #{encoder_forward.3} parent=11 // pred_check_branch
        %248 = sbr.rel (%p246) target = $region32
      $region31: #{encoder_forward.3} parent=11 // pred_region
        _
      $region32: #{encoder_forward.3} parent=11 // pred_fallthru
        _
      // Predicated region
      $region33: #{encoder_forward.3} parent=11 // pred_check
        %p249 = pneg %p167
      $region34: #{encoder_forward.3} parent=11 // pred_check_branch
        %251 = sbr.rel (%p249) target = $region36
      $region35: #{encoder_forward.3} parent=11 // pred_region
        _
      $region36: #{encoder_forward.3} parent=11 // pred_fallthru
        _
    $region12: #{encoder_forward.3} parent=5 // pred_fallthru
      _
    %p252 = scmp.lt.s32.totalorder %s15, 2
    // Predicated region
    $region37: #{encoder_forward.3} parent=5 // pred_check
      %p253 = pneg %p252
    $region38: #{encoder_forward.3} parent=5 // pred_check_branch
      %255 = sbr.rel (%p253) target = $region40
    $region39: #{encoder_forward.3} parent=5 // pred_region
      // Predicated region
      $region41: #{encoder_forward.3} parent=39 // pred_check
        %p256 = pneg %p35
      $region42: #{encoder_forward.3} parent=39 // pred_check_branch
        %258 = sbr.rel (%p256) target = $region44
      $region43: #{encoder_forward.3} parent=39 // pred_region
        %p259 = scmp.lt.s32.totalorder %s15, 1
        %s260 = scalar_select %p259, %s15, 1
        %s261 = smul.addr %s260, 32
        %s262 = smul.addr %s261, 8
        %s263 = scalar_lea.vmem %s0, %s262
      $region44: #{encoder_forward.3} parent=39 // pred_fallthru
        _
    $region40: #{encoder_forward.3} parent=5 // pred_fallthru
      _
    %p264 = scmp.le.s32.totalorder 1, %s15
    %p265 = scmp.lt.s32.totalorder %s15, 3
    %p266 = pnand %p264, %p265
    %p267 = pneg %p266
    // Predicated region
    $region45: #{encoder_forward.3} parent=5 // pred_check
      _
    $region46: #{encoder_forward.3} parent=5 // pred_check_branch
      %269 = sbr.rel (%p266) target = $region48
    $region47: #{encoder_forward.3} parent=5 // pred_region
      %s270 = ssub.s32 %s15, 1
      %p271 = scmp.lt.s32.totalorder %s20, 1
      %s272 = scalar_select %p271, %s20, 1
      %s273 = smul.addr %s272, 32
      %s274 = smul.addr %s273, 8
      %s275 = scalar_lea.vmem %s0, %s274
      %p276 = pneg %p41
      %p277 = pneg %p38
      %p278 = pneg %p62
      %p279 = pneg %p59
      %p280 = pneg %p83
      %p281 = pneg %p80
      %p282 = pneg %p104
      %p283 = pneg %p101
      %p284 = pneg %p125
      %p285 = pneg %p122
      %p286 = pneg %p146
      %p287 = pneg %p143
      %p288 = pneg %p167
      %p289 = pneg %p164
      %p290 = pneg %p193
      %p291 = pneg %p190
      %p292 = scmp.lt.s32.totalorder %s20, 1
      %s293 = scalar_select %p292, %s20, 1
      %s294 = smul.addr %s293, 32
      %s295 = smul.addr %s294, 8
      %s296 = scalar_lea.vmem %s7, %s295
      %p297 = pneg %p219
      %p298 = pneg %p216
      %p299 = scmp.lt.s32.totalorder %s20, 1
      %s300 = scalar_select %p299, %s20, 1
      %s301 = smul.addr %s300, 8
      %s302 = smul.addr %s301, 8
      %s303 = scalar_lea.vmem %s8, %s302
      %p304 = scmp.lt.s32.totalorder %s20, 1
      %s305 = scalar_select %p304, %s20, 1
      %s306 = smul.addr %s305, 32
      %s307 = smul.addr %s306, 8
      %s308 = scalar_lea.vmem %s0, %s307
      %p309 = scmp.lt.s32.totalorder %s20, 1
      %s310 = scalar_select %p309, %s20, 1
      %s311 = smul.addr %s310, 32
      %s312 = smul.addr %s311, 8
      %s313 = scalar_lea.vmem %s7, %s312
      %p314 = scmp.lt.s32.totalorder %s20, 1
      %s315 = scalar_select %p314, %s20, 1
      %s316 = smul.addr %s315, 8
      %s317 = smul.addr %s316, 8
      %s318 = scalar_lea.vmem %s8, %s317
      %v319 = vld [vmem:[%s308] sm:$0xff]
      %v320 = vld [vmem:[%s308 + $0x8] sm:$0xff]
      %v321 = vld [vmem:[%s308 + $0x10] sm:$0xff]
      %v322 = vld [vmem:[%s308 + $0x18] sm:$0xff]
      %v323 = vld [vmem:[%s308 + $0x20] sm:$0xff]
      %v324 = vld [vmem:[%s308 + $0x28] sm:$0xff]
      %v325 = vld [vmem:[%s308 + $0x30] sm:$0xff]
      %v326 = vld [vmem:[%s308 + $0x38] sm:$0xff]
      %v327 = vld [vmem:[%s308 + $0x40] sm:$0xff]
      %v328 = vld [vmem:[%s308 + $0x48] sm:$0xff]
      %v329 = vld [vmem:[%s308 + $0x50] sm:$0xff]
      %v330 = vld [vmem:[%s308 + $0x58] sm:$0xff]
      %v331 = vld [vmem:[%s308 + $0x60] sm:$0xff]
      %v332 = vld [vmem:[%s308 + $0x68] sm:$0xff]
      %v333 = vld [vmem:[%s308 + $0x70] sm:$0xff]
      %v334 = vld [vmem:[%s308 + $0x78] sm:$0xff]
      %v335 = vld [vmem:[%s308 + $0x80] sm:$0xff]
      %v336 = vld [vmem:[%s308 + $0x88] sm:$0xff]
      %v337 = vld [vmem:[%s308 + $0x90] sm:$0xff]
      %v338 = vld [vmem:[%s308 + $0x98] sm:$0xff]
      %v339 = vld [vmem:[%s308 + $0xa0] sm:$0xff]
      %v340 = vld [vmem:[%s308 + $0xa8] sm:$0xff]
      %v341 = vld [vmem:[%s308 + $0xb0] sm:$0xff]
      %v342 = vld [vmem:[%s308 + $0xb8] sm:$0xff]
      %v343 = vld [vmem:[%s308 + $0xc0] sm:$0xff]
      %v344 = vld [vmem:[%s308 + $0xc8] sm:$0xff]
      %v345 = vld [vmem:[%s308 + $0xd0] sm:$0xff]
      %v346 = vld [vmem:[%s308 + $0xd8] sm:$0xff]
      %v347 = vld [vmem:[%s308 + $0xe0] sm:$0xff]
      %v348 = vld [vmem:[%s308 + $0xe8] sm:$0xff]
      %v349 = vld [vmem:[%s308 + $0xf0] sm:$0xff]
      %v350 = vld [vmem:[%s308 + $0xf8] sm:$0xff]
      %v351 = vld [vmem:[%s1] sm:$0xff]
      %v352 = vld [vmem:[%s1 + $0x8] sm:$0xff]
      %v353 = vld [vmem:[%s1 + $0x10] sm:$0xff]
      %v354 = vld [vmem:[%s1 + $0x18] sm:$0xff]
      %v355 = vld [vmem:[%s1 + $0x20] sm:$0xf]
      %vm356 = vcmask 293888
      %v358 = vsel %vm356, %v319, 0
      %v361 = vsel %vm356, %v320, 0
      %v364 = vsel %vm356, %v321, 0
      %v367 = vsel %vm356, %v322, 0
      %v370 = vsel %vm356, %v323, 0
      %v373 = vsel %vm356, %v324, 0
      %v376 = vsel %vm356, %v325, 0
      %v379 = vsel %vm356, %v326, 0
      %v382 = vsel %vm356, %v327, 0
      %v385 = vsel %vm356, %v328, 0
      %v388 = vsel %vm356, %v329, 0
      %v391 = vsel %vm356, %v330, 0
      %v394 = vsel %vm356, %v331, 0
      %v397 = vsel %vm356, %v332, 0
      %v400 = vsel %vm356, %v333, 0
      %v403 = vsel %vm356, %v334, 0
      %v406 = vsel %vm356, %v335, 0
      %v409 = vsel %vm356, %v336, 0
      %v412 = vsel %vm356, %v337, 0
      %v415 = vsel %vm356, %v338, 0
      %v418 = vsel %vm356, %v339, 0
      %v421 = vsel %vm356, %v340, 0
      %v424 = vsel %vm356, %v341, 0
      %v427 = vsel %vm356, %v342, 0
      %v430 = vsel %vm356, %v343, 0
      %v433 = vsel %vm356, %v344, 0
      %v436 = vsel %vm356, %v345, 0
      %v439 = vsel %vm356, %v346, 0
      %v442 = vsel %vm356, %v347, 0
      %v445 = vsel %vm356, %v348, 0
      %v448 = vsel %vm356, %v349, 0
      %v451 = vsel %vm356, %v350, 0
      %vm453 = vcmask 1043456
      %v455 = vsel %vm453, %v355, 0
      %457 = vmatpush.msra.mxu0 0.0
      %458 = vmatpush.msra.mxu0 0.0
      %459 = vmatpush.msra.mxu0 0.0
      %460 = vmatpush.msra.mxu0 0.0
      %461 = vmatpush.msra.mxu0 0.0
      %462 = vmatpush.msra.mxu0 0.0
      %463 = vmatpush.msra.mxu0 0.0
      %464 = vmatpush.msra.mxu0 0.0
      %465 = vmatpush.msra.mxu0 0.0
      %466 = vmatpush.msra.mxu0 0.0
      %467 = vmatpush.msra.mxu0 0.0
      %468 = vmatpush.msra.mxu0 %v455
      %469 = vmatpush.msra.mxu0 %v354
      %470 = vmatpush.msra.mxu0 %v353
      %471 = vmatpush.msra.mxu0 %v352
      %472 = vmatpush.msra.mxu0 %v351
      %473 = vmatmul.f32.gmra.mxu0 %v358
      %v474 = vpop.f32.mrf.mxu0
      %v475 = vadd.f32 0.0, %v474
      %476 = vmatmul.f32.gmra.mxu0 %v361
      %v477 = vpop.f32.mrf.mxu0
      %v478 = vadd.f32 0.0, %v477
      %479 = vmatmul.f32.gmra.mxu0 %v364
      %v480 = vpop.f32.mrf.mxu0
      %v481 = vadd.f32 0.0, %v480
      %482 = vmatmul.f32.gmra.mxu0 %v367
      %v483 = vpop.f32.mrf.mxu0
      %v484 = vadd.f32 0.0, %v483
      %485 = vmatmul.f32.gmra.mxu0 %v370
      %v486 = vpop.f32.mrf.mxu0
      %v487 = vadd.f32 0.0, %v486
      %488 = vmatmul.f32.gmra.mxu0 %v373
      %v489 = vpop.f32.mrf.mxu0
      %v490 = vadd.f32 0.0, %v489
      %491 = vmatmul.f32.gmra.mxu0 %v376
      %v492 = vpop.f32.mrf.mxu0
      %v493 = vadd.f32 0.0, %v492
      %494 = vmatmul.f32.gmra.mxu0 %v379
      %v495 = vpop.f32.mrf.mxu0
      %v496 = vadd.f32 0.0, %v495
      %497 = vmatmul.f32.gmra.mxu0 %v382
      %v498 = vpop.f32.mrf.mxu0
      %v499 = vadd.f32 0.0, %v498
      %500 = vmatmul.f32.gmra.mxu0 %v385
      %v501 = vpop.f32.mrf.mxu0
      %v502 = vadd.f32 0.0, %v501
      %503 = vmatmul.f32.gmra.mxu0 %v388
      %v504 = vpop.f32.mrf.mxu0
      %v505 = vadd.f32 0.0, %v504
      %506 = vmatmul.f32.gmra.mxu0 %v391
      %v507 = vpop.f32.mrf.mxu0
      %v508 = vadd.f32 0.0, %v507
      %509 = vmatmul.f32.gmra.mxu0 %v394
      %v510 = vpop.f32.mrf.mxu0
      %v511 = vadd.f32 0.0, %v510
      %512 = vmatmul.f32.gmra.mxu0 %v397
      %v513 = vpop.f32.mrf.mxu0
      %v514 = vadd.f32 0.0, %v513
      %515 = vmatmul.f32.gmra.mxu0 %v400
      %v516 = vpop.f32.mrf.mxu0
      %v517 = vadd.f32 0.0, %v516
      %518 = vmatmul.f32.gmra.mxu0 %v403
      %v519 = vpop.f32.mrf.mxu0
      %v520 = vadd.f32 0.0, %v519
      %521 = vmatmul.f32.gmra.mxu0 %v406
      %v522 = vpop.f32.mrf.mxu0
      %v523 = vadd.f32 0.0, %v522
      %524 = vmatmul.f32.gmra.mxu0 %v409
      %v525 = vpop.f32.mrf.mxu0
      %v526 = vadd.f32 0.0, %v525
      %527 = vmatmul.f32.gmra.mxu0 %v412
      %v528 = vpop.f32.mrf.mxu0
      %v529 = vadd.f32 0.0, %v528
      %530 = vmatmul.f32.gmra.mxu0 %v415
      %v531 = vpop.f32.mrf.mxu0
      %v532 = vadd.f32 0.0, %v531
      %533 = vmatmul.f32.gmra.mxu0 %v418
      %v534 = vpop.f32.mrf.mxu0
      %v535 = vadd.f32 0.0, %v534
      %536 = vmatmul.f32.gmra.mxu0 %v421
      %v537 = vpop.f32.mrf.mxu0
      %v538 = vadd.f32 0.0, %v537
      %539 = vmatmul.f32.gmra.mxu0 %v424
      %v540 = vpop.f32.mrf.mxu0
      %v541 = vadd.f32 0.0, %v540
      %542 = vmatmul.f32.gmra.mxu0 %v427
      %v543 = vpop.f32.mrf.mxu0
      %v544 = vadd.f32 0.0, %v543
      %545 = vmatmul.f32.gmra.mxu0 %v430
      %v546 = vpop.f32.mrf.mxu0
      %v547 = vadd.f32 0.0, %v546
      %548 = vmatmul.f32.gmra.mxu0 %v433
      %v549 = vpop.f32.mrf.mxu0
      %v550 = vadd.f32 0.0, %v549
      %551 = vmatmul.f32.gmra.mxu0 %v436
      %v552 = vpop.f32.mrf.mxu0
      %v553 = vadd.f32 0.0, %v552
      %554 = vmatmul.f32.gmra.mxu0 %v439
      %v555 = vpop.f32.mrf.mxu0
      %v556 = vadd.f32 0.0, %v555
      %557 = vmatmul.f32.gmra.mxu0 %v442
      %v558 = vpop.f32.mrf.mxu0
      %v559 = vadd.f32 0.0, %v558
      %560 = vmatmul.f32.gmra.mxu0 %v445
      %v561 = vpop.f32.mrf.mxu0
      %v562 = vadd.f32 0.0, %v561
      %563 = vmatmul.f32.gmra.mxu0 %v448
      %v564 = vpop.f32.mrf.mxu0
      %v565 = vadd.f32 0.0, %v564
      %566 = vmatmul.f32.gmra.mxu0 %v451
      %v567 = vpop.f32.mrf.mxu0
      %v568 = vadd.f32 0.0, %v567
      %569 = vdwg.mxu0
      %v570 = vld [vmem:[%s2] sm:$0x1]
      %v572 = vperm.slane %v570, 0
      %v574 = vmul.f32 %v475, %v572
      %v575 = vmul.f32 %v478, %v572
      %v576 = vmul.f32 %v481, %v572
      %v577 = vmul.f32 %v484, %v572
      %v578 = vmul.f32 %v487, %v572
      %v579 = vmul.f32 %v490, %v572
      %v580 = vmul.f32 %v493, %v572
      %v581 = vmul.f32 %v496, %v572
      %v582 = vmul.f32 %v499, %v572
      %v583 = vmul.f32 %v502, %v572
      %v584 = vmul.f32 %v505, %v572
      %v585 = vmul.f32 %v508, %v572
      %v586 = vmul.f32 %v511, %v572
      %v587 = vmul.f32 %v514, %v572
      %v588 = vmul.f32 %v517, %v572
      %v589 = vmul.f32 %v520, %v572
      %v590 = vmul.f32 %v523, %v572
      %v591 = vmul.f32 %v526, %v572
      %v592 = vmul.f32 %v529, %v572
      %v593 = vmul.f32 %v532, %v572
      %v594 = vmul.f32 %v535, %v572
      %v595 = vmul.f32 %v538, %v572
      %v596 = vmul.f32 %v541, %v572
      %v597 = vmul.f32 %v544, %v572
      %v598 = vmul.f32 %v547, %v572
      %v599 = vmul.f32 %v550, %v572
      %v600 = vmul.f32 %v553, %v572
      %v601 = vmul.f32 %v556, %v572
      %v602 = vmul.f32 %v559, %v572
      %v603 = vmul.f32 %v562, %v572
      %v604 = vmul.f32 %v565, %v572
      %v605 = vmul.f32 %v568, %v572
      %v606 = vld [vmem:[%s3] sm:$0x1]
      %v608 = vperm.slane %v606, 0
      %v610 = vadd.f32 %v574, %v608
      %v611 = vadd.f32 %v575, %v608
      %v612 = vadd.f32 %v576, %v608
      %v613 = vadd.f32 %v577, %v608
      %v614 = vadd.f32 %v578, %v608
      %v615 = vadd.f32 %v579, %v608
      %v616 = vadd.f32 %v580, %v608
      %v617 = vadd.f32 %v581, %v608
      %v618 = vadd.f32 %v582, %v608
      %v619 = vadd.f32 %v583, %v608
      %v620 = vadd.f32 %v584, %v608
      %v621 = vadd.f32 %v585, %v608
      %v622 = vadd.f32 %v586, %v608
      %v623 = vadd.f32 %v587, %v608
      %v624 = vadd.f32 %v588, %v608
      %v625 = vadd.f32 %v589, %v608
      %v626 = vadd.f32 %v590, %v608
      %v627 = vadd.f32 %v591, %v608
      %v628 = vadd.f32 %v592, %v608
      %v629 = vadd.f32 %v593, %v608
      %v630 = vadd.f32 %v594, %v608
      %v631 = vadd.f32 %v595, %v608
      %v632 = vadd.f32 %v596, %v608
      %v633 = vadd.f32 %v597, %v608
      %v634 = vadd.f32 %v598, %v608
      %v635 = vadd.f32 %v599, %v608
      %v636 = vadd.f32 %v600, %v608
      %v637 = vadd.f32 %v601, %v608
      %v638 = vadd.f32 %v602, %v608
      %v639 = vadd.f32 %v603, %v608
      %v640 = vadd.f32 %v604, %v608
      %v641 = vadd.f32 %v605, %v608
      %v642 = vmax.f32 %v610, 0.0
      %v643 = vmax.f32 %v611, 0.0
      %v644 = vmax.f32 %v612, 0.0
      %v645 = vmax.f32 %v613, 0.0
      %v646 = vmax.f32 %v614, 0.0
      %v647 = vmax.f32 %v615, 0.0
      %v648 = vmax.f32 %v616, 0.0
      %v649 = vmax.f32 %v617, 0.0
      %v650 = vmax.f32 %v618, 0.0
      %v651 = vmax.f32 %v619, 0.0
      %v652 = vmax.f32 %v620, 0.0
      %v653 = vmax.f32 %v621, 0.0
      %v654 = vmax.f32 %v622, 0.0
      %v655 = vmax.f32 %v623, 0.0
      %v656 = vmax.f32 %v624, 0.0
      %v657 = vmax.f32 %v625, 0.0
      %v658 = vmax.f32 %v626, 0.0
      %v659 = vmax.f32 %v627, 0.0
      %v660 = vmax.f32 %v628, 0.0
      %v661 = vmax.f32 %v629, 0.0
      %v662 = vmax.f32 %v630, 0.0
      %v663 = vmax.f32 %v631, 0.0
      %v664 = vmax.f32 %v632, 0.0
      %v665 = vmax.f32 %v633, 0.0
      %v666 = vmax.f32 %v634, 0.0
      %v667 = vmax.f32 %v635, 0.0
      %v668 = vmax.f32 %v636, 0.0
      %v669 = vmax.f32 %v637, 0.0
      %v670 = vmax.f32 %v638, 0.0
      %v671 = vmax.f32 %v639, 0.0
      %v672 = vmax.f32 %v640, 0.0
      %v673 = vmax.f32 %v641, 0.0
      %vm674 = vcmask 64512
      %675 = vst.msk [vmem:[#allocation2] sm:$0xff] %vm674, 0.0
      %676 = vst.msk [vmem:[#allocation2 + $0x8] sm:$0xff] %vm674, 0.0
      %677 = vst.msk [vmem:[#allocation2 + $0x10] sm:$0xff] %vm674, 0.0
      %678 = vst.msk [vmem:[#allocation2 + $0x18] sm:$0xff] %vm674, 0.0
      %679 = vst.msk [vmem:[#allocation2 + $0x20] sm:$0xff] %vm674, 0.0
      %680 = vst.msk [vmem:[#allocation2 + $0x28] sm:$0xff] %vm674, 0.0
      %681 = vst.msk [vmem:[#allocation2 + $0x30] sm:$0xff] %vm674, 0.0
      %682 = vst.msk [vmem:[#allocation2 + $0x38] sm:$0xff] %vm674, 0.0
      %683 = vst.msk [vmem:[#allocation2 + $0x40] sm:$0xff] %vm674, 0.0
      %684 = vst.msk [vmem:[#allocation2 + $0x48] sm:$0xff] %vm674, 0.0
      %685 = vst.msk [vmem:[#allocation2 + $0x50] sm:$0xff] %vm674, 0.0
      %686 = vst.msk [vmem:[#allocation2 + $0x58] sm:$0xff] %vm674, 0.0
      %687 = vst.msk [vmem:[#allocation2 + $0x60] sm:$0xff] %vm674, 0.0
      %688 = vst.msk [vmem:[#allocation2 + $0x68] sm:$0xff] %vm674, 0.0
      %689 = vst.msk [vmem:[#allocation2 + $0x70] sm:$0xff] %vm674, 0.0
      %690 = vst.msk [vmem:[#allocation2 + $0x78] sm:$0xff] %vm674, 0.0
      %691 = vst.msk [vmem:[#allocation2 + $0x80] sm:$0xff] %vm674, 0.0
      %692 = vst.msk [vmem:[#allocation2 + $0x88] sm:$0xff] %vm674, 0.0
      %693 = vst.msk [vmem:[#allocation2 + $0x90] sm:$0xff] %vm674, 0.0
      %694 = vst.msk [vmem:[#allocation2 + $0x98] sm:$0xff] %vm674, 0.0
      %695 = vst.msk [vmem:[#allocation2 + $0xa0] sm:$0xff] %vm674, 0.0
      %696 = vst.msk [vmem:[#allocation2 + $0xa8] sm:$0xff] %vm674, 0.0
      %697 = vst.msk [vmem:[#allocation2 + $0xb0] sm:$0xff] %vm674, 0.0
      %698 = vst.msk [vmem:[#allocation2 + $0xb8] sm:$0xff] %vm674, 0.0
      %699 = vst.msk [vmem:[#allocation2 + $0xc0] sm:$0xff] %vm674, 0.0
      %700 = vst.msk [vmem:[#allocation2 + $0xc8] sm:$0xff] %vm674, 0.0
      %701 = vst.msk [vmem:[#allocation2 + $0xd0] sm:$0xff] %vm674, 0.0
      %702 = vst.msk [vmem:[#allocation2 + $0xd8] sm:$0xff] %vm674, 0.0
      %703 = vst.msk [vmem:[#allocation2 + $0xe0] sm:$0xff] %vm674, 0.0
      %704 = vst.msk [vmem:[#allocation2 + $0xe8] sm:$0xff] %vm674, 0.0
      %705 = vst.msk [vmem:[#allocation2 + $0xf0] sm:$0xff] %vm674, 0.0
      %706 = vst.msk [vmem:[#allocation2 + $0xf8] sm:$0xff] %vm674, 0.0
      %707 = vst.msk [vmem:[#allocation2 + $0x100] sm:$0xff] %vm674, 0.0
      %708 = vst.msk [vmem:[#allocation2 + $0x108] sm:$0xff] %vm674, 0.0
      %709 = vst.msk [vmem:[#allocation2 + $0x110] sm:$0xff] %vm674, 0.0
      %710 = vst.msk [vmem:[#allocation2 + $0x118] sm:$0xff] %vm674, 0.0
      %711 = vst.msk [vmem:[#allocation2 + $0x120] sm:$0xff] %vm674, 0.0
      %712 = vst.msk [vmem:[#allocation2 + $0x128] sm:$0xff] %vm674, 0.0
      %713 = vst.msk [vmem:[#allocation2 + $0x130] sm:$0xff] %vm674, 0.0
      %714 = vst.msk [vmem:[#allocation2 + $0x138] sm:$0xff] %vm674, 0.0
      %715 = vst.msk [vmem:[#allocation2 + $0x140] sm:$0xff] %vm674, 0.0
      %716 = vst.msk [vmem:[#allocation2 + $0x148] sm:$0xff] %vm674, 0.0
      %717 = vst.msk [vmem:[#allocation2 + $0x150] sm:$0xff] %vm674, 0.0
      %718 = vst.msk [vmem:[#allocation2 + $0x158] sm:$0xff] %vm674, 0.0
      %719 = vst.msk [vmem:[#allocation2 + $0x160] sm:$0xff] %vm674, 0.0
      %720 = vst.msk [vmem:[#allocation2 + $0x168] sm:$0xff] %vm674, 0.0
      %721 = vst.msk [vmem:[#allocation2 + $0x170] sm:$0xff] %vm674, 0.0
      %722 = vst.msk [vmem:[#allocation2 + $0x178] sm:$0xff] %vm674, 0.0
      %723 = vst.msk [vmem:[#allocation2 + $0x180] sm:$0xff] %vm674, 0.0
      %724 = vst.msk [vmem:[#allocation2 + $0x188] sm:$0xff] %vm674, 0.0
      %725 = vst.msk [vmem:[#allocation2 + $0x190] sm:$0xff] %vm674, 0.0
      %726 = vst.msk [vmem:[#allocation2 + $0x198] sm:$0xff] %vm674, 0.0
      %727 = vst.msk [vmem:[#allocation2 + $0x1a0] sm:$0xff] %vm674, 0.0
      %728 = vst.msk [vmem:[#allocation2 + $0x1a8] sm:$0xff] %vm674, 0.0
      %729 = vst.msk [vmem:[#allocation2 + $0x1b0] sm:$0xff] %vm674, 0.0
      %730 = vst.msk [vmem:[#allocation2 + $0x1b8] sm:$0xff] %vm674, 0.0
      %731 = vst.msk [vmem:[#allocation2 + $0x1c0] sm:$0xff] %vm674, 0.0
      %732 = vst.msk [vmem:[#allocation2 + $0x1c8] sm:$0xff] %vm674, 0.0
      %733 = vst.msk [vmem:[#allocation2 + $0x1d0] sm:$0xff] %vm674, 0.0
      %734 = vst.msk [vmem:[#allocation2 + $0x1d8] sm:$0xff] %vm674, 0.0
      %735 = vst.msk [vmem:[#allocation2 + $0x1e0] sm:$0xff] %vm674, 0.0
      %736 = vst.msk [vmem:[#allocation2 + $0x1e8] sm:$0xff] %vm674, 0.0
      %737 = vst.msk [vmem:[#allocation2 + $0x1f0] sm:$0xff] %vm674, 0.0
      %738 = vst.msk [vmem:[#allocation2 + $0x1f8] sm:$0xff] %vm674, 0.0
      %739 = vst.msk [vmem:[#allocation2 + $0x200] sm:$0xff] %vm674, 0.0
      %740 = vst.msk [vmem:[#allocation2 + $0x208] sm:$0xff] %vm674, 0.0
      %741 = vst.msk [vmem:[#allocation2 + $0x210] sm:$0xff] %vm674, 0.0
      %742 = vst.msk [vmem:[#allocation2 + $0x218] sm:$0xff] %vm674, 0.0
      %743 = vst.msk [vmem:[#allocation2 + $0x220] sm:$0xff] %vm674, 0.0
      %744 = vst.msk [vmem:[#allocation2 + $0x228] sm:$0xff] %vm674, 0.0
      %745 = vst.msk [vmem:[#allocation2 + $0x230] sm:$0xff] %vm674, 0.0
      %746 = vst.msk [vmem:[#allocation2 + $0x238] sm:$0xff] %vm674, 0.0
      %747 = vst.msk [vmem:[#allocation2 + $0x240] sm:$0xff] %vm674, 0.0
      %748 = vst.msk [vmem:[#allocation2 + $0x248] sm:$0xff] %vm674, 0.0
      %749 = vst.msk [vmem:[#allocation2 + $0x28] sm:$0xff] %vm674, %v642
      %750 = vst.msk [vmem:[#allocation2 + $0x30] sm:$0xff] %vm674, %v643
      %751 = vst.msk [vmem:[#allocation2 + $0x48] sm:$0xff] %vm674, %v644
      %752 = vst.msk [vmem:[#allocation2 + $0x50] sm:$0xff] %vm674, %v645
      %753 = vst.msk [vmem:[#allocation2 + $0x68] sm:$0xff] %vm674, %v646
      %754 = vst.msk [vmem:[#allocation2 + $0x70] sm:$0xff] %vm674, %v647
      %755 = vst.msk [vmem:[#allocation2 + $0x88] sm:$0xff] %vm674, %v648
      %756 = vst.msk [vmem:[#allocation2 + $0x90] sm:$0xff] %vm674, %v649
      %757 = vst.msk [vmem:[#allocation2 + $0xa8] sm:$0xff] %vm674, %v650
      %758 = vst.msk [vmem:[#allocation2 + $0xb0] sm:$0xff] %vm674, %v651
      %759 = vst.msk [vmem:[#allocation2 + $0xc8] sm:$0xff] %vm674, %v652
      %760 = vst.msk [vmem:[#allocation2 + $0xd0] sm:$0xff] %vm674, %v653
      %761 = vst.msk [vmem:[#allocation2 + $0xe8] sm:$0xff] %vm674, %v654
      %762 = vst.msk [vmem:[#allocation2 + $0xf0] sm:$0xff] %vm674, %v655
      %763 = vst.msk [vmem:[#allocation2 + $0x108] sm:$0xff] %vm674, %v656
      %764 = vst.msk [vmem:[#allocation2 + $0x110] sm:$0xff] %vm674, %v657
      %765 = vst.msk [vmem:[#allocation2 + $0x128] sm:$0xff] %vm674, %v658
      %766 = vst.msk [vmem:[#allocation2 + $0x130] sm:$0xff] %vm674, %v659
      %767 = vst.msk [vmem:[#allocation2 + $0x148] sm:$0xff] %vm674, %v660
      %768 = vst.msk [vmem:[#allocation2 + $0x150] sm:$0xff] %vm674, %v661
      %769 = vst.msk [vmem:[#allocation2 + $0x168] sm:$0xff] %vm674, %v662
      %770 = vst.msk [vmem:[#allocation2 + $0x170] sm:$0xff] %vm674, %v663
      %771 = vst.msk [vmem:[#allocation2 + $0x188] sm:$0xff] %vm674, %v664
      %772 = vst.msk [vmem:[#allocation2 + $0x190] sm:$0xff] %vm674, %v665
      %773 = vst.msk [vmem:[#allocation2 + $0x1a8] sm:$0xff] %vm674, %v666
      %774 = vst.msk [vmem:[#allocation2 + $0x1b0] sm:$0xff] %vm674, %v667
      %775 = vst.msk [vmem:[#allocation2 + $0x1c8] sm:$0xff] %vm674, %v668
      %776 = vst.msk [vmem:[#allocation2 + $0x1d0] sm:$0xff] %vm674, %v669
      %777 = vst.msk [vmem:[#allocation2 + $0x1e8] sm:$0xff] %vm674, %v670
      %778 = vst.msk [vmem:[#allocation2 + $0x1f0] sm:$0xff] %vm674, %v671
      %779 = vst.msk [vmem:[#allocation2 + $0x208] sm:$0xff] %vm674, %v672
      %780 = vst.msk [vmem:[#allocation2 + $0x210] sm:$0xff] %vm674, %v673
      %v781 = vld [vmem:[#allocation2 + $0x7] sm:$0xff]
      %v782 = vld [vmem:[#allocation2 + $0xf] sm:$0xff]
      %v783 = vld [vmem:[#allocation2 + $0x17] sm:$0xff]
      %v784 = vld [vmem:[#allocation2 + $0x1f] sm:$0xff]
      %v785 = vld [vmem:[#allocation2 + $0x27] sm:$0xff]
      %v786 = vld [vmem:[#allocation2 + $0x2f] sm:$0xff]
      %v787 = vld [vmem:[#allocation2 + $0x37] sm:$0xff]
      %v788 = vld [vmem:[#allocation2 + $0x3f] sm:$0xff]
      %v789 = vld [vmem:[#allocation2 + $0x47] sm:$0xff]
      %v790 = vld [vmem:[#allocation2 + $0x4f] sm:$0xff]
      %v791 = vld [vmem:[#allocation2 + $0x57] sm:$0xff]
      %v792 = vld [vmem:[#allocation2 + $0x5f] sm:$0xff]
      %v793 = vld [vmem:[#allocation2 + $0x67] sm:$0xff]
      %v794 = vld [vmem:[#allocation2 + $0x6f] sm:$0xff]
      %v795 = vld [vmem:[#allocation2 + $0x77] sm:$0xff]
      %v796 = vld [vmem:[#allocation2 + $0x7f] sm:$0xff]
      %v797 = vld [vmem:[#allocation2 + $0x87] sm:$0xff]
      %v798 = vld [vmem:[#allocation2 + $0x8f] sm:$0xff]
      %v799 = vld [vmem:[#allocation2 + $0x97] sm:$0xff]
      %v800 = vld [vmem:[#allocation2 + $0x9f] sm:$0xff]
      %v801 = vld [vmem:[#allocation2 + $0xa7] sm:$0xff]
      %v802 = vld [vmem:[#allocation2 + $0xaf] sm:$0xff]
      %v803 = vld [vmem:[#allocation2 + $0xb7] sm:$0xff]
      %v804 = vld [vmem:[#allocation2 + $0xbf] sm:$0xff]
      %v805 = vld [vmem:[#allocation2 + $0xc7] sm:$0xff]
      %v806 = vld [vmem:[#allocation2 + $0xcf] sm:$0xff]
      %v807 = vld [vmem:[#allocation2 + $0xd7] sm:$0xff]
      %v808 = vld [vmem:[#allocation2 + $0xdf] sm:$0xff]
      %v809 = vld [vmem:[#allocation2 + $0xe7] sm:$0xff]
      %v810 = vld [vmem:[#allocation2 + $0xef] sm:$0xff]
      %v811 = vld [vmem:[#allocation2 + $0xf7] sm:$0xff]
      %v812 = vld [vmem:[#allocation2 + $0xff] sm:$0xff]
      %v813 = vld [vmem:[#allocation2 + $0x107] sm:$0xff]
      %v814 = vld [vmem:[#allocation2 + $0x10f] sm:$0xff]
      %v815 = vld [vmem:[#allocation2 + $0x117] sm:$0xff]
      %v816 = vld [vmem:[#allocation2 + $0x11f] sm:$0xff]
      %v817 = vld [vmem:[#allocation2 + $0x127] sm:$0xff]
      %v818 = vld [vmem:[#allocation2 + $0x12f] sm:$0xff]
      %v819 = vld [vmem:[#allocation2 + $0x137] sm:$0xff]
      %v820 = vld [vmem:[#allocation2 + $0x13f] sm:$0xff]
      %v821 = vld [vmem:[#allocation2 + $0x147] sm:$0xff]
      %v822 = vld [vmem:[#allocation2 + $0x14f] sm:$0xff]
      %v823 = vld [vmem:[#allocation2 + $0x157] sm:$0xff]
      %v824 = vld [vmem:[#allocation2 + $0x15f] sm:$0xff]
      %v825 = vld [vmem:[#allocation2 + $0x167] sm:$0xff]
      %v826 = vld [vmem:[#allocation2 + $0x16f] sm:$0xff]
      %v827 = vld [vmem:[#allocation2 + $0x177] sm:$0xff]
      %v828 = vld [vmem:[#allocation2 + $0x17f] sm:$0xff]
      %v829 = vld [vmem:[#allocation2 + $0x187] sm:$0xff]
      %v830 = vld [vmem:[#allocation2 + $0x18f] sm:$0xff]
      %v831 = vld [vmem:[#allocation2 + $0x197] sm:$0xff]
      %v832 = vld [vmem:[#allocation2 + $0x19f] sm:$0xff]
      %v833 = vld [vmem:[#allocation2 + $0x1a7] sm:$0xff]
      %v834 = vld [vmem:[#allocation2 + $0x1af] sm:$0xff]
      %v835 = vld [vmem:[#allocation2 + $0x1b7] sm:$0xff]
      %v836 = vld [vmem:[#allocation2 + $0x1bf] sm:$0xff]
      %v837 = vld [vmem:[#allocation2 + $0x1c7] sm:$0xff]
      %v838 = vld [vmem:[#allocation2 + $0x1cf] sm:$0xff]
      %v839 = vld [vmem:[#allocation2 + $0x1d7] sm:$0xff]
      %v840 = vld [vmem:[#allocation2 + $0x1df] sm:$0xff]
      %v841 = vld [vmem:[#allocation2 + $0x1e7] sm:$0xff]
      %v842 = vld [vmem:[#allocation2 + $0x1ef] sm:$0xff]
      %v843 = vld [vmem:[#allocation2 + $0x1f7] sm:$0xff]
      %v844 = vld [vmem:[#allocation2 + $0x1ff] sm:$0xff]
      %v845 = vld [vmem:[%s4] sm:$0xff]
      %v846 = vld [vmem:[#allocation2 + $0x8] sm:$0xff]
      %v847 = vld [vmem:[#allocation2 + $0x10] sm:$0xff]
      %v848 = vld [vmem:[#allocation2 + $0x18] sm:$0xff]
      %v849 = vld [vmem:[#allocation2 + $0x20] sm:$0xff]
      %v850 = vld [vmem:[#allocation2 + $0x28] sm:$0xff]
      %v851 = vld [vmem:[#allocation2 + $0x30] sm:$0xff]
      %v852 = vld [vmem:[#allocation2 + $0x38] sm:$0xff]
      %v853 = vld [vmem:[#allocation2 + $0x40] sm:$0xff]
      %v854 = vld [vmem:[#allocation2 + $0x48] sm:$0xff]
      %v855 = vld [vmem:[#allocation2 + $0x50] sm:$0xff]
      %v856 = vld [vmem:[#allocation2 + $0x58] sm:$0xff]
      %v857 = vld [vmem:[#allocation2 + $0x60] sm:$0xff]
      %v858 = vld [vmem:[#allocation2 + $0x68] sm:$0xff]
      %v859 = vld [vmem:[#allocation2 + $0x70] sm:$0xff]
      %v860 = vld [vmem:[#allocation2 + $0x78] sm:$0xff]
      %v861 = vld [vmem:[#allocation2 + $0x80] sm:$0xff]
      %v862 = vld [vmem:[#allocation2 + $0x88] sm:$0xff]
      %v863 = vld [vmem:[#allocation2 + $0x90] sm:$0xff]
      %v864 = vld [vmem:[#allocation2 + $0x98] sm:$0xff]
      %v865 = vld [vmem:[#allocation2 + $0xa0] sm:$0xff]
      %v866 = vld [vmem:[#allocation2 + $0xa8] sm:$0xff]
      %v867 = vld [vmem:[#allocation2 + $0xb0] sm:$0xff]
      %v868 = vld [vmem:[#allocation2 + $0xb8] sm:$0xff]
      %v869 = vld [vmem:[#allocation2 + $0xc0] sm:$0xff]
      %v870 = vld [vmem:[#allocation2 + $0xc8] sm:$0xff]
      %v871 = vld [vmem:[#allocation2 + $0xd0] sm:$0xff]
      %v872 = vld [vmem:[#allocation2 + $0xd8] sm:$0xff]
      %v873 = vld [vmem:[#allocation2 + $0xe0] sm:$0xff]
      %v874 = vld [vmem:[#allocation2 + $0xe8] sm:$0xff]
      %v875 = vld [vmem:[#allocation2 + $0xf0] sm:$0xff]
      %v876 = vld [vmem:[#allocation2 + $0xf8] sm:$0xff]
      %v877 = vld [vmem:[#allocation2 + $0x100] sm:$0xff]
      %v878 = vld [vmem:[#allocation2 + $0x108] sm:$0xff]
      %v879 = vld [vmem:[#allocation2 + $0x110] sm:$0xff]
      %v880 = vld [vmem:[#allocation2 + $0x118] sm:$0xff]
      %v881 = vld [vmem:[#allocation2 + $0x120] sm:$0xff]
      %v882 = vld [vmem:[#allocation2 + $0x128] sm:$0xff]
      %v883 = vld [vmem:[#allocation2 + $0x130] sm:$0xff]
      %v884 = vld [vmem:[#allocation2 + $0x138] sm:$0xff]
      %v885 = vld [vmem:[#allocation2 + $0x140] sm:$0xff]
      %v886 = vld [vmem:[#allocation2 + $0x148] sm:$0xff]
      %v887 = vld [vmem:[#allocation2 + $0x150] sm:$0xff]
      %v888 = vld [vmem:[#allocation2 + $0x158] sm:$0xff]
      %v889 = vld [vmem:[#allocation2 + $0x160] sm:$0xff]
      %v890 = vld [vmem:[#allocation2 + $0x168] sm:$0xff]
      %v891 = vld [vmem:[#allocation2 + $0x170] sm:$0xff]
      %v892 = vld [vmem:[#allocation2 + $0x178] sm:$0xff]
      %v893 = vld [vmem:[#allocation2 + $0x180] sm:$0xff]
      %v894 = vld [vmem:[#allocation2 + $0x188] sm:$0xff]
      %v895 = vld [vmem:[#allocation2 + $0x190] sm:$0xff]
      %v896 = vld [vmem:[#allocation2 + $0x198] sm:$0xff]
      %v897 = vld [vmem:[#allocation2 + $0x1a0] sm:$0xff]
      %v898 = vld [vmem:[#allocation2 + $0x1a8] sm:$0xff]
      %v899 = vld [vmem:[#allocation2 + $0x1b0] sm:$0xff]
      %v900 = vld [vmem:[#allocation2 + $0x1b8] sm:$0xff]
      %v901 = vld [vmem:[#allocation2 + $0x1c0] sm:$0xff]
      %v902 = vld [vmem:[#allocation2 + $0x1c8] sm:$0xff]
      %v903 = vld [vmem:[#allocation2 + $0x1d0] sm:$0xff]
      %v904 = vld [vmem:[#allocation2 + $0x1d8] sm:$0xff]
      %v905 = vld [vmem:[#allocation2 + $0x1e0] sm:$0xff]
      %v906 = vld [vmem:[#allocation2 + $0x1e8] sm:$0xff]
      %v907 = vld [vmem:[#allocation2 + $0x1f0] sm:$0xff]
      %v908 = vld [vmem:[#allocation2 + $0x1f8] sm:$0xff]
      %v909 = vld [vmem:[#allocation2 + $0x200] sm:$0xff]
      %s910 = scalar_lea.vmem %s4, 8
      %v911 = vld [vmem:[%s910] sm:$0xff]
      %v913 = vsel %vm674, %v846, 0
      %v916 = vsel %vm674, %v847, 0
      %v919 = vsel %vm674, %v848, 0
      %v922 = vsel %vm674, %v849, 0
      %v925 = vsel %vm674, %v850, 0
      %v928 = vsel %vm674, %v851, 0
      %v931 = vsel %vm674, %v852, 0
      %v934 = vsel %vm674, %v853, 0
      %v937 = vsel %vm674, %v854, 0
      %v940 = vsel %vm674, %v855, 0
      %v943 = vsel %vm674, %v856, 0
      %v946 = vsel %vm674, %v857, 0
      %v949 = vsel %vm674, %v858, 0
      %v952 = vsel %vm674, %v859, 0
      %v955 = vsel %vm674, %v860, 0
      %v958 = vsel %vm674, %v861, 0
      %v961 = vsel %vm674, %v862, 0
      %v964 = vsel %vm674, %v863, 0
      %v967 = vsel %vm674, %v864, 0
      %v970 = vsel %vm674, %v865, 0
      %v973 = vsel %vm674, %v866, 0
      %v976 = vsel %vm674, %v867, 0
      %v979 = vsel %vm674, %v868, 0
      %v982 = vsel %vm674, %v869, 0
      %v985 = vsel %vm674, %v870, 0
      %v988 = vsel %vm674, %v871, 0
      %v991 = vsel %vm674, %v872, 0
      %v994 = vsel %vm674, %v873, 0
      %v997 = vsel %vm674, %v874, 0
      %v1000 = vsel %vm674, %v875, 0
      %v1003 = vsel %vm674, %v876, 0
      %v1006 = vsel %vm674, %v877, 0
      %v1009 = vsel %vm674, %v878, 0
      %v1012 = vsel %vm674, %v879, 0
      %v1015 = vsel %vm674, %v880, 0
      %v1018 = vsel %vm674, %v881, 0
      %v1021 = vsel %vm674, %v882, 0
      %v1024 = vsel %vm674, %v883, 0
      %v1027 = vsel %vm674, %v884, 0
      %v1030 = vsel %vm674, %v885, 0
      %v1033 = vsel %vm674, %v886, 0
      %v1036 = vsel %vm674, %v887, 0
      %v1039 = vsel %vm674, %v888, 0
      %v1042 = vsel %vm674, %v889, 0
      %v1045 = vsel %vm674, %v890, 0
      %v1048 = vsel %vm674, %v891, 0
      %v1051 = vsel %vm674, %v892, 0
      %v1054 = vsel %vm674, %v893, 0
      %v1057 = vsel %vm674, %v894, 0
      %v1060 = vsel %vm674, %v895, 0
      %v1063 = vsel %vm674, %v896, 0
      %v1066 = vsel %vm674, %v897, 0
      %v1069 = vsel %vm674, %v898, 0
      %v1072 = vsel %vm674, %v899, 0
      %v1075 = vsel %vm674, %v900, 0
      %v1078 = vsel %vm674, %v901, 0
      %v1081 = vsel %vm674, %v902, 0
      %v1084 = vsel %vm674, %v903, 0
      %v1087 = vsel %vm674, %v904, 0
      %v1090 = vsel %vm674, %v905, 0
      %v1093 = vsel %vm674, %v906, 0
      %v1096 = vsel %vm674, %v907, 0
      %v1099 = vsel %vm674, %v908, 0
      %v1102 = vsel %vm674, %v909, 0
      %1104 = vmatpush.msra.mxu0 0.0
      %1105 = vmatpush.msra.mxu0 0.0
      %1106 = vmatpush.msra.mxu0 0.0
      %1107 = vmatpush.msra.mxu0 0.0
      %1108 = vmatpush.msra.mxu0 0.0
      %1109 = vmatpush.msra.mxu0 0.0
      %1110 = vmatpush.msra.mxu0 0.0
      %1111 = vmatpush.msra.mxu0 0.0
      %1112 = vmatpush.msra.mxu0 0.0
      %1113 = vmatpush.msra.mxu0 0.0
      %1114 = vmatpush.msra.mxu0 0.0
      %1115 = vmatpush.msra.mxu0 0.0
      %1116 = vmatpush.msra.mxu0 0.0
      %1117 = vmatpush.msra.mxu0 0.0
      %1118 = vmatpush.msra.mxu0 0.0
      %1119 = vmatpush.msra.mxu0 %v911
      %1120 = vmatmul.f32.gmra.mxu0 %v913
      %v1121 = vpop.f32.mrf.mxu0
      %v1122 = vadd.f32 0.0, %v1121
      %1123 = vmatmul.f32.gmra.mxu0 %v916
      %v1124 = vpop.f32.mrf.mxu0
      %v1125 = vadd.f32 0.0, %v1124
      %1126 = vmatmul.f32.gmra.mxu0 %v919
      %v1127 = vpop.f32.mrf.mxu0
      %1128 = vmatmul.f32.gmra.mxu0 %v922
      %v1129 = vpop.f32.mrf.mxu0
      %1130 = vmatmul.f32.gmra.mxu0 %v925
      %v1131 = vpop.f32.mrf.mxu0
      %v1132 = vadd.f32 0.0, %v1131
      %1133 = vmatmul.f32.gmra.mxu0 %v928
      %v1134 = vpop.f32.mrf.mxu0
      %v1135 = vadd.f32 0.0, %v1134
      %1136 = vmatmul.f32.gmra.mxu0 %v931
      %v1137 = vpop.f32.mrf.mxu0
      %1138 = vmatmul.f32.gmra.mxu0 %v934
      %v1139 = vpop.f32.mrf.mxu0
      %1140 = vmatmul.f32.gmra.mxu0 %v937
      %v1141 = vpop.f32.mrf.mxu0
      %v1142 = vadd.f32 0.0, %v1141
      %1143 = vmatmul.f32.gmra.mxu0 %v940
      %v1144 = vpop.f32.mrf.mxu0
      %v1145 = vadd.f32 0.0, %v1144
      %1146 = vmatmul.f32.gmra.mxu0 %v943
      %v1147 = vpop.f32.mrf.mxu0
      %1148 = vmatmul.f32.gmra.mxu0 %v946
      %v1149 = vpop.f32.mrf.mxu0
      %1150 = vmatmul.f32.gmra.mxu0 %v949
      %v1151 = vpop.f32.mrf.mxu0
      %v1152 = vadd.f32 0.0, %v1151
      %1153 = vmatmul.f32.gmra.mxu0 %v952
      %v1154 = vpop.f32.mrf.mxu0
      %v1155 = vadd.f32 0.0, %v1154
      %1156 = vmatmul.f32.gmra.mxu0 %v955
      %v1157 = vpop.f32.mrf.mxu0
      %1158 = vmatmul.f32.gmra.mxu0 %v958
      %v1159 = vpop.f32.mrf.mxu0
      %1160 = vmatmul.f32.gmra.mxu0 %v961
      %v1161 = vpop.f32.mrf.mxu0
      %v1162 = vadd.f32 0.0, %v1161
      %1163 = vmatmul.f32.gmra.mxu0 %v964
      %v1164 = vpop.f32.mrf.mxu0
      %v1165 = vadd.f32 0.0, %v1164
      %1166 = vmatmul.f32.gmra.mxu0 %v967
      %v1167 = vpop.f32.mrf.mxu0
      %1168 = vmatmul.f32.gmra.mxu0 %v970
      %v1169 = vpop.f32.mrf.mxu0
      %1170 = vmatmul.f32.gmra.mxu0 %v973
      %v1171 = vpop.f32.mrf.mxu0
      %v1172 = vadd.f32 0.0, %v1171
      %1173 = vmatmul.f32.gmra.mxu0 %v976
      %v1174 = vpop.f32.mrf.mxu0
      %v1175 = vadd.f32 0.0, %v1174
      %1176 = vmatmul.f32.gmra.mxu0 %v979
      %v1177 = vpop.f32.mrf.mxu0
      %1178 = vmatmul.f32.gmra.mxu0 %v982
      %v1179 = vpop.f32.mrf.mxu0
      %1180 = vmatmul.f32.gmra.mxu0 %v985
      %v1181 = vpop.f32.mrf.mxu0
      %v1182 = vadd.f32 0.0, %v1181
      %1183 = vmatmul.f32.gmra.mxu0 %v988
      %v1184 = vpop.f32.mrf.mxu0
      %v1185 = vadd.f32 0.0, %v1184
      %1186 = vmatmul.f32.gmra.mxu0 %v991
      %v1187 = vpop.f32.mrf.mxu0
      %1188 = vmatmul.f32.gmra.mxu0 %v994
      %v1189 = vpop.f32.mrf.mxu0
      %1190 = vmatmul.f32.gmra.mxu0 %v997
      %v1191 = vpop.f32.mrf.mxu0
      %v1192 = vadd.f32 0.0, %v1191
      %1193 = vmatmul.f32.gmra.mxu0 %v1000
      %v1194 = vpop.f32.mrf.mxu0
      %v1195 = vadd.f32 0.0, %v1194
      %1196 = vmatmul.f32.gmra.mxu0 %v1003
      %v1197 = vpop.f32.mrf.mxu0
      %1198 = vmatmul.f32.gmra.mxu0 %v1006
      %v1199 = vpop.f32.mrf.mxu0
      %1200 = vmatmul.f32.gmra.mxu0 %v1009
      %v1201 = vpop.f32.mrf.mxu0
      %v1202 = vadd.f32 0.0, %v1201
      %1203 = vmatmul.f32.gmra.mxu0 %v1012
      %v1204 = vpop.f32.mrf.mxu0
      %v1205 = vadd.f32 0.0, %v1204
      %1206 = vmatmul.f32.gmra.mxu0 %v1015
      %v1207 = vpop.f32.mrf.mxu0
      %1208 = vmatmul.f32.gmra.mxu0 %v1018
      %v1209 = vpop.f32.mrf.mxu0
      %1210 = vmatmul.f32.gmra.mxu0 %v1021
      %v1211 = vpop.f32.mrf.mxu0
      %v1212 = vadd.f32 0.0, %v1211
      %1213 = vmatmul.f32.gmra.mxu0 %v1024
      %v1214 = vpop.f32.mrf.mxu0
      %v1215 = vadd.f32 0.0, %v1214
      %1216 = vmatmul.f32.gmra.mxu0 %v1027
      %v1217 = vpop.f32.mrf.mxu0
      %1218 = vmatmul.f32.gmra.mxu0 %v1030
      %v1219 = vpop.f32.mrf.mxu0
      %1220 = vmatmul.f32.gmra.mxu0 %v1033
      %v1221 = vpop.f32.mrf.mxu0
      %v1222 = vadd.f32 0.0, %v1221
      %1223 = vmatmul.f32.gmra.mxu0 %v1036
      %v1224 = vpop.f32.mrf.mxu0
      %v1225 = vadd.f32 0.0, %v1224
      %1226 = vmatmul.f32.gmra.mxu0 %v1039
      %v1227 = vpop.f32.mrf.mxu0
      %1228 = vmatmul.f32.gmra.mxu0 %v1042
      %v1229 = vpop.f32.mrf.mxu0
      %1230 = vmatmul.f32.gmra.mxu0 %v1045
      %v1231 = vpop.f32.mrf.mxu0
      %v1232 = vadd.f32 0.0, %v1231
      %1233 = vmatmul.f32.gmra.mxu0 %v1048
      %v1234 = vpop.f32.mrf.mxu0
      %v1235 = vadd.f32 0.0, %v1234
      %1236 = vmatmul.f32.gmra.mxu0 %v1051
      %v1237 = vpop.f32.mrf.mxu0
      %1238 = vmatmul.f32.gmra.mxu0 %v1054
      %v1239 = vpop.f32.mrf.mxu0
      %1240 = vmatmul.f32.gmra.mxu0 %v1057
      %v1241 = vpop.f32.mrf.mxu0
      %v1242 = vadd.f32 0.0, %v1241
      %1243 = vmatmul.f32.gmra.mxu0 %v1060
      %v1244 = vpop.f32.mrf.mxu0
      %v1245 = vadd.f32 0.0, %v1244
      %1246 = vmatmul.f32.gmra.mxu0 %v1063
      %v1247 = vpop.f32.mrf.mxu0
      %1248 = vmatmul.f32.gmra.mxu0 %v1066
      %v1249 = vpop.f32.mrf.mxu0
      %1250 = vmatmul.f32.gmra.mxu0 %v1069
      %v1251 = vpop.f32.mrf.mxu0
      %v1252 = vadd.f32 0.0, %v1251
      %1253 = vmatmul.f32.gmra.mxu0 %v1072
      %v1254 = vpop.f32.mrf.mxu0
      %v1255 = vadd.f32 0.0, %v1254
      %1256 = vmatmul.f32.gmra.mxu0 %v1075
      %v1257 = vpop.f32.mrf.mxu0
      %1258 = vmatmul.f32.gmra.mxu0 %v1078
      %v1259 = vpop.f32.mrf.mxu0
      %1260 = vmatmul.f32.gmra.mxu0 %v1081
      %v1261 = vpop.f32.mrf.mxu0
      %v1262 = vadd.f32 0.0, %v1261
      %1263 = vmatmul.f32.gmra.mxu0 %v1084
      %v1264 = vpop.f32.mrf.mxu0
      %v1265 = vadd.f32 0.0, %v1264
      %1266 = vmatmul.f32.gmra.mxu0 %v1087
      %v1267 = vpop.f32.mrf.mxu0
      %1268 = vmatmul.f32.gmra.mxu0 %v1090
      %v1269 = vpop.f32.mrf.mxu0
      %1270 = vmatmul.f32.gmra.mxu0 %v1093
      %v1271 = vpop.f32.mrf.mxu0
      %v1272 = vadd.f32 0.0, %v1271
      %1273 = vmatmul.f32.gmra.mxu0 %v1096
      %v1274 = vpop.f32.mrf.mxu0
      %v1275 = vadd.f32 0.0, %v1274
      %1276 = vmatmul.f32.gmra.mxu0 %v1099
      %v1277 = vpop.f32.mrf.mxu0
      %1278 = vmatmul.f32.gmra.mxu0 %v1102
      %v1279 = vpop.f32.mrf.mxu0
      %1280 = vdwg.mxu0
      %v1282 = vsel %vm674, %v781, 0
      %v1285 = vsel %vm674, %v782, 0
      %v1288 = vsel %vm674, %v783, 0
      %v1291 = vsel %vm674, %v784, 0
      %v1294 = vsel %vm674, %v785, 0
      %v1297 = vsel %vm674, %v786, 0
      %v1300 = vsel %vm674, %v787, 0
      %v1303 = vsel %vm674, %v788, 0
      %v1306 = vsel %vm674, %v789, 0
      %v1309 = vsel %vm674, %v790, 0
      %v1312 = vsel %vm674, %v791, 0
      %v1315 = vsel %vm674, %v792, 0
      %v1318 = vsel %vm674, %v793, 0
      %v1321 = vsel %vm674, %v794, 0
      %v1324 = vsel %vm674, %v795, 0
      %v1327 = vsel %vm674, %v796, 0
      %v1330 = vsel %vm674, %v797, 0
      %v1333 = vsel %vm674, %v798, 0
      %v1336 = vsel %vm674, %v799, 0
      %v1339 = vsel %vm674, %v800, 0
      %v1342 = vsel %vm674, %v801, 0
      %v1345 = vsel %vm674, %v802, 0
      %v1348 = vsel %vm674, %v803, 0
      %v1351 = vsel %vm674, %v804, 0
      %v1354 = vsel %vm674, %v805, 0
      %v1357 = vsel %vm674, %v806, 0
      %v1360 = vsel %vm674, %v807, 0
      %v1363 = vsel %vm674, %v808, 0
      %v1366 = vsel %vm674, %v809, 0
      %v1369 = vsel %vm674, %v810, 0
      %v1372 = vsel %vm674, %v811, 0
      %v1375 = vsel %vm674, %v812, 0
      %v1378 = vsel %vm674, %v813, 0
      %v1381 = vsel %vm674, %v814, 0
      %v1384 = vsel %vm674, %v815, 0
      %v1387 = vsel %vm674, %v816, 0
      %v1390 = vsel %vm674, %v817, 0
      %v1393 = vsel %vm674, %v818, 0
      %v1396 = vsel %vm674, %v819, 0
      %v1399 = vsel %vm674, %v820, 0
      %v1402 = vsel %vm674, %v821, 0
      %v1405 = vsel %vm674, %v822, 0
      %v1408 = vsel %vm674, %v823, 0
      %v1411 = vsel %vm674, %v824, 0
      %v1414 = vsel %vm674, %v825, 0
      %v1417 = vsel %vm674, %v826, 0
      %v1420 = vsel %vm674, %v827, 0
      %v1423 = vsel %vm674, %v828, 0
      %v1426 = vsel %vm674, %v829, 0
      %v1429 = vsel %vm674, %v830, 0
      %v1432 = vsel %vm674, %v831, 0
      %v1435 = vsel %vm674, %v832, 0
      %v1438 = vsel %vm674, %v833, 0
      %v1441 = vsel %vm674, %v834, 0
      %v1444 = vsel %vm674, %v835, 0
      %v1447 = vsel %vm674, %v836, 0
      %v1450 = vsel %vm674, %v837, 0
      %v1453 = vsel %vm674, %v838, 0
      %v1456 = vsel %vm674, %v839, 0
      %v1459 = vsel %vm674, %v840, 0
      %v1462 = vsel %vm674, %v841, 0
      %v1465 = vsel %vm674, %v842, 0
      %v1468 = vsel %vm674, %v843, 0
      %v1471 = vsel %vm674, %v844, 0
      %1473 = vmatpush.msra.mxu0 0.0
      %1474 = vmatpush.msra.mxu0 0.0
      %1475 = vmatpush.msra.mxu0 0.0
      %1476 = vmatpush.msra.mxu0 0.0
      %1477 = vmatpush.msra.mxu0 0.0
      %1478 = vmatpush.msra.mxu0 0.0
      %1479 = vmatpush.msra.mxu0 0.0
      %1480 = vmatpush.msra.mxu0 0.0
      %1481 = vmatpush.msra.mxu0 0.0
      %1482 = vmatpush.msra.mxu0 0.0
      %1483 = vmatpush.msra.mxu0 0.0
      %1484 = vmatpush.msra.mxu0 0.0
      %1485 = vmatpush.msra.mxu0 0.0
      %1486 = vmatpush.msra.mxu0 0.0
      %1487 = vmatpush.msra.mxu0 0.0
      %1488 = vmatpush.msra.mxu0 %v845
      %1489 = vmatmul.f32.gmra.mxu0 %v1282
      %v1490 = vpop.f32.mrf.mxu0
      %v1491 = vadd.f32 %v1122, %v1490
      %1492 = vmatmul.f32.gmra.mxu0 %v1285
      %v1493 = vpop.f32.mrf.mxu0
      %v1494 = vadd.f32 %v1125, %v1493
      %1495 = vmatmul.f32.gmra.mxu0 %v1288
      %v1496 = vpop.f32.mrf.mxu0
      %1497 = vmatmul.f32.gmra.mxu0 %v1291
      %v1498 = vpop.f32.mrf.mxu0
      %1499 = vmatmul.f32.gmra.mxu0 %v1294
      %v1500 = vpop.f32.mrf.mxu0
      %v1501 = vadd.f32 %v1132, %v1500
      %1502 = vmatmul.f32.gmra.mxu0 %v1297
      %v1503 = vpop.f32.mrf.mxu0
      %v1504 = vadd.f32 %v1135, %v1503
      %1505 = vmatmul.f32.gmra.mxu0 %v1300
      %v1506 = vpop.f32.mrf.mxu0
      %1507 = vmatmul.f32.gmra.mxu0 %v1303
      %v1508 = vpop.f32.mrf.mxu0
      %1509 = vmatmul.f32.gmra.mxu0 %v1306
      %v1510 = vpop.f32.mrf.mxu0
      %v1511 = vadd.f32 %v1142, %v1510
      %1512 = vmatmul.f32.gmra.mxu0 %v1309
      %v1513 = vpop.f32.mrf.mxu0
      %v1514 = vadd.f32 %v1145, %v1513
      %1515 = vmatmul.f32.gmra.mxu0 %v1312
      %v1516 = vpop.f32.mrf.mxu0
      %1517 = vmatmul.f32.gmra.mxu0 %v1315
      %v1518 = vpop.f32.mrf.mxu0
      %1519 = vmatmul.f32.gmra.mxu0 %v1318
      %v1520 = vpop.f32.mrf.mxu0
      %v1521 = vadd.f32 %v1152, %v1520
      %1522 = vmatmul.f32.gmra.mxu0 %v1321
      %v1523 = vpop.f32.mrf.mxu0
      %v1524 = vadd.f32 %v1155, %v1523
      %1525 = vmatmul.f32.gmra.mxu0 %v1324
      %v1526 = vpop.f32.mrf.mxu0
      %1527 = vmatmul.f32.gmra.mxu0 %v1327
      %v1528 = vpop.f32.mrf.mxu0
      %1529 = vmatmul.f32.gmra.mxu0 %v1330
      %v1530 = vpop.f32.mrf.mxu0
      %v1531 = vadd.f32 %v1162, %v1530
      %1532 = vmatmul.f32.gmra.mxu0 %v1333
      %v1533 = vpop.f32.mrf.mxu0
      %v1534 = vadd.f32 %v1165, %v1533
      %1535 = vmatmul.f32.gmra.mxu0 %v1336
      %v1536 = vpop.f32.mrf.mxu0
      %1537 = vmatmul.f32.gmra.mxu0 %v1339
      %v1538 = vpop.f32.mrf.mxu0
      %1539 = vmatmul.f32.gmra.mxu0 %v1342
      %v1540 = vpop.f32.mrf.mxu0
      %v1541 = vadd.f32 %v1172, %v1540
      %1542 = vmatmul.f32.gmra.mxu0 %v1345
      %v1543 = vpop.f32.mrf.mxu0
      %v1544 = vadd.f32 %v1175, %v1543
      %1545 = vmatmul.f32.gmra.mxu0 %v1348
      %v1546 = vpop.f32.mrf.mxu0
      %1547 = vmatmul.f32.gmra.mxu0 %v1351
      %v1548 = vpop.f32.mrf.mxu0
      %1549 = vmatmul.f32.gmra.mxu0 %v1354
      %v1550 = vpop.f32.mrf.mxu0
      %v1551 = vadd.f32 %v1182, %v1550
      %1552 = vmatmul.f32.gmra.mxu0 %v1357
      %v1553 = vpop.f32.mrf.mxu0
      %v1554 = vadd.f32 %v1185, %v1553
      %1555 = vmatmul.f32.gmra.mxu0 %v1360
      %v1556 = vpop.f32.mrf.mxu0
      %1557 = vmatmul.f32.gmra.mxu0 %v1363
      %v1558 = vpop.f32.mrf.mxu0
      %1559 = vmatmul.f32.gmra.mxu0 %v1366
      %v1560 = vpop.f32.mrf.mxu0
      %v1561 = vadd.f32 %v1192, %v1560
      %1562 = vmatmul.f32.gmra.mxu0 %v1369
      %v1563 = vpop.f32.mrf.mxu0
      %v1564 = vadd.f32 %v1195, %v1563
      %1565 = vmatmul.f32.gmra.mxu0 %v1372
      %v1566 = vpop.f32.mrf.mxu0
      %1567 = vmatmul.f32.gmra.mxu0 %v1375
      %v1568 = vpop.f32.mrf.mxu0
      %1569 = vmatmul.f32.gmra.mxu0 %v1378
      %v1570 = vpop.f32.mrf.mxu0
      %v1571 = vadd.f32 %v1202, %v1570
      %1572 = vmatmul.f32.gmra.mxu0 %v1381
      %v1573 = vpop.f32.mrf.mxu0
      %v1574 = vadd.f32 %v1205, %v1573
      %1575 = vmatmul.f32.gmra.mxu0 %v1384
      %v1576 = vpop.f32.mrf.mxu0
      %1577 = vmatmul.f32.gmra.mxu0 %v1387
      %v1578 = vpop.f32.mrf.mxu0
      %1579 = vmatmul.f32.gmra.mxu0 %v1390
      %v1580 = vpop.f32.mrf.mxu0
      %v1581 = vadd.f32 %v1212, %v1580
      %1582 = vmatmul.f32.gmra.mxu0 %v1393
      %v1583 = vpop.f32.mrf.mxu0
      %v1584 = vadd.f32 %v1215, %v1583
      %1585 = vmatmul.f32.gmra.mxu0 %v1396
      %v1586 = vpop.f32.mrf.mxu0
      %1587 = vmatmul.f32.gmra.mxu0 %v1399
      %v1588 = vpop.f32.mrf.mxu0
      %1589 = vmatmul.f32.gmra.mxu0 %v1402
      %v1590 = vpop.f32.mrf.mxu0
      %v1591 = vadd.f32 %v1222, %v1590
      %1592 = vmatmul.f32.gmra.mxu0 %v1405
      %v1593 = vpop.f32.mrf.mxu0
      %v1594 = vadd.f32 %v1225, %v1593
      %1595 = vmatmul.f32.gmra.mxu0 %v1408
      %v1596 = vpop.f32.mrf.mxu0
      %1597 = vmatmul.f32.gmra.mxu0 %v1411
      %v1598 = vpop.f32.mrf.mxu0
      %1599 = vmatmul.f32.gmra.mxu0 %v1414
      %v1600 = vpop.f32.mrf.mxu0
      %v1601 = vadd.f32 %v1232, %v1600
      %1602 = vmatmul.f32.gmra.mxu0 %v1417
      %v1603 = vpop.f32.mrf.mxu0
      %v1604 = vadd.f32 %v1235, %v1603
      %1605 = vmatmul.f32.gmra.mxu0 %v1420
      %v1606 = vpop.f32.mrf.mxu0
      %1607 = vmatmul.f32.gmra.mxu0 %v1423
      %v1608 = vpop.f32.mrf.mxu0
      %1609 = vmatmul.f32.gmra.mxu0 %v1426
      %v1610 = vpop.f32.mrf.mxu0
      %v1611 = vadd.f32 %v1242, %v1610
      %1612 = vmatmul.f32.gmra.mxu0 %v1429
      %v1613 = vpop.f32.mrf.mxu0
      %v1614 = vadd.f32 %v1245, %v1613
      %1615 = vmatmul.f32.gmra.mxu0 %v1432
      %v1616 = vpop.f32.mrf.mxu0
      %1617 = vmatmul.f32.gmra.mxu0 %v1435
      %v1618 = vpop.f32.mrf.mxu0
      %1619 = vmatmul.f32.gmra.mxu0 %v1438
      %v1620 = vpop.f32.mrf.mxu0
      %v1621 = vadd.f32 %v1252, %v1620
      %1622 = vmatmul.f32.gmra.mxu0 %v1441
      %v1623 = vpop.f32.mrf.mxu0
      %v1624 = vadd.f32 %v1255, %v1623
      %1625 = vmatmul.f32.gmra.mxu0 %v1444
      %v1626 = vpop.f32.mrf.mxu0
      %1627 = vmatmul.f32.gmra.mxu0 %v1447
      %v1628 = vpop.f32.mrf.mxu0
      %1629 = vmatmul.f32.gmra.mxu0 %v1450
      %v1630 = vpop.f32.mrf.mxu0
      %v1631 = vadd.f32 %v1262, %v1630
      %1632 = vmatmul.f32.gmra.mxu0 %v1453
      %v1633 = vpop.f32.mrf.mxu0
      %v1634 = vadd.f32 %v1265, %v1633
      %1635 = vmatmul.f32.gmra.mxu0 %v1456
      %v1636 = vpop.f32.mrf.mxu0
      %1637 = vmatmul.f32.gmra.mxu0 %v1459
      %v1638 = vpop.f32.mrf.mxu0
      %1639 = vmatmul.f32.gmra.mxu0 %v1462
      %v1640 = vpop.f32.mrf.mxu0
      %v1641 = vadd.f32 %v1272, %v1640
      %1642 = vmatmul.f32.gmra.mxu0 %v1465
      %v1643 = vpop.f32.mrf.mxu0
      %v1644 = vadd.f32 %v1275, %v1643
      %1645 = vmatmul.f32.gmra.mxu0 %v1468
      %v1646 = vpop.f32.mrf.mxu0
      %1647 = vmatmul.f32.gmra.mxu0 %v1471
      %v1648 = vpop.f32.mrf.mxu0
      %1649 = vdwg.mxu0
      %v1650 = vld [vmem:[#allocation2 + $0x9] sm:$0xff]
      %v1651 = vld [vmem:[#allocation2 + $0x11] sm:$0xff]
      %v1652 = vld [vmem:[#allocation2 + $0x19] sm:$0xff]
      %v1653 = vld [vmem:[#allocation2 + $0x21] sm:$0xff]
      %v1654 = vld [vmem:[#allocation2 + $0x29] sm:$0xff]
      %v1655 = vld [vmem:[#allocation2 + $0x31] sm:$0xff]
      %v1656 = vld [vmem:[#allocation2 + $0x39] sm:$0xff]
      %v1657 = vld [vmem:[#allocation2 + $0x41] sm:$0xff]
      %v1658 = vld [vmem:[#allocation2 + $0x49] sm:$0xff]
      %v1659 = vld [vmem:[#allocation2 + $0x51] sm:$0xff]
      %v1660 = vld [vmem:[#allocation2 + $0x59] sm:$0xff]
      %v1661 = vld [vmem:[#allocation2 + $0x61] sm:$0xff]
      %v1662 = vld [vmem:[#allocation2 + $0x69] sm:$0xff]
      %v1663 = vld [vmem:[#allocation2 + $0x71] sm:$0xff]
      %v1664 = vld [vmem:[#allocation2 + $0x79] sm:$0xff]
      %v1665 = vld [vmem:[#allocation2 + $0x81] sm:$0xff]
      %v1666 = vld [vmem:[#allocation2 + $0x89] sm:$0xff]
      %v1667 = vld [vmem:[#allocation2 + $0x91] sm:$0xff]
      %v1668 = vld [vmem:[#allocation2 + $0x99] sm:$0xff]
      %v1669 = vld [vmem:[#allocation2 + $0xa1] sm:$0xff]
      %v1670 = vld [vmem:[#allocation2 + $0xa9] sm:$0xff]
      %v1671 = vld [vmem:[#allocation2 + $0xb1] sm:$0xff]
      %v1672 = vld [vmem:[#allocation2 + $0xb9] sm:$0xff]
      %v1673 = vld [vmem:[#allocation2 + $0xc1] sm:$0xff]
      %v1674 = vld [vmem:[#allocation2 + $0xc9] sm:$0xff]
      %v1675 = vld [vmem:[#allocation2 + $0xd1] sm:$0xff]
      %v1676 = vld [vmem:[#allocation2 + $0xd9] sm:$0xff]
      %v1677 = vld [vmem:[#allocation2 + $0xe1] sm:$0xff]
      %v1678 = vld [vmem:[#allocation2 + $0xe9] sm:$0xff]
      %v1679 = vld [vmem:[#allocation2 + $0xf1] sm:$0xff]
      %v1680 = vld [vmem:[#allocation2 + $0xf9] sm:$0xff]
      %v1681 = vld [vmem:[#allocation2 + $0x101] sm:$0xff]
      %v1682 = vld [vmem:[#allocation2 + $0x109] sm:$0xff]
      %v1683 = vld [vmem:[#allocation2 + $0x111] sm:$0xff]
      %v1684 = vld [vmem:[#allocation2 + $0x119] sm:$0xff]
      %v1685 = vld [vmem:[#allocation2 + $0x121] sm:$0xff]
      %v1686 = vld [vmem:[#allocation2 + $0x129] sm:$0xff]
      %v1687 = vld [vmem:[#allocation2 + $0x131] sm:$0xff]
      %v1688 = vld [vmem:[#allocation2 + $0x139] sm:$0xff]
      %v1689 = vld [vmem:[#allocation2 + $0x141] sm:$0xff]
      %v1690 = vld [vmem:[#allocation2 + $0x149] sm:$0xff]
      %v1691 = vld [vmem:[#allocation2 + $0x151] sm:$0xff]
      %v1692 = vld [vmem:[#allocation2 + $0x159] sm:$0xff]
      %v1693 = vld [vmem:[#allocation2 + $0x161] sm:$0xff]
      %v1694 = vld [vmem:[#allocation2 + $0x169] sm:$0xff]
      %v1695 = vld [vmem:[#allocation2 + $0x171] sm:$0xff]
      %v1696 = vld [vmem:[#allocation2 + $0x179] sm:$0xff]
      %v1697 = vld [vmem:[#allocation2 + $0x181] sm:$0xff]
      %v1698 = vld [vmem:[#allocation2 + $0x189] sm:$0xff]
      %v1699 = vld [vmem:[#allocation2 + $0x191] sm:$0xff]
      %v1700 = vld [vmem:[#allocation2 + $0x199] sm:$0xff]
      %v1701 = vld [vmem:[#allocation2 + $0x1a1] sm:$0xff]
      %v1702 = vld [vmem:[#allocation2 + $0x1a9] sm:$0xff]
      %v1703 = vld [vmem:[#allocation2 + $0x1b1] sm:$0xff]
      %v1704 = vld [vmem:[#allocation2 + $0x1b9] sm:$0xff]
      %v1705 = vld [vmem:[#allocation2 + $0x1c1] sm:$0xff]
      %v1706 = vld [vmem:[#allocation2 + $0x1c9] sm:$0xff]
      %v1707 = vld [vmem:[#allocation2 + $0x1d1] sm:$0xff]
      %v1708 = vld [vmem:[#allocation2 + $0x1d9] sm:$0xff]
      %v1709 = vld [vmem:[#allocation2 + $0x1e1] sm:$0xff]
      %v1710 = vld [vmem:[#allocation2 + $0x1e9] sm:$0xff]
      %v1711 = vld [vmem:[#allocation2 + $0x1f1] sm:$0xff]
      %v1712 = vld [vmem:[#allocation2 + $0x1f9] sm:$0xff]
      %v1713 = vld [vmem:[#allocation2 + $0x201] sm:$0xff]
      %s1714 = scalar_lea.vmem %s4, 16
      %v1715 = vld [vmem:[%s1714] sm:$0xff]
      %v1717 = vsel %vm674, %v1650, 0
      %v1720 = vsel %vm674, %v1651, 0
      %v1723 = vsel %vm674, %v1652, 0
      %v1726 = vsel %vm674, %v1653, 0
      %v1729 = vsel %vm674, %v1654, 0
      %v1732 = vsel %vm674, %v1655, 0
      %v1735 = vsel %vm674, %v1656, 0
      %v1738 = vsel %vm674, %v1657, 0
      %v1741 = vsel %vm674, %v1658, 0
      %v1744 = vsel %vm674, %v1659, 0
      %v1747 = vsel %vm674, %v1660, 0
      %v1750 = vsel %vm674, %v1661, 0
      %v1753 = vsel %vm674, %v1662, 0
      %v1756 = vsel %vm674, %v1663, 0
      %v1759 = vsel %vm674, %v1664, 0
      %v1762 = vsel %vm674, %v1665, 0
      %v1765 = vsel %vm674, %v1666, 0
      %v1768 = vsel %vm674, %v1667, 0
      %v1771 = vsel %vm674, %v1668, 0
      %v1774 = vsel %vm674, %v1669, 0
      %v1777 = vsel %vm674, %v1670, 0
      %v1780 = vsel %vm674, %v1671, 0
      %v1783 = vsel %vm674, %v1672, 0
      %v1786 = vsel %vm674, %v1673, 0
      %v1789 = vsel %vm674, %v1674, 0
      %v1792 = vsel %vm674, %v1675, 0
      %v1795 = vsel %vm674, %v1676, 0
      %v1798 = vsel %vm674, %v1677, 0
      %v1801 = vsel %vm674, %v1678, 0
      %v1804 = vsel %vm674, %v1679, 0
      %v1807 = vsel %vm674, %v1680, 0
      %v1810 = vsel %vm674, %v1681, 0
      %v1813 = vsel %vm674, %v1682, 0
      %v1816 = vsel %vm674, %v1683, 0
      %v1819 = vsel %vm674, %v1684, 0
      %v1822 = vsel %vm674, %v1685, 0
      %v1825 = vsel %vm674, %v1686, 0
      %v1828 = vsel %vm674, %v1687, 0
      %v1831 = vsel %vm674, %v1688, 0
      %v1834 = vsel %vm674, %v1689, 0
      %v1837 = vsel %vm674, %v1690, 0
      %v1840 = vsel %vm674, %v1691, 0
      %v1843 = vsel %vm674, %v1692, 0
      %v1846 = vsel %vm674, %v1693, 0
      %v1849 = vsel %vm674, %v1694, 0
      %v1852 = vsel %vm674, %v1695, 0
      %v1855 = vsel %vm674, %v1696, 0
      %v1858 = vsel %vm674, %v1697, 0
      %v1861 = vsel %vm674, %v1698, 0
      %v1864 = vsel %vm674, %v1699, 0
      %v1867 = vsel %vm674, %v1700, 0
      %v1870 = vsel %vm674, %v1701, 0
      %v1873 = vsel %vm674, %v1702, 0
      %v1876 = vsel %vm674, %v1703, 0
      %v1879 = vsel %vm674, %v1704, 0
      %v1882 = vsel %vm674, %v1705, 0
      %v1885 = vsel %vm674, %v1706, 0
      %v1888 = vsel %vm674, %v1707, 0
      %v1891 = vsel %vm674, %v1708, 0
      %v1894 = vsel %vm674, %v1709, 0
      %v1897 = vsel %vm674, %v1710, 0
      %v1900 = vsel %vm674, %v1711, 0
      %v1903 = vsel %vm674, %v1712, 0
      %v1906 = vsel %vm674, %v1713, 0
      %1908 = vmatpush.msra.mxu0 0.0
      %1909 = vmatpush.msra.mxu0 0.0
      %1910 = vmatpush.msra.mxu0 0.0
      %1911 = vmatpush.msra.mxu0 0.0
      %1912 = vmatpush.msra.mxu0 0.0
      %1913 = vmatpush.msra.mxu0 0.0
      %1914 = vmatpush.msra.mxu0 0.0
      %1915 = vmatpush.msra.mxu0 0.0
      %1916 = vmatpush.msra.mxu0 0.0
      %1917 = vmatpush.msra.mxu0 0.0
      %1918 = vmatpush.msra.mxu0 0.0
      %1919 = vmatpush.msra.mxu0 0.0
      %1920 = vmatpush.msra.mxu0 0.0
      %1921 = vmatpush.msra.mxu0 0.0
      %1922 = vmatpush.msra.mxu0 0.0
      %1923 = vmatpush.msra.mxu0 %v1715
      %1924 = vmatmul.f32.gmra.mxu0 %v1717
      %v1925 = vpop.f32.mrf.mxu0
      %v1926 = vadd.f32 0.0, %v1925
      %1927 = vmatmul.f32.gmra.mxu0 %v1720
      %v1928 = vpop.f32.mrf.mxu0
      %v1929 = vadd.f32 0.0, %v1928
      %1930 = vmatmul.f32.gmra.mxu0 %v1723
      %v1931 = vpop.f32.mrf.mxu0
      %1932 = vmatmul.f32.gmra.mxu0 %v1726
      %v1933 = vpop.f32.mrf.mxu0
      %1934 = vmatmul.f32.gmra.mxu0 %v1729
      %v1935 = vpop.f32.mrf.mxu0
      %v1936 = vadd.f32 0.0, %v1935
      %1937 = vmatmul.f32.gmra.mxu0 %v1732
      %v1938 = vpop.f32.mrf.mxu0
      %v1939 = vadd.f32 0.0, %v1938
      %1940 = vmatmul.f32.gmra.mxu0 %v1735
      %v1941 = vpop.f32.mrf.mxu0
      %1942 = vmatmul.f32.gmra.mxu0 %v1738
      %v1943 = vpop.f32.mrf.mxu0
      %1944 = vmatmul.f32.gmra.mxu0 %v1741
      %v1945 = vpop.f32.mrf.mxu0
      %v1946 = vadd.f32 0.0, %v1945
      %1947 = vmatmul.f32.gmra.mxu0 %v1744
      %v1948 = vpop.f32.mrf.mxu0
      %v1949 = vadd.f32 0.0, %v1948
      %1950 = vmatmul.f32.gmra.mxu0 %v1747
      %v1951 = vpop.f32.mrf.mxu0
      %1952 = vmatmul.f32.gmra.mxu0 %v1750
      %v1953 = vpop.f32.mrf.mxu0
      %1954 = vmatmul.f32.gmra.mxu0 %v1753
      %v1955 = vpop.f32.mrf.mxu0
      %v1956 = vadd.f32 0.0, %v1955
      %1957 = vmatmul.f32.gmra.mxu0 %v1756
      %v1958 = vpop.f32.mrf.mxu0
      %v1959 = vadd.f32 0.0, %v1958
      %1960 = vmatmul.f32.gmra.mxu0 %v1759
      %v1961 = vpop.f32.mrf.mxu0
      %1962 = vmatmul.f32.gmra.mxu0 %v1762
      %v1963 = vpop.f32.mrf.mxu0
      %1964 = vmatmul.f32.gmra.mxu0 %v1765
      %v1965 = vpop.f32.mrf.mxu0
      %v1966 = vadd.f32 0.0, %v1965
      %1967 = vmatmul.f32.gmra.mxu0 %v1768
      %v1968 = vpop.f32.mrf.mxu0
      %v1969 = vadd.f32 0.0, %v1968
      %1970 = vmatmul.f32.gmra.mxu0 %v1771
      %v1971 = vpop.f32.mrf.mxu0
      %1972 = vmatmul.f32.gmra.mxu0 %v1774
      %v1973 = vpop.f32.mrf.mxu0
      %1974 = vmatmul.f32.gmra.mxu0 %v1777
      %v1975 = vpop.f32.mrf.mxu0
      %v1976 = vadd.f32 0.0, %v1975
      %1977 = vmatmul.f32.gmra.mxu0 %v1780
      %v1978 = vpop.f32.mrf.mxu0
      %v1979 = vadd.f32 0.0, %v1978
      %1980 = vmatmul.f32.gmra.mxu0 %v1783
      %v1981 = vpop.f32.mrf.mxu0
      %1982 = vmatmul.f32.gmra.mxu0 %v1786
      %v1983 = vpop.f32.mrf.mxu0
      %1984 = vmatmul.f32.gmra.mxu0 %v1789
      %v1985 = vpop.f32.mrf.mxu0
      %v1986 = vadd.f32 0.0, %v1985
      %1987 = vmatmul.f32.gmra.mxu0 %v1792
      %v1988 = vpop.f32.mrf.mxu0
      %v1989 = vadd.f32 0.0, %v1988
      %1990 = vmatmul.f32.gmra.mxu0 %v1795
      %v1991 = vpop.f32.mrf.mxu0
      %1992 = vmatmul.f32.gmra.mxu0 %v1798
      %v1993 = vpop.f32.mrf.mxu0
      %1994 = vmatmul.f32.gmra.mxu0 %v1801
      %v1995 = vpop.f32.mrf.mxu0
      %v1996 = vadd.f32 0.0, %v1995
      %1997 = vmatmul.f32.gmra.mxu0 %v1804
      %v1998 = vpop.f32.mrf.mxu0
      %v1999 = vadd.f32 0.0, %v1998
      %2000 = vmatmul.f32.gmra.mxu0 %v1807
      %v2001 = vpop.f32.mrf.mxu0
      %2002 = vmatmul.f32.gmra.mxu0 %v1810
      %v2003 = vpop.f32.mrf.mxu0
      %2004 = vmatmul.f32.gmra.mxu0 %v1813
      %v2005 = vpop.f32.mrf.mxu0
      %v2006 = vadd.f32 0.0, %v2005
      %2007 = vmatmul.f32.gmra.mxu0 %v1816
      %v2008 = vpop.f32.mrf.mxu0
      %v2009 = vadd.f32 0.0, %v2008
      %2010 = vmatmul.f32.gmra.mxu0 %v1819
      %v2011 = vpop.f32.mrf.mxu0
      %2012 = vmatmul.f32.gmra.mxu0 %v1822
      %v2013 = vpop.f32.mrf.mxu0
      %2014 = vmatmul.f32.gmra.mxu0 %v1825
      %v2015 = vpop.f32.mrf.mxu0
      %v2016 = vadd.f32 0.0, %v2015
      %2017 = vmatmul.f32.gmra.mxu0 %v1828
      %v2018 = vpop.f32.mrf.mxu0
      %v2019 = vadd.f32 0.0, %v2018
      %2020 = vmatmul.f32.gmra.mxu0 %v1831
      %v2021 = vpop.f32.mrf.mxu0
      %2022 = vmatmul.f32.gmra.mxu0 %v1834
      %v2023 = vpop.f32.mrf.mxu0
      %2024 = vmatmul.f32.gmra.mxu0 %v1837
      %v2025 = vpop.f32.mrf.mxu0
      %v2026 = vadd.f32 0.0, %v2025
      %2027 = vmatmul.f32.gmra.mxu0 %v1840
      %v2028 = vpop.f32.mrf.mxu0
      %v2029 = vadd.f32 0.0, %v2028
      %2030 = vmatmul.f32.gmra.mxu0 %v1843
      %v2031 = vpop.f32.mrf.mxu0
      %2032 = vmatmul.f32.gmra.mxu0 %v1846
      %v2033 = vpop.f32.mrf.mxu0
      %2034 = vmatmul.f32.gmra.mxu0 %v1849
      %v2035 = vpop.f32.mrf.mxu0
      %v2036 = vadd.f32 0.0, %v2035
      %2037 = vmatmul.f32.gmra.mxu0 %v1852
      %v2038 = vpop.f32.mrf.mxu0
      %v2039 = vadd.f32 0.0, %v2038
      %2040 = vmatmul.f32.gmra.mxu0 %v1855
      %v2041 = vpop.f32.mrf.mxu0
      %2042 = vmatmul.f32.gmra.mxu0 %v1858
      %v2043 = vpop.f32.mrf.mxu0
      %2044 = vmatmul.f32.gmra.mxu0 %v1861
      %v2045 = vpop.f32.mrf.mxu0
      %v2046 = vadd.f32 0.0, %v2045
      %2047 = vmatmul.f32.gmra.mxu0 %v1864
      %v2048 = vpop.f32.mrf.mxu0
      %v2049 = vadd.f32 0.0, %v2048
      %2050 = vmatmul.f32.gmra.mxu0 %v1867
      %v2051 = vpop.f32.mrf.mxu0
      %2052 = vmatmul.f32.gmra.mxu0 %v1870
      %v2053 = vpop.f32.mrf.mxu0
      %2054 = vmatmul.f32.gmra.mxu0 %v1873
      %v2055 = vpop.f32.mrf.mxu0
      %v2056 = vadd.f32 0.0, %v2055
      %2057 = vmatmul.f32.gmra.mxu0 %v1876
      %v2058 = vpop.f32.mrf.mxu0
      %v2059 = vadd.f32 0.0, %v2058
      %2060 = vmatmul.f32.gmra.mxu0 %v1879
      %v2061 = vpop.f32.mrf.mxu0
      %2062 = vmatmul.f32.gmra.mxu0 %v1882
      %v2063 = vpop.f32.mrf.mxu0
      %2064 = vmatmul.f32.gmra.mxu0 %v1885
      %v2065 = vpop.f32.mrf.mxu0
      %v2066 = vadd.f32 0.0, %v2065
      %2067 = vmatmul.f32.gmra.mxu0 %v1888
      %v2068 = vpop.f32.mrf.mxu0
      %v2069 = vadd.f32 0.0, %v2068
      %2070 = vmatmul.f32.gmra.mxu0 %v1891
      %v2071 = vpop.f32.mrf.mxu0
      %2072 = vmatmul.f32.gmra.mxu0 %v1894
      %v2073 = vpop.f32.mrf.mxu0
      %2074 = vmatmul.f32.gmra.mxu0 %v1897
      %v2075 = vpop.f32.mrf.mxu0
      %v2076 = vadd.f32 0.0, %v2075
      %2077 = vmatmul.f32.gmra.mxu0 %v1900
      %v2078 = vpop.f32.mrf.mxu0
      %v2079 = vadd.f32 0.0, %v2078
      %2080 = vmatmul.f32.gmra.mxu0 %v1903
      %v2081 = vpop.f32.mrf.mxu0
      %2082 = vmatmul.f32.gmra.mxu0 %v1906
      %v2083 = vpop.f32.mrf.mxu0
      %2084 = vdwg.mxu0
      %v2085 = vadd.f32 %v1491, %v1926
      %v2086 = vadd.f32 %v1494, %v1929
      %v2087 = vadd.f32 %v1501, %v1936
      %v2088 = vadd.f32 %v1504, %v1939
      %v2089 = vadd.f32 %v1511, %v1946
      %v2090 = vadd.f32 %v1514, %v1949
      %v2091 = vadd.f32 %v1521, %v1956
      %v2092 = vadd.f32 %v1524, %v1959
      %v2093 = vadd.f32 %v1531, %v1966
      %v2094 = vadd.f32 %v1534, %v1969
      %v2095 = vadd.f32 %v1541, %v1976
      %v2096 = vadd.f32 %v1544, %v1979
      %v2097 = vadd.f32 %v1551, %v1986
      %v2098 = vadd.f32 %v1554, %v1989
      %v2099 = vadd.f32 %v1561, %v1996
      %v2100 = vadd.f32 %v1564, %v1999
      %v2101 = vadd.f32 %v1571, %v2006
      %v2102 = vadd.f32 %v1574, %v2009
      %v2103 = vadd.f32 %v1581, %v2016
      %v2104 = vadd.f32 %v1584, %v2019
      %v2105 = vadd.f32 %v1591, %v2026
      %v2106 = vadd.f32 %v1594, %v2029
      %v2107 = vadd.f32 %v1601, %v2036
      %v2108 = vadd.f32 %v1604, %v2039
      %v2109 = vadd.f32 %v1611, %v2046
      %v2110 = vadd.f32 %v1614, %v2049
      %v2111 = vadd.f32 %v1621, %v2056
      %v2112 = vadd.f32 %v1624, %v2059
      %v2113 = vadd.f32 %v1631, %v2066
      %v2114 = vadd.f32 %v1634, %v2069
      %v2115 = vadd.f32 %v1641, %v2076
      %v2116 = vadd.f32 %v1644, %v2079
      %v2117 = vld [vmem:[#allocation2 + $0x27] sm:$0xff]
      %v2118 = vld [vmem:[#allocation2 + $0x2f] sm:$0xff]
      %v2119 = vld [vmem:[#allocation2 + $0x37] sm:$0xff]
      %v2120 = vld [vmem:[#allocation2 + $0x3f] sm:$0xff]
      %v2121 = vld [vmem:[#allocation2 + $0x47] sm:$0xff]
      %v2122 = vld [vmem:[#allocation2 + $0x4f] sm:$0xff]
      %v2123 = vld [vmem:[#allocation2 + $0x57] sm:$0xff]
      %v2124 = vld [vmem:[#allocation2 + $0x5f] sm:$0xff]
      %v2125 = vld [vmem:[#allocation2 + $0x67] sm:$0xff]
      %v2126 = vld [vmem:[#allocation2 + $0x6f] sm:$0xff]
      %v2127 = vld [vmem:[#allocation2 + $0x77] sm:$0xff]
      %v2128 = vld [vmem:[#allocation2 + $0x7f] sm:$0xff]
      %v2129 = vld [vmem:[#allocation2 + $0x87] sm:$0xff]
      %v2130 = vld [vmem:[#allocation2 + $0x8f] sm:$0xff]
      %v2131 = vld [vmem:[#allocation2 + $0x97] sm:$0xff]
      %v2132 = vld [vmem:[#allocation2 + $0x9f] sm:$0xff]
      %v2133 = vld [vmem:[#allocation2 + $0xa7] sm:$0xff]
      %v2134 = vld [vmem:[#allocation2 + $0xaf] sm:$0xff]
      %v2135 = vld [vmem:[#allocation2 + $0xb7] sm:$0xff]
      %v2136 = vld [vmem:[#allocation2 + $0xbf] sm:$0xff]
      %v2137 = vld [vmem:[#allocation2 + $0xc7] sm:$0xff]
      %v2138 = vld [vmem:[#allocation2 + $0xcf] sm:$0xff]
      %v2139 = vld [vmem:[#allocation2 + $0xd7] sm:$0xff]
      %v2140 = vld [vmem:[#allocation2 + $0xdf] sm:$0xff]
      %v2141 = vld [vmem:[#allocation2 + $0xe7] sm:$0xff]
      %v2142 = vld [vmem:[#allocation2 + $0xef] sm:$0xff]
      %v2143 = vld [vmem:[#allocation2 + $0xf7] sm:$0xff]
      %v2144 = vld [vmem:[#allocation2 + $0xff] sm:$0xff]
      %v2145 = vld [vmem:[#allocation2 + $0x107] sm:$0xff]
      %v2146 = vld [vmem:[#allocation2 + $0x10f] sm:$0xff]
      %v2147 = vld [vmem:[#allocation2 + $0x117] sm:$0xff]
      %v2148 = vld [vmem:[#allocation2 + $0x11f] sm:$0xff]
      %v2149 = vld [vmem:[#allocation2 + $0x127] sm:$0xff]
      %v2150 = vld [vmem:[#allocation2 + $0x12f] sm:$0xff]
      %v2151 = vld [vmem:[#allocation2 + $0x137] sm:$0xff]
      %v2152 = vld [vmem:[#allocation2 + $0x13f] sm:$0xff]
      %v2153 = vld [vmem:[#allocation2 + $0x147] sm:$0xff]
      %v2154 = vld [vmem:[#allocation2 + $0x14f] sm:$0xff]
      %v2155 = vld [vmem:[#allocation2 + $0x157] sm:$0xff]
      %v2156 = vld [vmem:[#allocation2 + $0x15f] sm:$0xff]
      %v2157 = vld [vmem:[#allocation2 + $0x167] sm:$0xff]
      %v2158 = vld [vmem:[#allocation2 + $0x16f] sm:$0xff]
      %v2159 = vld [vmem:[#allocation2 + $0x177] sm:$0xff]
      %v2160 = vld [vmem:[#allocation2 + $0x17f] sm:$0xff]
      %v2161 = vld [vmem:[#allocation2 + $0x187] sm:$0xff]
      %v2162 = vld [vmem:[#allocation2 + $0x18f] sm:$0xff]
      %v2163 = vld [vmem:[#allocation2 + $0x197] sm:$0xff]
      %v2164 = vld [vmem:[#allocation2 + $0x19f] sm:$0xff]
      %v2165 = vld [vmem:[#allocation2 + $0x1a7] sm:$0xff]
      %v2166 = vld [vmem:[#allocation2 + $0x1af] sm:$0xff]
      %v2167 = vld [vmem:[#allocation2 + $0x1b7] sm:$0xff]
      %v2168 = vld [vmem:[#allocation2 + $0x1bf] sm:$0xff]
      %v2169 = vld [vmem:[#allocation2 + $0x1c7] sm:$0xff]
      %v2170 = vld [vmem:[#allocation2 + $0x1cf] sm:$0xff]
      %v2171 = vld [vmem:[#allocation2 + $0x1d7] sm:$0xff]
      %v2172 = vld [vmem:[#allocation2 + $0x1df] sm:$0xff]
      %v2173 = vld [vmem:[#allocation2 + $0x1e7] sm:$0xff]
      %v2174 = vld [vmem:[#allocation2 + $0x1ef] sm:$0xff]
      %v2175 = vld [vmem:[#allocation2 + $0x1f7] sm:$0xff]
      %v2176 = vld [vmem:[#allocation2 + $0x1ff] sm:$0xff]
      %v2177 = vld [vmem:[#allocation2 + $0x207] sm:$0xff]
      %v2178 = vld [vmem:[#allocation2 + $0x20f] sm:$0xff]
      %v2179 = vld [vmem:[#allocation2 + $0x217] sm:$0xff]
      %v2180 = vld [vmem:[#allocation2 + $0x21f] sm:$0xff]
      %s2181 = scalar_lea.vmem %s4, 24
      %v2182 = vld [vmem:[%s2181] sm:$0xff]
      %v2184 = vsel %vm674, %v2117, 0
      %v2187 = vsel %vm674, %v2118, 0
      %v2190 = vsel %vm674, %v2119, 0
      %v2193 = vsel %vm674, %v2120, 0
      %v2196 = vsel %vm674, %v2121, 0
      %v2199 = vsel %vm674, %v2122, 0
      %v2202 = vsel %vm674, %v2123, 0
      %v2205 = vsel %vm674, %v2124, 0
      %v2208 = vsel %vm674, %v2125, 0
      %v2211 = vsel %vm674, %v2126, 0
      %v2214 = vsel %vm674, %v2127, 0
      %v2217 = vsel %vm674, %v2128, 0
      %v2220 = vsel %vm674, %v2129, 0
      %v2223 = vsel %vm674, %v2130, 0
      %v2226 = vsel %vm674, %v2131, 0
      %v2229 = vsel %vm674, %v2132, 0
      %v2232 = vsel %vm674, %v2133, 0
      %v2235 = vsel %vm674, %v2134, 0
      %v2238 = vsel %vm674, %v2135, 0
      %v2241 = vsel %vm674, %v2136, 0
      %v2244 = vsel %vm674, %v2137, 0
      %v2247 = vsel %vm674, %v2138, 0
      %v2250 = vsel %vm674, %v2139, 0
      %v2253 = vsel %vm674, %v2140, 0
      %v2256 = vsel %vm674, %v2141, 0
      %v2259 = vsel %vm674, %v2142, 0
      %v2262 = vsel %vm674, %v2143, 0
      %v2265 = vsel %vm674, %v2144, 0
      %v2268 = vsel %vm674, %v2145, 0
      %v2271 = vsel %vm674, %v2146, 0
      %v2274 = vsel %vm674, %v2147, 0
      %v2277 = vsel %vm674, %v2148, 0
      %v2280 = vsel %vm674, %v2149, 0
      %v2283 = vsel %vm674, %v2150, 0
      %v2286 = vsel %vm674, %v2151, 0
      %v2289 = vsel %vm674, %v2152, 0
      %v2292 = vsel %vm674, %v2153, 0
      %v2295 = vsel %vm674, %v2154, 0
      %v2298 = vsel %vm674, %v2155, 0
      %v2301 = vsel %vm674, %v2156, 0
      %v2304 = vsel %vm674, %v2157, 0
      %v2307 = vsel %vm674, %v2158, 0
      %v2310 = vsel %vm674, %v2159, 0
      %v2313 = vsel %vm674, %v2160, 0
      %v2316 = vsel %vm674, %v2161, 0
      %v2319 = vsel %vm674, %v2162, 0
      %v2322 = vsel %vm674, %v2163, 0
      %v2325 = vsel %vm674, %v2164, 0
      %v2328 = vsel %vm674, %v2165, 0
      %v2331 = vsel %vm674, %v2166, 0
      %v2334 = vsel %vm674, %v2167, 0
      %v2337 = vsel %vm674, %v2168, 0
      %v2340 = vsel %vm674, %v2169, 0
      %v2343 = vsel %vm674, %v2170, 0
      %v2346 = vsel %vm674, %v2171, 0
      %v2349 = vsel %vm674, %v2172, 0
      %v2352 = vsel %vm674, %v2173, 0
      %v2355 = vsel %vm674, %v2174, 0
      %v2358 = vsel %vm674, %v2175, 0
      %v2361 = vsel %vm674, %v2176, 0
      %v2364 = vsel %vm674, %v2177, 0
      %v2367 = vsel %vm674, %v2178, 0
      %v2370 = vsel %vm674, %v2179, 0
      %v2373 = vsel %vm674, %v2180, 0
      %2375 = vmatpush.msra.mxu0 0.0
      %2376 = vmatpush.msra.mxu0 0.0
      %2377 = vmatpush.msra.mxu0 0.0
      %2378 = vmatpush.msra.mxu0 0.0
      %2379 = vmatpush.msra.mxu0 0.0
      %2380 = vmatpush.msra.mxu0 0.0
      %2381 = vmatpush.msra.mxu0 0.0
      %2382 = vmatpush.msra.mxu0 0.0
      %2383 = vmatpush.msra.mxu0 0.0
      %2384 = vmatpush.msra.mxu0 0.0
      %2385 = vmatpush.msra.mxu0 0.0
      %2386 = vmatpush.msra.mxu0 0.0
      %2387 = vmatpush.msra.mxu0 0.0
      %2388 = vmatpush.msra.mxu0 0.0
      %2389 = vmatpush.msra.mxu0 0.0
      %2390 = vmatpush.msra.mxu0 %v2182
      %2391 = vmatmul.f32.gmra.mxu0 %v2184
      %v2392 = vpop.f32.mrf.mxu0
      %v2393 = vadd.f32 0.0, %v2392
      %2394 = vmatmul.f32.gmra.mxu0 %v2187
      %v2395 = vpop.f32.mrf.mxu0
      %v2396 = vadd.f32 0.0, %v2395
      %2397 = vmatmul.f32.gmra.mxu0 %v2190
      %v2398 = vpop.f32.mrf.mxu0
      %2399 = vmatmul.f32.gmra.mxu0 %v2193
      %v2400 = vpop.f32.mrf.mxu0
      %2401 = vmatmul.f32.gmra.mxu0 %v2196
      %v2402 = vpop.f32.mrf.mxu0
      %v2403 = vadd.f32 0.0, %v2402
      %2404 = vmatmul.f32.gmra.mxu0 %v2199
      %v2405 = vpop.f32.mrf.mxu0
      %v2406 = vadd.f32 0.0, %v2405
      %2407 = vmatmul.f32.gmra.mxu0 %v2202
      %v2408 = vpop.f32.mrf.mxu0
      %2409 = vmatmul.f32.gmra.mxu0 %v2205
      %v2410 = vpop.f32.mrf.mxu0
      %2411 = vmatmul.f32.gmra.mxu0 %v2208
      %v2412 = vpop.f32.mrf.mxu0
      %v2413 = vadd.f32 0.0, %v2412
      %2414 = vmatmul.f32.gmra.mxu0 %v2211
      %v2415 = vpop.f32.mrf.mxu0
      %v2416 = vadd.f32 0.0, %v2415
      %2417 = vmatmul.f32.gmra.mxu0 %v2214
      %v2418 = vpop.f32.mrf.mxu0
      %2419 = vmatmul.f32.gmra.mxu0 %v2217
      %v2420 = vpop.f32.mrf.mxu0
      %2421 = vmatmul.f32.gmra.mxu0 %v2220
      %v2422 = vpop.f32.mrf.mxu0
      %v2423 = vadd.f32 0.0, %v2422
      %2424 = vmatmul.f32.gmra.mxu0 %v2223
      %v2425 = vpop.f32.mrf.mxu0
      %v2426 = vadd.f32 0.0, %v2425
      %2427 = vmatmul.f32.gmra.mxu0 %v2226
      %v2428 = vpop.f32.mrf.mxu0
      %2429 = vmatmul.f32.gmra.mxu0 %v2229
      %v2430 = vpop.f32.mrf.mxu0
      %2431 = vmatmul.f32.gmra.mxu0 %v2232
      %v2432 = vpop.f32.mrf.mxu0
      %v2433 = vadd.f32 0.0, %v2432
      %2434 = vmatmul.f32.gmra.mxu0 %v2235
      %v2435 = vpop.f32.mrf.mxu0
      %v2436 = vadd.f32 0.0, %v2435
      %2437 = vmatmul.f32.gmra.mxu0 %v2238
      %v2438 = vpop.f32.mrf.mxu0
      %2439 = vmatmul.f32.gmra.mxu0 %v2241
      %v2440 = vpop.f32.mrf.mxu0
      %2441 = vmatmul.f32.gmra.mxu0 %v2244
      %v2442 = vpop.f32.mrf.mxu0
      %v2443 = vadd.f32 0.0, %v2442
      %2444 = vmatmul.f32.gmra.mxu0 %v2247
      %v2445 = vpop.f32.mrf.mxu0
      %v2446 = vadd.f32 0.0, %v2445
      %2447 = vmatmul.f32.gmra.mxu0 %v2250
      %v2448 = vpop.f32.mrf.mxu0
      %2449 = vmatmul.f32.gmra.mxu0 %v2253
      %v2450 = vpop.f32.mrf.mxu0
      %2451 = vmatmul.f32.gmra.mxu0 %v2256
      %v2452 = vpop.f32.mrf.mxu0
      %v2453 = vadd.f32 0.0, %v2452
      %2454 = vmatmul.f32.gmra.mxu0 %v2259
      %v2455 = vpop.f32.mrf.mxu0
      %v2456 = vadd.f32 0.0, %v2455
      %2457 = vmatmul.f32.gmra.mxu0 %v2262
      %v2458 = vpop.f32.mrf.mxu0
      %2459 = vmatmul.f32.gmra.mxu0 %v2265
      %v2460 = vpop.f32.mrf.mxu0
      %2461 = vmatmul.f32.gmra.mxu0 %v2268
      %v2462 = vpop.f32.mrf.mxu0
      %v2463 = vadd.f32 0.0, %v2462
      %2464 = vmatmul.f32.gmra.mxu0 %v2271
      %v2465 = vpop.f32.mrf.mxu0
      %v2466 = vadd.f32 0.0, %v2465
      %2467 = vmatmul.f32.gmra.mxu0 %v2274
      %v2468 = vpop.f32.mrf.mxu0
      %2469 = vmatmul.f32.gmra.mxu0 %v2277
      %v2470 = vpop.f32.mrf.mxu0
      %2471 = vmatmul.f32.gmra.mxu0 %v2280
      %v2472 = vpop.f32.mrf.mxu0
      %v2473 = vadd.f32 0.0, %v2472
      %2474 = vmatmul.f32.gmra.mxu0 %v2283
      %v2475 = vpop.f32.mrf.mxu0
      %v2476 = vadd.f32 0.0, %v2475
      %2477 = vmatmul.f32.gmra.mxu0 %v2286
      %v2478 = vpop.f32.mrf.mxu0
      %2479 = vmatmul.f32.gmra.mxu0 %v2289
      %v2480 = vpop.f32.mrf.mxu0
      %2481 = vmatmul.f32.gmra.mxu0 %v2292
      %v2482 = vpop.f32.mrf.mxu0
      %v2483 = vadd.f32 0.0, %v2482
      %2484 = vmatmul.f32.gmra.mxu0 %v2295
      %v2485 = vpop.f32.mrf.mxu0
      %v2486 = vadd.f32 0.0, %v2485
      %2487 = vmatmul.f32.gmra.mxu0 %v2298
      %v2488 = vpop.f32.mrf.mxu0
      %2489 = vmatmul.f32.gmra.mxu0 %v2301
      %v2490 = vpop.f32.mrf.mxu0
      %2491 = vmatmul.f32.gmra.mxu0 %v2304
      %v2492 = vpop.f32.mrf.mxu0
      %v2493 = vadd.f32 0.0, %v2492
      %2494 = vmatmul.f32.gmra.mxu0 %v2307
      %v2495 = vpop.f32.mrf.mxu0
      %v2496 = vadd.f32 0.0, %v2495
      %2497 = vmatmul.f32.gmra.mxu0 %v2310
      %v2498 = vpop.f32.mrf.mxu0
      %2499 = vmatmul.f32.gmra.mxu0 %v2313
      %v2500 = vpop.f32.mrf.mxu0
      %2501 = vmatmul.f32.gmra.mxu0 %v2316
      %v2502 = vpop.f32.mrf.mxu0
      %v2503 = vadd.f32 0.0, %v2502
      %2504 = vmatmul.f32.gmra.mxu0 %v2319
      %v2505 = vpop.f32.mrf.mxu0
      %v2506 = vadd.f32 0.0, %v2505
      %2507 = vmatmul.f32.gmra.mxu0 %v2322
      %v2508 = vpop.f32.mrf.mxu0
      %2509 = vmatmul.f32.gmra.mxu0 %v2325
      %v2510 = vpop.f32.mrf.mxu0
      %2511 = vmatmul.f32.gmra.mxu0 %v2328
      %v2512 = vpop.f32.mrf.mxu0
      %v2513 = vadd.f32 0.0, %v2512
      %2514 = vmatmul.f32.gmra.mxu0 %v2331
      %v2515 = vpop.f32.mrf.mxu0
      %v2516 = vadd.f32 0.0, %v2515
      %2517 = vmatmul.f32.gmra.mxu0 %v2334
      %v2518 = vpop.f32.mrf.mxu0
      %2519 = vmatmul.f32.gmra.mxu0 %v2337
      %v2520 = vpop.f32.mrf.mxu0
      %2521 = vmatmul.f32.gmra.mxu0 %v2340
      %v2522 = vpop.f32.mrf.mxu0
      %v2523 = vadd.f32 0.0, %v2522
      %2524 = vmatmul.f32.gmra.mxu0 %v2343
      %v2525 = vpop.f32.mrf.mxu0
      %v2526 = vadd.f32 0.0, %v2525
      %2527 = vmatmul.f32.gmra.mxu0 %v2346
      %v2528 = vpop.f32.mrf.mxu0
      %2529 = vmatmul.f32.gmra.mxu0 %v2349
      %v2530 = vpop.f32.mrf.mxu0
      %2531 = vmatmul.f32.gmra.mxu0 %v2352
      %v2532 = vpop.f32.mrf.mxu0
      %v2533 = vadd.f32 0.0, %v2532
      %2534 = vmatmul.f32.gmra.mxu0 %v2355
      %v2535 = vpop.f32.mrf.mxu0
      %v2536 = vadd.f32 0.0, %v2535
      %2537 = vmatmul.f32.gmra.mxu0 %v2358
      %v2538 = vpop.f32.mrf.mxu0
      %2539 = vmatmul.f32.gmra.mxu0 %v2361
      %v2540 = vpop.f32.mrf.mxu0
      %2541 = vmatmul.f32.gmra.mxu0 %v2364
      %v2542 = vpop.f32.mrf.mxu0
      %v2543 = vadd.f32 0.0, %v2542
      %2544 = vmatmul.f32.gmra.mxu0 %v2367
      %v2545 = vpop.f32.mrf.mxu0
      %v2546 = vadd.f32 0.0, %v2545
      %2547 = vmatmul.f32.gmra.mxu0 %v2370
      %v2548 = vpop.f32.mrf.mxu0
      %2549 = vmatmul.f32.gmra.mxu0 %v2373
      %v2550 = vpop.f32.mrf.mxu0
      %2551 = vdwg.mxu0
      %v2552 = vadd.f32 %v2085, %v2393
      %v2553 = vadd.f32 %v2086, %v2396
      %v2554 = vadd.f32 %v2087, %v2403
      %v2555 = vadd.f32 %v2088, %v2406
      %v2556 = vadd.f32 %v2089, %v2413
      %v2557 = vadd.f32 %v2090, %v2416
      %v2558 = vadd.f32 %v2091, %v2423
      %v2559 = vadd.f32 %v2092, %v2426
      %v2560 = vadd.f32 %v2093, %v2433
      %v2561 = vadd.f32 %v2094, %v2436
      %v2562 = vadd.f32 %v2095, %v2443
      %v2563 = vadd.f32 %v2096, %v2446
      %v2564 = vadd.f32 %v2097, %v2453
      %v2565 = vadd.f32 %v2098, %v2456
      %v2566 = vadd.f32 %v2099, %v2463
      %v2567 = vadd.f32 %v2100, %v2466
      %v2568 = vadd.f32 %v2101, %v2473
      %v2569 = vadd.f32 %v2102, %v2476
      %v2570 = vadd.f32 %v2103, %v2483
      %v2571 = vadd.f32 %v2104, %v2486
      %v2572 = vadd.f32 %v2105, %v2493
      %v2573 = vadd.f32 %v2106, %v2496
      %v2574 = vadd.f32 %v2107, %v2503
      %v2575 = vadd.f32 %v2108, %v2506
      %v2576 = vadd.f32 %v2109, %v2513
      %v2577 = vadd.f32 %v2110, %v2516
      %v2578 = vadd.f32 %v2111, %v2523
      %v2579 = vadd.f32 %v2112, %v2526
      %v2580 = vadd.f32 %v2113, %v2533
      %v2581 = vadd.f32 %v2114, %v2536
      %v2582 = vadd.f32 %v2115, %v2543
      %v2583 = vadd.f32 %v2116, %v2546
      %v2584 = vld [vmem:[#allocation2 + $0x28] sm:$0xff]
      %v2585 = vld [vmem:[#allocation2 + $0x30] sm:$0xff]
      %v2586 = vld [vmem:[#allocation2 + $0x38] sm:$0xff]
      %v2587 = vld [vmem:[#allocation2 + $0x40] sm:$0xff]
      %v2588 = vld [vmem:[#allocation2 + $0x48] sm:$0xff]
      %v2589 = vld [vmem:[#allocation2 + $0x50] sm:$0xff]
      %v2590 = vld [vmem:[#allocation2 + $0x58] sm:$0xff]
      %v2591 = vld [vmem:[#allocation2 + $0x60] sm:$0xff]
      %v2592 = vld [vmem:[#allocation2 + $0x68] sm:$0xff]
      %v2593 = vld [vmem:[#allocation2 + $0x70] sm:$0xff]
      %v2594 = vld [vmem:[#allocation2 + $0x78] sm:$0xff]
      %v2595 = vld [vmem:[#allocation2 + $0x80] sm:$0xff]
      %v2596 = vld [vmem:[#allocation2 + $0x88] sm:$0xff]
      %v2597 = vld [vmem:[#allocation2 + $0x90] sm:$0xff]
      %v2598 = vld [vmem:[#allocation2 + $0x98] sm:$0xff]
      %v2599 = vld [vmem:[#allocation2 + $0xa0] sm:$0xff]
      %v2600 = vld [vmem:[#allocation2 + $0xa8] sm:$0xff]
      %v2601 = vld [vmem:[#allocation2 + $0xb0] sm:$0xff]
      %v2602 = vld [vmem:[#allocation2 + $0xb8] sm:$0xff]
      %v2603 = vld [vmem:[#allocation2 + $0xc0] sm:$0xff]
      %v2604 = vld [vmem:[#allocation2 + $0xc8] sm:$0xff]
      %v2605 = vld [vmem:[#allocation2 + $0xd0] sm:$0xff]
      %v2606 = vld [vmem:[#allocation2 + $0xd8] sm:$0xff]
      %v2607 = vld [vmem:[#allocation2 + $0xe0] sm:$0xff]
      %v2608 = vld [vmem:[#allocation2 + $0xe8] sm:$0xff]
      %v2609 = vld [vmem:[#allocation2 + $0xf0] sm:$0xff]
      %v2610 = vld [vmem:[#allocation2 + $0xf8] sm:$0xff]
      %v2611 = vld [vmem:[#allocation2 + $0x100] sm:$0xff]
      %v2612 = vld [vmem:[#allocation2 + $0x108] sm:$0xff]
      %v2613 = vld [vmem:[#allocation2 + $0x110] sm:$0xff]
      %v2614 = vld [vmem:[#allocation2 + $0x118] sm:$0xff]
      %v2615 = vld [vmem:[#allocation2 + $0x120] sm:$0xff]
      %v2616 = vld [vmem:[#allocation2 + $0x128] sm:$0xff]
      %v2617 = vld [vmem:[#allocation2 + $0x130] sm:$0xff]
      %v2618 = vld [vmem:[#allocation2 + $0x138] sm:$0xff]
      %v2619 = vld [vmem:[#allocation2 + $0x140] sm:$0xff]
      %v2620 = vld [vmem:[#allocation2 + $0x148] sm:$0xff]
      %v2621 = vld [vmem:[#allocation2 + $0x150] sm:$0xff]
      %v2622 = vld [vmem:[#allocation2 + $0x158] sm:$0xff]
      %v2623 = vld [vmem:[#allocation2 + $0x160] sm:$0xff]
      %v2624 = vld [vmem:[#allocation2 + $0x168] sm:$0xff]
      %v2625 = vld [vmem:[#allocation2 + $0x170] sm:$0xff]
      %v2626 = vld [vmem:[#allocation2 + $0x178] sm:$0xff]
      %v2627 = vld [vmem:[#allocation2 + $0x180] sm:$0xff]
      %v2628 = vld [vmem:[#allocation2 + $0x188] sm:$0xff]
      %v2629 = vld [vmem:[#allocation2 + $0x190] sm:$0xff]
      %v2630 = vld [vmem:[#allocation2 + $0x198] sm:$0xff]
      %v2631 = vld [vmem:[#allocation2 + $0x1a0] sm:$0xff]
      %v2632 = vld [vmem:[#allocation2 + $0x1a8] sm:$0xff]
      %v2633 = vld [vmem:[#allocation2 + $0x1b0] sm:$0xff]
      %v2634 = vld [vmem:[#allocation2 + $0x1b8] sm:$0xff]
      %v2635 = vld [vmem:[#allocation2 + $0x1c0] sm:$0xff]
      %v2636 = vld [vmem:[#allocation2 + $0x1c8] sm:$0xff]
      %v2637 = vld [vmem:[#allocation2 + $0x1d0] sm:$0xff]
      %v2638 = vld [vmem:[#allocation2 + $0x1d8] sm:$0xff]
      %v2639 = vld [vmem:[#allocation2 + $0x1e0] sm:$0xff]
      %v2640 = vld [vmem:[#allocation2 + $0x1e8] sm:$0xff]
      %v2641 = vld [vmem:[#allocation2 + $0x1f0] sm:$0xff]
      %v2642 = vld [vmem:[#allocation2 + $0x1f8] sm:$0xff]
      %v2643 = vld [vmem:[#allocation2 + $0x200] sm:$0xff]
      %v2644 = vld [vmem:[#allocation2 + $0x208] sm:$0xff]
      %v2645 = vld [vmem:[#allocation2 + $0x210] sm:$0xff]
      %v2646 = vld [vmem:[#allocation2 + $0x218] sm:$0xff]
      %v2647 = vld [vmem:[#allocation2 + $0x220] sm:$0xff]
      %s2648 = scalar_lea.vmem %s4, 32
      %v2649 = vld [vmem:[%s2648] sm:$0xff]
      %v2651 = vsel %vm674, %v2584, 0
      %v2654 = vsel %vm674, %v2585, 0
      %v2657 = vsel %vm674, %v2586, 0
      %v2660 = vsel %vm674, %v2587, 0
      %v2663 = vsel %vm674, %v2588, 0
      %v2666 = vsel %vm674, %v2589, 0
      %v2669 = vsel %vm674, %v2590, 0
      %v2672 = vsel %vm674, %v2591, 0
      %v2675 = vsel %vm674, %v2592, 0
      %v2678 = vsel %vm674, %v2593, 0
      %v2681 = vsel %vm674, %v2594, 0
      %v2684 = vsel %vm674, %v2595, 0
      %v2687 = vsel %vm674, %v2596, 0
      %v2690 = vsel %vm674, %v2597, 0
      %v2693 = vsel %vm674, %v2598, 0
      %v2696 = vsel %vm674, %v2599, 0
      %v2699 = vsel %vm674, %v2600, 0
      %v2702 = vsel %vm674, %v2601, 0
      %v2705 = vsel %vm674, %v2602, 0
      %v2708 = vsel %vm674, %v2603, 0
      %v2711 = vsel %vm674, %v2604, 0
      %v2714 = vsel %vm674, %v2605, 0
      %v2717 = vsel %vm674, %v2606, 0
      %v2720 = vsel %vm674, %v2607, 0
      %v2723 = vsel %vm674, %v2608, 0
      %v2726 = vsel %vm674, %v2609, 0
      %v2729 = vsel %vm674, %v2610, 0
      %v2732 = vsel %vm674, %v2611, 0
      %v2735 = vsel %vm674, %v2612, 0
      %v2738 = vsel %vm674, %v2613, 0
      %v2741 = vsel %vm674, %v2614, 0
      %v2744 = vsel %vm674, %v2615, 0
      %v2747 = vsel %vm674, %v2616, 0
      %v2750 = vsel %vm674, %v2617, 0
      %v2753 = vsel %vm674, %v2618, 0
      %v2756 = vsel %vm674, %v2619, 0
      %v2759 = vsel %vm674, %v2620, 0
      %v2762 = vsel %vm674, %v2621, 0
      %v2765 = vsel %vm674, %v2622, 0
      %v2768 = vsel %vm674, %v2623, 0
      %v2771 = vsel %vm674, %v2624, 0
      %v2774 = vsel %vm674, %v2625, 0
      %v2777 = vsel %vm674, %v2626, 0
      %v2780 = vsel %vm674, %v2627, 0
      %v2783 = vsel %vm674, %v2628, 0
      %v2786 = vsel %vm674, %v2629, 0
      %v2789 = vsel %vm674, %v2630, 0
      %v2792 = vsel %vm674, %v2631, 0
      %v2795 = vsel %vm674, %v2632, 0
      %v2798 = vsel %vm674, %v2633, 0
      %v2801 = vsel %vm674, %v2634, 0
      %v2804 = vsel %vm674, %v2635, 0
      %v2807 = vsel %vm674, %v2636, 0
      %v2810 = vsel %vm674, %v2637, 0
      %v2813 = vsel %vm674, %v2638, 0
      %v2816 = vsel %vm674, %v2639, 0
      %v2819 = vsel %vm674, %v2640, 0
      %v2822 = vsel %vm674, %v2641, 0
      %v2825 = vsel %vm674, %v2642, 0
      %v2828 = vsel %vm674, %v2643, 0
      %v2831 = vsel %vm674, %v2644, 0
      %v2834 = vsel %vm674, %v2645, 0
      %v2837 = vsel %vm674, %v2646, 0
      %v2840 = vsel %vm674, %v2647, 0
      %2842 = vmatpush.msra.mxu0 0.0
      %2843 = vmatpush.msra.mxu0 0.0
      %2844 = vmatpush.msra.mxu0 0.0
      %2845 = vmatpush.msra.mxu0 0.0
      %2846 = vmatpush.msra.mxu0 0.0
      %2847 = vmatpush.msra.mxu0 0.0
      %2848 = vmatpush.msra.mxu0 0.0
      %2849 = vmatpush.msra.mxu0 0.0
      %2850 = vmatpush.msra.mxu0 0.0
      %2851 = vmatpush.msra.mxu0 0.0
      %2852 = vmatpush.msra.mxu0 0.0
      %2853 = vmatpush.msra.mxu0 0.0
      %2854 = vmatpush.msra.mxu0 0.0
      %2855 = vmatpush.msra.mxu0 0.0
      %2856 = vmatpush.msra.mxu0 0.0
      %2857 = vmatpush.msra.mxu0 %v2649
      %2858 = vmatmul.f32.gmra.mxu0 %v2651
      %v2859 = vpop.f32.mrf.mxu0
      %v2860 = vadd.f32 0.0, %v2859
      %2861 = vmatmul.f32.gmra.mxu0 %v2654
      %v2862 = vpop.f32.mrf.mxu0
      %v2863 = vadd.f32 0.0, %v2862
      %2864 = vmatmul.f32.gmra.mxu0 %v2657
      %v2865 = vpop.f32.mrf.mxu0
      %2866 = vmatmul.f32.gmra.mxu0 %v2660
      %v2867 = vpop.f32.mrf.mxu0
      %2868 = vmatmul.f32.gmra.mxu0 %v2663
      %v2869 = vpop.f32.mrf.mxu0
      %v2870 = vadd.f32 0.0, %v2869
      %2871 = vmatmul.f32.gmra.mxu0 %v2666
      %v2872 = vpop.f32.mrf.mxu0
      %v2873 = vadd.f32 0.0, %v2872
      %2874 = vmatmul.f32.gmra.mxu0 %v2669
      %v2875 = vpop.f32.mrf.mxu0
      %2876 = vmatmul.f32.gmra.mxu0 %v2672
      %v2877 = vpop.f32.mrf.mxu0
      %2878 = vmatmul.f32.gmra.mxu0 %v2675
      %v2879 = vpop.f32.mrf.mxu0
      %v2880 = vadd.f32 0.0, %v2879
      %2881 = vmatmul.f32.gmra.mxu0 %v2678
      %v2882 = vpop.f32.mrf.mxu0
      %v2883 = vadd.f32 0.0, %v2882
      %2884 = vmatmul.f32.gmra.mxu0 %v2681
      %v2885 = vpop.f32.mrf.mxu0
      %2886 = vmatmul.f32.gmra.mxu0 %v2684
      %v2887 = vpop.f32.mrf.mxu0
      %2888 = vmatmul.f32.gmra.mxu0 %v2687
      %v2889 = vpop.f32.mrf.mxu0
      %v2890 = vadd.f32 0.0, %v2889
      %2891 = vmatmul.f32.gmra.mxu0 %v2690
      %v2892 = vpop.f32.mrf.mxu0
      %v2893 = vadd.f32 0.0, %v2892
      %2894 = vmatmul.f32.gmra.mxu0 %v2693
      %v2895 = vpop.f32.mrf.mxu0
      %2896 = vmatmul.f32.gmra.mxu0 %v2696
      %v2897 = vpop.f32.mrf.mxu0
      %2898 = vmatmul.f32.gmra.mxu0 %v2699
      %v2899 = vpop.f32.mrf.mxu0
      %v2900 = vadd.f32 0.0, %v2899
      %2901 = vmatmul.f32.gmra.mxu0 %v2702
      %v2902 = vpop.f32.mrf.mxu0
      %v2903 = vadd.f32 0.0, %v2902
      %2904 = vmatmul.f32.gmra.mxu0 %v2705
      %v2905 = vpop.f32.mrf.mxu0
      %2906 = vmatmul.f32.gmra.mxu0 %v2708
      %v2907 = vpop.f32.mrf.mxu0
      %2908 = vmatmul.f32.gmra.mxu0 %v2711
      %v2909 = vpop.f32.mrf.mxu0
      %v2910 = vadd.f32 0.0, %v2909
      %2911 = vmatmul.f32.gmra.mxu0 %v2714
      %v2912 = vpop.f32.mrf.mxu0
      %v2913 = vadd.f32 0.0, %v2912
      %2914 = vmatmul.f32.gmra.mxu0 %v2717
      %v2915 = vpop.f32.mrf.mxu0
      %2916 = vmatmul.f32.gmra.mxu0 %v2720
      %v2917 = vpop.f32.mrf.mxu0
      %2918 = vmatmul.f32.gmra.mxu0 %v2723
      %v2919 = vpop.f32.mrf.mxu0
      %v2920 = vadd.f32 0.0, %v2919
      %2921 = vmatmul.f32.gmra.mxu0 %v2726
      %v2922 = vpop.f32.mrf.mxu0
      %v2923 = vadd.f32 0.0, %v2922
      %2924 = vmatmul.f32.gmra.mxu0 %v2729
      %v2925 = vpop.f32.mrf.mxu0
      %2926 = vmatmul.f32.gmra.mxu0 %v2732
      %v2927 = vpop.f32.mrf.mxu0
      %2928 = vmatmul.f32.gmra.mxu0 %v2735
      %v2929 = vpop.f32.mrf.mxu0
      %v2930 = vadd.f32 0.0, %v2929
      %2931 = vmatmul.f32.gmra.mxu0 %v2738
      %v2932 = vpop.f32.mrf.mxu0
      %v2933 = vadd.f32 0.0, %v2932
      %2934 = vmatmul.f32.gmra.mxu0 %v2741
      %v2935 = vpop.f32.mrf.mxu0
      %2936 = vmatmul.f32.gmra.mxu0 %v2744
      %v2937 = vpop.f32.mrf.mxu0
      %2938 = vmatmul.f32.gmra.mxu0 %v2747
      %v2939 = vpop.f32.mrf.mxu0
      %v2940 = vadd.f32 0.0, %v2939
      %2941 = vmatmul.f32.gmra.mxu0 %v2750
      %v2942 = vpop.f32.mrf.mxu0
      %v2943 = vadd.f32 0.0, %v2942
      %2944 = vmatmul.f32.gmra.mxu0 %v2753
      %v2945 = vpop.f32.mrf.mxu0
      %2946 = vmatmul.f32.gmra.mxu0 %v2756
      %v2947 = vpop.f32.mrf.mxu0
      %2948 = vmatmul.f32.gmra.mxu0 %v2759
      %v2949 = vpop.f32.mrf.mxu0
      %v2950 = vadd.f32 0.0, %v2949
      %2951 = vmatmul.f32.gmra.mxu0 %v2762
      %v2952 = vpop.f32.mrf.mxu0
      %v2953 = vadd.f32 0.0, %v2952
      %2954 = vmatmul.f32.gmra.mxu0 %v2765
      %v2955 = vpop.f32.mrf.mxu0
      %2956 = vmatmul.f32.gmra.mxu0 %v2768
      %v2957 = vpop.f32.mrf.mxu0
      %2958 = vmatmul.f32.gmra.mxu0 %v2771
      %v2959 = vpop.f32.mrf.mxu0
      %v2960 = vadd.f32 0.0, %v2959
      %2961 = vmatmul.f32.gmra.mxu0 %v2774
      %v2962 = vpop.f32.mrf.mxu0
      %v2963 = vadd.f32 0.0, %v2962
      %2964 = vmatmul.f32.gmra.mxu0 %v2777
      %v2965 = vpop.f32.mrf.mxu0
      %2966 = vmatmul.f32.gmra.mxu0 %v2780
      %v2967 = vpop.f32.mrf.mxu0
      %2968 = vmatmul.f32.gmra.mxu0 %v2783
      %v2969 = vpop.f32.mrf.mxu0
      %v2970 = vadd.f32 0.0, %v2969
      %2971 = vmatmul.f32.gmra.mxu0 %v2786
      %v2972 = vpop.f32.mrf.mxu0
      %v2973 = vadd.f32 0.0, %v2972
      %2974 = vmatmul.f32.gmra.mxu0 %v2789
      %v2975 = vpop.f32.mrf.mxu0
      %2976 = vmatmul.f32.gmra.mxu0 %v2792
      %v2977 = vpop.f32.mrf.mxu0
      %2978 = vmatmul.f32.gmra.mxu0 %v2795
      %v2979 = vpop.f32.mrf.mxu0
      %v2980 = vadd.f32 0.0, %v2979
      %2981 = vmatmul.f32.gmra.mxu0 %v2798
      %v2982 = vpop.f32.mrf.mxu0
      %v2983 = vadd.f32 0.0, %v2982
      %2984 = vmatmul.f32.gmra.mxu0 %v2801
      %v2985 = vpop.f32.mrf.mxu0
      %2986 = vmatmul.f32.gmra.mxu0 %v2804
      %v2987 = vpop.f32.mrf.mxu0
      %2988 = vmatmul.f32.gmra.mxu0 %v2807
      %v2989 = vpop.f32.mrf.mxu0
      %v2990 = vadd.f32 0.0, %v2989
      %2991 = vmatmul.f32.gmra.mxu0 %v2810
      %v2992 = vpop.f32.mrf.mxu0
      %v2993 = vadd.f32 0.0, %v2992
      %2994 = vmatmul.f32.gmra.mxu0 %v2813
      %v2995 = vpop.f32.mrf.mxu0
      %2996 = vmatmul.f32.gmra.mxu0 %v2816
      %v2997 = vpop.f32.mrf.mxu0
      %2998 = vmatmul.f32.gmra.mxu0 %v2819
      %v2999 = vpop.f32.mrf.mxu0
      %v3000 = vadd.f32 0.0, %v2999
      %3001 = vmatmul.f32.gmra.mxu0 %v2822
      %v3002 = vpop.f32.mrf.mxu0
      %v3003 = vadd.f32 0.0, %v3002
      %3004 = vmatmul.f32.gmra.mxu0 %v2825
      %v3005 = vpop.f32.mrf.mxu0
      %3006 = vmatmul.f32.gmra.mxu0 %v2828
      %v3007 = vpop.f32.mrf.mxu0
      %3008 = vmatmul.f32.gmra.mxu0 %v2831
      %v3009 = vpop.f32.mrf.mxu0
      %v3010 = vadd.f32 0.0, %v3009
      %3011 = vmatmul.f32.gmra.mxu0 %v2834
      %v3012 = vpop.f32.mrf.mxu0
      %v3013 = vadd.f32 0.0, %v3012
      %3014 = vmatmul.f32.gmra.mxu0 %v2837
      %v3015 = vpop.f32.mrf.mxu0
      %3016 = vmatmul.f32.gmra.mxu0 %v2840
      %v3017 = vpop.f32.mrf.mxu0
      %3018 = vdwg.mxu0
      %v3019 = vadd.f32 %v2552, %v2860
      %v3020 = vadd.f32 %v2553, %v2863
      %v3021 = vadd.f32 %v2554, %v2870
      %v3022 = vadd.f32 %v2555, %v2873
      %v3023 = vadd.f32 %v2556, %v2880
      %v3024 = vadd.f32 %v2557, %v2883
      %v3025 = vadd.f32 %v2558, %v2890
      %v3026 = vadd.f32 %v2559, %v2893
      %v3027 = vadd.f32 %v2560, %v2900
      %v3028 = vadd.f32 %v2561, %v2903
      %v3029 = vadd.f32 %v2562, %v2910
      %v3030 = vadd.f32 %v2563, %v2913
      %v3031 = vadd.f32 %v2564, %v2920
      %v3032 = vadd.f32 %v2565, %v2923
      %v3033 = vadd.f32 %v2566, %v2930
      %v3034 = vadd.f32 %v2567, %v2933
      %v3035 = vadd.f32 %v2568, %v2940
      %v3036 = vadd.f32 %v2569, %v2943
      %v3037 = vadd.f32 %v2570, %v2950
      %v3038 = vadd.f32 %v2571, %v2953
      %v3039 = vadd.f32 %v2572, %v2960
      %v3040 = vadd.f32 %v2573, %v2963
      %v3041 = vadd.f32 %v2574, %v2970
      %v3042 = vadd.f32 %v2575, %v2973
      %v3043 = vadd.f32 %v2576, %v2980
      %v3044 = vadd.f32 %v2577, %v2983
      %v3045 = vadd.f32 %v2578, %v2990
      %v3046 = vadd.f32 %v2579, %v2993
      %v3047 = vadd.f32 %v2580, %v3000
      %v3048 = vadd.f32 %v2581, %v3003
      %v3049 = vadd.f32 %v2582, %v3010
      %v3050 = vadd.f32 %v2583, %v3013
      %v3051 = vld [vmem:[#allocation2 + $0x29] sm:$0xff]
      %v3052 = vld [vmem:[#allocation2 + $0x31] sm:$0xff]
      %v3053 = vld [vmem:[#allocation2 + $0x39] sm:$0xff]
      %v3054 = vld [vmem:[#allocation2 + $0x41] sm:$0xff]
      %v3055 = vld [vmem:[#allocation2 + $0x49] sm:$0xff]
      %v3056 = vld [vmem:[#allocation2 + $0x51] sm:$0xff]
      %v3057 = vld [vmem:[#allocation2 + $0x59] sm:$0xff]
      %v3058 = vld [vmem:[#allocation2 + $0x61] sm:$0xff]
      %v3059 = vld [vmem:[#allocation2 + $0x69] sm:$0xff]
      %v3060 = vld [vmem:[#allocation2 + $0x71] sm:$0xff]
      %v3061 = vld [vmem:[#allocation2 + $0x79] sm:$0xff]
      %v3062 = vld [vmem:[#allocation2 + $0x81] sm:$0xff]
      %v3063 = vld [vmem:[#allocation2 + $0x89] sm:$0xff]
      %v3064 = vld [vmem:[#allocation2 + $0x91] sm:$0xff]
      %v3065 = vld [vmem:[#allocation2 + $0x99] sm:$0xff]
      %v3066 = vld [vmem:[#allocation2 + $0xa1] sm:$0xff]
      %v3067 = vld [vmem:[#allocation2 + $0xa9] sm:$0xff]
      %v3068 = vld [vmem:[#allocation2 + $0xb1] sm:$0xff]
      %v3069 = vld [vmem:[#allocation2 + $0xb9] sm:$0xff]
      %v3070 = vld [vmem:[#allocation2 + $0xc1] sm:$0xff]
      %v3071 = vld [vmem:[#allocation2 + $0xc9] sm:$0xff]
      %v3072 = vld [vmem:[#allocation2 + $0xd1] sm:$0xff]
      %v3073 = vld [vmem:[#allocation2 + $0xd9] sm:$0xff]
      %v3074 = vld [vmem:[#allocation2 + $0xe1] sm:$0xff]
      %v3075 = vld [vmem:[#allocation2 + $0xe9] sm:$0xff]
      %v3076 = vld [vmem:[#allocation2 + $0xf1] sm:$0xff]
      %v3077 = vld [vmem:[#allocation2 + $0xf9] sm:$0xff]
      %v3078 = vld [vmem:[#allocation2 + $0x101] sm:$0xff]
      %v3079 = vld [vmem:[#allocation2 + $0x109] sm:$0xff]
      %v3080 = vld [vmem:[#allocation2 + $0x111] sm:$0xff]
      %v3081 = vld [vmem:[#allocation2 + $0x119] sm:$0xff]
      %v3082 = vld [vmem:[#allocation2 + $0x121] sm:$0xff]
      %v3083 = vld [vmem:[#allocation2 + $0x129] sm:$0xff]
      %v3084 = vld [vmem:[#allocation2 + $0x131] sm:$0xff]
      %v3085 = vld [vmem:[#allocation2 + $0x139] sm:$0xff]
      %v3086 = vld [vmem:[#allocation2 + $0x141] sm:$0xff]
      %v3087 = vld [vmem:[#allocation2 + $0x149] sm:$0xff]
      %v3088 = vld [vmem:[#allocation2 + $0x151] sm:$0xff]
      %v3089 = vld [vmem:[#allocation2 + $0x159] sm:$0xff]
      %v3090 = vld [vmem:[#allocation2 + $0x161] sm:$0xff]
      %v3091 = vld [vmem:[#allocation2 + $0x169] sm:$0xff]
      %v3092 = vld [vmem:[#allocation2 + $0x171] sm:$0xff]
      %v3093 = vld [vmem:[#allocation2 + $0x179] sm:$0xff]
      %v3094 = vld [vmem:[#allocation2 + $0x181] sm:$0xff]
      %v3095 = vld [vmem:[#allocation2 + $0x189] sm:$0xff]
      %v3096 = vld [vmem:[#allocation2 + $0x191] sm:$0xff]
      %v3097 = vld [vmem:[#allocation2 + $0x199] sm:$0xff]
      %v3098 = vld [vmem:[#allocation2 + $0x1a1] sm:$0xff]
      %v3099 = vld [vmem:[#allocation2 + $0x1a9] sm:$0xff]
      %v3100 = vld [vmem:[#allocation2 + $0x1b1] sm:$0xff]
      %v3101 = vld [vmem:[#allocation2 + $0x1b9] sm:$0xff]
      %v3102 = vld [vmem:[#allocation2 + $0x1c1] sm:$0xff]
      %v3103 = vld [vmem:[#allocation2 + $0x1c9] sm:$0xff]
      %v3104 = vld [vmem:[#allocation2 + $0x1d1] sm:$0xff]
      %v3105 = vld [vmem:[#allocation2 + $0x1d9] sm:$0xff]
      %v3106 = vld [vmem:[#allocation2 + $0x1e1] sm:$0xff]
      %v3107 = vld [vmem:[#allocation2 + $0x1e9] sm:$0xff]
      %v3108 = vld [vmem:[#allocation2 + $0x1f1] sm:$0xff]
      %v3109 = vld [vmem:[#allocation2 + $0x1f9] sm:$0xff]
      %v3110 = vld [vmem:[#allocation2 + $0x201] sm:$0xff]
      %v3111 = vld [vmem:[#allocation2 + $0x209] sm:$0xff]
      %v3112 = vld [vmem:[#allocation2 + $0x211] sm:$0xff]
      %v3113 = vld [vmem:[#allocation2 + $0x219] sm:$0xff]
      %v3114 = vld [vmem:[#allocation2 + $0x221] sm:$0xff]
      %s3115 = scalar_lea.vmem %s4, 40
      %v3116 = vld [vmem:[%s3115] sm:$0xff]
      %v3118 = vsel %vm674, %v3051, 0
      %v3121 = vsel %vm674, %v3052, 0
      %v3124 = vsel %vm674, %v3053, 0
      %v3127 = vsel %vm674, %v3054, 0
      %v3130 = vsel %vm674, %v3055, 0
      %v3133 = vsel %vm674, %v3056, 0
      %v3136 = vsel %vm674, %v3057, 0
      %v3139 = vsel %vm674, %v3058, 0
      %v3142 = vsel %vm674, %v3059, 0
      %v3145 = vsel %vm674, %v3060, 0
      %v3148 = vsel %vm674, %v3061, 0
      %v3151 = vsel %vm674, %v3062, 0
      %v3154 = vsel %vm674, %v3063, 0
      %v3157 = vsel %vm674, %v3064, 0
      %v3160 = vsel %vm674, %v3065, 0
      %v3163 = vsel %vm674, %v3066, 0
      %v3166 = vsel %vm674, %v3067, 0
      %v3169 = vsel %vm674, %v3068, 0
      %v3172 = vsel %vm674, %v3069, 0
      %v3175 = vsel %vm674, %v3070, 0
      %v3178 = vsel %vm674, %v3071, 0
      %v3181 = vsel %vm674, %v3072, 0
      %v3184 = vsel %vm674, %v3073, 0
      %v3187 = vsel %vm674, %v3074, 0
      %v3190 = vsel %vm674, %v3075, 0
      %v3193 = vsel %vm674, %v3076, 0
      %v3196 = vsel %vm674, %v3077, 0
      %v3199 = vsel %vm674, %v3078, 0
      %v3202 = vsel %vm674, %v3079, 0
      %v3205 = vsel %vm674, %v3080, 0
      %v3208 = vsel %vm674, %v3081, 0
      %v3211 = vsel %vm674, %v3082, 0
      %v3214 = vsel %vm674, %v3083, 0
      %v3217 = vsel %vm674, %v3084, 0
      %v3220 = vsel %vm674, %v3085, 0
      %v3223 = vsel %vm674, %v3086, 0
      %v3226 = vsel %vm674, %v3087, 0
      %v3229 = vsel %vm674, %v3088, 0
      %v3232 = vsel %vm674, %v3089, 0
      %v3235 = vsel %vm674, %v3090, 0
      %v3238 = vsel %vm674, %v3091, 0
      %v3241 = vsel %vm674, %v3092, 0
      %v3244 = vsel %vm674, %v3093, 0
      %v3247 = vsel %vm674, %v3094, 0
      %v3250 = vsel %vm674, %v3095, 0
      %v3253 = vsel %vm674, %v3096, 0
      %v3256 = vsel %vm674, %v3097, 0
      %v3259 = vsel %vm674, %v3098, 0
      %v3262 = vsel %vm674, %v3099, 0
      %v3265 = vsel %vm674, %v3100, 0
      %v3268 = vsel %vm674, %v3101, 0
      %v3271 = vsel %vm674, %v3102, 0
      %v3274 = vsel %vm674, %v3103, 0
      %v3277 = vsel %vm674, %v3104, 0
      %v3280 = vsel %vm674, %v3105, 0
      %v3283 = vsel %vm674, %v3106, 0
      %v3286 = vsel %vm674, %v3107, 0
      %v3289 = vsel %vm674, %v3108, 0
      %v3292 = vsel %vm674, %v3109, 0
      %v3295 = vsel %vm674, %v3110, 0
      %v3298 = vsel %vm674, %v3111, 0
      %v3301 = vsel %vm674, %v3112, 0
      %v3304 = vsel %vm674, %v3113, 0
      %v3307 = vsel %vm674, %v3114, 0
      %3309 = vmatpush.msra.mxu0 0.0
      %3310 = vmatpush.msra.mxu0 0.0
      %3311 = vmatpush.msra.mxu0 0.0
      %3312 = vmatpush.msra.mxu0 0.0
      %3313 = vmatpush.msra.mxu0 0.0
      %3314 = vmatpush.msra.mxu0 0.0
      %3315 = vmatpush.msra.mxu0 0.0
      %3316 = vmatpush.msra.mxu0 0.0
      %3317 = vmatpush.msra.mxu0 0.0
      %3318 = vmatpush.msra.mxu0 0.0
      %3319 = vmatpush.msra.mxu0 0.0
      %3320 = vmatpush.msra.mxu0 0.0
      %3321 = vmatpush.msra.mxu0 0.0
      %3322 = vmatpush.msra.mxu0 0.0
      %3323 = vmatpush.msra.mxu0 0.0
      %3324 = vmatpush.msra.mxu0 %v3116
      %3325 = vmatmul.f32.gmra.mxu0 %v3118
      %v3326 = vpop.f32.mrf.mxu0
      %v3327 = vadd.f32 0.0, %v3326
      %3328 = vmatmul.f32.gmra.mxu0 %v3121
      %v3329 = vpop.f32.mrf.mxu0
      %v3330 = vadd.f32 0.0, %v3329
      %3331 = vmatmul.f32.gmra.mxu0 %v3124
      %v3332 = vpop.f32.mrf.mxu0
      %3333 = vmatmul.f32.gmra.mxu0 %v3127
      %v3334 = vpop.f32.mrf.mxu0
      %3335 = vmatmul.f32.gmra.mxu0 %v3130
      %v3336 = vpop.f32.mrf.mxu0
      %v3337 = vadd.f32 0.0, %v3336
      %3338 = vmatmul.f32.gmra.mxu0 %v3133
      %v3339 = vpop.f32.mrf.mxu0
      %v3340 = vadd.f32 0.0, %v3339
      %3341 = vmatmul.f32.gmra.mxu0 %v3136
      %v3342 = vpop.f32.mrf.mxu0
      %3343 = vmatmul.f32.gmra.mxu0 %v3139
      %v3344 = vpop.f32.mrf.mxu0
      %3345 = vmatmul.f32.gmra.mxu0 %v3142
      %v3346 = vpop.f32.mrf.mxu0
      %v3347 = vadd.f32 0.0, %v3346
      %3348 = vmatmul.f32.gmra.mxu0 %v3145
      %v3349 = vpop.f32.mrf.mxu0
      %v3350 = vadd.f32 0.0, %v3349
      %3351 = vmatmul.f32.gmra.mxu0 %v3148
      %v3352 = vpop.f32.mrf.mxu0
      %3353 = vmatmul.f32.gmra.mxu0 %v3151
      %v3354 = vpop.f32.mrf.mxu0
      %3355 = vmatmul.f32.gmra.mxu0 %v3154
      %v3356 = vpop.f32.mrf.mxu0
      %v3357 = vadd.f32 0.0, %v3356
      %3358 = vmatmul.f32.gmra.mxu0 %v3157
      %v3359 = vpop.f32.mrf.mxu0
      %v3360 = vadd.f32 0.0, %v3359
      %3361 = vmatmul.f32.gmra.mxu0 %v3160
      %v3362 = vpop.f32.mrf.mxu0
      %3363 = vmatmul.f32.gmra.mxu0 %v3163
      %v3364 = vpop.f32.mrf.mxu0
      %3365 = vmatmul.f32.gmra.mxu0 %v3166
      %v3366 = vpop.f32.mrf.mxu0
      %v3367 = vadd.f32 0.0, %v3366
      %3368 = vmatmul.f32.gmra.mxu0 %v3169
      %v3369 = vpop.f32.mrf.mxu0
      %v3370 = vadd.f32 0.0, %v3369
      %3371 = vmatmul.f32.gmra.mxu0 %v3172
      %v3372 = vpop.f32.mrf.mxu0
      %3373 = vmatmul.f32.gmra.mxu0 %v3175
      %v3374 = vpop.f32.mrf.mxu0
      %3375 = vmatmul.f32.gmra.mxu0 %v3178
      %v3376 = vpop.f32.mrf.mxu0
      %v3377 = vadd.f32 0.0, %v3376
      %3378 = vmatmul.f32.gmra.mxu0 %v3181
      %v3379 = vpop.f32.mrf.mxu0
      %v3380 = vadd.f32 0.0, %v3379
      %3381 = vmatmul.f32.gmra.mxu0 %v3184
      %v3382 = vpop.f32.mrf.mxu0
      %3383 = vmatmul.f32.gmra.mxu0 %v3187
      %v3384 = vpop.f32.mrf.mxu0
      %3385 = vmatmul.f32.gmra.mxu0 %v3190
      %v3386 = vpop.f32.mrf.mxu0
      %v3387 = vadd.f32 0.0, %v3386
      %3388 = vmatmul.f32.gmra.mxu0 %v3193
      %v3389 = vpop.f32.mrf.mxu0
      %v3390 = vadd.f32 0.0, %v3389
      %3391 = vmatmul.f32.gmra.mxu0 %v3196
      %v3392 = vpop.f32.mrf.mxu0
      %3393 = vmatmul.f32.gmra.mxu0 %v3199
      %v3394 = vpop.f32.mrf.mxu0
      %3395 = vmatmul.f32.gmra.mxu0 %v3202
      %v3396 = vpop.f32.mrf.mxu0
      %v3397 = vadd.f32 0.0, %v3396
      %3398 = vmatmul.f32.gmra.mxu0 %v3205
      %v3399 = vpop.f32.mrf.mxu0
      %v3400 = vadd.f32 0.0, %v3399
      %3401 = vmatmul.f32.gmra.mxu0 %v3208
      %v3402 = vpop.f32.mrf.mxu0
      %3403 = vmatmul.f32.gmra.mxu0 %v3211
      %v3404 = vpop.f32.mrf.mxu0
      %3405 = vmatmul.f32.gmra.mxu0 %v3214
      %v3406 = vpop.f32.mrf.mxu0
      %v3407 = vadd.f32 0.0, %v3406
      %3408 = vmatmul.f32.gmra.mxu0 %v3217
      %v3409 = vpop.f32.mrf.mxu0
      %v3410 = vadd.f32 0.0, %v3409
      %3411 = vmatmul.f32.gmra.mxu0 %v3220
      %v3412 = vpop.f32.mrf.mxu0
      %3413 = vmatmul.f32.gmra.mxu0 %v3223
      %v3414 = vpop.f32.mrf.mxu0
      %3415 = vmatmul.f32.gmra.mxu0 %v3226
      %v3416 = vpop.f32.mrf.mxu0
      %v3417 = vadd.f32 0.0, %v3416
      %3418 = vmatmul.f32.gmra.mxu0 %v3229
      %v3419 = vpop.f32.mrf.mxu0
      %v3420 = vadd.f32 0.0, %v3419
      %3421 = vmatmul.f32.gmra.mxu0 %v3232
      %v3422 = vpop.f32.mrf.mxu0
      %3423 = vmatmul.f32.gmra.mxu0 %v3235
      %v3424 = vpop.f32.mrf.mxu0
      %3425 = vmatmul.f32.gmra.mxu0 %v3238
      %v3426 = vpop.f32.mrf.mxu0
      %v3427 = vadd.f32 0.0, %v3426
      %3428 = vmatmul.f32.gmra.mxu0 %v3241
      %v3429 = vpop.f32.mrf.mxu0
      %v3430 = vadd.f32 0.0, %v3429
      %3431 = vmatmul.f32.gmra.mxu0 %v3244
      %v3432 = vpop.f32.mrf.mxu0
      %3433 = vmatmul.f32.gmra.mxu0 %v3247
      %v3434 = vpop.f32.mrf.mxu0
      %3435 = vmatmul.f32.gmra.mxu0 %v3250
      %v3436 = vpop.f32.mrf.mxu0
      %v3437 = vadd.f32 0.0, %v3436
      %3438 = vmatmul.f32.gmra.mxu0 %v3253
      %v3439 = vpop.f32.mrf.mxu0
      %v3440 = vadd.f32 0.0, %v3439
      %3441 = vmatmul.f32.gmra.mxu0 %v3256
      %v3442 = vpop.f32.mrf.mxu0
      %3443 = vmatmul.f32.gmra.mxu0 %v3259
      %v3444 = vpop.f32.mrf.mxu0
      %3445 = vmatmul.f32.gmra.mxu0 %v3262
      %v3446 = vpop.f32.mrf.mxu0
      %v3447 = vadd.f32 0.0, %v3446
      %3448 = vmatmul.f32.gmra.mxu0 %v3265
      %v3449 = vpop.f32.mrf.mxu0
      %v3450 = vadd.f32 0.0, %v3449
      %3451 = vmatmul.f32.gmra.mxu0 %v3268
      %v3452 = vpop.f32.mrf.mxu0
      %3453 = vmatmul.f32.gmra.mxu0 %v3271
      %v3454 = vpop.f32.mrf.mxu0
      %3455 = vmatmul.f32.gmra.mxu0 %v3274
      %v3456 = vpop.f32.mrf.mxu0
      %v3457 = vadd.f32 0.0, %v3456
      %3458 = vmatmul.f32.gmra.mxu0 %v3277
      %v3459 = vpop.f32.mrf.mxu0
      %v3460 = vadd.f32 0.0, %v3459
      %3461 = vmatmul.f32.gmra.mxu0 %v3280
      %v3462 = vpop.f32.mrf.mxu0
      %3463 = vmatmul.f32.gmra.mxu0 %v3283
      %v3464 = vpop.f32.mrf.mxu0
      %3465 = vmatmul.f32.gmra.mxu0 %v3286
      %v3466 = vpop.f32.mrf.mxu0
      %v3467 = vadd.f32 0.0, %v3466
      %3468 = vmatmul.f32.gmra.mxu0 %v3289
      %v3469 = vpop.f32.mrf.mxu0
      %v3470 = vadd.f32 0.0, %v3469
      %3471 = vmatmul.f32.gmra.mxu0 %v3292
      %v3472 = vpop.f32.mrf.mxu0
      %3473 = vmatmul.f32.gmra.mxu0 %v3295
      %v3474 = vpop.f32.mrf.mxu0
      %3475 = vmatmul.f32.gmra.mxu0 %v3298
      %v3476 = vpop.f32.mrf.mxu0
      %v3477 = vadd.f32 0.0, %v3476
      %3478 = vmatmul.f32.gmra.mxu0 %v3301
      %v3479 = vpop.f32.mrf.mxu0
      %v3480 = vadd.f32 0.0, %v3479
      %3481 = vmatmul.f32.gmra.mxu0 %v3304
      %v3482 = vpop.f32.mrf.mxu0
      %3483 = vmatmul.f32.gmra.mxu0 %v3307
      %v3484 = vpop.f32.mrf.mxu0
      %3485 = vdwg.mxu0
      %v3486 = vadd.f32 %v3019, %v3327
      %v3487 = vadd.f32 %v3020, %v3330
      %v3488 = vadd.f32 %v3021, %v3337
      %v3489 = vadd.f32 %v3022, %v3340
      %v3490 = vadd.f32 %v3023, %v3347
      %v3491 = vadd.f32 %v3024, %v3350
      %v3492 = vadd.f32 %v3025, %v3357
      %v3493 = vadd.f32 %v3026, %v3360
      %v3494 = vadd.f32 %v3027, %v3367
      %v3495 = vadd.f32 %v3028, %v3370
      %v3496 = vadd.f32 %v3029, %v3377
      %v3497 = vadd.f32 %v3030, %v3380
      %v3498 = vadd.f32 %v3031, %v3387
      %v3499 = vadd.f32 %v3032, %v3390
      %v3500 = vadd.f32 %v3033, %v3397
      %v3501 = vadd.f32 %v3034, %v3400
      %v3502 = vadd.f32 %v3035, %v3407
      %v3503 = vadd.f32 %v3036, %v3410
      %v3504 = vadd.f32 %v3037, %v3417
      %v3505 = vadd.f32 %v3038, %v3420
      %v3506 = vadd.f32 %v3039, %v3427
      %v3507 = vadd.f32 %v3040, %v3430
      %v3508 = vadd.f32 %v3041, %v3437
      %v3509 = vadd.f32 %v3042, %v3440
      %v3510 = vadd.f32 %v3043, %v3447
      %v3511 = vadd.f32 %v3044, %v3450
      %v3512 = vadd.f32 %v3045, %v3457
      %v3513 = vadd.f32 %v3046, %v3460
      %v3514 = vadd.f32 %v3047, %v3467
      %v3515 = vadd.f32 %v3048, %v3470
      %v3516 = vadd.f32 %v3049, %v3477
      %v3517 = vadd.f32 %v3050, %v3480
      %v3518 = vld [vmem:[#allocation2 + $0x47] sm:$0xff]
      %v3519 = vld [vmem:[#allocation2 + $0x4f] sm:$0xff]
      %v3520 = vld [vmem:[#allocation2 + $0x57] sm:$0xff]
      %v3521 = vld [vmem:[#allocation2 + $0x5f] sm:$0xff]
      %v3522 = vld [vmem:[#allocation2 + $0x67] sm:$0xff]
      %v3523 = vld [vmem:[#allocation2 + $0x6f] sm:$0xff]
      %v3524 = vld [vmem:[#allocation2 + $0x77] sm:$0xff]
      %v3525 = vld [vmem:[#allocation2 + $0x7f] sm:$0xff]
      %v3526 = vld [vmem:[#allocation2 + $0x87] sm:$0xff]
      %v3527 = vld [vmem:[#allocation2 + $0x8f] sm:$0xff]
      %v3528 = vld [vmem:[#allocation2 + $0x97] sm:$0xff]
      %v3529 = vld [vmem:[#allocation2 + $0x9f] sm:$0xff]
      %v3530 = vld [vmem:[#allocation2 + $0xa7] sm:$0xff]
      %v3531 = vld [vmem:[#allocation2 + $0xaf] sm:$0xff]
      %v3532 = vld [vmem:[#allocation2 + $0xb7] sm:$0xff]
      %v3533 = vld [vmem:[#allocation2 + $0xbf] sm:$0xff]
      %v3534 = vld [vmem:[#allocation2 + $0xc7] sm:$0xff]
      %v3535 = vld [vmem:[#allocation2 + $0xcf] sm:$0xff]
      %v3536 = vld [vmem:[#allocation2 + $0xd7] sm:$0xff]
      %v3537 = vld [vmem:[#allocation2 + $0xdf] sm:$0xff]
      %v3538 = vld [vmem:[#allocation2 + $0xe7] sm:$0xff]
      %v3539 = vld [vmem:[#allocation2 + $0xef] sm:$0xff]
      %v3540 = vld [vmem:[#allocation2 + $0xf7] sm:$0xff]
      %v3541 = vld [vmem:[#allocation2 + $0xff] sm:$0xff]
      %v3542 = vld [vmem:[#allocation2 + $0x107] sm:$0xff]
      %v3543 = vld [vmem:[#allocation2 + $0x10f] sm:$0xff]
      %v3544 = vld [vmem:[#allocation2 + $0x117] sm:$0xff]
      %v3545 = vld [vmem:[#allocation2 + $0x11f] sm:$0xff]
      %v3546 = vld [vmem:[#allocation2 + $0x127] sm:$0xff]
      %v3547 = vld [vmem:[#allocation2 + $0x12f] sm:$0xff]
      %v3548 = vld [vmem:[#allocation2 + $0x137] sm:$0xff]
      %v3549 = vld [vmem:[#allocation2 + $0x13f] sm:$0xff]
      %v3550 = vld [vmem:[#allocation2 + $0x147] sm:$0xff]
      %v3551 = vld [vmem:[#allocation2 + $0x14f] sm:$0xff]
      %v3552 = vld [vmem:[#allocation2 + $0x157] sm:$0xff]
      %v3553 = vld [vmem:[#allocation2 + $0x15f] sm:$0xff]
      %v3554 = vld [vmem:[#allocation2 + $0x167] sm:$0xff]
      %v3555 = vld [vmem:[#allocation2 + $0x16f] sm:$0xff]
      %v3556 = vld [vmem:[#allocation2 + $0x177] sm:$0xff]
      %v3557 = vld [vmem:[#allocation2 + $0x17f] sm:$0xff]
      %v3558 = vld [vmem:[#allocation2 + $0x187] sm:$0xff]
      %v3559 = vld [vmem:[#allocation2 + $0x18f] sm:$0xff]
      %v3560 = vld [vmem:[#allocation2 + $0x197] sm:$0xff]
      %v3561 = vld [vmem:[#allocation2 + $0x19f] sm:$0xff]
      %v3562 = vld [vmem:[#allocation2 + $0x1a7] sm:$0xff]
      %v3563 = vld [vmem:[#allocation2 + $0x1af] sm:$0xff]
      %v3564 = vld [vmem:[#allocation2 + $0x1b7] sm:$0xff]
      %v3565 = vld [vmem:[#allocation2 + $0x1bf] sm:$0xff]
      %v3566 = vld [vmem:[#allocation2 + $0x1c7] sm:$0xff]
      %v3567 = vld [vmem:[#allocation2 + $0x1cf] sm:$0xff]
      %v3568 = vld [vmem:[#allocation2 + $0x1d7] sm:$0xff]
      %v3569 = vld [vmem:[#allocation2 + $0x1df] sm:$0xff]
      %v3570 = vld [vmem:[#allocation2 + $0x1e7] sm:$0xff]
      %v3571 = vld [vmem:[#allocation2 + $0x1ef] sm:$0xff]
      %v3572 = vld [vmem:[#allocation2 + $0x1f7] sm:$0xff]
      %v3573 = vld [vmem:[#allocation2 + $0x1ff] sm:$0xff]
      %v3574 = vld [vmem:[#allocation2 + $0x207] sm:$0xff]
      %v3575 = vld [vmem:[#allocation2 + $0x20f] sm:$0xff]
      %v3576 = vld [vmem:[#allocation2 + $0x217] sm:$0xff]
      %v3577 = vld [vmem:[#allocation2 + $0x21f] sm:$0xff]
      %v3578 = vld [vmem:[#allocation2 + $0x227] sm:$0xff]
      %v3579 = vld [vmem:[#allocation2 + $0x22f] sm:$0xff]
      %v3580 = vld [vmem:[#allocation2 + $0x237] sm:$0xff]
      %v3581 = vld [vmem:[#allocation2 + $0x23f] sm:$0xff]
      %s3582 = scalar_lea.vmem %s4, 48
      %v3583 = vld [vmem:[%s3582] sm:$0xff]
      %v3585 = vsel %vm674, %v3518, 0
      %v3588 = vsel %vm674, %v3519, 0
      %v3591 = vsel %vm674, %v3520, 0
      %v3594 = vsel %vm674, %v3521, 0
      %v3597 = vsel %vm674, %v3522, 0
      %v3600 = vsel %vm674, %v3523, 0
      %v3603 = vsel %vm674, %v3524, 0
      %v3606 = vsel %vm674, %v3525, 0
      %v3609 = vsel %vm674, %v3526, 0
      %v3612 = vsel %vm674, %v3527, 0
      %v3615 = vsel %vm674, %v3528, 0
      %v3618 = vsel %vm674, %v3529, 0
      %v3621 = vsel %vm674, %v3530, 0
      %v3624 = vsel %vm674, %v3531, 0
      %v3627 = vsel %vm674, %v3532, 0
      %v3630 = vsel %vm674, %v3533, 0
      %v3633 = vsel %vm674, %v3534, 0
      %v3636 = vsel %vm674, %v3535, 0
      %v3639 = vsel %vm674, %v3536, 0
      %v3642 = vsel %vm674, %v3537, 0
      %v3645 = vsel %vm674, %v3538, 0
      %v3648 = vsel %vm674, %v3539, 0
      %v3651 = vsel %vm674, %v3540, 0
      %v3654 = vsel %vm674, %v3541, 0
      %v3657 = vsel %vm674, %v3542, 0
      %v3660 = vsel %vm674, %v3543, 0
      %v3663 = vsel %vm674, %v3544, 0
      %v3666 = vsel %vm674, %v3545, 0
      %v3669 = vsel %vm674, %v3546, 0
      %v3672 = vsel %vm674, %v3547, 0
      %v3675 = vsel %vm674, %v3548, 0
      %v3678 = vsel %vm674, %v3549, 0
      %v3681 = vsel %vm674, %v3550, 0
      %v3684 = vsel %vm674, %v3551, 0
      %v3687 = vsel %vm674, %v3552, 0
      %v3690 = vsel %vm674, %v3553, 0
      %v3693 = vsel %vm674, %v3554, 0
      %v3696 = vsel %vm674, %v3555, 0
      %v3699 = vsel %vm674, %v3556, 0
      %v3702 = vsel %vm674, %v3557, 0
      %v3705 = vsel %vm674, %v3558, 0
      %v3708 = vsel %vm674, %v3559, 0
      %v3711 = vsel %vm674, %v3560, 0
      %v3714 = vsel %vm674, %v3561, 0
      %v3717 = vsel %vm674, %v3562, 0
      %v3720 = vsel %vm674, %v3563, 0
      %v3723 = vsel %vm674, %v3564, 0
      %v3726 = vsel %vm674, %v3565, 0
      %v3729 = vsel %vm674, %v3566, 0
      %v3732 = vsel %vm674, %v3567, 0
      %v3735 = vsel %vm674, %v3568, 0
      %v3738 = vsel %vm674, %v3569, 0
      %v3741 = vsel %vm674, %v3570, 0
      %v3744 = vsel %vm674, %v3571, 0
      %v3747 = vsel %vm674, %v3572, 0
      %v3750 = vsel %vm674, %v3573, 0
      %v3753 = vsel %vm674, %v3574, 0
      %v3756 = vsel %vm674, %v3575, 0
      %v3759 = vsel %vm674, %v3576, 0
      %v3762 = vsel %vm674, %v3577, 0
      %v3765 = vsel %vm674, %v3578, 0
      %v3768 = vsel %vm674, %v3579, 0
      %v3771 = vsel %vm674, %v3580, 0
      %v3774 = vsel %vm674, %v3581, 0
      %3776 = vmatpush.msra.mxu0 0.0
      %3777 = vmatpush.msra.mxu0 0.0
      %3778 = vmatpush.msra.mxu0 0.0
      %3779 = vmatpush.msra.mxu0 0.0
      %3780 = vmatpush.msra.mxu0 0.0
      %3781 = vmatpush.msra.mxu0 0.0
      %3782 = vmatpush.msra.mxu0 0.0
      %3783 = vmatpush.msra.mxu0 0.0
      %3784 = vmatpush.msra.mxu0 0.0
      %3785 = vmatpush.msra.mxu0 0.0
      %3786 = vmatpush.msra.mxu0 0.0
      %3787 = vmatpush.msra.mxu0 0.0
      %3788 = vmatpush.msra.mxu0 0.0
      %3789 = vmatpush.msra.mxu0 0.0
      %3790 = vmatpush.msra.mxu0 0.0
      %3791 = vmatpush.msra.mxu0 %v3583
      %3792 = vmatmul.f32.gmra.mxu0 %v3585
      %v3793 = vpop.f32.mrf.mxu0
      %v3794 = vadd.f32 0.0, %v3793
      %3795 = vmatmul.f32.gmra.mxu0 %v3588
      %v3796 = vpop.f32.mrf.mxu0
      %v3797 = vadd.f32 0.0, %v3796
      %3798 = vmatmul.f32.gmra.mxu0 %v3591
      %v3799 = vpop.f32.mrf.mxu0
      %3800 = vmatmul.f32.gmra.mxu0 %v3594
      %v3801 = vpop.f32.mrf.mxu0
      %3802 = vmatmul.f32.gmra.mxu0 %v3597
      %v3803 = vpop.f32.mrf.mxu0
      %v3804 = vadd.f32 0.0, %v3803
      %3805 = vmatmul.f32.gmra.mxu0 %v3600
      %v3806 = vpop.f32.mrf.mxu0
      %v3807 = vadd.f32 0.0, %v3806
      %3808 = vmatmul.f32.gmra.mxu0 %v3603
      %v3809 = vpop.f32.mrf.mxu0
      %3810 = vmatmul.f32.gmra.mxu0 %v3606
      %v3811 = vpop.f32.mrf.mxu0
      %3812 = vmatmul.f32.gmra.mxu0 %v3609
      %v3813 = vpop.f32.mrf.mxu0
      %v3814 = vadd.f32 0.0, %v3813
      %3815 = vmatmul.f32.gmra.mxu0 %v3612
      %v3816 = vpop.f32.mrf.mxu0
      %v3817 = vadd.f32 0.0, %v3816
      %3818 = vmatmul.f32.gmra.mxu0 %v3615
      %v3819 = vpop.f32.mrf.mxu0
      %3820 = vmatmul.f32.gmra.mxu0 %v3618
      %v3821 = vpop.f32.mrf.mxu0
      %3822 = vmatmul.f32.gmra.mxu0 %v3621
      %v3823 = vpop.f32.mrf.mxu0
      %v3824 = vadd.f32 0.0, %v3823
      %3825 = vmatmul.f32.gmra.mxu0 %v3624
      %v3826 = vpop.f32.mrf.mxu0
      %v3827 = vadd.f32 0.0, %v3826
      %3828 = vmatmul.f32.gmra.mxu0 %v3627
      %v3829 = vpop.f32.mrf.mxu0
      %3830 = vmatmul.f32.gmra.mxu0 %v3630
      %v3831 = vpop.f32.mrf.mxu0
      %3832 = vmatmul.f32.gmra.mxu0 %v3633
      %v3833 = vpop.f32.mrf.mxu0
      %v3834 = vadd.f32 0.0, %v3833
      %3835 = vmatmul.f32.gmra.mxu0 %v3636
      %v3836 = vpop.f32.mrf.mxu0
      %v3837 = vadd.f32 0.0, %v3836
      %3838 = vmatmul.f32.gmra.mxu0 %v3639
      %v3839 = vpop.f32.mrf.mxu0
      %3840 = vmatmul.f32.gmra.mxu0 %v3642
      %v3841 = vpop.f32.mrf.mxu0
      %3842 = vmatmul.f32.gmra.mxu0 %v3645
      %v3843 = vpop.f32.mrf.mxu0
      %v3844 = vadd.f32 0.0, %v3843
      %3845 = vmatmul.f32.gmra.mxu0 %v3648
      %v3846 = vpop.f32.mrf.mxu0
      %v3847 = vadd.f32 0.0, %v3846
      %3848 = vmatmul.f32.gmra.mxu0 %v3651
      %v3849 = vpop.f32.mrf.mxu0
      %3850 = vmatmul.f32.gmra.mxu0 %v3654
      %v3851 = vpop.f32.mrf.mxu0
      %3852 = vmatmul.f32.gmra.mxu0 %v3657
      %v3853 = vpop.f32.mrf.mxu0
      %v3854 = vadd.f32 0.0, %v3853
      %3855 = vmatmul.f32.gmra.mxu0 %v3660
      %v3856 = vpop.f32.mrf.mxu0
      %v3857 = vadd.f32 0.0, %v3856
      %3858 = vmatmul.f32.gmra.mxu0 %v3663
      %v3859 = vpop.f32.mrf.mxu0
      %3860 = vmatmul.f32.gmra.mxu0 %v3666
      %v3861 = vpop.f32.mrf.mxu0
      %3862 = vmatmul.f32.gmra.mxu0 %v3669
      %v3863 = vpop.f32.mrf.mxu0
      %v3864 = vadd.f32 0.0, %v3863
      %3865 = vmatmul.f32.gmra.mxu0 %v3672
      %v3866 = vpop.f32.mrf.mxu0
      %v3867 = vadd.f32 0.0, %v3866
      %3868 = vmatmul.f32.gmra.mxu0 %v3675
      %v3869 = vpop.f32.mrf.mxu0
      %3870 = vmatmul.f32.gmra.mxu0 %v3678
      %v3871 = vpop.f32.mrf.mxu0
      %3872 = vmatmul.f32.gmra.mxu0 %v3681
      %v3873 = vpop.f32.mrf.mxu0
      %v3874 = vadd.f32 0.0, %v3873
      %3875 = vmatmul.f32.gmra.mxu0 %v3684
      %v3876 = vpop.f32.mrf.mxu0
      %v3877 = vadd.f32 0.0, %v3876
      %3878 = vmatmul.f32.gmra.mxu0 %v3687
      %v3879 = vpop.f32.mrf.mxu0
      %3880 = vmatmul.f32.gmra.mxu0 %v3690
      %v3881 = vpop.f32.mrf.mxu0
      %3882 = vmatmul.f32.gmra.mxu0 %v3693
      %v3883 = vpop.f32.mrf.mxu0
      %v3884 = vadd.f32 0.0, %v3883
      %3885 = vmatmul.f32.gmra.mxu0 %v3696
      %v3886 = vpop.f32.mrf.mxu0
      %v3887 = vadd.f32 0.0, %v3886
      %3888 = vmatmul.f32.gmra.mxu0 %v3699
      %v3889 = vpop.f32.mrf.mxu0
      %3890 = vmatmul.f32.gmra.mxu0 %v3702
      %v3891 = vpop.f32.mrf.mxu0
      %3892 = vmatmul.f32.gmra.mxu0 %v3705
      %v3893 = vpop.f32.mrf.mxu0
      %v3894 = vadd.f32 0.0, %v3893
      %3895 = vmatmul.f32.gmra.mxu0 %v3708
      %v3896 = vpop.f32.mrf.mxu0
      %v3897 = vadd.f32 0.0, %v3896
      %3898 = vmatmul.f32.gmra.mxu0 %v3711
      %v3899 = vpop.f32.mrf.mxu0
      %3900 = vmatmul.f32.gmra.mxu0 %v3714
      %v3901 = vpop.f32.mrf.mxu0
      %3902 = vmatmul.f32.gmra.mxu0 %v3717
      %v3903 = vpop.f32.mrf.mxu0
      %v3904 = vadd.f32 0.0, %v3903
      %3905 = vmatmul.f32.gmra.mxu0 %v3720
      %v3906 = vpop.f32.mrf.mxu0
      %v3907 = vadd.f32 0.0, %v3906
      %3908 = vmatmul.f32.gmra.mxu0 %v3723
      %v3909 = vpop.f32.mrf.mxu0
      %3910 = vmatmul.f32.gmra.mxu0 %v3726
      %v3911 = vpop.f32.mrf.mxu0
      %3912 = vmatmul.f32.gmra.mxu0 %v3729
      %v3913 = vpop.f32.mrf.mxu0
      %v3914 = vadd.f32 0.0, %v3913
      %3915 = vmatmul.f32.gmra.mxu0 %v3732
      %v3916 = vpop.f32.mrf.mxu0
      %v3917 = vadd.f32 0.0, %v3916
      %3918 = vmatmul.f32.gmra.mxu0 %v3735
      %v3919 = vpop.f32.mrf.mxu0
      %3920 = vmatmul.f32.gmra.mxu0 %v3738
      %v3921 = vpop.f32.mrf.mxu0
      %3922 = vmatmul.f32.gmra.mxu0 %v3741
      %v3923 = vpop.f32.mrf.mxu0
      %v3924 = vadd.f32 0.0, %v3923
      %3925 = vmatmul.f32.gmra.mxu0 %v3744
      %v3926 = vpop.f32.mrf.mxu0
      %v3927 = vadd.f32 0.0, %v3926
      %3928 = vmatmul.f32.gmra.mxu0 %v3747
      %v3929 = vpop.f32.mrf.mxu0
      %3930 = vmatmul.f32.gmra.mxu0 %v3750
      %v3931 = vpop.f32.mrf.mxu0
      %3932 = vmatmul.f32.gmra.mxu0 %v3753
      %v3933 = vpop.f32.mrf.mxu0
      %v3934 = vadd.f32 0.0, %v3933
      %3935 = vmatmul.f32.gmra.mxu0 %v3756
      %v3936 = vpop.f32.mrf.mxu0
      %v3937 = vadd.f32 0.0, %v3936
      %3938 = vmatmul.f32.gmra.mxu0 %v3759
      %v3939 = vpop.f32.mrf.mxu0
      %3940 = vmatmul.f32.gmra.mxu0 %v3762
      %v3941 = vpop.f32.mrf.mxu0
      %3942 = vmatmul.f32.gmra.mxu0 %v3765
      %v3943 = vpop.f32.mrf.mxu0
      %v3944 = vadd.f32 0.0, %v3943
      %3945 = vmatmul.f32.gmra.mxu0 %v3768
      %v3946 = vpop.f32.mrf.mxu0
      %v3947 = vadd.f32 0.0, %v3946
      %3948 = vmatmul.f32.gmra.mxu0 %v3771
      %v3949 = vpop.f32.mrf.mxu0
      %3950 = vmatmul.f32.gmra.mxu0 %v3774
      %v3951 = vpop.f32.mrf.mxu0
      %3952 = vdwg.mxu0
      %v3953 = vadd.f32 %v3486, %v3794
      %v3954 = vadd.f32 %v3487, %v3797
      %v3955 = vadd.f32 %v3488, %v3804
      %v3956 = vadd.f32 %v3489, %v3807
      %v3957 = vadd.f32 %v3490, %v3814
      %v3958 = vadd.f32 %v3491, %v3817
      %v3959 = vadd.f32 %v3492, %v3824
      %v3960 = vadd.f32 %v3493, %v3827
      %v3961 = vadd.f32 %v3494, %v3834
      %v3962 = vadd.f32 %v3495, %v3837
      %v3963 = vadd.f32 %v3496, %v3844
      %v3964 = vadd.f32 %v3497, %v3847
      %v3965 = vadd.f32 %v3498, %v3854
      %v3966 = vadd.f32 %v3499, %v3857
      %v3967 = vadd.f32 %v3500, %v3864
      %v3968 = vadd.f32 %v3501, %v3867
      %v3969 = vadd.f32 %v3502, %v3874
      %v3970 = vadd.f32 %v3503, %v3877
      %v3971 = vadd.f32 %v3504, %v3884
      %v3972 = vadd.f32 %v3505, %v3887
      %v3973 = vadd.f32 %v3506, %v3894
      %v3974 = vadd.f32 %v3507, %v3897
      %v3975 = vadd.f32 %v3508, %v3904
      %v3976 = vadd.f32 %v3509, %v3907
      %v3977 = vadd.f32 %v3510, %v3914
      %v3978 = vadd.f32 %v3511, %v3917
      %v3979 = vadd.f32 %v3512, %v3924
      %v3980 = vadd.f32 %v3513, %v3927
      %v3981 = vadd.f32 %v3514, %v3934
      %v3982 = vadd.f32 %v3515, %v3937
      %v3983 = vadd.f32 %v3516, %v3944
      %v3984 = vadd.f32 %v3517, %v3947
      %v3985 = vld [vmem:[#allocation2 + $0x48] sm:$0xff]
      %v3986 = vld [vmem:[#allocation2 + $0x50] sm:$0xff]
      %v3987 = vld [vmem:[#allocation2 + $0x58] sm:$0xff]
      %v3988 = vld [vmem:[#allocation2 + $0x60] sm:$0xff]
      %v3989 = vld [vmem:[#allocation2 + $0x68] sm:$0xff]
      %v3990 = vld [vmem:[#allocation2 + $0x70] sm:$0xff]
      %v3991 = vld [vmem:[#allocation2 + $0x78] sm:$0xff]
      %v3992 = vld [vmem:[#allocation2 + $0x80] sm:$0xff]
      %v3993 = vld [vmem:[#allocation2 + $0x88] sm:$0xff]
      %v3994 = vld [vmem:[#allocation2 + $0x90] sm:$0xff]
      %v3995 = vld [vmem:[#allocation2 + $0x98] sm:$0xff]
      %v3996 = vld [vmem:[#allocation2 + $0xa0] sm:$0xff]
      %v3997 = vld [vmem:[#allocation2 + $0xa8] sm:$0xff]
      %v3998 = vld [vmem:[#allocation2 + $0xb0] sm:$0xff]
      %v3999 = vld [vmem:[#allocation2 + $0xb8] sm:$0xff]
      %v4000 = vld [vmem:[#allocation2 + $0xc0] sm:$0xff]
      %v4001 = vld [vmem:[#allocation2 + $0xc8] sm:$0xff]
      %v4002 = vld [vmem:[#allocation2 + $0xd0] sm:$0xff]
      %v4003 = vld [vmem:[#allocation2 + $0xd8] sm:$0xff]
      %v4004 = vld [vmem:[#allocation2 + $0xe0] sm:$0xff]
      %v4005 = vld [vmem:[#allocation2 + $0xe8] sm:$0xff]
      %v4006 = vld [vmem:[#allocation2 + $0xf0] sm:$0xff]
      %v4007 = vld [vmem:[#allocation2 + $0xf8] sm:$0xff]
      %v4008 = vld [vmem:[#allocation2 + $0x100] sm:$0xff]
      %v4009 = vld [vmem:[#allocation2 + $0x108] sm:$0xff]
      %v4010 = vld [vmem:[#allocation2 + $0x110] sm:$0xff]
      %v4011 = vld [vmem:[#allocation2 + $0x118] sm:$0xff]
      %v4012 = vld [vmem:[#allocation2 + $0x120] sm:$0xff]
      %v4013 = vld [vmem:[#allocation2 + $0x128] sm:$0xff]
      %v4014 = vld [vmem:[#allocation2 + $0x130] sm:$0xff]
      %v4015 = vld [vmem:[#allocation2 + $0x138] sm:$0xff]
      %v4016 = vld [vmem:[#allocation2 + $0x140] sm:$0xff]
      %v4017 = vld [vmem:[#allocation2 + $0x148] sm:$0xff]
      %v4018 = vld [vmem:[#allocation2 + $0x150] sm:$0xff]
      %v4019 = vld [vmem:[#allocation2 + $0x158] sm:$0xff]
      %v4020 = vld [vmem:[#allocation2 + $0x160] sm:$0xff]
      %v4021 = vld [vmem:[#allocation2 + $0x168] sm:$0xff]
      %v4022 = vld [vmem:[#allocation2 + $0x170] sm:$0xff]
      %v4023 = vld [vmem:[#allocation2 + $0x178] sm:$0xff]
      %v4024 = vld [vmem:[#allocation2 + $0x180] sm:$0xff]
      %v4025 = vld [vmem:[#allocation2 + $0x188] sm:$0xff]
      %v4026 = vld [vmem:[#allocation2 + $0x190] sm:$0xff]
      %v4027 = vld [vmem:[#allocation2 + $0x198] sm:$0xff]
      %v4028 = vld [vmem:[#allocation2 + $0x1a0] sm:$0xff]
      %v4029 = vld [vmem:[#allocation2 + $0x1a8] sm:$0xff]
      %v4030 = vld [vmem:[#allocation2 + $0x1b0] sm:$0xff]
      %v4031 = vld [vmem:[#allocation2 + $0x1b8] sm:$0xff]
      %v4032 = vld [vmem:[#allocation2 + $0x1c0] sm:$0xff]
      %v4033 = vld [vmem:[#allocation2 + $0x1c8] sm:$0xff]
      %v4034 = vld [vmem:[#allocation2 + $0x1d0] sm:$0xff]
      %v4035 = vld [vmem:[#allocation2 + $0x1d8] sm:$0xff]
      %v4036 = vld [vmem:[#allocation2 + $0x1e0] sm:$0xff]
      %v4037 = vld [vmem:[#allocation2 + $0x1e8] sm:$0xff]
      %v4038 = vld [vmem:[#allocation2 + $0x1f0] sm:$0xff]
      %v4039 = vld [vmem:[#allocation2 + $0x1f8] sm:$0xff]
      %v4040 = vld [vmem:[#allocation2 + $0x200] sm:$0xff]
      %v4041 = vld [vmem:[#allocation2 + $0x208] sm:$0xff]
      %v4042 = vld [vmem:[#allocation2 + $0x210] sm:$0xff]
      %v4043 = vld [vmem:[#allocation2 + $0x218] sm:$0xff]
      %v4044 = vld [vmem:[#allocation2 + $0x220] sm:$0xff]
      %v4045 = vld [vmem:[#allocation2 + $0x228] sm:$0xff]
      %v4046 = vld [vmem:[#allocation2 + $0x230] sm:$0xff]
      %v4047 = vld [vmem:[#allocation2 + $0x238] sm:$0xff]
      %v4048 = vld [vmem:[#allocation2 + $0x240] sm:$0xff]
      %s4049 = scalar_lea.vmem %s4, 56
      %v4050 = vld [vmem:[%s4049] sm:$0xff]
      %v4052 = vsel %vm674, %v3985, 0
      %v4055 = vsel %vm674, %v3986, 0
      %v4058 = vsel %vm674, %v3987, 0
      %v4061 = vsel %vm674, %v3988, 0
      %v4064 = vsel %vm674, %v3989, 0
      %v4067 = vsel %vm674, %v3990, 0
      %v4070 = vsel %vm674, %v3991, 0
      %v4073 = vsel %vm674, %v3992, 0
      %v4076 = vsel %vm674, %v3993, 0
      %v4079 = vsel %vm674, %v3994, 0
      %v4082 = vsel %vm674, %v3995, 0
      %v4085 = vsel %vm674, %v3996, 0
      %v4088 = vsel %vm674, %v3997, 0
      %v4091 = vsel %vm674, %v3998, 0
      %v4094 = vsel %vm674, %v3999, 0
      %v4097 = vsel %vm674, %v4000, 0
      %v4100 = vsel %vm674, %v4001, 0
      %v4103 = vsel %vm674, %v4002, 0
      %v4106 = vsel %vm674, %v4003, 0
      %v4109 = vsel %vm674, %v4004, 0
      %v4112 = vsel %vm674, %v4005, 0
      %v4115 = vsel %vm674, %v4006, 0
      %v4118 = vsel %vm674, %v4007, 0
      %v4121 = vsel %vm674, %v4008, 0
      %v4124 = vsel %vm674, %v4009, 0
      %v4127 = vsel %vm674, %v4010, 0
      %v4130 = vsel %vm674, %v4011, 0
      %v4133 = vsel %vm674, %v4012, 0
      %v4136 = vsel %vm674, %v4013, 0
      %v4139 = vsel %vm674, %v4014, 0
      %v4142 = vsel %vm674, %v4015, 0
      %v4145 = vsel %vm674, %v4016, 0
      %v4148 = vsel %vm674, %v4017, 0
      %v4151 = vsel %vm674, %v4018, 0
      %v4154 = vsel %vm674, %v4019, 0
      %v4157 = vsel %vm674, %v4020, 0
      %v4160 = vsel %vm674, %v4021, 0
      %v4163 = vsel %vm674, %v4022, 0
      %v4166 = vsel %vm674, %v4023, 0
      %v4169 = vsel %vm674, %v4024, 0
      %v4172 = vsel %vm674, %v4025, 0
      %v4175 = vsel %vm674, %v4026, 0
      %v4178 = vsel %vm674, %v4027, 0
      %v4181 = vsel %vm674, %v4028, 0
      %v4184 = vsel %vm674, %v4029, 0
      %v4187 = vsel %vm674, %v4030, 0
      %v4190 = vsel %vm674, %v4031, 0
      %v4193 = vsel %vm674, %v4032, 0
      %v4196 = vsel %vm674, %v4033, 0
      %v4199 = vsel %vm674, %v4034, 0
      %v4202 = vsel %vm674, %v4035, 0
      %v4205 = vsel %vm674, %v4036, 0
      %v4208 = vsel %vm674, %v4037, 0
      %v4211 = vsel %vm674, %v4038, 0
      %v4214 = vsel %vm674, %v4039, 0
      %v4217 = vsel %vm674, %v4040, 0
      %v4220 = vsel %vm674, %v4041, 0
      %v4223 = vsel %vm674, %v4042, 0
      %v4226 = vsel %vm674, %v4043, 0
      %v4229 = vsel %vm674, %v4044, 0
      %v4232 = vsel %vm674, %v4045, 0
      %v4235 = vsel %vm674, %v4046, 0
      %v4238 = vsel %vm674, %v4047, 0
      %v4241 = vsel %vm674, %v4048, 0
      %4243 = vmatpush.msra.mxu0 0.0
      %4244 = vmatpush.msra.mxu0 0.0
      %4245 = vmatpush.msra.mxu0 0.0
      %4246 = vmatpush.msra.mxu0 0.0
      %4247 = vmatpush.msra.mxu0 0.0
      %4248 = vmatpush.msra.mxu0 0.0
      %4249 = vmatpush.msra.mxu0 0.0
      %4250 = vmatpush.msra.mxu0 0.0
      %4251 = vmatpush.msra.mxu0 0.0
      %4252 = vmatpush.msra.mxu0 0.0
      %4253 = vmatpush.msra.mxu0 0.0
      %4254 = vmatpush.msra.mxu0 0.0
      %4255 = vmatpush.msra.mxu0 0.0
      %4256 = vmatpush.msra.mxu0 0.0
      %4257 = vmatpush.msra.mxu0 0.0
      %4258 = vmatpush.msra.mxu0 %v4050
      %4259 = vmatmul.f32.gmra.mxu0 %v4052
      %v4260 = vpop.f32.mrf.mxu0
      %v4261 = vadd.f32 0.0, %v4260
      %4262 = vmatmul.f32.gmra.mxu0 %v4055
      %v4263 = vpop.f32.mrf.mxu0
      %v4264 = vadd.f32 0.0, %v4263
      %4265 = vmatmul.f32.gmra.mxu0 %v4058
      %v4266 = vpop.f32.mrf.mxu0
      %4267 = vmatmul.f32.gmra.mxu0 %v4061
      %v4268 = vpop.f32.mrf.mxu0
      %4269 = vmatmul.f32.gmra.mxu0 %v4064
      %v4270 = vpop.f32.mrf.mxu0
      %v4271 = vadd.f32 0.0, %v4270
      %4272 = vmatmul.f32.gmra.mxu0 %v4067
      %v4273 = vpop.f32.mrf.mxu0
      %v4274 = vadd.f32 0.0, %v4273
      %4275 = vmatmul.f32.gmra.mxu0 %v4070
      %v4276 = vpop.f32.mrf.mxu0
      %4277 = vmatmul.f32.gmra.mxu0 %v4073
      %v4278 = vpop.f32.mrf.mxu0
      %4279 = vmatmul.f32.gmra.mxu0 %v4076
      %v4280 = vpop.f32.mrf.mxu0
      %v4281 = vadd.f32 0.0, %v4280
      %4282 = vmatmul.f32.gmra.mxu0 %v4079
      %v4283 = vpop.f32.mrf.mxu0
      %v4284 = vadd.f32 0.0, %v4283
      %4285 = vmatmul.f32.gmra.mxu0 %v4082
      %v4286 = vpop.f32.mrf.mxu0
      %4287 = vmatmul.f32.gmra.mxu0 %v4085
      %v4288 = vpop.f32.mrf.mxu0
      %4289 = vmatmul.f32.gmra.mxu0 %v4088
      %v4290 = vpop.f32.mrf.mxu0
      %v4291 = vadd.f32 0.0, %v4290
      %4292 = vmatmul.f32.gmra.mxu0 %v4091
      %v4293 = vpop.f32.mrf.mxu0
      %v4294 = vadd.f32 0.0, %v4293
      %4295 = vmatmul.f32.gmra.mxu0 %v4094
      %v4296 = vpop.f32.mrf.mxu0
      %4297 = vmatmul.f32.gmra.mxu0 %v4097
      %v4298 = vpop.f32.mrf.mxu0
      %4299 = vmatmul.f32.gmra.mxu0 %v4100
      %v4300 = vpop.f32.mrf.mxu0
      %v4301 = vadd.f32 0.0, %v4300
      %4302 = vmatmul.f32.gmra.mxu0 %v4103
      %v4303 = vpop.f32.mrf.mxu0
      %v4304 = vadd.f32 0.0, %v4303
      %4305 = vmatmul.f32.gmra.mxu0 %v4106
      %v4306 = vpop.f32.mrf.mxu0
      %4307 = vmatmul.f32.gmra.mxu0 %v4109
      %v4308 = vpop.f32.mrf.mxu0
      %4309 = vmatmul.f32.gmra.mxu0 %v4112
      %v4310 = vpop.f32.mrf.mxu0
      %v4311 = vadd.f32 0.0, %v4310
      %4312 = vmatmul.f32.gmra.mxu0 %v4115
      %v4313 = vpop.f32.mrf.mxu0
      %v4314 = vadd.f32 0.0, %v4313
      %4315 = vmatmul.f32.gmra.mxu0 %v4118
      %v4316 = vpop.f32.mrf.mxu0
      %4317 = vmatmul.f32.gmra.mxu0 %v4121
      %v4318 = vpop.f32.mrf.mxu0
      %4319 = vmatmul.f32.gmra.mxu0 %v4124
      %v4320 = vpop.f32.mrf.mxu0
      %v4321 = vadd.f32 0.0, %v4320
      %4322 = vmatmul.f32.gmra.mxu0 %v4127
      %v4323 = vpop.f32.mrf.mxu0
      %v4324 = vadd.f32 0.0, %v4323
      %4325 = vmatmul.f32.gmra.mxu0 %v4130
      %v4326 = vpop.f32.mrf.mxu0
      %4327 = vmatmul.f32.gmra.mxu0 %v4133
      %v4328 = vpop.f32.mrf.mxu0
      %4329 = vmatmul.f32.gmra.mxu0 %v4136
      %v4330 = vpop.f32.mrf.mxu0
      %v4331 = vadd.f32 0.0, %v4330
      %4332 = vmatmul.f32.gmra.mxu0 %v4139
      %v4333 = vpop.f32.mrf.mxu0
      %v4334 = vadd.f32 0.0, %v4333
      %4335 = vmatmul.f32.gmra.mxu0 %v4142
      %v4336 = vpop.f32.mrf.mxu0
      %4337 = vmatmul.f32.gmra.mxu0 %v4145
      %v4338 = vpop.f32.mrf.mxu0
      %4339 = vmatmul.f32.gmra.mxu0 %v4148
      %v4340 = vpop.f32.mrf.mxu0
      %v4341 = vadd.f32 0.0, %v4340
      %4342 = vmatmul.f32.gmra.mxu0 %v4151
      %v4343 = vpop.f32.mrf.mxu0
      %v4344 = vadd.f32 0.0, %v4343
      %4345 = vmatmul.f32.gmra.mxu0 %v4154
      %v4346 = vpop.f32.mrf.mxu0
      %4347 = vmatmul.f32.gmra.mxu0 %v4157
      %v4348 = vpop.f32.mrf.mxu0
      %4349 = vmatmul.f32.gmra.mxu0 %v4160
      %v4350 = vpop.f32.mrf.mxu0
      %v4351 = vadd.f32 0.0, %v4350
      %4352 = vmatmul.f32.gmra.mxu0 %v4163
      %v4353 = vpop.f32.mrf.mxu0
      %v4354 = vadd.f32 0.0, %v4353
      %4355 = vmatmul.f32.gmra.mxu0 %v4166
      %v4356 = vpop.f32.mrf.mxu0
      %4357 = vmatmul.f32.gmra.mxu0 %v4169
      %v4358 = vpop.f32.mrf.mxu0
      %4359 = vmatmul.f32.gmra.mxu0 %v4172
      %v4360 = vpop.f32.mrf.mxu0
      %v4361 = vadd.f32 0.0, %v4360
      %4362 = vmatmul.f32.gmra.mxu0 %v4175
      %v4363 = vpop.f32.mrf.mxu0
      %v4364 = vadd.f32 0.0, %v4363
      %4365 = vmatmul.f32.gmra.mxu0 %v4178
      %v4366 = vpop.f32.mrf.mxu0
      %4367 = vmatmul.f32.gmra.mxu0 %v4181
      %v4368 = vpop.f32.mrf.mxu0
      %4369 = vmatmul.f32.gmra.mxu0 %v4184
      %v4370 = vpop.f32.mrf.mxu0
      %v4371 = vadd.f32 0.0, %v4370
      %4372 = vmatmul.f32.gmra.mxu0 %v4187
      %v4373 = vpop.f32.mrf.mxu0
      %v4374 = vadd.f32 0.0, %v4373
      %4375 = vmatmul.f32.gmra.mxu0 %v4190
      %v4376 = vpop.f32.mrf.mxu0
      %4377 = vmatmul.f32.gmra.mxu0 %v4193
      %v4378 = vpop.f32.mrf.mxu0
      %4379 = vmatmul.f32.gmra.mxu0 %v4196
      %v4380 = vpop.f32.mrf.mxu0
      %v4381 = vadd.f32 0.0, %v4380
      %4382 = vmatmul.f32.gmra.mxu0 %v4199
      %v4383 = vpop.f32.mrf.mxu0
      %v4384 = vadd.f32 0.0, %v4383
      %4385 = vmatmul.f32.gmra.mxu0 %v4202
      %v4386 = vpop.f32.mrf.mxu0
      %4387 = vmatmul.f32.gmra.mxu0 %v4205
      %v4388 = vpop.f32.mrf.mxu0
      %4389 = vmatmul.f32.gmra.mxu0 %v4208
      %v4390 = vpop.f32.mrf.mxu0
      %v4391 = vadd.f32 0.0, %v4390
      %4392 = vmatmul.f32.gmra.mxu0 %v4211
      %v4393 = vpop.f32.mrf.mxu0
      %v4394 = vadd.f32 0.0, %v4393
      %4395 = vmatmul.f32.gmra.mxu0 %v4214
      %v4396 = vpop.f32.mrf.mxu0
      %4397 = vmatmul.f32.gmra.mxu0 %v4217
      %v4398 = vpop.f32.mrf.mxu0
      %4399 = vmatmul.f32.gmra.mxu0 %v4220
      %v4400 = vpop.f32.mrf.mxu0
      %v4401 = vadd.f32 0.0, %v4400
      %4402 = vmatmul.f32.gmra.mxu0 %v4223
      %v4403 = vpop.f32.mrf.mxu0
      %v4404 = vadd.f32 0.0, %v4403
      %4405 = vmatmul.f32.gmra.mxu0 %v4226
      %v4406 = vpop.f32.mrf.mxu0
      %4407 = vmatmul.f32.gmra.mxu0 %v4229
      %v4408 = vpop.f32.mrf.mxu0
      %4409 = vmatmul.f32.gmra.mxu0 %v4232
      %v4410 = vpop.f32.mrf.mxu0
      %v4411 = vadd.f32 0.0, %v4410
      %4412 = vmatmul.f32.gmra.mxu0 %v4235
      %v4413 = vpop.f32.mrf.mxu0
      %v4414 = vadd.f32 0.0, %v4413
      %4415 = vmatmul.f32.gmra.mxu0 %v4238
      %v4416 = vpop.f32.mrf.mxu0
      %4417 = vmatmul.f32.gmra.mxu0 %v4241
      %v4418 = vpop.f32.mrf.mxu0
      %4419 = vdwg.mxu0
      %v4420 = vadd.f32 %v3953, %v4261
      %v4421 = vadd.f32 %v3954, %v4264
      %v4422 = vadd.f32 %v3955, %v4271
      %v4423 = vadd.f32 %v3956, %v4274
      %v4424 = vadd.f32 %v3957, %v4281
      %v4425 = vadd.f32 %v3958, %v4284
      %v4426 = vadd.f32 %v3959, %v4291
      %v4427 = vadd.f32 %v3960, %v4294
      %v4428 = vadd.f32 %v3961, %v4301
      %v4429 = vadd.f32 %v3962, %v4304
      %v4430 = vadd.f32 %v3963, %v4311
      %v4431 = vadd.f32 %v3964, %v4314
      %v4432 = vadd.f32 %v3965, %v4321
      %v4433 = vadd.f32 %v3966, %v4324
      %v4434 = vadd.f32 %v3967, %v4331
      %v4435 = vadd.f32 %v3968, %v4334
      %v4436 = vadd.f32 %v3969, %v4341
      %v4437 = vadd.f32 %v3970, %v4344
      %v4438 = vadd.f32 %v3971, %v4351
      %v4439 = vadd.f32 %v3972, %v4354
      %v4440 = vadd.f32 %v3973, %v4361
      %v4441 = vadd.f32 %v3974, %v4364
      %v4442 = vadd.f32 %v3975, %v4371
      %v4443 = vadd.f32 %v3976, %v4374
      %v4444 = vadd.f32 %v3977, %v4381
      %v4445 = vadd.f32 %v3978, %v4384
      %v4446 = vadd.f32 %v3979, %v4391
      %v4447 = vadd.f32 %v3980, %v4394
      %v4448 = vadd.f32 %v3981, %v4401
      %v4449 = vadd.f32 %v3982, %v4404
      %v4450 = vadd.f32 %v3983, %v4411
      %v4451 = vadd.f32 %v3984, %v4414
      %v4452 = vld [vmem:[#allocation2 + $0x49] sm:$0xff]
      %v4453 = vld [vmem:[#allocation2 + $0x51] sm:$0xff]
      %v4454 = vld [vmem:[#allocation2 + $0x59] sm:$0xff]
      %v4455 = vld [vmem:[#allocation2 + $0x61] sm:$0xff]
      %v4456 = vld [vmem:[#allocation2 + $0x69] sm:$0xff]
      %v4457 = vld [vmem:[#allocation2 + $0x71] sm:$0xff]
      %v4458 = vld [vmem:[#allocation2 + $0x79] sm:$0xff]
      %v4459 = vld [vmem:[#allocation2 + $0x81] sm:$0xff]
      %v4460 = vld [vmem:[#allocation2 + $0x89] sm:$0xff]
      %v4461 = vld [vmem:[#allocation2 + $0x91] sm:$0xff]
      %v4462 = vld [vmem:[#allocation2 + $0x99] sm:$0xff]
      %v4463 = vld [vmem:[#allocation2 + $0xa1] sm:$0xff]
      %v4464 = vld [vmem:[#allocation2 + $0xa9] sm:$0xff]
      %v4465 = vld [vmem:[#allocation2 + $0xb1] sm:$0xff]
      %v4466 = vld [vmem:[#allocation2 + $0xb9] sm:$0xff]
      %v4467 = vld [vmem:[#allocation2 + $0xc1] sm:$0xff]
      %v4468 = vld [vmem:[#allocation2 + $0xc9] sm:$0xff]
      %v4469 = vld [vmem:[#allocation2 + $0xd1] sm:$0xff]
      %v4470 = vld [vmem:[#allocation2 + $0xd9] sm:$0xff]
      %v4471 = vld [vmem:[#allocation2 + $0xe1] sm:$0xff]
      %v4472 = vld [vmem:[#allocation2 + $0xe9] sm:$0xff]
      %v4473 = vld [vmem:[#allocation2 + $0xf1] sm:$0xff]
      %v4474 = vld [vmem:[#allocation2 + $0xf9] sm:$0xff]
      %v4475 = vld [vmem:[#allocation2 + $0x101] sm:$0xff]
      %v4476 = vld [vmem:[#allocation2 + $0x109] sm:$0xff]
      %v4477 = vld [vmem:[#allocation2 + $0x111] sm:$0xff]
      %v4478 = vld [vmem:[#allocation2 + $0x119] sm:$0xff]
      %v4479 = vld [vmem:[#allocation2 + $0x121] sm:$0xff]
      %v4480 = vld [vmem:[#allocation2 + $0x129] sm:$0xff]
      %v4481 = vld [vmem:[#allocation2 + $0x131] sm:$0xff]
      %v4482 = vld [vmem:[#allocation2 + $0x139] sm:$0xff]
      %v4483 = vld [vmem:[#allocation2 + $0x141] sm:$0xff]
      %v4484 = vld [vmem:[#allocation2 + $0x149] sm:$0xff]
      %v4485 = vld [vmem:[#allocation2 + $0x151] sm:$0xff]
      %v4486 = vld [vmem:[#allocation2 + $0x159] sm:$0xff]
      %v4487 = vld [vmem:[#allocation2 + $0x161] sm:$0xff]
      %v4488 = vld [vmem:[#allocation2 + $0x169] sm:$0xff]
      %v4489 = vld [vmem:[#allocation2 + $0x171] sm:$0xff]
      %v4490 = vld [vmem:[#allocation2 + $0x179] sm:$0xff]
      %v4491 = vld [vmem:[#allocation2 + $0x181] sm:$0xff]
      %v4492 = vld [vmem:[#allocation2 + $0x189] sm:$0xff]
      %v4493 = vld [vmem:[#allocation2 + $0x191] sm:$0xff]
      %v4494 = vld [vmem:[#allocation2 + $0x199] sm:$0xff]
      %v4495 = vld [vmem:[#allocation2 + $0x1a1] sm:$0xff]
      %v4496 = vld [vmem:[#allocation2 + $0x1a9] sm:$0xff]
      %v4497 = vld [vmem:[#allocation2 + $0x1b1] sm:$0xff]
      %v4498 = vld [vmem:[#allocation2 + $0x1b9] sm:$0xff]
      %v4499 = vld [vmem:[#allocation2 + $0x1c1] sm:$0xff]
      %v4500 = vld [vmem:[#allocation2 + $0x1c9] sm:$0xff]
      %v4501 = vld [vmem:[#allocation2 + $0x1d1] sm:$0xff]
      %v4502 = vld [vmem:[#allocation2 + $0x1d9] sm:$0xff]
      %v4503 = vld [vmem:[#allocation2 + $0x1e1] sm:$0xff]
      %v4504 = vld [vmem:[#allocation2 + $0x1e9] sm:$0xff]
      %v4505 = vld [vmem:[#allocation2 + $0x1f1] sm:$0xff]
      %v4506 = vld [vmem:[#allocation2 + $0x1f9] sm:$0xff]
      %v4507 = vld [vmem:[#allocation2 + $0x201] sm:$0xff]
      %v4508 = vld [vmem:[#allocation2 + $0x209] sm:$0xff]
      %v4509 = vld [vmem:[#allocation2 + $0x211] sm:$0xff]
      %v4510 = vld [vmem:[#allocation2 + $0x219] sm:$0xff]
      %v4511 = vld [vmem:[#allocation2 + $0x221] sm:$0xff]
      %v4512 = vld [vmem:[#allocation2 + $0x229] sm:$0xff]
      %v4513 = vld [vmem:[#allocation2 + $0x231] sm:$0xff]
      %v4514 = vld [vmem:[#allocation2 + $0x239] sm:$0xff]
      %v4515 = vld [vmem:[#allocation2 + $0x241] sm:$0xff]
      %s4516 = scalar_lea.vmem %s4, 64
      %v4517 = vld [vmem:[%s4516] sm:$0xff]
      %v4519 = vsel %vm674, %v4452, 0
      %v4522 = vsel %vm674, %v4453, 0
      %v4525 = vsel %vm674, %v4454, 0
      %v4528 = vsel %vm674, %v4455, 0
      %v4531 = vsel %vm674, %v4456, 0
      %v4534 = vsel %vm674, %v4457, 0
      %v4537 = vsel %vm674, %v4458, 0
      %v4540 = vsel %vm674, %v4459, 0
      %v4543 = vsel %vm674, %v4460, 0
      %v4546 = vsel %vm674, %v4461, 0
      %v4549 = vsel %vm674, %v4462, 0
      %v4552 = vsel %vm674, %v4463, 0
      %v4555 = vsel %vm674, %v4464, 0
      %v4558 = vsel %vm674, %v4465, 0
      %v4561 = vsel %vm674, %v4466, 0
      %v4564 = vsel %vm674, %v4467, 0
      %v4567 = vsel %vm674, %v4468, 0
      %v4570 = vsel %vm674, %v4469, 0
      %v4573 = vsel %vm674, %v4470, 0
      %v4576 = vsel %vm674, %v4471, 0
      %v4579 = vsel %vm674, %v4472, 0
      %v4582 = vsel %vm674, %v4473, 0
      %v4585 = vsel %vm674, %v4474, 0
      %v4588 = vsel %vm674, %v4475, 0
      %v4591 = vsel %vm674, %v4476, 0
      %v4594 = vsel %vm674, %v4477, 0
      %v4597 = vsel %vm674, %v4478, 0
      %v4600 = vsel %vm674, %v4479, 0
      %v4603 = vsel %vm674, %v4480, 0
      %v4606 = vsel %vm674, %v4481, 0
      %v4609 = vsel %vm674, %v4482, 0
      %v4612 = vsel %vm674, %v4483, 0
      %v4615 = vsel %vm674, %v4484, 0
      %v4618 = vsel %vm674, %v4485, 0
      %v4621 = vsel %vm674, %v4486, 0
      %v4624 = vsel %vm674, %v4487, 0
      %v4627 = vsel %vm674, %v4488, 0
      %v4630 = vsel %vm674, %v4489, 0
      %v4633 = vsel %vm674, %v4490, 0
      %v4636 = vsel %vm674, %v4491, 0
      %v4639 = vsel %vm674, %v4492, 0
      %v4642 = vsel %vm674, %v4493, 0
      %v4645 = vsel %vm674, %v4494, 0
      %v4648 = vsel %vm674, %v4495, 0
      %v4651 = vsel %vm674, %v4496, 0
      %v4654 = vsel %vm674, %v4497, 0
      %v4657 = vsel %vm674, %v4498, 0
      %v4660 = vsel %vm674, %v4499, 0
      %v4663 = vsel %vm674, %v4500, 0
      %v4666 = vsel %vm674, %v4501, 0
      %v4669 = vsel %vm674, %v4502, 0
      %v4672 = vsel %vm674, %v4503, 0
      %v4675 = vsel %vm674, %v4504, 0
      %v4678 = vsel %vm674, %v4505, 0
      %v4681 = vsel %vm674, %v4506, 0
      %v4684 = vsel %vm674, %v4507, 0
      %v4687 = vsel %vm674, %v4508, 0
      %v4690 = vsel %vm674, %v4509, 0
      %v4693 = vsel %vm674, %v4510, 0
      %v4696 = vsel %vm674, %v4511, 0
      %v4699 = vsel %vm674, %v4512, 0
      %v4702 = vsel %vm674, %v4513, 0
      %v4705 = vsel %vm674, %v4514, 0
      %v4708 = vsel %vm674, %v4515, 0
      %4710 = vmatpush.msra.mxu0 0.0
      %4711 = vmatpush.msra.mxu0 0.0
      %4712 = vmatpush.msra.mxu0 0.0
      %4713 = vmatpush.msra.mxu0 0.0
      %4714 = vmatpush.msra.mxu0 0.0
      %4715 = vmatpush.msra.mxu0 0.0
      %4716 = vmatpush.msra.mxu0 0.0
      %4717 = vmatpush.msra.mxu0 0.0
      %4718 = vmatpush.msra.mxu0 0.0
      %4719 = vmatpush.msra.mxu0 0.0
      %4720 = vmatpush.msra.mxu0 0.0
      %4721 = vmatpush.msra.mxu0 0.0
      %4722 = vmatpush.msra.mxu0 0.0
      %4723 = vmatpush.msra.mxu0 0.0
      %4724 = vmatpush.msra.mxu0 0.0
      %4725 = vmatpush.msra.mxu0 %v4517
      %4726 = vmatmul.f32.gmra.mxu0 %v4519
      %v4727 = vpop.f32.mrf.mxu0
      %v4728 = vadd.f32 0.0, %v4727
      %4729 = vmatmul.f32.gmra.mxu0 %v4522
      %v4730 = vpop.f32.mrf.mxu0
      %v4731 = vadd.f32 0.0, %v4730
      %4732 = vmatmul.f32.gmra.mxu0 %v4525
      %v4733 = vpop.f32.mrf.mxu0
      %4734 = vmatmul.f32.gmra.mxu0 %v4528
      %v4735 = vpop.f32.mrf.mxu0
      %4736 = vmatmul.f32.gmra.mxu0 %v4531
      %v4737 = vpop.f32.mrf.mxu0
      %v4738 = vadd.f32 0.0, %v4737
      %4739 = vmatmul.f32.gmra.mxu0 %v4534
      %v4740 = vpop.f32.mrf.mxu0
      %v4741 = vadd.f32 0.0, %v4740
      %4742 = vmatmul.f32.gmra.mxu0 %v4537
      %v4743 = vpop.f32.mrf.mxu0
      %4744 = vmatmul.f32.gmra.mxu0 %v4540
      %v4745 = vpop.f32.mrf.mxu0
      %4746 = vmatmul.f32.gmra.mxu0 %v4543
      %v4747 = vpop.f32.mrf.mxu0
      %v4748 = vadd.f32 0.0, %v4747
      %4749 = vmatmul.f32.gmra.mxu0 %v4546
      %v4750 = vpop.f32.mrf.mxu0
      %v4751 = vadd.f32 0.0, %v4750
      %4752 = vmatmul.f32.gmra.mxu0 %v4549
      %v4753 = vpop.f32.mrf.mxu0
      %4754 = vmatmul.f32.gmra.mxu0 %v4552
      %v4755 = vpop.f32.mrf.mxu0
      %4756 = vmatmul.f32.gmra.mxu0 %v4555
      %v4757 = vpop.f32.mrf.mxu0
      %v4758 = vadd.f32 0.0, %v4757
      %4759 = vmatmul.f32.gmra.mxu0 %v4558
      %v4760 = vpop.f32.mrf.mxu0
      %v4761 = vadd.f32 0.0, %v4760
      %4762 = vmatmul.f32.gmra.mxu0 %v4561
      %v4763 = vpop.f32.mrf.mxu0
      %4764 = vmatmul.f32.gmra.mxu0 %v4564
      %v4765 = vpop.f32.mrf.mxu0
      %4766 = vmatmul.f32.gmra.mxu0 %v4567
      %v4767 = vpop.f32.mrf.mxu0
      %v4768 = vadd.f32 0.0, %v4767
      %4769 = vmatmul.f32.gmra.mxu0 %v4570
      %v4770 = vpop.f32.mrf.mxu0
      %v4771 = vadd.f32 0.0, %v4770
      %4772 = vmatmul.f32.gmra.mxu0 %v4573
      %v4773 = vpop.f32.mrf.mxu0
      %4774 = vmatmul.f32.gmra.mxu0 %v4576
      %v4775 = vpop.f32.mrf.mxu0
      %4776 = vmatmul.f32.gmra.mxu0 %v4579
      %v4777 = vpop.f32.mrf.mxu0
      %v4778 = vadd.f32 0.0, %v4777
      %4779 = vmatmul.f32.gmra.mxu0 %v4582
      %v4780 = vpop.f32.mrf.mxu0
      %v4781 = vadd.f32 0.0, %v4780
      %4782 = vmatmul.f32.gmra.mxu0 %v4585
      %v4783 = vpop.f32.mrf.mxu0
      %4784 = vmatmul.f32.gmra.mxu0 %v4588
      %v4785 = vpop.f32.mrf.mxu0
      %4786 = vmatmul.f32.gmra.mxu0 %v4591
      %v4787 = vpop.f32.mrf.mxu0
      %v4788 = vadd.f32 0.0, %v4787
      %4789 = vmatmul.f32.gmra.mxu0 %v4594
      %v4790 = vpop.f32.mrf.mxu0
      %v4791 = vadd.f32 0.0, %v4790
      %4792 = vmatmul.f32.gmra.mxu0 %v4597
      %v4793 = vpop.f32.mrf.mxu0
      %4794 = vmatmul.f32.gmra.mxu0 %v4600
      %v4795 = vpop.f32.mrf.mxu0
      %4796 = vmatmul.f32.gmra.mxu0 %v4603
      %v4797 = vpop.f32.mrf.mxu0
      %v4798 = vadd.f32 0.0, %v4797
      %4799 = vmatmul.f32.gmra.mxu0 %v4606
      %v4800 = vpop.f32.mrf.mxu0
      %v4801 = vadd.f32 0.0, %v4800
      %4802 = vmatmul.f32.gmra.mxu0 %v4609
      %v4803 = vpop.f32.mrf.mxu0
      %4804 = vmatmul.f32.gmra.mxu0 %v4612
      %v4805 = vpop.f32.mrf.mxu0
      %4806 = vmatmul.f32.gmra.mxu0 %v4615
      %v4807 = vpop.f32.mrf.mxu0
      %v4808 = vadd.f32 0.0, %v4807
      %4809 = vmatmul.f32.gmra.mxu0 %v4618
      %v4810 = vpop.f32.mrf.mxu0
      %v4811 = vadd.f32 0.0, %v4810
      %4812 = vmatmul.f32.gmra.mxu0 %v4621
      %v4813 = vpop.f32.mrf.mxu0
      %4814 = vmatmul.f32.gmra.mxu0 %v4624
      %v4815 = vpop.f32.mrf.mxu0
      %4816 = vmatmul.f32.gmra.mxu0 %v4627
      %v4817 = vpop.f32.mrf.mxu0
      %v4818 = vadd.f32 0.0, %v4817
      %4819 = vmatmul.f32.gmra.mxu0 %v4630
      %v4820 = vpop.f32.mrf.mxu0
      %v4821 = vadd.f32 0.0, %v4820
      %4822 = vmatmul.f32.gmra.mxu0 %v4633
      %v4823 = vpop.f32.mrf.mxu0
      %4824 = vmatmul.f32.gmra.mxu0 %v4636
      %v4825 = vpop.f32.mrf.mxu0
      %4826 = vmatmul.f32.gmra.mxu0 %v4639
      %v4827 = vpop.f32.mrf.mxu0
      %v4828 = vadd.f32 0.0, %v4827
      %4829 = vmatmul.f32.gmra.mxu0 %v4642
      %v4830 = vpop.f32.mrf.mxu0
      %v4831 = vadd.f32 0.0, %v4830
      %4832 = vmatmul.f32.gmra.mxu0 %v4645
      %v4833 = vpop.f32.mrf.mxu0
      %4834 = vmatmul.f32.gmra.mxu0 %v4648
      %v4835 = vpop.f32.mrf.mxu0
      %4836 = vmatmul.f32.gmra.mxu0 %v4651
      %v4837 = vpop.f32.mrf.mxu0
      %v4838 = vadd.f32 0.0, %v4837
      %4839 = vmatmul.f32.gmra.mxu0 %v4654
      %v4840 = vpop.f32.mrf.mxu0
      %v4841 = vadd.f32 0.0, %v4840
      %4842 = vmatmul.f32.gmra.mxu0 %v4657
      %v4843 = vpop.f32.mrf.mxu0
      %4844 = vmatmul.f32.gmra.mxu0 %v4660
      %v4845 = vpop.f32.mrf.mxu0
      %4846 = vmatmul.f32.gmra.mxu0 %v4663
      %v4847 = vpop.f32.mrf.mxu0
      %v4848 = vadd.f32 0.0, %v4847
      %4849 = vmatmul.f32.gmra.mxu0 %v4666
      %v4850 = vpop.f32.mrf.mxu0
      %v4851 = vadd.f32 0.0, %v4850
      %4852 = vmatmul.f32.gmra.mxu0 %v4669
      %v4853 = vpop.f32.mrf.mxu0
      %4854 = vmatmul.f32.gmra.mxu0 %v4672
      %v4855 = vpop.f32.mrf.mxu0
      %4856 = vmatmul.f32.gmra.mxu0 %v4675
      %v4857 = vpop.f32.mrf.mxu0
      %v4858 = vadd.f32 0.0, %v4857
      %4859 = vmatmul.f32.gmra.mxu0 %v4678
      %v4860 = vpop.f32.mrf.mxu0
      %v4861 = vadd.f32 0.0, %v4860
      %4862 = vmatmul.f32.gmra.mxu0 %v4681
      %v4863 = vpop.f32.mrf.mxu0
      %4864 = vmatmul.f32.gmra.mxu0 %v4684
      %v4865 = vpop.f32.mrf.mxu0
      %4866 = vmatmul.f32.gmra.mxu0 %v4687
      %v4867 = vpop.f32.mrf.mxu0
      %v4868 = vadd.f32 0.0, %v4867
      %4869 = vmatmul.f32.gmra.mxu0 %v4690
      %v4870 = vpop.f32.mrf.mxu0
      %v4871 = vadd.f32 0.0, %v4870
      %4872 = vmatmul.f32.gmra.mxu0 %v4693
      %v4873 = vpop.f32.mrf.mxu0
      %4874 = vmatmul.f32.gmra.mxu0 %v4696
      %v4875 = vpop.f32.mrf.mxu0
      %4876 = vmatmul.f32.gmra.mxu0 %v4699
      %v4877 = vpop.f32.mrf.mxu0
      %v4878 = vadd.f32 0.0, %v4877
      %4879 = vmatmul.f32.gmra.mxu0 %v4702
      %v4880 = vpop.f32.mrf.mxu0
      %v4881 = vadd.f32 0.0, %v4880
      %4882 = vmatmul.f32.gmra.mxu0 %v4705
      %v4883 = vpop.f32.mrf.mxu0
      %4884 = vmatmul.f32.gmra.mxu0 %v4708
      %v4885 = vpop.f32.mrf.mxu0
      %4886 = vdwg.mxu0
      %v4887 = vadd.f32 %v4420, %v4728
      %v4888 = vadd.f32 %v4421, %v4731
      %v4889 = vadd.f32 %v4422, %v4738
      %v4890 = vadd.f32 %v4423, %v4741
      %v4891 = vadd.f32 %v4424, %v4748
      %v4892 = vadd.f32 %v4425, %v4751
      %v4893 = vadd.f32 %v4426, %v4758
      %v4894 = vadd.f32 %v4427, %v4761
      %v4895 = vadd.f32 %v4428, %v4768
      %v4896 = vadd.f32 %v4429, %v4771
      %v4897 = vadd.f32 %v4430, %v4778
      %v4898 = vadd.f32 %v4431, %v4781
      %v4899 = vadd.f32 %v4432, %v4788
      %v4900 = vadd.f32 %v4433, %v4791
      %v4901 = vadd.f32 %v4434, %v4798
      %v4902 = vadd.f32 %v4435, %v4801
      %v4903 = vadd.f32 %v4436, %v4808
      %v4904 = vadd.f32 %v4437, %v4811
      %v4905 = vadd.f32 %v4438, %v4818
      %v4906 = vadd.f32 %v4439, %v4821
      %v4907 = vadd.f32 %v4440, %v4828
      %v4908 = vadd.f32 %v4441, %v4831
      %v4909 = vadd.f32 %v4442, %v4838
      %v4910 = vadd.f32 %v4443, %v4841
      %v4911 = vadd.f32 %v4444, %v4848
      %v4912 = vadd.f32 %v4445, %v4851
      %v4913 = vadd.f32 %v4446, %v4858
      %v4914 = vadd.f32 %v4447, %v4861
      %v4915 = vadd.f32 %v4448, %v4868
      %v4916 = vadd.f32 %v4449, %v4871
      %v4917 = vadd.f32 %v4450, %v4878
      %v4918 = vadd.f32 %v4451, %v4881
      %v4919 = vld [vmem:[%s5] sm:$0x1]
      %v4921 = vperm.slane %v4919, 0
      %v4923 = vmul.f32 %v4887, %v4921
      %v4924 = vmul.f32 %v4888, %v4921
      %v4925 = vmul.f32 %v4889, %v4921
      %v4926 = vmul.f32 %v4890, %v4921
      %v4927 = vmul.f32 %v4891, %v4921
      %v4928 = vmul.f32 %v4892, %v4921
      %v4929 = vmul.f32 %v4893, %v4921
      %v4930 = vmul.f32 %v4894, %v4921
      %v4931 = vmul.f32 %v4895, %v4921
      %v4932 = vmul.f32 %v4896, %v4921
      %v4933 = vmul.f32 %v4897, %v4921
      %v4934 = vmul.f32 %v4898, %v4921
      %v4935 = vmul.f32 %v4899, %v4921
      %v4936 = vmul.f32 %v4900, %v4921
      %v4937 = vmul.f32 %v4901, %v4921
      %v4938 = vmul.f32 %v4902, %v4921
      %v4939 = vmul.f32 %v4903, %v4921
      %v4940 = vmul.f32 %v4904, %v4921
      %v4941 = vmul.f32 %v4905, %v4921
      %v4942 = vmul.f32 %v4906, %v4921
      %v4943 = vmul.f32 %v4907, %v4921
      %v4944 = vmul.f32 %v4908, %v4921
      %v4945 = vmul.f32 %v4909, %v4921
      %v4946 = vmul.f32 %v4910, %v4921
      %v4947 = vmul.f32 %v4911, %v4921
      %v4948 = vmul.f32 %v4912, %v4921
      %v4949 = vmul.f32 %v4913, %v4921
      %v4950 = vmul.f32 %v4914, %v4921
      %v4951 = vmul.f32 %v4915, %v4921
      %v4952 = vmul.f32 %v4916, %v4921
      %v4953 = vmul.f32 %v4917, %v4921
      %v4954 = vmul.f32 %v4918, %v4921
      %v4955 = vld [vmem:[%s6] sm:$0x1]
      %v4957 = vperm.slane %v4955, 0
      %v4959 = vadd.f32 %v4923, %v4957
      %v4960 = vadd.f32 %v4924, %v4957
      %v4961 = vadd.f32 %v4925, %v4957
      %v4962 = vadd.f32 %v4926, %v4957
      %v4963 = vadd.f32 %v4927, %v4957
      %v4964 = vadd.f32 %v4928, %v4957
      %v4965 = vadd.f32 %v4929, %v4957
      %v4966 = vadd.f32 %v4930, %v4957
      %v4967 = vadd.f32 %v4931, %v4957
      %v4968 = vadd.f32 %v4932, %v4957
      %v4969 = vadd.f32 %v4933, %v4957
      %v4970 = vadd.f32 %v4934, %v4957
      %v4971 = vadd.f32 %v4935, %v4957
      %v4972 = vadd.f32 %v4936, %v4957
      %v4973 = vadd.f32 %v4937, %v4957
      %v4974 = vadd.f32 %v4938, %v4957
      %v4975 = vadd.f32 %v4939, %v4957
      %v4976 = vadd.f32 %v4940, %v4957
      %v4977 = vadd.f32 %v4941, %v4957
      %v4978 = vadd.f32 %v4942, %v4957
      %v4979 = vadd.f32 %v4943, %v4957
      %v4980 = vadd.f32 %v4944, %v4957
      %v4981 = vadd.f32 %v4945, %v4957
      %v4982 = vadd.f32 %v4946, %v4957
      %v4983 = vadd.f32 %v4947, %v4957
      %v4984 = vadd.f32 %v4948, %v4957
      %v4985 = vadd.f32 %v4949, %v4957
      %v4986 = vadd.f32 %v4950, %v4957
      %v4987 = vadd.f32 %v4951, %v4957
      %v4988 = vadd.f32 %v4952, %v4957
      %v4989 = vadd.f32 %v4953, %v4957
      %v4990 = vadd.f32 %v4954, %v4957
      %v4991 = vmax.f32 %v4959, 0.0
      %v4992 = vmax.f32 %v4960, 0.0
      %v4993 = vmax.f32 %v4961, 0.0
      %v4994 = vmax.f32 %v4962, 0.0
      %v4995 = vmax.f32 %v4963, 0.0
      %v4996 = vmax.f32 %v4964, 0.0
      %v4997 = vmax.f32 %v4965, 0.0
      %v4998 = vmax.f32 %v4966, 0.0
      %v4999 = vmax.f32 %v4967, 0.0
      %v5000 = vmax.f32 %v4968, 0.0
      %v5001 = vmax.f32 %v4969, 0.0
      %v5002 = vmax.f32 %v4970, 0.0
      %v5003 = vmax.f32 %v4971, 0.0
      %v5004 = vmax.f32 %v4972, 0.0
      %v5005 = vmax.f32 %v4973, 0.0
      %v5006 = vmax.f32 %v4974, 0.0
      %v5007 = vmax.f32 %v4975, 0.0
      %v5008 = vmax.f32 %v4976, 0.0
      %v5009 = vmax.f32 %v4977, 0.0
      %v5010 = vmax.f32 %v4978, 0.0
      %v5011 = vmax.f32 %v4979, 0.0
      %v5012 = vmax.f32 %v4980, 0.0
      %v5013 = vmax.f32 %v4981, 0.0
      %v5014 = vmax.f32 %v4982, 0.0
      %v5015 = vmax.f32 %v4983, 0.0
      %v5016 = vmax.f32 %v4984, 0.0
      %v5017 = vmax.f32 %v4985, 0.0
      %v5018 = vmax.f32 %v4986, 0.0
      %v5019 = vmax.f32 %v4987, 0.0
      %v5020 = vmax.f32 %v4988, 0.0
      %v5021 = vmax.f32 %v4989, 0.0
      %v5022 = vmax.f32 %v4990, 0.0
      %5023 = vst.msk [vmem:[%s313] sm:$0xff] %vm674, %v4991
      %5024 = vst.msk [vmem:[%s313 + $0x8] sm:$0xff] %vm674, %v4992
      %s5025 = scalar_lea.vmem %s313, 16
      %5026 = vst.msk [vmem:[%s5025] sm:$0xff] %vm674, %v4993
      %5027 = vst.msk [vmem:[%s5025 + $0x8] sm:$0xff] %vm674, %v4994
      %s5028 = scalar_lea.vmem %s313, 32
      %5029 = vst.msk [vmem:[%s5028] sm:$0xff] %vm674, %v4995
      %5030 = vst.msk [vmem:[%s5028 + $0x8] sm:$0xff] %vm674, %v4996
      %s5031 = scalar_lea.vmem %s313, 48
      %5032 = vst.msk [vmem:[%s5031] sm:$0xff] %vm674, %v4997
      %5033 = vst.msk [vmem:[%s5031 + $0x8] sm:$0xff] %vm674, %v4998
      %s5034 = scalar_lea.vmem %s313, 64
      %5035 = vst.msk [vmem:[%s5034] sm:$0xff] %vm674, %v4999
      %5036 = vst.msk [vmem:[%s5034 + $0x8] sm:$0xff] %vm674, %v5000
      %s5037 = scalar_lea.vmem %s313, 80
      %5038 = vst.msk [vmem:[%s5037] sm:$0xff] %vm674, %v5001
      %5039 = vst.msk [vmem:[%s5037 + $0x8] sm:$0xff] %vm674, %v5002
      %s5040 = scalar_lea.vmem %s313, 96
      %5041 = vst.msk [vmem:[%s5040] sm:$0xff] %vm674, %v5003
      %5042 = vst.msk [vmem:[%s5040 + $0x8] sm:$0xff] %vm674, %v5004
      %s5043 = scalar_lea.vmem %s313, 112
      %5044 = vst.msk [vmem:[%s5043] sm:$0xff] %vm674, %v5005
      %5045 = vst.msk [vmem:[%s5043 + $0x8] sm:$0xff] %vm674, %v5006
      %s5046 = scalar_lea.vmem %s313, 128
      %5047 = vst.msk [vmem:[%s5046] sm:$0xff] %vm674, %v5007
      %5048 = vst.msk [vmem:[%s5046 + $0x8] sm:$0xff] %vm674, %v5008
      %s5049 = scalar_lea.vmem %s313, 144
      %5050 = vst.msk [vmem:[%s5049] sm:$0xff] %vm674, %v5009
      %5051 = vst.msk [vmem:[%s5049 + $0x8] sm:$0xff] %vm674, %v5010
      %s5052 = scalar_lea.vmem %s313, 160
      %5053 = vst.msk [vmem:[%s5052] sm:$0xff] %vm674, %v5011
      %5054 = vst.msk [vmem:[%s5052 + $0x8] sm:$0xff] %vm674, %v5012
      %s5055 = scalar_lea.vmem %s313, 176
      %5056 = vst.msk [vmem:[%s5055] sm:$0xff] %vm674, %v5013
      %5057 = vst.msk [vmem:[%s5055 + $0x8] sm:$0xff] %vm674, %v5014
      %s5058 = scalar_lea.vmem %s313, 192
      %5059 = vst.msk [vmem:[%s5058] sm:$0xff] %vm674, %v5015
      %5060 = vst.msk [vmem:[%s5058 + $0x8] sm:$0xff] %vm674, %v5016
      %s5061 = scalar_lea.vmem %s313, 208
      %5062 = vst.msk [vmem:[%s5061] sm:$0xff] %vm674, %v5017
      %5063 = vst.msk [vmem:[%s5061 + $0x8] sm:$0xff] %vm674, %v5018
      %s5064 = scalar_lea.vmem %s313, 224
      %5065 = vst.msk [vmem:[%s5064] sm:$0xff] %vm674, %v5019
      %5066 = vst.msk [vmem:[%s5064 + $0x8] sm:$0xff] %vm674, %v5020
      %s5067 = scalar_lea.vmem %s313, 240
      %5068 = vst.msk [vmem:[%s5067] sm:$0xff] %vm674, %v5021
      %5069 = vst.msk [vmem:[%s5067 + $0x8] sm:$0xff] %vm674, %v5022
      %v5070 = vlaneseq
      %v5071 = vshrl.u32 %v5070, 7
      %v5072 = vlaneseq
      %v5073 = vand.u32 %v5072, 127
      %v5074 = vmul.u32 %v5071, 2
      %vm5075 = vcmp.eq.s32.totalorder %v5073, %v5074
      %v5076 = vsel %vm5075, 1, 0
      %v5077 = vcvt.s32.f32 %v5076
      %v5078 = vadd.s32 %v5074, 1
      %vm5079 = vcmp.eq.s32.totalorder %v5073, %v5078
      %v5080 = vsel %vm5079, 1, 0
      %v5081 = vcvt.s32.f32 %v5080
      %v5082 = vmax.f32 %v4991, %v4993
      %v5083 = vmax.f32 %v4992, %v4994
      %vm5084 = vcmask 130048
      %v5086 = vsel %vm5084, %v5077, 0
      %5088 = vmatpush.msra.mxu0 0.0
      %5089 = vmatpush.msra.mxu0 0.0
      %5090 = vmatpush.msra.mxu0 0.0
      %5091 = vmatpush.msra.mxu0 0.0
      %5092 = vmatpush.msra.mxu0 0.0
      %5093 = vmatpush.msra.mxu0 0.0
      %5094 = vmatpush.msra.mxu0 0.0
      %5095 = vmatpush.msra.mxu0 0.0
      %5096 = vmatpush.msra.mxu0 0.0
      %5097 = vmatpush.msra.mxu0 0.0
      %5098 = vmatpush.msra.mxu0 0.0
      %5099 = vmatpush.msra.mxu0 0.0
      %5100 = vmatpush.msra.mxu0 0.0
      %5101 = vmatpush.msra.mxu0 0.0
      %5102 = vmatpush.msra.mxu0 %v5083
      %5103 = vmatpush.msra.mxu0 %v5082
      %5104 = vmatmul.f32.gmra.mxu0 %v5086
      %v5105 = vpop.f32.mrf.mxu0
      %v5106 = vadd.f32 0.0, %v5105
      %5107 = vdwg.mxu0
      %v5109 = vsel %vm5084, %v5081, 0
      %5111 = vmatpush.msra.mxu0 0.0
      %5112 = vmatpush.msra.mxu0 0.0
      %5113 = vmatpush.msra.mxu0 0.0
      %5114 = vmatpush.msra.mxu0 0.0
      %5115 = vmatpush.msra.mxu0 0.0
      %5116 = vmatpush.msra.mxu0 0.0
      %5117 = vmatpush.msra.mxu0 0.0
      %5118 = vmatpush.msra.mxu0 0.0
      %5119 = vmatpush.msra.mxu0 0.0
      %5120 = vmatpush.msra.mxu0 0.0
      %5121 = vmatpush.msra.mxu0 0.0
      %5122 = vmatpush.msra.mxu0 0.0
      %5123 = vmatpush.msra.mxu0 0.0
      %5124 = vmatpush.msra.mxu0 0.0
      %5125 = vmatpush.msra.mxu0 %v5083
      %5126 = vmatpush.msra.mxu0 %v5082
      %5127 = vmatmul.f32.gmra.mxu0 %v5109
      %v5128 = vpop.f32.mrf.mxu0
      %v5129 = vadd.f32 0.0, %v5128
      %5130 = vdwg.mxu0
      %v5131 = vmax.f32 %v5106, %v5129
      %5132 = vst.msk [vmem:[%s318] sm:$0xff] %vm674, %v5131
      %v5133 = vmax.f32 %v4995, %v4997
      %v5134 = vmax.f32 %v4996, %v4998
      %5135 = vmatpush.msra.mxu0 0.0
      %5136 = vmatpush.msra.mxu0 0.0
      %5137 = vmatpush.msra.mxu0 0.0
      %5138 = vmatpush.msra.mxu0 0.0
      %5139 = vmatpush.msra.mxu0 0.0
      %5140 = vmatpush.msra.mxu0 0.0
      %5141 = vmatpush.msra.mxu0 0.0
      %5142 = vmatpush.msra.mxu0 0.0
      %5143 = vmatpush.msra.mxu0 0.0
      %5144 = vmatpush.msra.mxu0 0.0
      %5145 = vmatpush.msra.mxu0 0.0
      %5146 = vmatpush.msra.mxu0 0.0
      %5147 = vmatpush.msra.mxu0 0.0
      %5148 = vmatpush.msra.mxu0 0.0
      %5149 = vmatpush.msra.mxu0 %v5134
      %5150 = vmatpush.msra.mxu0 %v5133
      %5151 = vmatmul.f32.gmra.mxu0 %v5086
      %v5152 = vpop.f32.mrf.mxu0
      %v5153 = vadd.f32 0.0, %v5152
      %5154 = vdwg.mxu0
      %5155 = vmatpush.msra.mxu0 0.0
      %5156 = vmatpush.msra.mxu0 0.0
      %5157 = vmatpush.msra.mxu0 0.0
      %5158 = vmatpush.msra.mxu0 0.0
      %5159 = vmatpush.msra.mxu0 0.0
      %5160 = vmatpush.msra.mxu0 0.0
      %5161 = vmatpush.msra.mxu0 0.0
      %5162 = vmatpush.msra.mxu0 0.0
      %5163 = vmatpush.msra.mxu0 0.0
      %5164 = vmatpush.msra.mxu0 0.0
      %5165 = vmatpush.msra.mxu0 0.0
      %5166 = vmatpush.msra.mxu0 0.0
      %5167 = vmatpush.msra.mxu0 0.0
      %5168 = vmatpush.msra.mxu0 0.0
      %5169 = vmatpush.msra.mxu0 %v5134
      %5170 = vmatpush.msra.mxu0 %v5133
      %5171 = vmatmul.f32.gmra.mxu0 %v5109
      %v5172 = vpop.f32.mrf.mxu0
      %v5173 = vadd.f32 0.0, %v5172
      %5174 = vdwg.mxu0
      %v5175 = vmax.f32 %v5153, %v5173
      %s5176 = scalar_lea.vmem %s318, 8
      %5177 = vst.msk [vmem:[%s5176] sm:$0xff] %vm674, %v5175
      %v5178 = vmax.f32 %v4999, %v5001
      %v5179 = vmax.f32 %v5000, %v5002
      %5180 = vmatpush.msra.mxu0 0.0
      %5181 = vmatpush.msra.mxu0 0.0
      %5182 = vmatpush.msra.mxu0 0.0
      %5183 = vmatpush.msra.mxu0 0.0
      %5184 = vmatpush.msra.mxu0 0.0
      %5185 = vmatpush.msra.mxu0 0.0
      %5186 = vmatpush.msra.mxu0 0.0
      %5187 = vmatpush.msra.mxu0 0.0
      %5188 = vmatpush.msra.mxu0 0.0
      %5189 = vmatpush.msra.mxu0 0.0
      %5190 = vmatpush.msra.mxu0 0.0
      %5191 = vmatpush.msra.mxu0 0.0
      %5192 = vmatpush.msra.mxu0 0.0
      %5193 = vmatpush.msra.mxu0 0.0
      %5194 = vmatpush.msra.mxu0 %v5179
      %5195 = vmatpush.msra.mxu0 %v5178
      %5196 = vmatmul.f32.gmra.mxu0 %v5086
      %v5197 = vpop.f32.mrf.mxu0
      %v5198 = vadd.f32 0.0, %v5197
      %5199 = vdwg.mxu0
      %5200 = vmatpush.msra.mxu0 0.0
      %5201 = vmatpush.msra.mxu0 0.0
      %5202 = vmatpush.msra.mxu0 0.0
      %5203 = vmatpush.msra.mxu0 0.0
      %5204 = vmatpush.msra.mxu0 0.0
      %5205 = vmatpush.msra.mxu0 0.0
      %5206 = vmatpush.msra.mxu0 0.0
      %5207 = vmatpush.msra.mxu0 0.0
      %5208 = vmatpush.msra.mxu0 0.0
      %5209 = vmatpush.msra.mxu0 0.0
      %5210 = vmatpush.msra.mxu0 0.0
      %5211 = vmatpush.msra.mxu0 0.0
      %5212 = vmatpush.msra.mxu0 0.0
      %5213 = vmatpush.msra.mxu0 0.0
      %5214 = vmatpush.msra.mxu0 %v5179
      %5215 = vmatpush.msra.mxu0 %v5178
      %5216 = vmatmul.f32.gmra.mxu0 %v5109
      %v5217 = vpop.f32.mrf.mxu0
      %v5218 = vadd.f32 0.0, %v5217
      %5219 = vdwg.mxu0
      %v5220 = vmax.f32 %v5198, %v5218
      %s5221 = scalar_lea.vmem %s318, 16
      %5222 = vst.msk [vmem:[%s5221] sm:$0xff] %vm674, %v5220
      %v5223 = vmax.f32 %v5003, %v5005
      %v5224 = vmax.f32 %v5004, %v5006
      %5225 = vmatpush.msra.mxu0 0.0
      %5226 = vmatpush.msra.mxu0 0.0
      %5227 = vmatpush.msra.mxu0 0.0
      %5228 = vmatpush.msra.mxu0 0.0
      %5229 = vmatpush.msra.mxu0 0.0
      %5230 = vmatpush.msra.mxu0 0.0
      %5231 = vmatpush.msra.mxu0 0.0
      %5232 = vmatpush.msra.mxu0 0.0
      %5233 = vmatpush.msra.mxu0 0.0
      %5234 = vmatpush.msra.mxu0 0.0
      %5235 = vmatpush.msra.mxu0 0.0
      %5236 = vmatpush.msra.mxu0 0.0
      %5237 = vmatpush.msra.mxu0 0.0
      %5238 = vmatpush.msra.mxu0 0.0
      %5239 = vmatpush.msra.mxu0 %v5224
      %5240 = vmatpush.msra.mxu0 %v5223
      %5241 = vmatmul.f32.gmra.mxu0 %v5086
      %v5242 = vpop.f32.mrf.mxu0
      %v5243 = vadd.f32 0.0, %v5242
      %5244 = vdwg.mxu0
      %5245 = vmatpush.msra.mxu0 0.0
      %5246 = vmatpush.msra.mxu0 0.0
      %5247 = vmatpush.msra.mxu0 0.0
      %5248 = vmatpush.msra.mxu0 0.0
      %5249 = vmatpush.msra.mxu0 0.0
      %5250 = vmatpush.msra.mxu0 0.0
      %5251 = vmatpush.msra.mxu0 0.0
      %5252 = vmatpush.msra.mxu0 0.0
      %5253 = vmatpush.msra.mxu0 0.0
      %5254 = vmatpush.msra.mxu0 0.0
      %5255 = vmatpush.msra.mxu0 0.0
      %5256 = vmatpush.msra.mxu0 0.0
      %5257 = vmatpush.msra.mxu0 0.0
      %5258 = vmatpush.msra.mxu0 0.0
      %5259 = vmatpush.msra.mxu0 %v5224
      %5260 = vmatpush.msra.mxu0 %v5223
      %5261 = vmatmul.f32.gmra.mxu0 %v5109
      %v5262 = vpop.f32.mrf.mxu0
      %v5263 = vadd.f32 0.0, %v5262
      %5264 = vdwg.mxu0
      %v5265 = vmax.f32 %v5243, %v5263
      %s5266 = scalar_lea.vmem %s318, 24
      %5267 = vst.msk [vmem:[%s5266] sm:$0xff] %vm674, %v5265
      %v5268 = vmax.f32 %v5007, %v5009
      %v5269 = vmax.f32 %v5008, %v5010
      %5270 = vmatpush.msra.mxu0 0.0
      %5271 = vmatpush.msra.mxu0 0.0
      %5272 = vmatpush.msra.mxu0 0.0
      %5273 = vmatpush.msra.mxu0 0.0
      %5274 = vmatpush.msra.mxu0 0.0
      %5275 = vmatpush.msra.mxu0 0.0
      %5276 = vmatpush.msra.mxu0 0.0
      %5277 = vmatpush.msra.mxu0 0.0
      %5278 = vmatpush.msra.mxu0 0.0
      %5279 = vmatpush.msra.mxu0 0.0
      %5280 = vmatpush.msra.mxu0 0.0
      %5281 = vmatpush.msra.mxu0 0.0
      %5282 = vmatpush.msra.mxu0 0.0
      %5283 = vmatpush.msra.mxu0 0.0
      %5284 = vmatpush.msra.mxu0 %v5269
      %5285 = vmatpush.msra.mxu0 %v5268
      %5286 = vmatmul.f32.gmra.mxu0 %v5086
      %v5287 = vpop.f32.mrf.mxu0
      %v5288 = vadd.f32 0.0, %v5287
      %5289 = vdwg.mxu0
      %5290 = vmatpush.msra.mxu0 0.0
      %5291 = vmatpush.msra.mxu0 0.0
      %5292 = vmatpush.msra.mxu0 0.0
      %5293 = vmatpush.msra.mxu0 0.0
      %5294 = vmatpush.msra.mxu0 0.0
      %5295 = vmatpush.msra.mxu0 0.0
      %5296 = vmatpush.msra.mxu0 0.0
      %5297 = vmatpush.msra.mxu0 0.0
      %5298 = vmatpush.msra.mxu0 0.0
      %5299 = vmatpush.msra.mxu0 0.0
      %5300 = vmatpush.msra.mxu0 0.0
      %5301 = vmatpush.msra.mxu0 0.0
      %5302 = vmatpush.msra.mxu0 0.0
      %5303 = vmatpush.msra.mxu0 0.0
      %5304 = vmatpush.msra.mxu0 %v5269
      %5305 = vmatpush.msra.mxu0 %v5268
      %5306 = vmatmul.f32.gmra.mxu0 %v5109
      %v5307 = vpop.f32.mrf.mxu0
      %v5308 = vadd.f32 0.0, %v5307
      %5309 = vdwg.mxu0
      %v5310 = vmax.f32 %v5288, %v5308
      %s5311 = scalar_lea.vmem %s318, 32
      %5312 = vst.msk [vmem:[%s5311] sm:$0xff] %vm674, %v5310
      %v5313 = vmax.f32 %v5011, %v5013
      %v5314 = vmax.f32 %v5012, %v5014
      %5315 = vmatpush.msra.mxu0 0.0
      %5316 = vmatpush.msra.mxu0 0.0
      %5317 = vmatpush.msra.mxu0 0.0
      %5318 = vmatpush.msra.mxu0 0.0
      %5319 = vmatpush.msra.mxu0 0.0
      %5320 = vmatpush.msra.mxu0 0.0
      %5321 = vmatpush.msra.mxu0 0.0
      %5322 = vmatpush.msra.mxu0 0.0
      %5323 = vmatpush.msra.mxu0 0.0
      %5324 = vmatpush.msra.mxu0 0.0
      %5325 = vmatpush.msra.mxu0 0.0
      %5326 = vmatpush.msra.mxu0 0.0
      %5327 = vmatpush.msra.mxu0 0.0
      %5328 = vmatpush.msra.mxu0 0.0
      %5329 = vmatpush.msra.mxu0 %v5314
      %5330 = vmatpush.msra.mxu0 %v5313
      %5331 = vmatmul.f32.gmra.mxu0 %v5086
      %v5332 = vpop.f32.mrf.mxu0
      %v5333 = vadd.f32 0.0, %v5332
      %5334 = vdwg.mxu0
      %5335 = vmatpush.msra.mxu0 0.0
      %5336 = vmatpush.msra.mxu0 0.0
      %5337 = vmatpush.msra.mxu0 0.0
      %5338 = vmatpush.msra.mxu0 0.0
      %5339 = vmatpush.msra.mxu0 0.0
      %5340 = vmatpush.msra.mxu0 0.0
      %5341 = vmatpush.msra.mxu0 0.0
      %5342 = vmatpush.msra.mxu0 0.0
      %5343 = vmatpush.msra.mxu0 0.0
      %5344 = vmatpush.msra.mxu0 0.0
      %5345 = vmatpush.msra.mxu0 0.0
      %5346 = vmatpush.msra.mxu0 0.0
      %5347 = vmatpush.msra.mxu0 0.0
      %5348 = vmatpush.msra.mxu0 0.0
      %5349 = vmatpush.msra.mxu0 %v5314
      %5350 = vmatpush.msra.mxu0 %v5313
      %5351 = vmatmul.f32.gmra.mxu0 %v5109
      %v5352 = vpop.f32.mrf.mxu0
      %v5353 = vadd.f32 0.0, %v5352
      %5354 = vdwg.mxu0
      %v5355 = vmax.f32 %v5333, %v5353
      %s5356 = scalar_lea.vmem %s318, 40
      %5357 = vst.msk [vmem:[%s5356] sm:$0xff] %vm674, %v5355
      %v5358 = vmax.f32 %v5015, %v5017
      %v5359 = vmax.f32 %v5016, %v5018
      %5360 = vmatpush.msra.mxu0 0.0
      %5361 = vmatpush.msra.mxu0 0.0
      %5362 = vmatpush.msra.mxu0 0.0
      %5363 = vmatpush.msra.mxu0 0.0
      %5364 = vmatpush.msra.mxu0 0.0
      %5365 = vmatpush.msra.mxu0 0.0
      %5366 = vmatpush.msra.mxu0 0.0
      %5367 = vmatpush.msra.mxu0 0.0
      %5368 = vmatpush.msra.mxu0 0.0
      %5369 = vmatpush.msra.mxu0 0.0
      %5370 = vmatpush.msra.mxu0 0.0
      %5371 = vmatpush.msra.mxu0 0.0
      %5372 = vmatpush.msra.mxu0 0.0
      %5373 = vmatpush.msra.mxu0 0.0
      %5374 = vmatpush.msra.mxu0 %v5359
      %5375 = vmatpush.msra.mxu0 %v5358
      %5376 = vmatmul.f32.gmra.mxu0 %v5086
      %v5377 = vpop.f32.mrf.mxu0
      %v5378 = vadd.f32 0.0, %v5377
      %5379 = vdwg.mxu0
      %5380 = vmatpush.msra.mxu0 0.0
      %5381 = vmatpush.msra.mxu0 0.0
      %5382 = vmatpush.msra.mxu0 0.0
      %5383 = vmatpush.msra.mxu0 0.0
      %5384 = vmatpush.msra.mxu0 0.0
      %5385 = vmatpush.msra.mxu0 0.0
      %5386 = vmatpush.msra.mxu0 0.0
      %5387 = vmatpush.msra.mxu0 0.0
      %5388 = vmatpush.msra.mxu0 0.0
      %5389 = vmatpush.msra.mxu0 0.0
      %5390 = vmatpush.msra.mxu0 0.0
      %5391 = vmatpush.msra.mxu0 0.0
      %5392 = vmatpush.msra.mxu0 0.0
      %5393 = vmatpush.msra.mxu0 0.0
      %5394 = vmatpush.msra.mxu0 %v5359
      %5395 = vmatpush.msra.mxu0 %v5358
      %5396 = vmatmul.f32.gmra.mxu0 %v5109
      %v5397 = vpop.f32.mrf.mxu0
      %v5398 = vadd.f32 0.0, %v5397
      %5399 = vdwg.mxu0
      %v5400 = vmax.f32 %v5378, %v5398
      %s5401 = scalar_lea.vmem %s318, 48
      %5402 = vst.msk [vmem:[%s5401] sm:$0xff] %vm674, %v5400
      %v5403 = vmax.f32 %v5019, %v5021
      %v5404 = vmax.f32 %v5020, %v5022
      %5405 = vmatpush.msra.mxu0 0.0
      %5406 = vmatpush.msra.mxu0 0.0
      %5407 = vmatpush.msra.mxu0 0.0
      %5408 = vmatpush.msra.mxu0 0.0
      %5409 = vmatpush.msra.mxu0 0.0
      %5410 = vmatpush.msra.mxu0 0.0
      %5411 = vmatpush.msra.mxu0 0.0
      %5412 = vmatpush.msra.mxu0 0.0
      %5413 = vmatpush.msra.mxu0 0.0
      %5414 = vmatpush.msra.mxu0 0.0
      %5415 = vmatpush.msra.mxu0 0.0
      %5416 = vmatpush.msra.mxu0 0.0
      %5417 = vmatpush.msra.mxu0 0.0
      %5418 = vmatpush.msra.mxu0 0.0
      %5419 = vmatpush.msra.mxu0 %v5404
      %5420 = vmatpush.msra.mxu0 %v5403
      %5421 = vmatmul.f32.gmra.mxu0 %v5086
      %v5422 = vpop.f32.mrf.mxu0
      %v5423 = vadd.f32 0.0, %v5422
      %5424 = vdwg.mxu0
      %5425 = vmatpush.msra.mxu0 0.0
      %5426 = vmatpush.msra.mxu0 0.0
      %5427 = vmatpush.msra.mxu0 0.0
      %5428 = vmatpush.msra.mxu0 0.0
      %5429 = vmatpush.msra.mxu0 0.0
      %5430 = vmatpush.msra.mxu0 0.0
      %5431 = vmatpush.msra.mxu0 0.0
      %5432 = vmatpush.msra.mxu0 0.0
      %5433 = vmatpush.msra.mxu0 0.0
      %5434 = vmatpush.msra.mxu0 0.0
      %5435 = vmatpush.msra.mxu0 0.0
      %5436 = vmatpush.msra.mxu0 0.0
      %5437 = vmatpush.msra.mxu0 0.0
      %5438 = vmatpush.msra.mxu0 0.0
      %5439 = vmatpush.msra.mxu0 %v5404
      %5440 = vmatpush.msra.mxu0 %v5403
      %5441 = vmatmul.f32.gmra.mxu0 %v5109
      %v5442 = vpop.f32.mrf.mxu0
      %v5443 = vadd.f32 0.0, %v5442
      %5444 = vdwg.mxu0
      %v5445 = vmax.f32 %v5423, %v5443
      %s5446 = scalar_lea.vmem %s318, 56
      %5447 = vst.msk [vmem:[%s5446] sm:$0xff] %vm674, %v5445
      %p5448 = scmp.lt.s32.totalorder %s20, 1
      %s5449 = scalar_select %p5448, %s20, 1
      %s5450 = smul.addr %s5449, 32
      %s5451 = smul.addr %s5450, 8
      %s5452 = scalar_lea.vmem %s7, %s5451
      %p5453 = scmp.lt.s32.totalorder %s20, 1
      %s5454 = scalar_select %p5453, %s20, 1
      %s5455 = smul.addr %s5454, 8
      %s5456 = smul.addr %s5455, 8
      %s5457 = scalar_lea.vmem %s8, %s5456
      // Predicated region
      $region49: #{encoder_forward.3} parent=47 // pred_check
        %p5458 = pneg %p190
      $region50: #{encoder_forward.3} parent=47 // pred_check_branch
        %5460 = sbr.rel (%p5458) target = $region52
      $region51: #{encoder_forward.3} parent=47 // pred_region
        _
      $region52: #{encoder_forward.3} parent=47 // pred_fallthru
        _
      // Predicated region
      $region53: #{encoder_forward.3} parent=47 // pred_check
        %p5461 = pneg %p216
      $region54: #{encoder_forward.3} parent=47 // pred_check_branch
        %5463 = sbr.rel (%p5461) target = $region56
      $region55: #{encoder_forward.3} parent=47 // pred_region
        _
      $region56: #{encoder_forward.3} parent=47 // pred_fallthru
        _
    $region48: #{encoder_forward.3} parent=5 // pred_fallthru
      _
    %p5464 = scmp.le.s32.totalorder 2, %s15
    // Predicated region
    $region57: #{encoder_forward.3} parent=5 // pred_check
      %p5465 = pneg %p5464
    $region58: #{encoder_forward.3} parent=5 // pred_check_branch
      %5467 = sbr.rel (%p5465) target = $region60
    $region59: #{encoder_forward.3} parent=5 // pred_region
      %s5468 = ssub.s32 %s15, 2
      // Predicated region
      $region61: #{encoder_forward.3} parent=59 // pred_check
        %p5469 = pneg %p196
      $region62: #{encoder_forward.3} parent=59 // pred_check_branch
        %5471 = sbr.rel (%p5469) target = $region64
      $region63: #{encoder_forward.3} parent=59 // pred_region
        %p5472 = scmp.lt.s32.totalorder %s21, 1
        %s5473 = scalar_select %p5472, %s21, 1
        %s5474 = smul.addr %s5473, 32
        %s5475 = smul.addr %s5474, 8
        %s5476 = scalar_lea.vmem %s7, %s5475
      $region64: #{encoder_forward.3} parent=59 // pred_fallthru
        _
      // Predicated region
      $region65: #{encoder_forward.3} parent=59 // pred_check
        %p5477 = pneg %p222
      $region66: #{encoder_forward.3} parent=59 // pred_check_branch
        %5479 = sbr.rel (%p5477) target = $region68
      $region67: #{encoder_forward.3} parent=59 // pred_region
        %p5480 = scmp.lt.s32.totalorder %s21, 1
        %s5481 = scalar_select %p5480, %s21, 1
        %s5482 = smul.addr %s5481, 8
        %s5483 = smul.addr %s5482, 8
        %s5484 = scalar_lea.vmem %s8, %s5483
      $region68: #{encoder_forward.3} parent=59 // pred_fallthru
        _
    $region60: #{encoder_forward.3} parent=5 // pred_fallthru
      _
  $region6: #{encoder_forward.3} parent=0 // loop_footer
    %s19 = sadd.s32 1, %s15
  $region7: #{encoder_forward.3} parent=0 // loop_footer_branch
    %14 = sbr.rel target = $region3
  $region8: #{encoder_forward.3} parent=0 // loop_exit
    _

</llo_original>
